<compile_context>
chip_gen: v6e
topology: v6e:2x2x1
jax: 0.10.0
libtpu: 0.0.40
codegen_flags: <defaults>
</compile_context>

<pallas_src>
import jax
import jax.numpy as jnp
from jax.experimental import pallas as pl
from jax.experimental.pallas import tpu as pltpu

EPS = 1e-5      # nn.BatchNorm2d default eps
LANES = 128     # TPU lane width


# ----------------------------- Pallas kernel ------------------------------ #
def basic_block_kernel(xpad_ref, w1_ref, w2_ref, g1_ref, b1_ref, g2_ref, b2_ref,
                       out_ref, y1pad_ref):
    """Fully fused BasicBlock forward.

    xpad_ref  : (N, H+2, W+2, Cp) f32  zero-padded NHWC input, channels padded to Cp
    w1_ref    : (9, Cp, Cp)       f32  conv1 weight, tap-major: w[dy*3+dx] = (Cin_p, Cout_p)
    w2_ref    : (9, Cp, Cp)       f32  conv2 weight, same layout
    g*/b*_ref : (1, Cp)           f32  BN affine params (zero-padded)
    out_ref   : (M, Cp)           f32  M = N*H*W, lane-dense output
    y1pad_ref : (N, H+2, W+2, Cp) f32  VMEM scratch holding stage-1 output with zero halo
    """
    n, hp, wp, cp = xpad_ref.shape
    h, w = hp - 2, wp - 2
    m = n * h * w

    def conv3x3(src_ref, w_ref):
        # 3x3 / stride 1 / pad 1 conv as 9 accumulated shifted matmuls on the MXU.
        acc = None
        for idx in range(9):
            dy, dx = divmod(idx, 3)
            xs = src_ref[:, dy:dy + h, dx:dx + w, :].reshape(m, cp)
            part = jnp.dot(xs, w_ref[idx], preferred_element_type=jnp.float32)
            acc = part if acc is None else acc + part
        return acc

    def bn_train(y, gamma, beta):
        # BatchNorm2d (training): per-channel stats over axis 0 of (M, Cp), biased var.
        # Single pass: sum and sum-of-squares, then var = E[y^2] - mean^2.
        inv_m = 1.0 / m
        mean = jnp.sum(y, axis=0, keepdims=True) * inv_m
        var = jnp.sum(y * y, axis=0, keepdims=True) * inv_m - mean * mean
        var = jnp.maximum(var, 0.0)   # guard cancellation (padded channels are exactly 0)
        return (y - mean) * jax.lax.rsqrt(var + EPS) * gamma + beta

    # ---- Stage 1: conv1 + bn1 + relu; park result (zero halo) in VMEM scratch ----
    y1 = conv3x3(xpad_ref, w1_ref)
    y1 = jnp.maximum(bn_train(y1, g1_ref[...], b1_ref[...]), 0.0)
    y1pad_ref[...] = jnp.zeros_like(y1pad_ref)
    y1pad_ref[:, 1:1 + h, 1:1 + w, :] = y1.reshape(n, h, w, cp)

    # ---- Stage 2: conv2 + bn2 + residual + relu ----
    y2 = bn_train(conv3x3(y1pad_ref, w2_ref), g2_ref[...], b2_ref[...])
    res = xpad_ref[:, 1:1 + h, 1:1 + w, :].reshape(m, cp)
    out_ref[...] = jnp.maximum(y2 + res, 0.0)


# ------------------------------ JAX glue ---------------------------------- #
def _conv_w_to_taps(w_oihw, cp):
    """PyTorch conv weight (Cout, Cin, 3, 3) -> (9, Cp, Cp), zero-padded channels."""
    cout, cin, kh, kw = w_oihw.shape
    wm = jnp.transpose(w_oihw.astype(jnp.float32), (2, 3, 1, 0))      # (3, 3, Cin, Cout)
    wm = jnp.pad(wm, ((0, 0), (0, 0), (0, cp - cin), (0, cp - cout)))
    return wm.reshape(kh * kw, cp, cp)


def _pad_vec(v, cp):
    return jnp.pad(v.astype(jnp.float32), (0, cp - v.shape[0])).reshape(1, cp)


def basic_block(x_nchw, w1, g1, b1, w2, g2, b2):
    """BasicBlock forward (stride=1, downsample=None). Public API is NCHW (PyTorch)."""
    n, cin, h, w = x_nchw.shape
    cout = w1.shape[0]
    if cin != cout:
        raise NotImplementedError("stride=1 / downsample=None path requires Cin == Cout")

    cp = ((max(cin, cout) + LANES - 1) // LANES) * LANES   # lane-dense channel padding
    m = n * h * w

    # NCHW -> NHWC, pad spatial halo (1) and channels (to Cp) with zeros.
    x_nhwc = jnp.transpose(x_nchw.astype(jnp.float32), (0, 2, 3, 1))
    xpad = jnp.pad(x_nhwc, ((0, 0), (1, 1), (1, 1), (0, cp - cin)))

    vmem = pl.BlockSpec(memory_space=pltpu.MemorySpace.VMEM)
    out_flat = pl.pallas_call(
        basic_block_kernel,
        out_shape=jax.ShapeDtypeStruct((m, cp), jnp.float32),
        in_specs=[vmem] * 7,
        out_specs=vmem,
        scratch_shapes=[pltpu.VMEM((n, h + 2, w + 2, cp), jnp.float32)],
        compiler_params=pltpu.CompilerParams(vmem_limit_bytes=32 * 1024 * 1024),
    )(xpad,
      _conv_w_to_taps(w1, cp), _conv_w_to_taps(w2, cp),
      _pad_vec(g1, cp), _pad_vec(b1, cp), _pad_vec(g2, cp), _pad_vec(b2, cp))

    out = out_flat[:, :cout].reshape(n, h, w, cout)
    return jnp.transpose(out, (0, 3, 1, 2))


# --------------------------- pure-JAX reference ---------------------------- #
def _bn_train_ref(y_nchw, gamma, beta):
    mu = y_nchw.mean(axis=(0, 2, 3), keepdims=True)
    var = ((y_nchw - mu) ** 2).mean(axis=(0, 2, 3), keepdims=True)
    return ((y_nchw - mu) / jnp.sqrt(var + EPS) * gamma.reshape(1, -1, 1, 1)
            + beta.reshape(1, -1, 1, 1))


def basic_block_ref(x, w1, g1, b1, w2, g2, b2):
    conv = lambda inp, w: jax.lax.conv_general_dilated(
        inp, w, window_strides=(1, 1), padding=((1, 1), (1, 1)),
        dimension_numbers=("NCHW", "OIHW", "NCHW"),
        precision=jax.lax.Precision.HIGHEST)
    out = jax.nn.relu(_bn_train_ref(conv(x, w1), g1, b1))
    out = _bn_train_ref(conv(out, w2), g2, b2)
    return jax.nn.relu(out + x)


# --------------------------------- main ------------------------------------ #
if __name__ == "__main__":
    key = jax.random.PRNGKey(0)
    N, C, H, W = 2, 4, 16, 16   # inplanes == planes == 4, stride=1, downsample=None
    ks = jax.random.split(key, 7)

    x = jax.random.normal(ks[0], (N, C, H, W), jnp.float32)
    scale = 1.0 / jnp.sqrt(9.0 * C)
    w1 = jax.random.normal(ks[1], (C, C, 3, 3), jnp.float32) * scale
    w2 = jax.random.normal(ks[2], (C, C, 3, 3), jnp.float32) * scale
    g1 = 1.0 + 0.1 * jax.random.normal(ks[3], (C,), jnp.float32)
    b1 = 0.1 * jax.random.normal(ks[4], (C,), jnp.float32)
    g2 = 1.0 + 0.1 * jax.random.normal(ks[5], (C,), jnp.float32)
    b2 = 0.1 * jax.random.normal(ks[6], (C,), jnp.float32)

    fwd = jax.jit(basic_block)
    out = jax.block_until_ready(fwd(x, w1, g1, b1, w2, g2, b2))

    ref = basic_block_ref(x, w1, g1, b1, w2, g2, b2)
    err = float(jnp.max(jnp.abs(out - ref)))
    assert out.shape == (N, C, H, W)
    assert err < 1e-3, f"max abs err vs reference: {err}"

    print("KERNEL_OK")
</pallas_src>

<mosaic_0001>
module attributes {stable_mosaic.version = 11 : i64} {
  func.func @basic_block_kernel(%arg0: memref<2x18x18x128xf32, #tpu.memory_space<vmem>>, %arg1: memref<9x128x128xf32, #tpu.memory_space<vmem>>, %arg2: memref<9x128x128xf32, #tpu.memory_space<vmem>>, %arg3: memref<1x128xf32, #tpu.memory_space<vmem>>, %arg4: memref<1x128xf32, #tpu.memory_space<vmem>>, %arg5: memref<1x128xf32, #tpu.memory_space<vmem>>, %arg6: memref<1x128xf32, #tpu.memory_space<vmem>>, %arg7: memref<512x128xf32, #tpu.memory_space<vmem>>, %arg8: memref<2x18x18x128xf32, #tpu.memory_space<vmem>>) attributes {dimension_semantics = [], scalar_prefetch = 0 : i64, scratch_operands = 1 : i64, tpu.core_type = #tpu.core_type<tc>} {
    %c0 = arith.constant 0 : index
    %c0_0 = arith.constant 0 : index
    %c0_1 = arith.constant 0 : index
    %c0_2 = arith.constant 0 : index
    %0 = vector.load %arg0[%c0, %c0_0, %c0_1, %c0_2] : memref<2x18x18x128xf32, #tpu.memory_space<vmem>>, vector<2x16x16x128xf32>
    %1 = vector.shape_cast %0 : vector<2x16x16x128xf32> to vector<512x128xf32>
    %c0_3 = arith.constant 0 : index
    %c0_4 = arith.constant 0 : index
    %c0_5 = arith.constant 0 : index
    %2 = vector.load %arg1[%c0_3, %c0_4, %c0_5] : memref<9x128x128xf32, #tpu.memory_space<vmem>>, vector<1x128x128xf32>
    %3 = vector.shape_cast %2 : vector<1x128x128xf32> to vector<128x128xf32>
    %cst = arith.constant dense<0.000000e+00> : vector<512x128xf32>
    %4 = tpu.matmul %1, %3, %cst {dimension_numbers = #tpu.dot_dimension_numbers<[1], [0], [0], [1], [0, 0, 1, 1], [], []>} : vector<512x128xf32>, vector<128x128xf32>, vector<512x128xf32> -> vector<512x128xf32>
    %c0_6 = arith.constant 0 : index
    %c0_7 = arith.constant 0 : index
    %c1 = arith.constant 1 : index
    %c0_8 = arith.constant 0 : index
    %5 = vector.load %arg0[%c0_6, %c0_7, %c1, %c0_8] : memref<2x18x18x128xf32, #tpu.memory_space<vmem>>, vector<2x16x16x128xf32>
    %6 = vector.shape_cast %5 : vector<2x16x16x128xf32> to vector<512x128xf32>
    %c1_9 = arith.constant 1 : index
    %c0_10 = arith.constant 0 : index
    %c0_11 = arith.constant 0 : index
    %7 = vector.load %arg1[%c1_9, %c0_10, %c0_11] : memref<9x128x128xf32, #tpu.memory_space<vmem>>, vector<1x128x128xf32>
    %8 = vector.shape_cast %7 : vector<1x128x128xf32> to vector<128x128xf32>
    %cst_12 = arith.constant dense<0.000000e+00> : vector<512x128xf32>
    %9 = tpu.matmul %6, %8, %cst_12 {dimension_numbers = #tpu.dot_dimension_numbers<[1], [0], [0], [1], [0, 0, 1, 1], [], []>} : vector<512x128xf32>, vector<128x128xf32>, vector<512x128xf32> -> vector<512x128xf32>
    %10 = arith.addf %4, %9 : vector<512x128xf32>
    %c0_13 = arith.constant 0 : index
    %c0_14 = arith.constant 0 : index
    %c2 = arith.constant 2 : index
    %c0_15 = arith.constant 0 : index
    %11 = vector.load %arg0[%c0_13, %c0_14, %c2, %c0_15] : memref<2x18x18x128xf32, #tpu.memory_space<vmem>>, vector<2x16x16x128xf32>
    %12 = vector.shape_cast %11 : vector<2x16x16x128xf32> to vector<512x128xf32>
    %c2_16 = arith.constant 2 : index
    %c0_17 = arith.constant 0 : index
    %c0_18 = arith.constant 0 : index
    %13 = vector.load %arg1[%c2_16, %c0_17, %c0_18] : memref<9x128x128xf32, #tpu.memory_space<vmem>>, vector<1x128x128xf32>
    %14 = vector.shape_cast %13 : vector<1x128x128xf32> to vector<128x128xf32>
    %cst_19 = arith.constant dense<0.000000e+00> : vector<512x128xf32>
    %15 = tpu.matmul %12, %14, %cst_19 {dimension_numbers = #tpu.dot_dimension_numbers<[1], [0], [0], [1], [0, 0, 1, 1], [], []>} : vector<512x128xf32>, vector<128x128xf32>, vector<512x128xf32> -> vector<512x128xf32>
    %16 = arith.addf %10, %15 : vector<512x128xf32>
    %c0_20 = arith.constant 0 : index
    %c1_21 = arith.constant 1 : index
    %c0_22 = arith.constant 0 : index
    %c0_23 = arith.constant 0 : index
    %17 = vector.load %arg0[%c0_20, %c1_21, %c0_22, %c0_23] : memref<2x18x18x128xf32, #tpu.memory_space<vmem>>, vector<2x16x16x128xf32>
    %18 = vector.shape_cast %17 : vector<2x16x16x128xf32> to vector<512x128xf32>
    %c3 = arith.constant 3 : index
    %c0_24 = arith.constant 0 : index
    %c0_25 = arith.constant 0 : index
    %19 = vector.load %arg1[%c3, %c0_24, %c0_25] : memref<9x128x128xf32, #tpu.memory_space<vmem>>, vector<1x128x128xf32>
    %20 = vector.shape_cast %19 : vector<1x128x128xf32> to vector<128x128xf32>
    %cst_26 = arith.constant dense<0.000000e+00> : vector<512x128xf32>
    %21 = tpu.matmul %18, %20, %cst_26 {dimension_numbers = #tpu.dot_dimension_numbers<[1], [0], [0], [1], [0, 0, 1, 1], [], []>} : vector<512x128xf32>, vector<128x128xf32>, vector<512x128xf32> -> vector<512x128xf32>
    %22 = arith.addf %16, %21 : vector<512x128xf32>
    %c0_27 = arith.constant 0 : index
    %c1_28 = arith.constant 1 : index
    %c1_29 = arith.constant 1 : index
    %c0_30 = arith.constant 0 : index
    %23 = vector.load %arg0[%c0_27, %c1_28, %c1_29, %c0_30] : memref<2x18x18x128xf32, #tpu.memory_space<vmem>>, vector<2x16x16x128xf32>
    %24 = vector.shape_cast %23 : vector<2x16x16x128xf32> to vector<512x128xf32>
    %c4 = arith.constant 4 : index
    %c0_31 = arith.constant 0 : index
    %c0_32 = arith.constant 0 : index
    %25 = vector.load %arg1[%c4, %c0_31, %c0_32] : memref<9x128x128xf32, #tpu.memory_space<vmem>>, vector<1x128x128xf32>
    %26 = vector.shape_cast %25 : vector<1x128x128xf32> to vector<128x128xf32>
    %cst_33 = arith.constant dense<0.000000e+00> : vector<512x128xf32>
    %27 = tpu.matmul %24, %26, %cst_33 {dimension_numbers = #tpu.dot_dimension_numbers<[1], [0], [0], [1], [0, 0, 1, 1], [], []>} : vector<512x128xf32>, vector<128x128xf32>, vector<512x128xf32> -> vector<512x128xf32>
    %28 = arith.addf %22, %27 : vector<512x128xf32>
    %c0_34 = arith.constant 0 : index
    %c1_35 = arith.constant 1 : index
    %c2_36 = arith.constant 2 : index
    %c0_37 = arith.constant 0 : index
    %29 = vector.load %arg0[%c0_34, %c1_35, %c2_36, %c0_37] : memref<2x18x18x128xf32, #tpu.memory_space<vmem>>, vector<2x16x16x128xf32>
    %30 = vector.shape_cast %29 : vector<2x16x16x128xf32> to vector<512x128xf32>
    %c5 = arith.constant 5 : index
    %c0_38 = arith.constant 0 : index
    %c0_39 = arith.constant 0 : index
    %31 = vector.load %arg1[%c5, %c0_38, %c0_39] : memref<9x128x128xf32, #tpu.memory_space<vmem>>, vector<1x128x128xf32>
    %32 = vector.shape_cast %31 : vector<1x128x128xf32> to vector<128x128xf32>
    %cst_40 = arith.constant dense<0.000000e+00> : vector<512x128xf32>
    %33 = tpu.matmul %30, %32, %cst_40 {dimension_numbers = #tpu.dot_dimension_numbers<[1], [0], [0], [1], [0, 0, 1, 1], [], []>} : vector<512x128xf32>, vector<128x128xf32>, vector<512x128xf32> -> vector<512x128xf32>
    %34 = arith.addf %28, %33 : vector<512x128xf32>
    %c0_41 = arith.constant 0 : index
    %c2_42 = arith.constant 2 : index
    %c0_43 = arith.constant 0 : index
    %c0_44 = arith.constant 0 : index
    %35 = vector.load %arg0[%c0_41, %c2_42, %c0_43, %c0_44] : memref<2x18x18x128xf32, #tpu.memory_space<vmem>>, vector<2x16x16x128xf32>
    %36 = vector.shape_cast %35 : vector<2x16x16x128xf32> to vector<512x128xf32>
    %c6 = arith.constant 6 : index
    %c0_45 = arith.constant 0 : index
    %c0_46 = arith.constant 0 : index
    %37 = vector.load %arg1[%c6, %c0_45, %c0_46] : memref<9x128x128xf32, #tpu.memory_space<vmem>>, vector<1x128x128xf32>
    %38 = vector.shape_cast %37 : vector<1x128x128xf32> to vector<128x128xf32>
    %cst_47 = arith.constant dense<0.000000e+00> : vector<512x128xf32>
    %39 = tpu.matmul %36, %38, %cst_47 {dimension_numbers = #tpu.dot_dimension_numbers<[1], [0], [0], [1], [0, 0, 1, 1], [], []>} : vector<512x128xf32>, vector<128x128xf32>, vector<512x128xf32> -> vector<512x128xf32>
    %40 = arith.addf %34, %39 : vector<512x128xf32>
    %c0_48 = arith.constant 0 : index
    %c2_49 = arith.constant 2 : index
    %c1_50 = arith.constant 1 : index
    %c0_51 = arith.constant 0 : index
    %41 = vector.load %arg0[%c0_48, %c2_49, %c1_50, %c0_51] : memref<2x18x18x128xf32, #tpu.memory_space<vmem>>, vector<2x16x16x128xf32>
    %42 = vector.shape_cast %41 : vector<2x16x16x128xf32> to vector<512x128xf32>
    %c7 = arith.constant 7 : index
    %c0_52 = arith.constant 0 : index
    %c0_53 = arith.constant 0 : index
    %43 = vector.load %arg1[%c7, %c0_52, %c0_53] : memref<9x128x128xf32, #tpu.memory_space<vmem>>, vector<1x128x128xf32>
    %44 = vector.shape_cast %43 : vector<1x128x128xf32> to vector<128x128xf32>
    %cst_54 = arith.constant dense<0.000000e+00> : vector<512x128xf32>
    %45 = tpu.matmul %42, %44, %cst_54 {dimension_numbers = #tpu.dot_dimension_numbers<[1], [0], [0], [1], [0, 0, 1, 1], [], []>} : vector<512x128xf32>, vector<128x128xf32>, vector<512x128xf32> -> vector<512x128xf32>
    %46 = arith.addf %40, %45 : vector<512x128xf32>
    %c0_55 = arith.constant 0 : index
    %c2_56 = arith.constant 2 : index
    %c2_57 = arith.constant 2 : index
    %c0_58 = arith.constant 0 : index
    %47 = vector.load %arg0[%c0_55, %c2_56, %c2_57, %c0_58] : memref<2x18x18x128xf32, #tpu.memory_space<vmem>>, vector<2x16x16x128xf32>
    %48 = vector.shape_cast %47 : vector<2x16x16x128xf32> to vector<512x128xf32>
    %c8 = arith.constant 8 : index
    %c0_59 = arith.constant 0 : index
    %c0_60 = arith.constant 0 : index
    %49 = vector.load %arg1[%c8, %c0_59, %c0_60] : memref<9x128x128xf32, #tpu.memory_space<vmem>>, vector<1x128x128xf32>
    %50 = vector.shape_cast %49 : vector<1x128x128xf32> to vector<128x128xf32>
    %cst_61 = arith.constant dense<0.000000e+00> : vector<512x128xf32>
    %51 = tpu.matmul %48, %50, %cst_61 {dimension_numbers = #tpu.dot_dimension_numbers<[1], [0], [0], [1], [0, 0, 1, 1], [], []>} : vector<512x128xf32>, vector<128x128xf32>, vector<512x128xf32> -> vector<512x128xf32>
    %52 = arith.addf %46, %51 : vector<512x128xf32>
    %c0_62 = arith.constant 0 : index
    %c0_63 = arith.constant 0 : index
    %53 = vector.load %arg3[%c0_62, %c0_63] : memref<1x128xf32, #tpu.memory_space<vmem>>, vector<1x128xf32>
    %c0_64 = arith.constant 0 : index
    %c0_65 = arith.constant 0 : index
    %54 = vector.load %arg4[%c0_64, %c0_65] : memref<1x128xf32, #tpu.memory_space<vmem>>, vector<1x128xf32>
    %cst_66 = arith.constant dense<0.000000e+00> : vector<128xf32>
    %55 = vector.multi_reduction <add>, %52, %cst_66 [0] : vector<512x128xf32> to vector<128xf32>
    %56 = vector.shape_cast %55 : vector<128xf32> to vector<1x128xf32>
    %cst_67 = arith.constant 0.001953125 : f32
    %57 = vector.broadcast %cst_67 : f32 to vector<1x128xf32>
    %58 = arith.mulf %56, %57 : vector<1x128xf32>
    %59 = arith.mulf %52, %52 : vector<512x128xf32>
    %cst_68 = arith.constant dense<0.000000e+00> : vector<128xf32>
    %60 = vector.multi_reduction <add>, %59, %cst_68 [0] : vector<512x128xf32> to vector<128xf32>
    %61 = vector.shape_cast %60 : vector<128xf32> to vector<1x128xf32>
    %cst_69 = arith.constant 0.001953125 : f32
    %62 = vector.broadcast %cst_69 : f32 to vector<1x128xf32>
    %63 = arith.mulf %61, %62 : vector<1x128xf32>
    %64 = arith.mulf %58, %58 : vector<1x128xf32>
    %65 = arith.subf %63, %64 : vector<1x128xf32>
    %cst_70 = arith.constant 0.000000e+00 : f32
    %66 = vector.broadcast %cst_70 : f32 to vector<1x128xf32>
    %67 = arith.maximumf %65, %66 : vector<1x128xf32>
    %68 = vector.broadcast %58 : vector<1x128xf32> to vector<512x128xf32>
    %69 = arith.subf %52, %68 : vector<512x128xf32>
    %cst_71 = arith.constant 9.99999974E-6 : f32
    %70 = vector.broadcast %cst_71 : f32 to vector<1x128xf32>
    %71 = arith.addf %67, %70 : vector<1x128xf32>
    %72 = math.rsqrt %71 : vector<1x128xf32>
    %73 = vector.broadcast %72 : vector<1x128xf32> to vector<512x128xf32>
    %74 = arith.mulf %69, %73 : vector<512x128xf32>
    %75 = vector.broadcast %53 : vector<1x128xf32> to vector<512x128xf32>
    %76 = arith.mulf %74, %75 : vector<512x128xf32>
    %77 = vector.broadcast %54 : vector<1x128xf32> to vector<512x128xf32>
    %78 = arith.addf %76, %77 : vector<512x128xf32>
    %cst_72 = arith.constant 0.000000e+00 : f32
    %79 = vector.broadcast %cst_72 : f32 to vector<512x128xf32>
    %80 = arith.maximumf %78, %79 : vector<512x128xf32>
    %cst_73 = arith.constant 0.000000e+00 : f32
    %81 = vector.broadcast %cst_73 : f32 to vector<2x18x18x128xf32>
    %c0_74 = arith.constant 0 : index
    %c0_75 = arith.constant 0 : index
    %c0_76 = arith.constant 0 : index
    %c0_77 = arith.constant 0 : index
    %82 = vector.load %arg8[%c0_74, %c0_75, %c0_76, %c0_77] : memref<2x18x18x128xf32, #tpu.memory_space<vmem>>, vector<2x18x18x128xf32>
    tpu.vector_store %arg8[%c0_74, %c0_75, %c0_76, %c0_77], %81 {strides = array<i32>} : memref<2x18x18x128xf32, #tpu.memory_space<vmem>>, vector<2x18x18x128xf32>,
    %83 = vector.shape_cast %80 : vector<512x128xf32> to vector<2x16x16x128xf32>
    %c0_78 = arith.constant 0 : index
    %c1_79 = arith.constant 1 : index
    %c1_80 = arith.constant 1 : index
    %c0_81 = arith.constant 0 : index
    %84 = vector.load %arg8[%c0_78, %c1_79, %c1_80, %c0_81] : memref<2x18x18x128xf32, #tpu.memory_space<vmem>>, vector<2x16x16x128xf32>
    tpu.vector_store %arg8[%c0_78, %c1_79, %c1_80, %c0_81], %83 {strides = array<i32>} : memref<2x18x18x128xf32, #tpu.memory_space<vmem>>, vector<2x16x16x128xf32>,
    %c0_82 = arith.constant 0 : index
    %c0_83 = arith.constant 0 : index
    %c0_84 = arith.constant 0 : index
    %c0_85 = arith.constant 0 : index
    %85 = vector.load %arg8[%c0_82, %c0_83, %c0_84, %c0_85] : memref<2x18x18x128xf32, #tpu.memory_space<vmem>>, vector<2x16x16x128xf32>
    %86 = vector.shape_cast %85 : vector<2x16x16x128xf32> to vector<512x128xf32>
    %c0_86 = arith.constant 0 : index
    %c0_87 = arith.constant 0 : index
    %c0_88 = arith.constant 0 : index
    %87 = vector.load %arg2[%c0_86, %c0_87, %c0_88] : memref<9x128x128xf32, #tpu.memory_space<vmem>>, vector<1x128x128xf32>
    %88 = vector.shape_cast %87 : vector<1x128x128xf32> to vector<128x128xf32>
    %cst_89 = arith.constant dense<0.000000e+00> : vector<512x128xf32>
    %89 = tpu.matmul %86, %88, %cst_89 {dimension_numbers = #tpu.dot_dimension_numbers<[1], [0], [0], [1], [0, 0, 1, 1], [], []>} : vector<512x128xf32>, vector<128x128xf32>, vector<512x128xf32> -> vector<512x128xf32>
    %c0_90 = arith.constant 0 : index
    %c0_91 = arith.constant 0 : index
    %c1_92 = arith.constant 1 : index
    %c0_93 = arith.constant 0 : index
    %90 = vector.load %arg8[%c0_90, %c0_91, %c1_92, %c0_93] : memref<2x18x18x128xf32, #tpu.memory_space<vmem>>, vector<2x16x16x128xf32>
    %91 = vector.shape_cast %90 : vector<2x16x16x128xf32> to vector<512x128xf32>
    %c1_94 = arith.constant 1 : index
    %c0_95 = arith.constant 0 : index
    %c0_96 = arith.constant 0 : index
    %92 = vector.load %arg2[%c1_94, %c0_95, %c0_96] : memref<9x128x128xf32, #tpu.memory_space<vmem>>, vector<1x128x128xf32>
    %93 = vector.shape_cast %92 : vector<1x128x128xf32> to vector<128x128xf32>
    %cst_97 = arith.constant dense<0.000000e+00> : vector<512x128xf32>
    %94 = tpu.matmul %91, %93, %cst_97 {dimension_numbers = #tpu.dot_dimension_numbers<[1], [0], [0], [1], [0, 0, 1, 1], [], []>} : vector<512x128xf32>, vector<128x128xf32>, vector<512x128xf32> -> vector<512x128xf32>
    %95 = arith.addf %89, %94 : vector<512x128xf32>
    %c0_98 = arith.constant 0 : index
    %c0_99 = arith.constant 0 : index
    %c2_100 = arith.constant 2 : index
    %c0_101 = arith.constant 0 : index
    %96 = vector.load %arg8[%c0_98, %c0_99, %c2_100, %c0_101] : memref<2x18x18x128xf32, #tpu.memory_space<vmem>>, vector<2x16x16x128xf32>
    %97 = vector.shape_cast %96 : vector<2x16x16x128xf32> to vector<512x128xf32>
    %c2_102 = arith.constant 2 : index
    %c0_103 = arith.constant 0 : index
    %c0_104 = arith.constant 0 : index
    %98 = vector.load %arg2[%c2_102, %c0_103, %c0_104] : memref<9x128x128xf32, #tpu.memory_space<vmem>>, vector<1x128x128xf32>
    %99 = vector.shape_cast %98 : vector<1x128x128xf32> to vector<128x128xf32>
    %cst_105 = arith.constant dense<0.000000e+00> : vector<512x128xf32>
    %100 = tpu.matmul %97, %99, %cst_105 {dimension_numbers = #tpu.dot_dimension_numbers<[1], [0], [0], [1], [0, 0, 1, 1], [], []>} : vector<512x128xf32>, vector<128x128xf32>, vector<512x128xf32> -> vector<512x128xf32>
    %101 = arith.addf %95, %100 : vector<512x128xf32>
    %c0_106 = arith.constant 0 : index
    %c1_107 = arith.constant 1 : index
    %c0_108 = arith.constant 0 : index
    %c0_109 = arith.constant 0 : index
    %102 = vector.load %arg8[%c0_106, %c1_107, %c0_108, %c0_109] : memref<2x18x18x128xf32, #tpu.memory_space<vmem>>, vector<2x16x16x128xf32>
    %103 = vector.shape_cast %102 : vector<2x16x16x128xf32> to vector<512x128xf32>
    %c3_110 = arith.constant 3 : index
    %c0_111 = arith.constant 0 : index
    %c0_112 = arith.constant 0 : index
    %104 = vector.load %arg2[%c3_110, %c0_111, %c0_112] : memref<9x128x128xf32, #tpu.memory_space<vmem>>, vector<1x128x128xf32>
    %105 = vector.shape_cast %104 : vector<1x128x128xf32> to vector<128x128xf32>
    %cst_113 = arith.constant dense<0.000000e+00> : vector<512x128xf32>
    %106 = tpu.matmul %103, %105, %cst_113 {dimension_numbers = #tpu.dot_dimension_numbers<[1], [0], [0], [1], [0, 0, 1, 1], [], []>} : vector<512x128xf32>, vector<128x128xf32>, vector<512x128xf32> -> vector<512x128xf32>
    %107 = arith.addf %101, %106 : vector<512x128xf32>
    %c0_114 = arith.constant 0 : index
    %c1_115 = arith.constant 1 : index
    %c1_116 = arith.constant 1 : index
    %c0_117 = arith.constant 0 : index
    %108 = vector.load %arg8[%c0_114, %c1_115, %c1_116, %c0_117] : memref<2x18x18x128xf32, #tpu.memory_space<vmem>>, vector<2x16x16x128xf32>
    %109 = vector.shape_cast %108 : vector<2x16x16x128xf32> to vector<512x128xf32>
    %c4_118 = arith.constant 4 : index
    %c0_119 = arith.constant 0 : index
    %c0_120 = arith.constant 0 : index
    %110 = vector.load %arg2[%c4_118, %c0_119, %c0_120] : memref<9x128x128xf32, #tpu.memory_space<vmem>>, vector<1x128x128xf32>
    %111 = vector.shape_cast %110 : vector<1x128x128xf32> to vector<128x128xf32>
    %cst_121 = arith.constant dense<0.000000e+00> : vector<512x128xf32>
    %112 = tpu.matmul %109, %111, %cst_121 {dimension_numbers = #tpu.dot_dimension_numbers<[1], [0], [0], [1], [0, 0, 1, 1], [], []>} : vector<512x128xf32>, vector<128x128xf32>, vector<512x128xf32> -> vector<512x128xf32>
    %113 = arith.addf %107, %112 : vector<512x128xf32>
    %c0_122 = arith.constant 0 : index
    %c1_123 = arith.constant 1 : index
    %c2_124 = arith.constant 2 : index
    %c0_125 = arith.constant 0 : index
    %114 = vector.load %arg8[%c0_122, %c1_123, %c2_124, %c0_125] : memref<2x18x18x128xf32, #tpu.memory_space<vmem>>, vector<2x16x16x128xf32>
    %115 = vector.shape_cast %114 : vector<2x16x16x128xf32> to vector<512x128xf32>
    %c5_126 = arith.constant 5 : index
    %c0_127 = arith.constant 0 : index
    %c0_128 = arith.constant 0 : index
    %116 = vector.load %arg2[%c5_126, %c0_127, %c0_128] : memref<9x128x128xf32, #tpu.memory_space<vmem>>, vector<1x128x128xf32>
    %117 = vector.shape_cast %116 : vector<1x128x128xf32> to vector<128x128xf32>
    %cst_129 = arith.constant dense<0.000000e+00> : vector<512x128xf32>
    %118 = tpu.matmul %115, %117, %cst_129 {dimension_numbers = #tpu.dot_dimension_numbers<[1], [0], [0], [1], [0, 0, 1, 1], [], []>} : vector<512x128xf32>, vector<128x128xf32>, vector<512x128xf32> -> vector<512x128xf32>
    %119 = arith.addf %113, %118 : vector<512x128xf32>
    %c0_130 = arith.constant 0 : index
    %c2_131 = arith.constant 2 : index
    %c0_132 = arith.constant 0 : index
    %c0_133 = arith.constant 0 : index
    %120 = vector.load %arg8[%c0_130, %c2_131, %c0_132, %c0_133] : memref<2x18x18x128xf32, #tpu.memory_space<vmem>>, vector<2x16x16x128xf32>
    %121 = vector.shape_cast %120 : vector<2x16x16x128xf32> to vector<512x128xf32>
    %c6_134 = arith.constant 6 : index
    %c0_135 = arith.constant 0 : index
    %c0_136 = arith.constant 0 : index
    %122 = vector.load %arg2[%c6_134, %c0_135, %c0_136] : memref<9x128x128xf32, #tpu.memory_space<vmem>>, vector<1x128x128xf32>
    %123 = vector.shape_cast %122 : vector<1x128x128xf32> to vector<128x128xf32>
    %cst_137 = arith.constant dense<0.000000e+00> : vector<512x128xf32>
    %124 = tpu.matmul %121, %123, %cst_137 {dimension_numbers = #tpu.dot_dimension_numbers<[1], [0], [0], [1], [0, 0, 1, 1], [], []>} : vector<512x128xf32>, vector<128x128xf32>, vector<512x128xf32> -> vector<512x128xf32>
    %125 = arith.addf %119, %124 : vector<512x128xf32>
    %c0_138 = arith.constant 0 : index
    %c2_139 = arith.constant 2 : index
    %c1_140 = arith.constant 1 : index
    %c0_141 = arith.constant 0 : index
    %126 = vector.load %arg8[%c0_138, %c2_139, %c1_140, %c0_141] : memref<2x18x18x128xf32, #tpu.memory_space<vmem>>, vector<2x16x16x128xf32>
    %127 = vector.shape_cast %126 : vector<2x16x16x128xf32> to vector<512x128xf32>
    %c7_142 = arith.constant 7 : index
    %c0_143 = arith.constant 0 : index
    %c0_144 = arith.constant 0 : index
    %128 = vector.load %arg2[%c7_142, %c0_143, %c0_144] : memref<9x128x128xf32, #tpu.memory_space<vmem>>, vector<1x128x128xf32>
    %129 = vector.shape_cast %128 : vector<1x128x128xf32> to vector<128x128xf32>
    %cst_145 = arith.constant dense<0.000000e+00> : vector<512x128xf32>
    %130 = tpu.matmul %127, %129, %cst_145 {dimension_numbers = #tpu.dot_dimension_numbers<[1], [0], [0], [1], [0, 0, 1, 1], [], []>} : vector<512x128xf32>, vector<128x128xf32>, vector<512x128xf32> -> vector<512x128xf32>
    %131 = arith.addf %125, %130 : vector<512x128xf32>
    %c0_146 = arith.constant 0 : index
    %c2_147 = arith.constant 2 : index
    %c2_148 = arith.constant 2 : index
    %c0_149 = arith.constant 0 : index
    %132 = vector.load %arg8[%c0_146, %c2_147, %c2_148, %c0_149] : memref<2x18x18x128xf32, #tpu.memory_space<vmem>>, vector<2x16x16x128xf32>
    %133 = vector.shape_cast %132 : vector<2x16x16x128xf32> to vector<512x128xf32>
    %c8_150 = arith.constant 8 : index
    %c0_151 = arith.constant 0 : index
    %c0_152 = arith.constant 0 : index
    %134 = vector.load %arg2[%c8_150, %c0_151, %c0_152] : memref<9x128x128xf32, #tpu.memory_space<vmem>>, vector<1x128x128xf32>
    %135 = vector.shape_cast %134 : vector<1x128x128xf32> to vector<128x128xf32>
    %cst_153 = arith.constant dense<0.000000e+00> : vector<512x128xf32>
    %136 = tpu.matmul %133, %135, %cst_153 {dimension_numbers = #tpu.dot_dimension_numbers<[1], [0], [0], [1], [0, 0, 1, 1], [], []>} : vector<512x128xf32>, vector<128x128xf32>, vector<512x128xf32> -> vector<512x128xf32>
    %137 = arith.addf %131, %136 : vector<512x128xf32>
    %c0_154 = arith.constant 0 : index
    %c0_155 = arith.constant 0 : index
    %138 = vector.load %arg5[%c0_154, %c0_155] : memref<1x128xf32, #tpu.memory_space<vmem>>, vector<1x128xf32>
    %c0_156 = arith.constant 0 : index
    %c0_157 = arith.constant 0 : index
    %139 = vector.load %arg6[%c0_156, %c0_157] : memref<1x128xf32, #tpu.memory_space<vmem>>, vector<1x128xf32>
    %cst_158 = arith.constant dense<0.000000e+00> : vector<128xf32>
    %140 = vector.multi_reduction <add>, %137, %cst_158 [0] : vector<512x128xf32> to vector<128xf32>
    %141 = vector.shape_cast %140 : vector<128xf32> to vector<1x128xf32>
    %cst_159 = arith.constant 0.001953125 : f32
    %142 = vector.broadcast %cst_159 : f32 to vector<1x128xf32>
    %143 = arith.mulf %141, %142 : vector<1x128xf32>
    %144 = arith.mulf %137, %137 : vector<512x128xf32>
    %cst_160 = arith.constant dense<0.000000e+00> : vector<128xf32>
    %145 = vector.multi_reduction <add>, %144, %cst_160 [0] : vector<512x128xf32> to vector<128xf32>
    %146 = vector.shape_cast %145 : vector<128xf32> to vector<1x128xf32>
    %cst_161 = arith.constant 0.001953125 : f32
    %147 = vector.broadcast %cst_161 : f32 to vector<1x128xf32>
    %148 = arith.mulf %146, %147 : vector<1x128xf32>
    %149 = arith.mulf %143, %143 : vector<1x128xf32>
    %150 = arith.subf %148, %149 : vector<1x128xf32>
    %cst_162 = arith.constant 0.000000e+00 : f32
    %151 = vector.broadcast %cst_162 : f32 to vector<1x128xf32>
    %152 = arith.maximumf %150, %151 : vector<1x128xf32>
    %153 = vector.broadcast %143 : vector<1x128xf32> to vector<512x128xf32>
    %154 = arith.subf %137, %153 : vector<512x128xf32>
    %cst_163 = arith.constant 9.99999974E-6 : f32
    %155 = vector.broadcast %cst_163 : f32 to vector<1x128xf32>
    %156 = arith.addf %152, %155 : vector<1x128xf32>
    %157 = math.rsqrt %156 : vector<1x128xf32>
    %158 = vector.broadcast %157 : vector<1x128xf32> to vector<512x128xf32>
    %159 = arith.mulf %154, %158 : vector<512x128xf32>
    %160 = vector.broadcast %138 : vector<1x128xf32> to vector<512x128xf32>
    %161 = arith.mulf %159, %160 : vector<512x128xf32>
    %162 = vector.broadcast %139 : vector<1x128xf32> to vector<512x128xf32>
    %163 = arith.addf %161, %162 : vector<512x128xf32>
    %c0_164 = arith.constant 0 : index
    %c1_165 = arith.constant 1 : index
    %c1_166 = arith.constant 1 : index
    %c0_167 = arith.constant 0 : index
    %164 = vector.load %arg0[%c0_164, %c1_165, %c1_166, %c0_167] : memref<2x18x18x128xf32, #tpu.memory_space<vmem>>, vector<2x16x16x128xf32>
    %165 = vector.shape_cast %164 : vector<2x16x16x128xf32> to vector<512x128xf32>
    %166 = arith.addf %163, %165 : vector<512x128xf32>
    %cst_168 = arith.constant 0.000000e+00 : f32
    %167 = vector.broadcast %cst_168 : f32 to vector<512x128xf32>
    %168 = arith.maximumf %166, %167 : vector<512x128xf32>
    %c0_169 = arith.constant 0 : index
    %c0_170 = arith.constant 0 : index
    %169 = vector.load %arg7[%c0_169, %c0_170] : memref<512x128xf32, #tpu.memory_space<vmem>>, vector<512x128xf32>
    tpu.vector_store %arg7[%c0_169, %c0_170], %168 {strides = array<i32>} : memref<512x128xf32, #tpu.memory_space<vmem>>, vector<512x128xf32>,
    return
  }
}

</mosaic_0001>

<llo_original>
// kernel: basic_block.1
$region0: #{basic_block.1}
  #allocation0 [shape = 'u32[]', space=smem, size = 0x4, offset = 0x4, fixed_abs, tag = 'smem constant byte address 0x4 - core index']
  #allocation1 [shape = 'u32[144,128]{1,0:T(1,128)}', space=vmem, size = 0x12000, scoped, tag = 'internal scratch']
  #allocation2 [shape = 'f32[2,18,18,128]{3,2,1,0:T(8,128)}', space=vmem, size = 0x6c000, scoped, tag = 'scratch operand']
  %s0 = inlined_call_operand.vmem [shape: f32[2,18,18,128], index: 0, kind: input, shape index: {}]
  %s1 = inlined_call_operand.vmem [shape: f32[9,128,128], index: 1, kind: input, shape index: {}]
  %s2 = inlined_call_operand.vmem [shape: f32[9,128,128], index: 2, kind: input, shape index: {}]
  %s3 = inlined_call_operand.vmem [shape: f32[1,128], index: 3, kind: input, shape index: {}]
  %s4 = inlined_call_operand.vmem [shape: f32[1,128], index: 4, kind: input, shape index: {}]
  %s5 = inlined_call_operand.vmem [shape: f32[1,128], index: 5, kind: input, shape index: {}]
  %s6 = inlined_call_operand.vmem [shape: f32[1,128], index: 6, kind: input, shape index: {}]
  %s7 = inlined_call_operand.vmem [shape: f32[512,128], index: 7, kind: output, shape index: {}]
  %s8 = sld [smem:[#allocation0]]
  $region38: #{basic_block.1} parent=0
    _
  %s10 = ssub.s32 1, %s8
  %s11 = scalar_select 0, %s10, %s8
  // Predicated region
  $region2: #{basic_block.1} parent=0 // pred_check
    _
  $region3: #{basic_block.1} parent=0 // pred_check_branch
    %13 = sbr.rel (0) target = $region5
  $region4: #{basic_block.1} parent=0 // pred_region
    _
  $region5: #{basic_block.1} parent=0 // pred_fallthru
    _
  // Predicated region
  $region6: #{basic_block.1} parent=0 // pred_check
    _
  $region7: #{basic_block.1} parent=0 // pred_check_branch
    %15 = sbr.rel (0) target = $region9
  $region8: #{basic_block.1} parent=0 // pred_region
    _
  $region9: #{basic_block.1} parent=0 // pred_fallthru
    _
  // Predicated region
  $region10: #{basic_block.1} parent=0 // pred_check
    _
  $region11: #{basic_block.1} parent=0 // pred_check_branch
    %17 = sbr.rel (0) target = $region13
  $region12: #{basic_block.1} parent=0 // pred_region
    _
  $region13: #{basic_block.1} parent=0 // pred_fallthru
    _
  // Predicated region
  $region14: #{basic_block.1} parent=0 // pred_check
    _
  $region15: #{basic_block.1} parent=0 // pred_check_branch
    %19 = sbr.rel (0) target = $region17
  $region16: #{basic_block.1} parent=0 // pred_region
    _
  $region17: #{basic_block.1} parent=0 // pred_fallthru
    _
  // Predicated region
  $region18: #{basic_block.1} parent=0 // pred_check
    _
  $region19: #{basic_block.1} parent=0 // pred_check_branch
    %21 = sbr.rel (0) target = $region21
  $region20: #{basic_block.1} parent=0 // pred_region
    _
  $region21: #{basic_block.1} parent=0 // pred_fallthru
    _
  // Predicated region
  $region22: #{basic_block.1} parent=0 // pred_check
    _
  $region23: #{basic_block.1} parent=0 // pred_check_branch
    %23 = sbr.rel (0) target = $region25
  $region24: #{basic_block.1} parent=0 // pred_region
    _
  $region25: #{basic_block.1} parent=0 // pred_fallthru
    _
  // Predicated region
  $region26: #{basic_block.1} parent=0 // pred_check
    _
  $region27: #{basic_block.1} parent=0 // pred_check_branch
    %25 = sbr.rel (0) target = $region29
  $region28: #{basic_block.1} parent=0 // pred_region
    _
  $region29: #{basic_block.1} parent=0 // pred_fallthru
    _
  %v26 = vld [vmem:[%s0] sm:$0xff]
  %v27 = vld [vmem:[%s0 + $0x8] sm:$0xff]
  %v28 = vld [vmem:[%s0 + $0x18] sm:$0xff]
  %v29 = vld [vmem:[%s0 + $0x20] sm:$0xff]
  %v30 = vld [vmem:[%s0 + $0x30] sm:$0xff]
  %v31 = vld [vmem:[%s0 + $0x38] sm:$0xff]
  %v32 = vld [vmem:[%s0 + $0x48] sm:$0xff]
  %v33 = vld [vmem:[%s0 + $0x50] sm:$0xff]
  %v34 = vld [vmem:[%s0 + $0x60] sm:$0xff]
  %v35 = vld [vmem:[%s0 + $0x68] sm:$0xff]
  %v36 = vld [vmem:[%s0 + $0x78] sm:$0xff]
  %v37 = vld [vmem:[%s0 + $0x80] sm:$0xff]
  %v38 = vld [vmem:[%s0 + $0x90] sm:$0xff]
  %v39 = vld [vmem:[%s0 + $0x98] sm:$0xff]
  %v40 = vld [vmem:[%s0 + $0xa8] sm:$0xff]
  %v41 = vld [vmem:[%s0 + $0xb0] sm:$0xff]
  %v42 = vld [vmem:[%s0 + $0xc0] sm:$0xff]
  %v43 = vld [vmem:[%s0 + $0xc8] sm:$0xff]
  %v44 = vld [vmem:[%s0 + $0xd8] sm:$0xff]
  %v45 = vld [vmem:[%s0 + $0xe0] sm:$0xff]
  %v46 = vld [vmem:[%s0 + $0xf0] sm:$0xff]
  %v47 = vld [vmem:[%s0 + $0xf8] sm:$0xff]
  %v48 = vld [vmem:[%s0 + $0x108] sm:$0xff]
  %v49 = vld [vmem:[%s0 + $0x110] sm:$0xff]
  %v50 = vld [vmem:[%s0 + $0x120] sm:$0xff]
  %v51 = vld [vmem:[%s0 + $0x128] sm:$0xff]
  %v52 = vld [vmem:[%s0 + $0x138] sm:$0xff]
  %v53 = vld [vmem:[%s0 + $0x140] sm:$0xff]
  %v54 = vld [vmem:[%s0 + $0x150] sm:$0xff]
  %v55 = vld [vmem:[%s0 + $0x158] sm:$0xff]
  %v56 = vld [vmem:[%s0 + $0x168] sm:$0xff]
  %v57 = vld [vmem:[%s0 + $0x170] sm:$0xff]
  %v58 = vld [vmem:[%s0 + $0x1b0] sm:$0xff]
  %v59 = vld [vmem:[%s0 + $0x1b8] sm:$0xff]
  %v60 = vld [vmem:[%s0 + $0x1c8] sm:$0xff]
  %v61 = vld [vmem:[%s0 + $0x1d0] sm:$0xff]
  %v62 = vld [vmem:[%s0 + $0x1e0] sm:$0xff]
  %v63 = vld [vmem:[%s0 + $0x1e8] sm:$0xff]
  %v64 = vld [vmem:[%s0 + $0x1f8] sm:$0xff]
  %v65 = vld [vmem:[%s0 + $0x200] sm:$0xff]
  %v66 = vld [vmem:[%s0 + $0x210] sm:$0xff]
  %v67 = vld [vmem:[%s0 + $0x218] sm:$0xff]
  %v68 = vld [vmem:[%s0 + $0x228] sm:$0xff]
  %v69 = vld [vmem:[%s0 + $0x230] sm:$0xff]
  %v70 = vld [vmem:[%s0 + $0x240] sm:$0xff]
  %v71 = vld [vmem:[%s0 + $0x248] sm:$0xff]
  %v72 = vld [vmem:[%s0 + $0x258] sm:$0xff]
  %v73 = vld [vmem:[%s0 + $0x260] sm:$0xff]
  %v74 = vld [vmem:[%s0 + $0x270] sm:$0xff]
  %v75 = vld [vmem:[%s0 + $0x278] sm:$0xff]
  %v76 = vld [vmem:[%s0 + $0x288] sm:$0xff]
  %v77 = vld [vmem:[%s0 + $0x290] sm:$0xff]
  %v78 = vld [vmem:[%s0 + $0x2a0] sm:$0xff]
  %v79 = vld [vmem:[%s0 + $0x2a8] sm:$0xff]
  %v80 = vld [vmem:[%s0 + $0x2b8] sm:$0xff]
  %v81 = vld [vmem:[%s0 + $0x2c0] sm:$0xff]
  %v82 = vld [vmem:[%s0 + $0x2d0] sm:$0xff]
  %v83 = vld [vmem:[%s0 + $0x2d8] sm:$0xff]
  %v84 = vld [vmem:[%s0 + $0x2e8] sm:$0xff]
  %v85 = vld [vmem:[%s0 + $0x2f0] sm:$0xff]
  %v86 = vld [vmem:[%s0 + $0x300] sm:$0xff]
  %v87 = vld [vmem:[%s0 + $0x308] sm:$0xff]
  %v88 = vld [vmem:[%s0 + $0x318] sm:$0xff]
  %v89 = vld [vmem:[%s0 + $0x320] sm:$0xff]
  %v90 = vld [vmem:[%s1] sm:$0xff]
  %v91 = vld [vmem:[%s1 + $0x8] sm:$0xff]
  %v92 = vld [vmem:[%s1 + $0x10] sm:$0xff]
  %v93 = vld [vmem:[%s1 + $0x18] sm:$0xff]
  %v94 = vld [vmem:[%s1 + $0x20] sm:$0xff]
  %v95 = vld [vmem:[%s1 + $0x28] sm:$0xff]
  %v96 = vld [vmem:[%s1 + $0x30] sm:$0xff]
  %v97 = vld [vmem:[%s1 + $0x38] sm:$0xff]
  %v98 = vld [vmem:[%s1 + $0x40] sm:$0xff]
  %v99 = vld [vmem:[%s1 + $0x48] sm:$0xff]
  %v100 = vld [vmem:[%s1 + $0x50] sm:$0xff]
  %v101 = vld [vmem:[%s1 + $0x58] sm:$0xff]
  %v102 = vld [vmem:[%s1 + $0x60] sm:$0xff]
  %v103 = vld [vmem:[%s1 + $0x68] sm:$0xff]
  %v104 = vld [vmem:[%s1 + $0x70] sm:$0xff]
  %v105 = vld [vmem:[%s1 + $0x78] sm:$0xff]
  %v106 = vld [vmem:[%s0 + $0x1] sm:$0xff]
  %v107 = vld [vmem:[%s0 + $0x9] sm:$0xff]
  %v108 = vld [vmem:[%s0 + $0x19] sm:$0xff]
  %v109 = vld [vmem:[%s0 + $0x21] sm:$0xff]
  %v110 = vld [vmem:[%s0 + $0x31] sm:$0xff]
  %v111 = vld [vmem:[%s0 + $0x39] sm:$0xff]
  %v112 = vld [vmem:[%s0 + $0x49] sm:$0xff]
  %v113 = vld [vmem:[%s0 + $0x51] sm:$0xff]
  %v114 = vld [vmem:[%s0 + $0x61] sm:$0xff]
  %v115 = vld [vmem:[%s0 + $0x69] sm:$0xff]
  %v116 = vld [vmem:[%s0 + $0x79] sm:$0xff]
  %v117 = vld [vmem:[%s0 + $0x81] sm:$0xff]
  %v118 = vld [vmem:[%s0 + $0x91] sm:$0xff]
  %v119 = vld [vmem:[%s0 + $0x99] sm:$0xff]
  %v120 = vld [vmem:[%s0 + $0xa9] sm:$0xff]
  %v121 = vld [vmem:[%s0 + $0xb1] sm:$0xff]
  %v122 = vld [vmem:[%s0 + $0xc1] sm:$0xff]
  %v123 = vld [vmem:[%s0 + $0xc9] sm:$0xff]
  %v124 = vld [vmem:[%s0 + $0xd9] sm:$0xff]
  %v125 = vld [vmem:[%s0 + $0xe1] sm:$0xff]
  %v126 = vld [vmem:[%s0 + $0xf1] sm:$0xff]
  %v127 = vld [vmem:[%s0 + $0xf9] sm:$0xff]
  %v128 = vld [vmem:[%s0 + $0x109] sm:$0xff]
  %v129 = vld [vmem:[%s0 + $0x111] sm:$0xff]
  %v130 = vld [vmem:[%s0 + $0x121] sm:$0xff]
  %v131 = vld [vmem:[%s0 + $0x129] sm:$0xff]
  %v132 = vld [vmem:[%s0 + $0x139] sm:$0xff]
  %v133 = vld [vmem:[%s0 + $0x141] sm:$0xff]
  %v134 = vld [vmem:[%s0 + $0x151] sm:$0xff]
  %v135 = vld [vmem:[%s0 + $0x159] sm:$0xff]
  %v136 = vld [vmem:[%s0 + $0x169] sm:$0xff]
  %v137 = vld [vmem:[%s0 + $0x171] sm:$0xff]
  %v138 = vld [vmem:[%s0 + $0x1b1] sm:$0xff]
  %v139 = vld [vmem:[%s0 + $0x1b9] sm:$0xff]
  %v140 = vld [vmem:[%s0 + $0x1c9] sm:$0xff]
  %v141 = vld [vmem:[%s0 + $0x1d1] sm:$0xff]
  %v142 = vld [vmem:[%s0 + $0x1e1] sm:$0xff]
  %v143 = vld [vmem:[%s0 + $0x1e9] sm:$0xff]
  %v144 = vld [vmem:[%s0 + $0x1f9] sm:$0xff]
  %v145 = vld [vmem:[%s0 + $0x201] sm:$0xff]
  %v146 = vld [vmem:[%s0 + $0x211] sm:$0xff]
  %v147 = vld [vmem:[%s0 + $0x219] sm:$0xff]
  %v148 = vld [vmem:[%s0 + $0x229] sm:$0xff]
  %v149 = vld [vmem:[%s0 + $0x231] sm:$0xff]
  %v150 = vld [vmem:[%s0 + $0x241] sm:$0xff]
  %v151 = vld [vmem:[%s0 + $0x249] sm:$0xff]
  %v152 = vld [vmem:[%s0 + $0x259] sm:$0xff]
  %v153 = vld [vmem:[%s0 + $0x261] sm:$0xff]
  %v154 = vld [vmem:[%s0 + $0x271] sm:$0xff]
  %v155 = vld [vmem:[%s0 + $0x279] sm:$0xff]
  %v156 = vld [vmem:[%s0 + $0x289] sm:$0xff]
  %v157 = vld [vmem:[%s0 + $0x291] sm:$0xff]
  %v158 = vld [vmem:[%s0 + $0x2a1] sm:$0xff]
  %v159 = vld [vmem:[%s0 + $0x2a9] sm:$0xff]
  %v160 = vld [vmem:[%s0 + $0x2b9] sm:$0xff]
  %v161 = vld [vmem:[%s0 + $0x2c1] sm:$0xff]
  %v162 = vld [vmem:[%s0 + $0x2d1] sm:$0xff]
  %v163 = vld [vmem:[%s0 + $0x2d9] sm:$0xff]
  %v164 = vld [vmem:[%s0 + $0x2e9] sm:$0xff]
  %v165 = vld [vmem:[%s0 + $0x2f1] sm:$0xff]
  %v166 = vld [vmem:[%s0 + $0x301] sm:$0xff]
  %v167 = vld [vmem:[%s0 + $0x309] sm:$0xff]
  %v168 = vld [vmem:[%s0 + $0x319] sm:$0xff]
  %v169 = vld [vmem:[%s0 + $0x321] sm:$0xff]
  %s170 = scalar_lea.vmem %s1, 128
  %v171 = vld [vmem:[%s170] sm:$0xff]
  %v172 = vld [vmem:[%s170 + $0x8] sm:$0xff]
  %v173 = vld [vmem:[%s170 + $0x10] sm:$0xff]
  %v174 = vld [vmem:[%s170 + $0x18] sm:$0xff]
  %v175 = vld [vmem:[%s170 + $0x20] sm:$0xff]
  %v176 = vld [vmem:[%s170 + $0x28] sm:$0xff]
  %v177 = vld [vmem:[%s170 + $0x30] sm:$0xff]
  %v178 = vld [vmem:[%s170 + $0x38] sm:$0xff]
  %v179 = vld [vmem:[%s170 + $0x40] sm:$0xff]
  %v180 = vld [vmem:[%s170 + $0x48] sm:$0xff]
  %v181 = vld [vmem:[%s170 + $0x50] sm:$0xff]
  %v182 = vld [vmem:[%s170 + $0x58] sm:$0xff]
  %v183 = vld [vmem:[%s170 + $0x60] sm:$0xff]
  %v184 = vld [vmem:[%s170 + $0x68] sm:$0xff]
  %v185 = vld [vmem:[%s170 + $0x70] sm:$0xff]
  %v186 = vld [vmem:[%s170 + $0x78] sm:$0xff]
  %187 = vmatprep.subr.mxu0 0.0
  %188 = vmatpush1.msra.mxu0 %v186
  %189 = vmatprep.subr.mxu0 0.0
  %190 = vmatpush1.msra.mxu0 %v185
  %191 = vmatprep.subr.mxu0 0.0
  %192 = vmatpush1.msra.mxu0 %v184
  %193 = vmatprep.subr.mxu0 0.0
  %194 = vmatpush1.msra.mxu0 %v183
  %195 = vmatprep.subr.mxu0 0.0
  %196 = vmatpush1.msra.mxu0 %v182
  %197 = vmatprep.subr.mxu0 0.0
  %198 = vmatpush1.msra.mxu0 %v181
  %199 = vmatprep.subr.mxu0 0.0
  %200 = vmatpush1.msra.mxu0 %v180
  %201 = vmatprep.subr.mxu0 0.0
  %202 = vmatpush1.msra.mxu0 %v179
  %203 = vmatprep.subr.mxu0 0.0
  %204 = vmatpush1.msra.mxu0 %v178
  %205 = vmatprep.subr.mxu0 0.0
  %206 = vmatpush1.msra.mxu0 %v177
  %207 = vmatprep.subr.mxu0 0.0
  %208 = vmatpush1.msra.mxu0 %v176
  %209 = vmatprep.subr.mxu0 0.0
  %210 = vmatpush1.msra.mxu0 %v175
  %211 = vmatprep.subr.mxu0 0.0
  %212 = vmatpush1.msra.mxu0 %v174
  %213 = vmatprep.subr.mxu0 0.0
  %214 = vmatpush1.msra.mxu0 %v173
  %215 = vmatprep.subr.mxu0 0.0
  %216 = vmatpush1.msra.mxu0 %v172
  %217 = vmatprep.subr.mxu0 0.0
  %218 = vmatpush1.msra.mxu0 %v171
  %219 = vmatprep.subr.mxu0 0.0
  %220 = vmatpush2.msra.mxu0 0.0
  %221 = vmatprep.subr.mxu0 0.0
  %222 = vmatpush2.msra.mxu0 0.0
  %223 = vmatprep.subr.mxu0 0.0
  %224 = vmatpush2.msra.mxu0 0.0
  %225 = vmatprep.subr.mxu0 0.0
  %226 = vmatpush2.msra.mxu0 0.0
  %227 = vmatprep.subr.mxu0 0.0
  %228 = vmatpush2.msra.mxu0 0.0
  %229 = vmatprep.subr.mxu0 0.0
  %230 = vmatpush2.msra.mxu0 0.0
  %231 = vmatprep.subr.mxu0 0.0
  %232 = vmatpush2.msra.mxu0 0.0
  %233 = vmatprep.subr.mxu0 0.0
  %234 = vmatpush2.msra.mxu0 0.0
  %235 = vmatprep.subr.mxu0 0.0
  %236 = vmatpush2.msra.mxu0 0.0
  %237 = vmatprep.subr.mxu0 0.0
  %238 = vmatpush2.msra.mxu0 0.0
  %239 = vmatprep.subr.mxu0 0.0
  %240 = vmatpush2.msra.mxu0 0.0
  %241 = vmatprep.subr.mxu0 0.0
  %242 = vmatpush2.msra.mxu0 0.0
  %243 = vmatprep.subr.mxu0 0.0
  %244 = vmatpush2.msra.mxu0 0.0
  %245 = vmatprep.subr.mxu0 0.0
  %246 = vmatpush2.msra.mxu0 0.0
  %247 = vmatprep.subr.mxu0 0.0
  %248 = vmatpush2.msra.mxu0 0.0
  %249 = vmatprep.subr.mxu0 0.0
  %250 = vmatpush2.msra.mxu0 0.0
  %251 = vmatprep.mubr.f32.mxu0 0.0
  %252 = vmatmul.mubr.f32.gmra.mxu0 %v106
  %v253 = vpop.f32.mrf.mxu0
  %v254 = vadd.f32 0.0, %v253
  %v255 = vpop.f32.mrf.mxu0
  %256 = vmatprep.mubr.f32.mxu0 0.0
  %257 = vmatmul.mubr.f32.gmra.mxu0 %v107
  %v258 = vpop.f32.mrf.mxu0
  %v259 = vadd.f32 0.0, %v258
  %v260 = vpop.f32.mrf.mxu0
  %261 = vmatprep.mubr.f32.mxu0 0.0
  %262 = vmatmul.mubr.f32.gmra.mxu0 %v108
  %v263 = vpop.f32.mrf.mxu0
  %v264 = vadd.f32 0.0, %v263
  %v265 = vpop.f32.mrf.mxu0
  %266 = vmatprep.mubr.f32.mxu0 0.0
  %267 = vmatmul.mubr.f32.gmra.mxu0 %v109
  %v268 = vpop.f32.mrf.mxu0
  %v269 = vadd.f32 0.0, %v268
  %v270 = vpop.f32.mrf.mxu0
  %271 = vmatprep.mubr.f32.mxu0 0.0
  %272 = vmatmul.mubr.f32.gmra.mxu0 %v110
  %v273 = vpop.f32.mrf.mxu0
  %v274 = vadd.f32 0.0, %v273
  %v275 = vpop.f32.mrf.mxu0
  %276 = vmatprep.mubr.f32.mxu0 0.0
  %277 = vmatmul.mubr.f32.gmra.mxu0 %v111
  %v278 = vpop.f32.mrf.mxu0
  %v279 = vadd.f32 0.0, %v278
  %v280 = vpop.f32.mrf.mxu0
  %281 = vmatprep.mubr.f32.mxu0 0.0
  %282 = vmatmul.mubr.f32.gmra.mxu0 %v112
  %v283 = vpop.f32.mrf.mxu0
  %v284 = vadd.f32 0.0, %v283
  %v285 = vpop.f32.mrf.mxu0
  %286 = vmatprep.mubr.f32.mxu0 0.0
  %287 = vmatmul.mubr.f32.gmra.mxu0 %v113
  %v288 = vpop.f32.mrf.mxu0
  %v289 = vadd.f32 0.0, %v288
  %v290 = vpop.f32.mrf.mxu0
  %291 = vmatprep.mubr.f32.mxu0 0.0
  %292 = vmatmul.mubr.f32.gmra.mxu0 %v114
  %v293 = vpop.f32.mrf.mxu0
  %v294 = vadd.f32 0.0, %v293
  %v295 = vpop.f32.mrf.mxu0
  %296 = vmatprep.mubr.f32.mxu0 0.0
  %297 = vmatmul.mubr.f32.gmra.mxu0 %v115
  %v298 = vpop.f32.mrf.mxu0
  %v299 = vadd.f32 0.0, %v298
  %v300 = vpop.f32.mrf.mxu0
  %301 = vmatprep.mubr.f32.mxu0 0.0
  %302 = vmatmul.mubr.f32.gmra.mxu0 %v116
  %v303 = vpop.f32.mrf.mxu0
  %v304 = vadd.f32 0.0, %v303
  %v305 = vpop.f32.mrf.mxu0
  %306 = vmatprep.mubr.f32.mxu0 0.0
  %307 = vmatmul.mubr.f32.gmra.mxu0 %v117
  %v308 = vpop.f32.mrf.mxu0
  %v309 = vadd.f32 0.0, %v308
  %v310 = vpop.f32.mrf.mxu0
  %311 = vmatprep.mubr.f32.mxu0 0.0
  %312 = vmatmul.mubr.f32.gmra.mxu0 %v118
  %v313 = vpop.f32.mrf.mxu0
  %v314 = vadd.f32 0.0, %v313
  %v315 = vpop.f32.mrf.mxu0
  %316 = vmatprep.mubr.f32.mxu0 0.0
  %317 = vmatmul.mubr.f32.gmra.mxu0 %v119
  %v318 = vpop.f32.mrf.mxu0
  %v319 = vadd.f32 0.0, %v318
  %v320 = vpop.f32.mrf.mxu0
  %321 = vmatprep.mubr.f32.mxu0 0.0
  %322 = vmatmul.mubr.f32.gmra.mxu0 %v120
  %v323 = vpop.f32.mrf.mxu0
  %v324 = vadd.f32 0.0, %v323
  %v325 = vpop.f32.mrf.mxu0
  %326 = vmatprep.mubr.f32.mxu0 0.0
  %327 = vmatmul.mubr.f32.gmra.mxu0 %v121
  %v328 = vpop.f32.mrf.mxu0
  %v329 = vadd.f32 0.0, %v328
  %v330 = vpop.f32.mrf.mxu0
  %331 = vmatprep.mubr.f32.mxu0 0.0
  %332 = vmatmul.mubr.f32.gmra.mxu0 %v122
  %v333 = vpop.f32.mrf.mxu0
  %v334 = vadd.f32 0.0, %v333
  %v335 = vpop.f32.mrf.mxu0
  %336 = vmatprep.mubr.f32.mxu0 0.0
  %337 = vmatmul.mubr.f32.gmra.mxu0 %v123
  %v338 = vpop.f32.mrf.mxu0
  %v339 = vadd.f32 0.0, %v338
  %v340 = vpop.f32.mrf.mxu0
  %341 = vmatprep.mubr.f32.mxu0 0.0
  %342 = vmatmul.mubr.f32.gmra.mxu0 %v124
  %v343 = vpop.f32.mrf.mxu0
  %v344 = vadd.f32 0.0, %v343
  %v345 = vpop.f32.mrf.mxu0
  %346 = vmatprep.mubr.f32.mxu0 0.0
  %347 = vmatmul.mubr.f32.gmra.mxu0 %v125
  %v348 = vpop.f32.mrf.mxu0
  %v349 = vadd.f32 0.0, %v348
  %v350 = vpop.f32.mrf.mxu0
  %351 = vmatprep.mubr.f32.mxu0 0.0
  %352 = vmatmul.mubr.f32.gmra.mxu0 %v126
  %v353 = vpop.f32.mrf.mxu0
  %v354 = vadd.f32 0.0, %v353
  %v355 = vpop.f32.mrf.mxu0
  %356 = vmatprep.mubr.f32.mxu0 0.0
  %357 = vmatmul.mubr.f32.gmra.mxu0 %v127
  %v358 = vpop.f32.mrf.mxu0
  %v359 = vadd.f32 0.0, %v358
  %v360 = vpop.f32.mrf.mxu0
  %361 = vmatprep.mubr.f32.mxu0 0.0
  %362 = vmatmul.mubr.f32.gmra.mxu0 %v128
  %v363 = vpop.f32.mrf.mxu0
  %v364 = vadd.f32 0.0, %v363
  %v365 = vpop.f32.mrf.mxu0
  %366 = vmatprep.mubr.f32.mxu0 0.0
  %367 = vmatmul.mubr.f32.gmra.mxu0 %v129
  %v368 = vpop.f32.mrf.mxu0
  %v369 = vadd.f32 0.0, %v368
  %v370 = vpop.f32.mrf.mxu0
  %371 = vmatprep.mubr.f32.mxu0 0.0
  %372 = vmatmul.mubr.f32.gmra.mxu0 %v130
  %v373 = vpop.f32.mrf.mxu0
  %v374 = vadd.f32 0.0, %v373
  %v375 = vpop.f32.mrf.mxu0
  %376 = vmatprep.mubr.f32.mxu0 0.0
  %377 = vmatmul.mubr.f32.gmra.mxu0 %v131
  %v378 = vpop.f32.mrf.mxu0
  %v379 = vadd.f32 0.0, %v378
  %v380 = vpop.f32.mrf.mxu0
  %381 = vmatprep.mubr.f32.mxu0 0.0
  %382 = vmatmul.mubr.f32.gmra.mxu0 %v132
  %v383 = vpop.f32.mrf.mxu0
  %v384 = vadd.f32 0.0, %v383
  %v385 = vpop.f32.mrf.mxu0
  %386 = vmatprep.mubr.f32.mxu0 0.0
  %387 = vmatmul.mubr.f32.gmra.mxu0 %v133
  %v388 = vpop.f32.mrf.mxu0
  %v389 = vadd.f32 0.0, %v388
  %v390 = vpop.f32.mrf.mxu0
  %391 = vmatprep.mubr.f32.mxu0 0.0
  %392 = vmatmul.mubr.f32.gmra.mxu0 %v134
  %v393 = vpop.f32.mrf.mxu0
  %v394 = vadd.f32 0.0, %v393
  %v395 = vpop.f32.mrf.mxu0
  %396 = vmatprep.mubr.f32.mxu0 0.0
  %397 = vmatmul.mubr.f32.gmra.mxu0 %v135
  %v398 = vpop.f32.mrf.mxu0
  %v399 = vadd.f32 0.0, %v398
  %v400 = vpop.f32.mrf.mxu0
  %401 = vmatprep.mubr.f32.mxu0 0.0
  %402 = vmatmul.mubr.f32.gmra.mxu0 %v136
  %v403 = vpop.f32.mrf.mxu0
  %v404 = vadd.f32 0.0, %v403
  %v405 = vpop.f32.mrf.mxu0
  %406 = vmatprep.mubr.f32.mxu0 0.0
  %407 = vmatmul.mubr.f32.gmra.mxu0 %v137
  %v408 = vpop.f32.mrf.mxu0
  %v409 = vadd.f32 0.0, %v408
  %v410 = vpop.f32.mrf.mxu0
  %411 = vmatprep.mubr.f32.mxu0 0.0
  %412 = vmatmul.mubr.f32.gmra.mxu0 %v138
  %v413 = vpop.f32.mrf.mxu0
  %v414 = vadd.f32 0.0, %v413
  %v415 = vpop.f32.mrf.mxu0
  %416 = vmatprep.mubr.f32.mxu0 0.0
  %417 = vmatmul.mubr.f32.gmra.mxu0 %v139
  %v418 = vpop.f32.mrf.mxu0
  %v419 = vadd.f32 0.0, %v418
  %v420 = vpop.f32.mrf.mxu0
  %421 = vmatprep.mubr.f32.mxu0 0.0
  %422 = vmatmul.mubr.f32.gmra.mxu0 %v140
  %v423 = vpop.f32.mrf.mxu0
  %v424 = vadd.f32 0.0, %v423
  %v425 = vpop.f32.mrf.mxu0
  %426 = vmatprep.mubr.f32.mxu0 0.0
  %427 = vmatmul.mubr.f32.gmra.mxu0 %v141
  %v428 = vpop.f32.mrf.mxu0
  %v429 = vadd.f32 0.0, %v428
  %v430 = vpop.f32.mrf.mxu0
  %431 = vmatprep.mubr.f32.mxu0 0.0
  %432 = vmatmul.mubr.f32.gmra.mxu0 %v142
  %v433 = vpop.f32.mrf.mxu0
  %v434 = vadd.f32 0.0, %v433
  %v435 = vpop.f32.mrf.mxu0
  %436 = vmatprep.mubr.f32.mxu0 0.0
  %437 = vmatmul.mubr.f32.gmra.mxu0 %v143
  %v438 = vpop.f32.mrf.mxu0
  %v439 = vadd.f32 0.0, %v438
  %v440 = vpop.f32.mrf.mxu0
  %441 = vmatprep.mubr.f32.mxu0 0.0
  %442 = vmatmul.mubr.f32.gmra.mxu0 %v144
  %v443 = vpop.f32.mrf.mxu0
  %v444 = vadd.f32 0.0, %v443
  %v445 = vpop.f32.mrf.mxu0
  %446 = vmatprep.mubr.f32.mxu0 0.0
  %447 = vmatmul.mubr.f32.gmra.mxu0 %v145
  %v448 = vpop.f32.mrf.mxu0
  %v449 = vadd.f32 0.0, %v448
  %v450 = vpop.f32.mrf.mxu0
  %451 = vmatprep.mubr.f32.mxu0 0.0
  %452 = vmatmul.mubr.f32.gmra.mxu0 %v146
  %v453 = vpop.f32.mrf.mxu0
  %v454 = vadd.f32 0.0, %v453
  %v455 = vpop.f32.mrf.mxu0
  %456 = vmatprep.mubr.f32.mxu0 0.0
  %457 = vmatmul.mubr.f32.gmra.mxu0 %v147
  %v458 = vpop.f32.mrf.mxu0
  %v459 = vadd.f32 0.0, %v458
  %v460 = vpop.f32.mrf.mxu0
  %461 = vmatprep.mubr.f32.mxu0 0.0
  %462 = vmatmul.mubr.f32.gmra.mxu0 %v148
  %v463 = vpop.f32.mrf.mxu0
  %v464 = vadd.f32 0.0, %v463
  %v465 = vpop.f32.mrf.mxu0
  %466 = vmatprep.mubr.f32.mxu0 0.0
  %467 = vmatmul.mubr.f32.gmra.mxu0 %v149
  %v468 = vpop.f32.mrf.mxu0
  %v469 = vadd.f32 0.0, %v468
  %v470 = vpop.f32.mrf.mxu0
  %471 = vmatprep.mubr.f32.mxu0 0.0
  %472 = vmatmul.mubr.f32.gmra.mxu0 %v150
  %v473 = vpop.f32.mrf.mxu0
  %v474 = vadd.f32 0.0, %v473
  %v475 = vpop.f32.mrf.mxu0
  %476 = vmatprep.mubr.f32.mxu0 0.0
  %477 = vmatmul.mubr.f32.gmra.mxu0 %v151
  %v478 = vpop.f32.mrf.mxu0
  %v479 = vadd.f32 0.0, %v478
  %v480 = vpop.f32.mrf.mxu0
  %481 = vmatprep.mubr.f32.mxu0 0.0
  %482 = vmatmul.mubr.f32.gmra.mxu0 %v152
  %v483 = vpop.f32.mrf.mxu0
  %v484 = vadd.f32 0.0, %v483
  %v485 = vpop.f32.mrf.mxu0
  %486 = vmatprep.mubr.f32.mxu0 0.0
  %487 = vmatmul.mubr.f32.gmra.mxu0 %v153
  %v488 = vpop.f32.mrf.mxu0
  %v489 = vadd.f32 0.0, %v488
  %v490 = vpop.f32.mrf.mxu0
  %491 = vmatprep.mubr.f32.mxu0 0.0
  %492 = vmatmul.mubr.f32.gmra.mxu0 %v154
  %v493 = vpop.f32.mrf.mxu0
  %v494 = vadd.f32 0.0, %v493
  %v495 = vpop.f32.mrf.mxu0
  %496 = vmatprep.mubr.f32.mxu0 0.0
  %497 = vmatmul.mubr.f32.gmra.mxu0 %v155
  %v498 = vpop.f32.mrf.mxu0
  %v499 = vadd.f32 0.0, %v498
  %v500 = vpop.f32.mrf.mxu0
  %501 = vmatprep.mubr.f32.mxu0 0.0
  %502 = vmatmul.mubr.f32.gmra.mxu0 %v156
  %v503 = vpop.f32.mrf.mxu0
  %v504 = vadd.f32 0.0, %v503
  %v505 = vpop.f32.mrf.mxu0
  %506 = vmatprep.mubr.f32.mxu0 0.0
  %507 = vmatmul.mubr.f32.gmra.mxu0 %v157
  %v508 = vpop.f32.mrf.mxu0
  %v509 = vadd.f32 0.0, %v508
  %v510 = vpop.f32.mrf.mxu0
  %511 = vmatprep.mubr.f32.mxu0 0.0
  %512 = vmatmul.mubr.f32.gmra.mxu0 %v158
  %v513 = vpop.f32.mrf.mxu0
  %v514 = vadd.f32 0.0, %v513
  %v515 = vpop.f32.mrf.mxu0
  %516 = vmatprep.mubr.f32.mxu0 0.0
  %517 = vmatmul.mubr.f32.gmra.mxu0 %v159
  %v518 = vpop.f32.mrf.mxu0
  %v519 = vadd.f32 0.0, %v518
  %v520 = vpop.f32.mrf.mxu0
  %521 = vmatprep.mubr.f32.mxu0 0.0
  %522 = vmatmul.mubr.f32.gmra.mxu0 %v160
  %v523 = vpop.f32.mrf.mxu0
  %v524 = vadd.f32 0.0, %v523
  %v525 = vpop.f32.mrf.mxu0
  %526 = vmatprep.mubr.f32.mxu0 0.0
  %527 = vmatmul.mubr.f32.gmra.mxu0 %v161
  %v528 = vpop.f32.mrf.mxu0
  %v529 = vadd.f32 0.0, %v528
  %v530 = vpop.f32.mrf.mxu0
  %531 = vmatprep.mubr.f32.mxu0 0.0
  %532 = vmatmul.mubr.f32.gmra.mxu0 %v162
  %v533 = vpop.f32.mrf.mxu0
  %v534 = vadd.f32 0.0, %v533
  %v535 = vpop.f32.mrf.mxu0
  %536 = vmatprep.mubr.f32.mxu0 0.0
  %537 = vmatmul.mubr.f32.gmra.mxu0 %v163
  %v538 = vpop.f32.mrf.mxu0
  %v539 = vadd.f32 0.0, %v538
  %v540 = vpop.f32.mrf.mxu0
  %541 = vmatprep.mubr.f32.mxu0 0.0
  %542 = vmatmul.mubr.f32.gmra.mxu0 %v164
  %v543 = vpop.f32.mrf.mxu0
  %v544 = vadd.f32 0.0, %v543
  %v545 = vpop.f32.mrf.mxu0
  %546 = vmatprep.mubr.f32.mxu0 0.0
  %547 = vmatmul.mubr.f32.gmra.mxu0 %v165
  %v548 = vpop.f32.mrf.mxu0
  %v549 = vadd.f32 0.0, %v548
  %v550 = vpop.f32.mrf.mxu0
  %551 = vmatprep.mubr.f32.mxu0 0.0
  %552 = vmatmul.mubr.f32.gmra.mxu0 %v166
  %v553 = vpop.f32.mrf.mxu0
  %v554 = vadd.f32 0.0, %v553
  %v555 = vpop.f32.mrf.mxu0
  %556 = vmatprep.mubr.f32.mxu0 0.0
  %557 = vmatmul.mubr.f32.gmra.mxu0 %v167
  %v558 = vpop.f32.mrf.mxu0
  %v559 = vadd.f32 0.0, %v558
  %v560 = vpop.f32.mrf.mxu0
  %561 = vmatprep.mubr.f32.mxu0 0.0
  %562 = vmatmul.mubr.f32.gmra.mxu0 %v168
  %v563 = vpop.f32.mrf.mxu0
  %v564 = vadd.f32 0.0, %v563
  %v565 = vpop.f32.mrf.mxu0
  %566 = vmatprep.mubr.f32.mxu0 0.0
  %567 = vmatmul.mubr.f32.gmra.mxu0 %v169
  %v568 = vpop.f32.mrf.mxu0
  %v569 = vadd.f32 0.0, %v568
  %v570 = vpop.f32.mrf.mxu0
  %571 = vdwg.mxu0
  %572 = vmatprep.subr.mxu0 0.0
  %573 = vmatpush1.msra.mxu0 %v105
  %574 = vmatprep.subr.mxu0 0.0
  %575 = vmatpush1.msra.mxu0 %v104
  %576 = vmatprep.subr.mxu0 0.0
  %577 = vmatpush1.msra.mxu0 %v103
  %578 = vmatprep.subr.mxu0 0.0
  %579 = vmatpush1.msra.mxu0 %v102
  %580 = vmatprep.subr.mxu0 0.0
  %581 = vmatpush1.msra.mxu0 %v101
  %582 = vmatprep.subr.mxu0 0.0
  %583 = vmatpush1.msra.mxu0 %v100
  %584 = vmatprep.subr.mxu0 0.0
  %585 = vmatpush1.msra.mxu0 %v99
  %586 = vmatprep.subr.mxu0 0.0
  %587 = vmatpush1.msra.mxu0 %v98
  %588 = vmatprep.subr.mxu0 0.0
  %589 = vmatpush1.msra.mxu0 %v97
  %590 = vmatprep.subr.mxu0 0.0
  %591 = vmatpush1.msra.mxu0 %v96
  %592 = vmatprep.subr.mxu0 0.0
  %593 = vmatpush1.msra.mxu0 %v95
  %594 = vmatprep.subr.mxu0 0.0
  %595 = vmatpush1.msra.mxu0 %v94
  %596 = vmatprep.subr.mxu0 0.0
  %597 = vmatpush1.msra.mxu0 %v93
  %598 = vmatprep.subr.mxu0 0.0
  %599 = vmatpush1.msra.mxu0 %v92
  %600 = vmatprep.subr.mxu0 0.0
  %601 = vmatpush1.msra.mxu0 %v91
  %602 = vmatprep.subr.mxu0 0.0
  %603 = vmatpush1.msra.mxu0 %v90
  %604 = vmatprep.subr.mxu0 0.0
  %605 = vmatpush2.msra.mxu0 0.0
  %606 = vmatprep.subr.mxu0 0.0
  %607 = vmatpush2.msra.mxu0 0.0
  %608 = vmatprep.subr.mxu0 0.0
  %609 = vmatpush2.msra.mxu0 0.0
  %610 = vmatprep.subr.mxu0 0.0
  %611 = vmatpush2.msra.mxu0 0.0
  %612 = vmatprep.subr.mxu0 0.0
  %613 = vmatpush2.msra.mxu0 0.0
  %614 = vmatprep.subr.mxu0 0.0
  %615 = vmatpush2.msra.mxu0 0.0
  %616 = vmatprep.subr.mxu0 0.0
  %617 = vmatpush2.msra.mxu0 0.0
  %618 = vmatprep.subr.mxu0 0.0
  %619 = vmatpush2.msra.mxu0 0.0
  %620 = vmatprep.subr.mxu0 0.0
  %621 = vmatpush2.msra.mxu0 0.0
  %622 = vmatprep.subr.mxu0 0.0
  %623 = vmatpush2.msra.mxu0 0.0
  %624 = vmatprep.subr.mxu0 0.0
  %625 = vmatpush2.msra.mxu0 0.0
  %626 = vmatprep.subr.mxu0 0.0
  %627 = vmatpush2.msra.mxu0 0.0
  %628 = vmatprep.subr.mxu0 0.0
  %629 = vmatpush2.msra.mxu0 0.0
  %630 = vmatprep.subr.mxu0 0.0
  %631 = vmatpush2.msra.mxu0 0.0
  %632 = vmatprep.subr.mxu0 0.0
  %633 = vmatpush2.msra.mxu0 0.0
  %634 = vmatprep.subr.mxu0 0.0
  %635 = vmatpush2.msra.mxu0 0.0
  %636 = vmatprep.mubr.f32.mxu0 0.0
  %637 = vmatmul.mubr.f32.gmra.mxu0 %v26
  %v638 = vpop.f32.mrf.mxu0
  %v639 = vadd.f32 %v254, %v638
  %v640 = vpop.f32.mrf.mxu0
  %641 = vmatprep.mubr.f32.mxu0 0.0
  %642 = vmatmul.mubr.f32.gmra.mxu0 %v27
  %v643 = vpop.f32.mrf.mxu0
  %v644 = vadd.f32 %v259, %v643
  %v645 = vpop.f32.mrf.mxu0
  %646 = vmatprep.mubr.f32.mxu0 0.0
  %647 = vmatmul.mubr.f32.gmra.mxu0 %v28
  %v648 = vpop.f32.mrf.mxu0
  %v649 = vadd.f32 %v264, %v648
  %v650 = vpop.f32.mrf.mxu0
  %651 = vmatprep.mubr.f32.mxu0 0.0
  %652 = vmatmul.mubr.f32.gmra.mxu0 %v29
  %v653 = vpop.f32.mrf.mxu0
  %v654 = vadd.f32 %v269, %v653
  %v655 = vpop.f32.mrf.mxu0
  %656 = vmatprep.mubr.f32.mxu0 0.0
  %657 = vmatmul.mubr.f32.gmra.mxu0 %v30
  %v658 = vpop.f32.mrf.mxu0
  %v659 = vadd.f32 %v274, %v658
  %v660 = vpop.f32.mrf.mxu0
  %661 = vmatprep.mubr.f32.mxu0 0.0
  %662 = vmatmul.mubr.f32.gmra.mxu0 %v31
  %v663 = vpop.f32.mrf.mxu0
  %v664 = vadd.f32 %v279, %v663
  %v665 = vpop.f32.mrf.mxu0
  %666 = vmatprep.mubr.f32.mxu0 0.0
  %667 = vmatmul.mubr.f32.gmra.mxu0 %v32
  %v668 = vpop.f32.mrf.mxu0
  %v669 = vadd.f32 %v284, %v668
  %v670 = vpop.f32.mrf.mxu0
  %671 = vmatprep.mubr.f32.mxu0 0.0
  %672 = vmatmul.mubr.f32.gmra.mxu0 %v33
  %v673 = vpop.f32.mrf.mxu0
  %v674 = vadd.f32 %v289, %v673
  %v675 = vpop.f32.mrf.mxu0
  %676 = vmatprep.mubr.f32.mxu0 0.0
  %677 = vmatmul.mubr.f32.gmra.mxu0 %v34
  %v678 = vpop.f32.mrf.mxu0
  %v679 = vadd.f32 %v294, %v678
  %v680 = vpop.f32.mrf.mxu0
  %681 = vmatprep.mubr.f32.mxu0 0.0
  %682 = vmatmul.mubr.f32.gmra.mxu0 %v35
  %v683 = vpop.f32.mrf.mxu0
  %v684 = vadd.f32 %v299, %v683
  %v685 = vpop.f32.mrf.mxu0
  %686 = vmatprep.mubr.f32.mxu0 0.0
  %687 = vmatmul.mubr.f32.gmra.mxu0 %v36
  %v688 = vpop.f32.mrf.mxu0
  %v689 = vadd.f32 %v304, %v688
  %v690 = vpop.f32.mrf.mxu0
  %691 = vmatprep.mubr.f32.mxu0 0.0
  %692 = vmatmul.mubr.f32.gmra.mxu0 %v37
  %v693 = vpop.f32.mrf.mxu0
  %v694 = vadd.f32 %v309, %v693
  %v695 = vpop.f32.mrf.mxu0
  %696 = vmatprep.mubr.f32.mxu0 0.0
  %697 = vmatmul.mubr.f32.gmra.mxu0 %v38
  %v698 = vpop.f32.mrf.mxu0
  %v699 = vadd.f32 %v314, %v698
  %v700 = vpop.f32.mrf.mxu0
  %701 = vmatprep.mubr.f32.mxu0 0.0
  %702 = vmatmul.mubr.f32.gmra.mxu0 %v39
  %v703 = vpop.f32.mrf.mxu0
  %v704 = vadd.f32 %v319, %v703
  %v705 = vpop.f32.mrf.mxu0
  %706 = vmatprep.mubr.f32.mxu0 0.0
  %707 = vmatmul.mubr.f32.gmra.mxu0 %v40
  %v708 = vpop.f32.mrf.mxu0
  %v709 = vadd.f32 %v324, %v708
  %v710 = vpop.f32.mrf.mxu0
  %711 = vmatprep.mubr.f32.mxu0 0.0
  %712 = vmatmul.mubr.f32.gmra.mxu0 %v41
  %v713 = vpop.f32.mrf.mxu0
  %v714 = vadd.f32 %v329, %v713
  %v715 = vpop.f32.mrf.mxu0
  %716 = vmatprep.mubr.f32.mxu0 0.0
  %717 = vmatmul.mubr.f32.gmra.mxu0 %v42
  %v718 = vpop.f32.mrf.mxu0
  %v719 = vadd.f32 %v334, %v718
  %v720 = vpop.f32.mrf.mxu0
  %721 = vmatprep.mubr.f32.mxu0 0.0
  %722 = vmatmul.mubr.f32.gmra.mxu0 %v43
  %v723 = vpop.f32.mrf.mxu0
  %v724 = vadd.f32 %v339, %v723
  %v725 = vpop.f32.mrf.mxu0
  %726 = vmatprep.mubr.f32.mxu0 0.0
  %727 = vmatmul.mubr.f32.gmra.mxu0 %v44
  %v728 = vpop.f32.mrf.mxu0
  %v729 = vadd.f32 %v344, %v728
  %v730 = vpop.f32.mrf.mxu0
  %731 = vmatprep.mubr.f32.mxu0 0.0
  %732 = vmatmul.mubr.f32.gmra.mxu0 %v45
  %v733 = vpop.f32.mrf.mxu0
  %v734 = vadd.f32 %v349, %v733
  %v735 = vpop.f32.mrf.mxu0
  %736 = vmatprep.mubr.f32.mxu0 0.0
  %737 = vmatmul.mubr.f32.gmra.mxu0 %v46
  %v738 = vpop.f32.mrf.mxu0
  %v739 = vadd.f32 %v354, %v738
  %v740 = vpop.f32.mrf.mxu0
  %741 = vmatprep.mubr.f32.mxu0 0.0
  %742 = vmatmul.mubr.f32.gmra.mxu0 %v47
  %v743 = vpop.f32.mrf.mxu0
  %v744 = vadd.f32 %v359, %v743
  %v745 = vpop.f32.mrf.mxu0
  %746 = vmatprep.mubr.f32.mxu0 0.0
  %747 = vmatmul.mubr.f32.gmra.mxu0 %v48
  %v748 = vpop.f32.mrf.mxu0
  %v749 = vadd.f32 %v364, %v748
  %v750 = vpop.f32.mrf.mxu0
  %751 = vmatprep.mubr.f32.mxu0 0.0
  %752 = vmatmul.mubr.f32.gmra.mxu0 %v49
  %v753 = vpop.f32.mrf.mxu0
  %v754 = vadd.f32 %v369, %v753
  %v755 = vpop.f32.mrf.mxu0
  %756 = vmatprep.mubr.f32.mxu0 0.0
  %757 = vmatmul.mubr.f32.gmra.mxu0 %v50
  %v758 = vpop.f32.mrf.mxu0
  %v759 = vadd.f32 %v374, %v758
  %v760 = vpop.f32.mrf.mxu0
  %761 = vmatprep.mubr.f32.mxu0 0.0
  %762 = vmatmul.mubr.f32.gmra.mxu0 %v51
  %v763 = vpop.f32.mrf.mxu0
  %v764 = vadd.f32 %v379, %v763
  %v765 = vpop.f32.mrf.mxu0
  %766 = vmatprep.mubr.f32.mxu0 0.0
  %767 = vmatmul.mubr.f32.gmra.mxu0 %v52
  %v768 = vpop.f32.mrf.mxu0
  %v769 = vadd.f32 %v384, %v768
  %v770 = vpop.f32.mrf.mxu0
  %771 = vmatprep.mubr.f32.mxu0 0.0
  %772 = vmatmul.mubr.f32.gmra.mxu0 %v53
  %v773 = vpop.f32.mrf.mxu0
  %v774 = vadd.f32 %v389, %v773
  %v775 = vpop.f32.mrf.mxu0
  %776 = vmatprep.mubr.f32.mxu0 0.0
  %777 = vmatmul.mubr.f32.gmra.mxu0 %v54
  %v778 = vpop.f32.mrf.mxu0
  %v779 = vadd.f32 %v394, %v778
  %v780 = vpop.f32.mrf.mxu0
  %781 = vmatprep.mubr.f32.mxu0 0.0
  %782 = vmatmul.mubr.f32.gmra.mxu0 %v55
  %v783 = vpop.f32.mrf.mxu0
  %v784 = vadd.f32 %v399, %v783
  %v785 = vpop.f32.mrf.mxu0
  %786 = vmatprep.mubr.f32.mxu0 0.0
  %787 = vmatmul.mubr.f32.gmra.mxu0 %v56
  %v788 = vpop.f32.mrf.mxu0
  %v789 = vadd.f32 %v404, %v788
  %v790 = vpop.f32.mrf.mxu0
  %791 = vmatprep.mubr.f32.mxu0 0.0
  %792 = vmatmul.mubr.f32.gmra.mxu0 %v57
  %v793 = vpop.f32.mrf.mxu0
  %v794 = vadd.f32 %v409, %v793
  %v795 = vpop.f32.mrf.mxu0
  %796 = vmatprep.mubr.f32.mxu0 0.0
  %797 = vmatmul.mubr.f32.gmra.mxu0 %v58
  %v798 = vpop.f32.mrf.mxu0
  %v799 = vadd.f32 %v414, %v798
  %v800 = vpop.f32.mrf.mxu0
  %801 = vmatprep.mubr.f32.mxu0 0.0
  %802 = vmatmul.mubr.f32.gmra.mxu0 %v59
  %v803 = vpop.f32.mrf.mxu0
  %v804 = vadd.f32 %v419, %v803
  %v805 = vpop.f32.mrf.mxu0
  %806 = vmatprep.mubr.f32.mxu0 0.0
  %807 = vmatmul.mubr.f32.gmra.mxu0 %v60
  %v808 = vpop.f32.mrf.mxu0
  %v809 = vadd.f32 %v424, %v808
  %v810 = vpop.f32.mrf.mxu0
  %811 = vmatprep.mubr.f32.mxu0 0.0
  %812 = vmatmul.mubr.f32.gmra.mxu0 %v61
  %v813 = vpop.f32.mrf.mxu0
  %v814 = vadd.f32 %v429, %v813
  %v815 = vpop.f32.mrf.mxu0
  %816 = vmatprep.mubr.f32.mxu0 0.0
  %817 = vmatmul.mubr.f32.gmra.mxu0 %v62
  %v818 = vpop.f32.mrf.mxu0
  %v819 = vadd.f32 %v434, %v818
  %v820 = vpop.f32.mrf.mxu0
  %821 = vmatprep.mubr.f32.mxu0 0.0
  %822 = vmatmul.mubr.f32.gmra.mxu0 %v63
  %v823 = vpop.f32.mrf.mxu0
  %v824 = vadd.f32 %v439, %v823
  %v825 = vpop.f32.mrf.mxu0
  %826 = vmatprep.mubr.f32.mxu0 0.0
  %827 = vmatmul.mubr.f32.gmra.mxu0 %v64
  %v828 = vpop.f32.mrf.mxu0
  %v829 = vadd.f32 %v444, %v828
  %v830 = vpop.f32.mrf.mxu0
  %831 = vmatprep.mubr.f32.mxu0 0.0
  %832 = vmatmul.mubr.f32.gmra.mxu0 %v65
  %v833 = vpop.f32.mrf.mxu0
  %v834 = vadd.f32 %v449, %v833
  %v835 = vpop.f32.mrf.mxu0
  %836 = vmatprep.mubr.f32.mxu0 0.0
  %837 = vmatmul.mubr.f32.gmra.mxu0 %v66
  %v838 = vpop.f32.mrf.mxu0
  %v839 = vadd.f32 %v454, %v838
  %v840 = vpop.f32.mrf.mxu0
  %841 = vmatprep.mubr.f32.mxu0 0.0
  %842 = vmatmul.mubr.f32.gmra.mxu0 %v67
  %v843 = vpop.f32.mrf.mxu0
  %v844 = vadd.f32 %v459, %v843
  %v845 = vpop.f32.mrf.mxu0
  %846 = vmatprep.mubr.f32.mxu0 0.0
  %847 = vmatmul.mubr.f32.gmra.mxu0 %v68
  %v848 = vpop.f32.mrf.mxu0
  %v849 = vadd.f32 %v464, %v848
  %v850 = vpop.f32.mrf.mxu0
  %851 = vmatprep.mubr.f32.mxu0 0.0
  %852 = vmatmul.mubr.f32.gmra.mxu0 %v69
  %v853 = vpop.f32.mrf.mxu0
  %v854 = vadd.f32 %v469, %v853
  %v855 = vpop.f32.mrf.mxu0
  %856 = vmatprep.mubr.f32.mxu0 0.0
  %857 = vmatmul.mubr.f32.gmra.mxu0 %v70
  %v858 = vpop.f32.mrf.mxu0
  %v859 = vadd.f32 %v474, %v858
  %v860 = vpop.f32.mrf.mxu0
  %861 = vmatprep.mubr.f32.mxu0 0.0
  %862 = vmatmul.mubr.f32.gmra.mxu0 %v71
  %v863 = vpop.f32.mrf.mxu0
  %v864 = vadd.f32 %v479, %v863
  %v865 = vpop.f32.mrf.mxu0
  %866 = vmatprep.mubr.f32.mxu0 0.0
  %867 = vmatmul.mubr.f32.gmra.mxu0 %v72
  %v868 = vpop.f32.mrf.mxu0
  %v869 = vadd.f32 %v484, %v868
  %v870 = vpop.f32.mrf.mxu0
  %871 = vmatprep.mubr.f32.mxu0 0.0
  %872 = vmatmul.mubr.f32.gmra.mxu0 %v73
  %v873 = vpop.f32.mrf.mxu0
  %v874 = vadd.f32 %v489, %v873
  %v875 = vpop.f32.mrf.mxu0
  %876 = vmatprep.mubr.f32.mxu0 0.0
  %877 = vmatmul.mubr.f32.gmra.mxu0 %v74
  %v878 = vpop.f32.mrf.mxu0
  %v879 = vadd.f32 %v494, %v878
  %v880 = vpop.f32.mrf.mxu0
  %881 = vmatprep.mubr.f32.mxu0 0.0
  %882 = vmatmul.mubr.f32.gmra.mxu0 %v75
  %v883 = vpop.f32.mrf.mxu0
  %v884 = vadd.f32 %v499, %v883
  %v885 = vpop.f32.mrf.mxu0
  %886 = vmatprep.mubr.f32.mxu0 0.0
  %887 = vmatmul.mubr.f32.gmra.mxu0 %v76
  %v888 = vpop.f32.mrf.mxu0
  %v889 = vadd.f32 %v504, %v888
  %v890 = vpop.f32.mrf.mxu0
  %891 = vmatprep.mubr.f32.mxu0 0.0
  %892 = vmatmul.mubr.f32.gmra.mxu0 %v77
  %v893 = vpop.f32.mrf.mxu0
  %v894 = vadd.f32 %v509, %v893
  %v895 = vpop.f32.mrf.mxu0
  %896 = vmatprep.mubr.f32.mxu0 0.0
  %897 = vmatmul.mubr.f32.gmra.mxu0 %v78
  %v898 = vpop.f32.mrf.mxu0
  %v899 = vadd.f32 %v514, %v898
  %v900 = vpop.f32.mrf.mxu0
  %901 = vmatprep.mubr.f32.mxu0 0.0
  %902 = vmatmul.mubr.f32.gmra.mxu0 %v79
  %v903 = vpop.f32.mrf.mxu0
  %v904 = vadd.f32 %v519, %v903
  %v905 = vpop.f32.mrf.mxu0
  %906 = vmatprep.mubr.f32.mxu0 0.0
  %907 = vmatmul.mubr.f32.gmra.mxu0 %v80
  %v908 = vpop.f32.mrf.mxu0
  %v909 = vadd.f32 %v524, %v908
  %v910 = vpop.f32.mrf.mxu0
  %911 = vmatprep.mubr.f32.mxu0 0.0
  %912 = vmatmul.mubr.f32.gmra.mxu0 %v81
  %v913 = vpop.f32.mrf.mxu0
  %v914 = vadd.f32 %v529, %v913
  %v915 = vpop.f32.mrf.mxu0
  %916 = vmatprep.mubr.f32.mxu0 0.0
  %917 = vmatmul.mubr.f32.gmra.mxu0 %v82
  %v918 = vpop.f32.mrf.mxu0
  %v919 = vadd.f32 %v534, %v918
  %v920 = vpop.f32.mrf.mxu0
  %921 = vmatprep.mubr.f32.mxu0 0.0
  %922 = vmatmul.mubr.f32.gmra.mxu0 %v83
  %v923 = vpop.f32.mrf.mxu0
  %v924 = vadd.f32 %v539, %v923
  %v925 = vpop.f32.mrf.mxu0
  %926 = vmatprep.mubr.f32.mxu0 0.0
  %927 = vmatmul.mubr.f32.gmra.mxu0 %v84
  %v928 = vpop.f32.mrf.mxu0
  %v929 = vadd.f32 %v544, %v928
  %v930 = vpop.f32.mrf.mxu0
  %931 = vmatprep.mubr.f32.mxu0 0.0
  %932 = vmatmul.mubr.f32.gmra.mxu0 %v85
  %v933 = vpop.f32.mrf.mxu0
  %v934 = vadd.f32 %v549, %v933
  %v935 = vpop.f32.mrf.mxu0
  %936 = vmatprep.mubr.f32.mxu0 0.0
  %937 = vmatmul.mubr.f32.gmra.mxu0 %v86
  %v938 = vpop.f32.mrf.mxu0
  %v939 = vadd.f32 %v554, %v938
  %v940 = vpop.f32.mrf.mxu0
  %941 = vmatprep.mubr.f32.mxu0 0.0
  %942 = vmatmul.mubr.f32.gmra.mxu0 %v87
  %v943 = vpop.f32.mrf.mxu0
  %v944 = vadd.f32 %v559, %v943
  %v945 = vpop.f32.mrf.mxu0
  %946 = vmatprep.mubr.f32.mxu0 0.0
  %947 = vmatmul.mubr.f32.gmra.mxu0 %v88
  %v948 = vpop.f32.mrf.mxu0
  %v949 = vadd.f32 %v564, %v948
  %v950 = vpop.f32.mrf.mxu0
  %951 = vmatprep.mubr.f32.mxu0 0.0
  %952 = vmatmul.mubr.f32.gmra.mxu0 %v89
  %v953 = vpop.f32.mrf.mxu0
  %v954 = vadd.f32 %v569, %v953
  %v955 = vpop.f32.mrf.mxu0
  %956 = vdwg.mxu0
  %v957 = vld [vmem:[%s0 + $0x2] sm:$0xff]
  %v958 = vld [vmem:[%s0 + $0xa] sm:$0xff]
  %v959 = vld [vmem:[%s0 + $0x1a] sm:$0xff]
  %v960 = vld [vmem:[%s0 + $0x22] sm:$0xff]
  %v961 = vld [vmem:[%s0 + $0x32] sm:$0xff]
  %v962 = vld [vmem:[%s0 + $0x3a] sm:$0xff]
  %v963 = vld [vmem:[%s0 + $0x4a] sm:$0xff]
  %v964 = vld [vmem:[%s0 + $0x52] sm:$0xff]
  %v965 = vld [vmem:[%s0 + $0x62] sm:$0xff]
  %v966 = vld [vmem:[%s0 + $0x6a] sm:$0xff]
  %v967 = vld [vmem:[%s0 + $0x7a] sm:$0xff]
  %v968 = vld [vmem:[%s0 + $0x82] sm:$0xff]
  %v969 = vld [vmem:[%s0 + $0x92] sm:$0xff]
  %v970 = vld [vmem:[%s0 + $0x9a] sm:$0xff]
  %v971 = vld [vmem:[%s0 + $0xaa] sm:$0xff]
  %v972 = vld [vmem:[%s0 + $0xb2] sm:$0xff]
  %v973 = vld [vmem:[%s0 + $0xc2] sm:$0xff]
  %v974 = vld [vmem:[%s0 + $0xca] sm:$0xff]
  %v975 = vld [vmem:[%s0 + $0xda] sm:$0xff]
  %v976 = vld [vmem:[%s0 + $0xe2] sm:$0xff]
  %v977 = vld [vmem:[%s0 + $0xf2] sm:$0xff]
  %v978 = vld [vmem:[%s0 + $0xfa] sm:$0xff]
  %v979 = vld [vmem:[%s0 + $0x10a] sm:$0xff]
  %v980 = vld [vmem:[%s0 + $0x112] sm:$0xff]
  %v981 = vld [vmem:[%s0 + $0x122] sm:$0xff]
  %v982 = vld [vmem:[%s0 + $0x12a] sm:$0xff]
  %v983 = vld [vmem:[%s0 + $0x13a] sm:$0xff]
  %v984 = vld [vmem:[%s0 + $0x142] sm:$0xff]
  %v985 = vld [vmem:[%s0 + $0x152] sm:$0xff]
  %v986 = vld [vmem:[%s0 + $0x15a] sm:$0xff]
  %v987 = vld [vmem:[%s0 + $0x16a] sm:$0xff]
  %v988 = vld [vmem:[%s0 + $0x172] sm:$0xff]
  %v989 = vld [vmem:[%s0 + $0x1b2] sm:$0xff]
  %v990 = vld [vmem:[%s0 + $0x1ba] sm:$0xff]
  %v991 = vld [vmem:[%s0 + $0x1ca] sm:$0xff]
  %v992 = vld [vmem:[%s0 + $0x1d2] sm:$0xff]
  %v993 = vld [vmem:[%s0 + $0x1e2] sm:$0xff]
  %v994 = vld [vmem:[%s0 + $0x1ea] sm:$0xff]
  %v995 = vld [vmem:[%s0 + $0x1fa] sm:$0xff]
  %v996 = vld [vmem:[%s0 + $0x202] sm:$0xff]
  %v997 = vld [vmem:[%s0 + $0x212] sm:$0xff]
  %v998 = vld [vmem:[%s0 + $0x21a] sm:$0xff]
  %v999 = vld [vmem:[%s0 + $0x22a] sm:$0xff]
  %v1000 = vld [vmem:[%s0 + $0x232] sm:$0xff]
  %v1001 = vld [vmem:[%s0 + $0x242] sm:$0xff]
  %v1002 = vld [vmem:[%s0 + $0x24a] sm:$0xff]
  %v1003 = vld [vmem:[%s0 + $0x25a] sm:$0xff]
  %v1004 = vld [vmem:[%s0 + $0x262] sm:$0xff]
  %v1005 = vld [vmem:[%s0 + $0x272] sm:$0xff]
  %v1006 = vld [vmem:[%s0 + $0x27a] sm:$0xff]
  %v1007 = vld [vmem:[%s0 + $0x28a] sm:$0xff]
  %v1008 = vld [vmem:[%s0 + $0x292] sm:$0xff]
  %v1009 = vld [vmem:[%s0 + $0x2a2] sm:$0xff]
  %v1010 = vld [vmem:[%s0 + $0x2aa] sm:$0xff]
  %v1011 = vld [vmem:[%s0 + $0x2ba] sm:$0xff]
  %v1012 = vld [vmem:[%s0 + $0x2c2] sm:$0xff]
  %v1013 = vld [vmem:[%s0 + $0x2d2] sm:$0xff]
  %v1014 = vld [vmem:[%s0 + $0x2da] sm:$0xff]
  %v1015 = vld [vmem:[%s0 + $0x2ea] sm:$0xff]
  %v1016 = vld [vmem:[%s0 + $0x2f2] sm:$0xff]
  %v1017 = vld [vmem:[%s0 + $0x302] sm:$0xff]
  %v1018 = vld [vmem:[%s0 + $0x30a] sm:$0xff]
  %v1019 = vld [vmem:[%s0 + $0x31a] sm:$0xff]
  %v1020 = vld [vmem:[%s0 + $0x322] sm:$0xff]
  %s1021 = scalar_lea.vmem %s1, 256
  %v1022 = vld [vmem:[%s1021] sm:$0xff]
  %v1023 = vld [vmem:[%s1021 + $0x8] sm:$0xff]
  %v1024 = vld [vmem:[%s1021 + $0x10] sm:$0xff]
  %v1025 = vld [vmem:[%s1021 + $0x18] sm:$0xff]
  %v1026 = vld [vmem:[%s1021 + $0x20] sm:$0xff]
  %v1027 = vld [vmem:[%s1021 + $0x28] sm:$0xff]
  %v1028 = vld [vmem:[%s1021 + $0x30] sm:$0xff]
  %v1029 = vld [vmem:[%s1021 + $0x38] sm:$0xff]
  %v1030 = vld [vmem:[%s1021 + $0x40] sm:$0xff]
  %v1031 = vld [vmem:[%s1021 + $0x48] sm:$0xff]
  %v1032 = vld [vmem:[%s1021 + $0x50] sm:$0xff]
  %v1033 = vld [vmem:[%s1021 + $0x58] sm:$0xff]
  %v1034 = vld [vmem:[%s1021 + $0x60] sm:$0xff]
  %v1035 = vld [vmem:[%s1021 + $0x68] sm:$0xff]
  %v1036 = vld [vmem:[%s1021 + $0x70] sm:$0xff]
  %v1037 = vld [vmem:[%s1021 + $0x78] sm:$0xff]
  %1038 = vmatprep.subr.mxu0 0.0
  %1039 = vmatpush1.msra.mxu0 %v1037
  %1040 = vmatprep.subr.mxu0 0.0
  %1041 = vmatpush1.msra.mxu0 %v1036
  %1042 = vmatprep.subr.mxu0 0.0
  %1043 = vmatpush1.msra.mxu0 %v1035
  %1044 = vmatprep.subr.mxu0 0.0
  %1045 = vmatpush1.msra.mxu0 %v1034
  %1046 = vmatprep.subr.mxu0 0.0
  %1047 = vmatpush1.msra.mxu0 %v1033
  %1048 = vmatprep.subr.mxu0 0.0
  %1049 = vmatpush1.msra.mxu0 %v1032
  %1050 = vmatprep.subr.mxu0 0.0
  %1051 = vmatpush1.msra.mxu0 %v1031
  %1052 = vmatprep.subr.mxu0 0.0
  %1053 = vmatpush1.msra.mxu0 %v1030
  %1054 = vmatprep.subr.mxu0 0.0
  %1055 = vmatpush1.msra.mxu0 %v1029
  %1056 = vmatprep.subr.mxu0 0.0
  %1057 = vmatpush1.msra.mxu0 %v1028
  %1058 = vmatprep.subr.mxu0 0.0
  %1059 = vmatpush1.msra.mxu0 %v1027
  %1060 = vmatprep.subr.mxu0 0.0
  %1061 = vmatpush1.msra.mxu0 %v1026
  %1062 = vmatprep.subr.mxu0 0.0
  %1063 = vmatpush1.msra.mxu0 %v1025
  %1064 = vmatprep.subr.mxu0 0.0
  %1065 = vmatpush1.msra.mxu0 %v1024
  %1066 = vmatprep.subr.mxu0 0.0
  %1067 = vmatpush1.msra.mxu0 %v1023
  %1068 = vmatprep.subr.mxu0 0.0
  %1069 = vmatpush1.msra.mxu0 %v1022
  %1070 = vmatprep.subr.mxu0 0.0
  %1071 = vmatpush2.msra.mxu0 0.0
  %1072 = vmatprep.subr.mxu0 0.0
  %1073 = vmatpush2.msra.mxu0 0.0
  %1074 = vmatprep.subr.mxu0 0.0
  %1075 = vmatpush2.msra.mxu0 0.0
  %1076 = vmatprep.subr.mxu0 0.0
  %1077 = vmatpush2.msra.mxu0 0.0
  %1078 = vmatprep.subr.mxu0 0.0
  %1079 = vmatpush2.msra.mxu0 0.0
  %1080 = vmatprep.subr.mxu0 0.0
  %1081 = vmatpush2.msra.mxu0 0.0
  %1082 = vmatprep.subr.mxu0 0.0
  %1083 = vmatpush2.msra.mxu0 0.0
  %1084 = vmatprep.subr.mxu0 0.0
  %1085 = vmatpush2.msra.mxu0 0.0
  %1086 = vmatprep.subr.mxu0 0.0
  %1087 = vmatpush2.msra.mxu0 0.0
  %1088 = vmatprep.subr.mxu0 0.0
  %1089 = vmatpush2.msra.mxu0 0.0
  %1090 = vmatprep.subr.mxu0 0.0
  %1091 = vmatpush2.msra.mxu0 0.0
  %1092 = vmatprep.subr.mxu0 0.0
  %1093 = vmatpush2.msra.mxu0 0.0
  %1094 = vmatprep.subr.mxu0 0.0
  %1095 = vmatpush2.msra.mxu0 0.0
  %1096 = vmatprep.subr.mxu0 0.0
  %1097 = vmatpush2.msra.mxu0 0.0
  %1098 = vmatprep.subr.mxu0 0.0
  %1099 = vmatpush2.msra.mxu0 0.0
  %1100 = vmatprep.subr.mxu0 0.0
  %1101 = vmatpush2.msra.mxu0 0.0
  %1102 = vmatprep.mubr.f32.mxu0 0.0
  %1103 = vmatmul.mubr.f32.gmra.mxu0 %v957
  %v1104 = vpop.f32.mrf.mxu0
  %v1105 = vadd.f32 0.0, %v1104
  %v1106 = vpop.f32.mrf.mxu0
  %1107 = vmatprep.mubr.f32.mxu0 0.0
  %1108 = vmatmul.mubr.f32.gmra.mxu0 %v958
  %v1109 = vpop.f32.mrf.mxu0
  %v1110 = vadd.f32 0.0, %v1109
  %v1111 = vpop.f32.mrf.mxu0
  %1112 = vmatprep.mubr.f32.mxu0 0.0
  %1113 = vmatmul.mubr.f32.gmra.mxu0 %v959
  %v1114 = vpop.f32.mrf.mxu0
  %v1115 = vadd.f32 0.0, %v1114
  %v1116 = vpop.f32.mrf.mxu0
  %1117 = vmatprep.mubr.f32.mxu0 0.0
  %1118 = vmatmul.mubr.f32.gmra.mxu0 %v960
  %v1119 = vpop.f32.mrf.mxu0
  %v1120 = vadd.f32 0.0, %v1119
  %v1121 = vpop.f32.mrf.mxu0
  %1122 = vmatprep.mubr.f32.mxu0 0.0
  %1123 = vmatmul.mubr.f32.gmra.mxu0 %v961
  %v1124 = vpop.f32.mrf.mxu0
  %v1125 = vadd.f32 0.0, %v1124
  %v1126 = vpop.f32.mrf.mxu0
  %1127 = vmatprep.mubr.f32.mxu0 0.0
  %1128 = vmatmul.mubr.f32.gmra.mxu0 %v962
  %v1129 = vpop.f32.mrf.mxu0
  %v1130 = vadd.f32 0.0, %v1129
  %v1131 = vpop.f32.mrf.mxu0
  %1132 = vmatprep.mubr.f32.mxu0 0.0
  %1133 = vmatmul.mubr.f32.gmra.mxu0 %v963
  %v1134 = vpop.f32.mrf.mxu0
  %v1135 = vadd.f32 0.0, %v1134
  %v1136 = vpop.f32.mrf.mxu0
  %1137 = vmatprep.mubr.f32.mxu0 0.0
  %1138 = vmatmul.mubr.f32.gmra.mxu0 %v964
  %v1139 = vpop.f32.mrf.mxu0
  %v1140 = vadd.f32 0.0, %v1139
  %v1141 = vpop.f32.mrf.mxu0
  %1142 = vmatprep.mubr.f32.mxu0 0.0
  %1143 = vmatmul.mubr.f32.gmra.mxu0 %v965
  %v1144 = vpop.f32.mrf.mxu0
  %v1145 = vadd.f32 0.0, %v1144
  %v1146 = vpop.f32.mrf.mxu0
  %1147 = vmatprep.mubr.f32.mxu0 0.0
  %1148 = vmatmul.mubr.f32.gmra.mxu0 %v966
  %v1149 = vpop.f32.mrf.mxu0
  %v1150 = vadd.f32 0.0, %v1149
  %v1151 = vpop.f32.mrf.mxu0
  %1152 = vmatprep.mubr.f32.mxu0 0.0
  %1153 = vmatmul.mubr.f32.gmra.mxu0 %v967
  %v1154 = vpop.f32.mrf.mxu0
  %v1155 = vadd.f32 0.0, %v1154
  %v1156 = vpop.f32.mrf.mxu0
  %1157 = vmatprep.mubr.f32.mxu0 0.0
  %1158 = vmatmul.mubr.f32.gmra.mxu0 %v968
  %v1159 = vpop.f32.mrf.mxu0
  %v1160 = vadd.f32 0.0, %v1159
  %v1161 = vpop.f32.mrf.mxu0
  %1162 = vmatprep.mubr.f32.mxu0 0.0
  %1163 = vmatmul.mubr.f32.gmra.mxu0 %v969
  %v1164 = vpop.f32.mrf.mxu0
  %v1165 = vadd.f32 0.0, %v1164
  %v1166 = vpop.f32.mrf.mxu0
  %1167 = vmatprep.mubr.f32.mxu0 0.0
  %1168 = vmatmul.mubr.f32.gmra.mxu0 %v970
  %v1169 = vpop.f32.mrf.mxu0
  %v1170 = vadd.f32 0.0, %v1169
  %v1171 = vpop.f32.mrf.mxu0
  %1172 = vmatprep.mubr.f32.mxu0 0.0
  %1173 = vmatmul.mubr.f32.gmra.mxu0 %v971
  %v1174 = vpop.f32.mrf.mxu0
  %v1175 = vadd.f32 0.0, %v1174
  %v1176 = vpop.f32.mrf.mxu0
  %1177 = vmatprep.mubr.f32.mxu0 0.0
  %1178 = vmatmul.mubr.f32.gmra.mxu0 %v972
  %v1179 = vpop.f32.mrf.mxu0
  %v1180 = vadd.f32 0.0, %v1179
  %v1181 = vpop.f32.mrf.mxu0
  %1182 = vmatprep.mubr.f32.mxu0 0.0
  %1183 = vmatmul.mubr.f32.gmra.mxu0 %v973
  %v1184 = vpop.f32.mrf.mxu0
  %v1185 = vadd.f32 0.0, %v1184
  %v1186 = vpop.f32.mrf.mxu0
  %1187 = vmatprep.mubr.f32.mxu0 0.0
  %1188 = vmatmul.mubr.f32.gmra.mxu0 %v974
  %v1189 = vpop.f32.mrf.mxu0
  %v1190 = vadd.f32 0.0, %v1189
  %v1191 = vpop.f32.mrf.mxu0
  %1192 = vmatprep.mubr.f32.mxu0 0.0
  %1193 = vmatmul.mubr.f32.gmra.mxu0 %v975
  %v1194 = vpop.f32.mrf.mxu0
  %v1195 = vadd.f32 0.0, %v1194
  %v1196 = vpop.f32.mrf.mxu0
  %1197 = vmatprep.mubr.f32.mxu0 0.0
  %1198 = vmatmul.mubr.f32.gmra.mxu0 %v976
  %v1199 = vpop.f32.mrf.mxu0
  %v1200 = vadd.f32 0.0, %v1199
  %v1201 = vpop.f32.mrf.mxu0
  %1202 = vmatprep.mubr.f32.mxu0 0.0
  %1203 = vmatmul.mubr.f32.gmra.mxu0 %v977
  %v1204 = vpop.f32.mrf.mxu0
  %v1205 = vadd.f32 0.0, %v1204
  %v1206 = vpop.f32.mrf.mxu0
  %1207 = vmatprep.mubr.f32.mxu0 0.0
  %1208 = vmatmul.mubr.f32.gmra.mxu0 %v978
  %v1209 = vpop.f32.mrf.mxu0
  %v1210 = vadd.f32 0.0, %v1209
  %v1211 = vpop.f32.mrf.mxu0
  %1212 = vmatprep.mubr.f32.mxu0 0.0
  %1213 = vmatmul.mubr.f32.gmra.mxu0 %v979
  %v1214 = vpop.f32.mrf.mxu0
  %v1215 = vadd.f32 0.0, %v1214
  %v1216 = vpop.f32.mrf.mxu0
  %1217 = vmatprep.mubr.f32.mxu0 0.0
  %1218 = vmatmul.mubr.f32.gmra.mxu0 %v980
  %v1219 = vpop.f32.mrf.mxu0
  %v1220 = vadd.f32 0.0, %v1219
  %v1221 = vpop.f32.mrf.mxu0
  %1222 = vmatprep.mubr.f32.mxu0 0.0
  %1223 = vmatmul.mubr.f32.gmra.mxu0 %v981
  %v1224 = vpop.f32.mrf.mxu0
  %v1225 = vadd.f32 0.0, %v1224
  %v1226 = vpop.f32.mrf.mxu0
  %1227 = vmatprep.mubr.f32.mxu0 0.0
  %1228 = vmatmul.mubr.f32.gmra.mxu0 %v982
  %v1229 = vpop.f32.mrf.mxu0
  %v1230 = vadd.f32 0.0, %v1229
  %v1231 = vpop.f32.mrf.mxu0
  %1232 = vmatprep.mubr.f32.mxu0 0.0
  %1233 = vmatmul.mubr.f32.gmra.mxu0 %v983
  %v1234 = vpop.f32.mrf.mxu0
  %v1235 = vadd.f32 0.0, %v1234
  %v1236 = vpop.f32.mrf.mxu0
  %1237 = vmatprep.mubr.f32.mxu0 0.0
  %1238 = vmatmul.mubr.f32.gmra.mxu0 %v984
  %v1239 = vpop.f32.mrf.mxu0
  %v1240 = vadd.f32 0.0, %v1239
  %v1241 = vpop.f32.mrf.mxu0
  %1242 = vmatprep.mubr.f32.mxu0 0.0
  %1243 = vmatmul.mubr.f32.gmra.mxu0 %v985
  %v1244 = vpop.f32.mrf.mxu0
  %v1245 = vadd.f32 0.0, %v1244
  %v1246 = vpop.f32.mrf.mxu0
  %1247 = vmatprep.mubr.f32.mxu0 0.0
  %1248 = vmatmul.mubr.f32.gmra.mxu0 %v986
  %v1249 = vpop.f32.mrf.mxu0
  %v1250 = vadd.f32 0.0, %v1249
  %v1251 = vpop.f32.mrf.mxu0
  %1252 = vmatprep.mubr.f32.mxu0 0.0
  %1253 = vmatmul.mubr.f32.gmra.mxu0 %v987
  %v1254 = vpop.f32.mrf.mxu0
  %v1255 = vadd.f32 0.0, %v1254
  %v1256 = vpop.f32.mrf.mxu0
  %1257 = vmatprep.mubr.f32.mxu0 0.0
  %1258 = vmatmul.mubr.f32.gmra.mxu0 %v988
  %v1259 = vpop.f32.mrf.mxu0
  %v1260 = vadd.f32 0.0, %v1259
  %v1261 = vpop.f32.mrf.mxu0
  %1262 = vmatprep.mubr.f32.mxu0 0.0
  %1263 = vmatmul.mubr.f32.gmra.mxu0 %v989
  %v1264 = vpop.f32.mrf.mxu0
  %v1265 = vadd.f32 0.0, %v1264
  %v1266 = vpop.f32.mrf.mxu0
  %1267 = vmatprep.mubr.f32.mxu0 0.0
  %1268 = vmatmul.mubr.f32.gmra.mxu0 %v990
  %v1269 = vpop.f32.mrf.mxu0
  %v1270 = vadd.f32 0.0, %v1269
  %v1271 = vpop.f32.mrf.mxu0
  %1272 = vmatprep.mubr.f32.mxu0 0.0
  %1273 = vmatmul.mubr.f32.gmra.mxu0 %v991
  %v1274 = vpop.f32.mrf.mxu0
  %v1275 = vadd.f32 0.0, %v1274
  %v1276 = vpop.f32.mrf.mxu0
  %1277 = vmatprep.mubr.f32.mxu0 0.0
  %1278 = vmatmul.mubr.f32.gmra.mxu0 %v992
  %v1279 = vpop.f32.mrf.mxu0
  %v1280 = vadd.f32 0.0, %v1279
  %v1281 = vpop.f32.mrf.mxu0
  %1282 = vmatprep.mubr.f32.mxu0 0.0
  %1283 = vmatmul.mubr.f32.gmra.mxu0 %v993
  %v1284 = vpop.f32.mrf.mxu0
  %v1285 = vadd.f32 0.0, %v1284
  %v1286 = vpop.f32.mrf.mxu0
  %1287 = vmatprep.mubr.f32.mxu0 0.0
  %1288 = vmatmul.mubr.f32.gmra.mxu0 %v994
  %v1289 = vpop.f32.mrf.mxu0
  %v1290 = vadd.f32 0.0, %v1289
  %v1291 = vpop.f32.mrf.mxu0
  %1292 = vmatprep.mubr.f32.mxu0 0.0
  %1293 = vmatmul.mubr.f32.gmra.mxu0 %v995
  %v1294 = vpop.f32.mrf.mxu0
  %v1295 = vadd.f32 0.0, %v1294
  %v1296 = vpop.f32.mrf.mxu0
  %1297 = vmatprep.mubr.f32.mxu0 0.0
  %1298 = vmatmul.mubr.f32.gmra.mxu0 %v996
  %v1299 = vpop.f32.mrf.mxu0
  %v1300 = vadd.f32 0.0, %v1299
  %v1301 = vpop.f32.mrf.mxu0
  %1302 = vmatprep.mubr.f32.mxu0 0.0
  %1303 = vmatmul.mubr.f32.gmra.mxu0 %v997
  %v1304 = vpop.f32.mrf.mxu0
  %v1305 = vadd.f32 0.0, %v1304
  %v1306 = vpop.f32.mrf.mxu0
  %1307 = vmatprep.mubr.f32.mxu0 0.0
  %1308 = vmatmul.mubr.f32.gmra.mxu0 %v998
  %v1309 = vpop.f32.mrf.mxu0
  %v1310 = vadd.f32 0.0, %v1309
  %v1311 = vpop.f32.mrf.mxu0
  %1312 = vmatprep.mubr.f32.mxu0 0.0
  %1313 = vmatmul.mubr.f32.gmra.mxu0 %v999
  %v1314 = vpop.f32.mrf.mxu0
  %v1315 = vadd.f32 0.0, %v1314
  %v1316 = vpop.f32.mrf.mxu0
  %1317 = vmatprep.mubr.f32.mxu0 0.0
  %1318 = vmatmul.mubr.f32.gmra.mxu0 %v1000
  %v1319 = vpop.f32.mrf.mxu0
  %v1320 = vadd.f32 0.0, %v1319
  %v1321 = vpop.f32.mrf.mxu0
  %1322 = vmatprep.mubr.f32.mxu0 0.0
  %1323 = vmatmul.mubr.f32.gmra.mxu0 %v1001
  %v1324 = vpop.f32.mrf.mxu0
  %v1325 = vadd.f32 0.0, %v1324
  %v1326 = vpop.f32.mrf.mxu0
  %1327 = vmatprep.mubr.f32.mxu0 0.0
  %1328 = vmatmul.mubr.f32.gmra.mxu0 %v1002
  %v1329 = vpop.f32.mrf.mxu0
  %v1330 = vadd.f32 0.0, %v1329
  %v1331 = vpop.f32.mrf.mxu0
  %1332 = vmatprep.mubr.f32.mxu0 0.0
  %1333 = vmatmul.mubr.f32.gmra.mxu0 %v1003
  %v1334 = vpop.f32.mrf.mxu0
  %v1335 = vadd.f32 0.0, %v1334
  %v1336 = vpop.f32.mrf.mxu0
  %1337 = vmatprep.mubr.f32.mxu0 0.0
  %1338 = vmatmul.mubr.f32.gmra.mxu0 %v1004
  %v1339 = vpop.f32.mrf.mxu0
  %v1340 = vadd.f32 0.0, %v1339
  %v1341 = vpop.f32.mrf.mxu0
  %1342 = vmatprep.mubr.f32.mxu0 0.0
  %1343 = vmatmul.mubr.f32.gmra.mxu0 %v1005
  %v1344 = vpop.f32.mrf.mxu0
  %v1345 = vadd.f32 0.0, %v1344
  %v1346 = vpop.f32.mrf.mxu0
  %1347 = vmatprep.mubr.f32.mxu0 0.0
  %1348 = vmatmul.mubr.f32.gmra.mxu0 %v1006
  %v1349 = vpop.f32.mrf.mxu0
  %v1350 = vadd.f32 0.0, %v1349
  %v1351 = vpop.f32.mrf.mxu0
  %1352 = vmatprep.mubr.f32.mxu0 0.0
  %1353 = vmatmul.mubr.f32.gmra.mxu0 %v1007
  %v1354 = vpop.f32.mrf.mxu0
  %v1355 = vadd.f32 0.0, %v1354
  %v1356 = vpop.f32.mrf.mxu0
  %1357 = vmatprep.mubr.f32.mxu0 0.0
  %1358 = vmatmul.mubr.f32.gmra.mxu0 %v1008
  %v1359 = vpop.f32.mrf.mxu0
  %v1360 = vadd.f32 0.0, %v1359
  %v1361 = vpop.f32.mrf.mxu0
  %1362 = vmatprep.mubr.f32.mxu0 0.0
  %1363 = vmatmul.mubr.f32.gmra.mxu0 %v1009
  %v1364 = vpop.f32.mrf.mxu0
  %v1365 = vadd.f32 0.0, %v1364
  %v1366 = vpop.f32.mrf.mxu0
  %1367 = vmatprep.mubr.f32.mxu0 0.0
  %1368 = vmatmul.mubr.f32.gmra.mxu0 %v1010
  %v1369 = vpop.f32.mrf.mxu0
  %v1370 = vadd.f32 0.0, %v1369
  %v1371 = vpop.f32.mrf.mxu0
  %1372 = vmatprep.mubr.f32.mxu0 0.0
  %1373 = vmatmul.mubr.f32.gmra.mxu0 %v1011
  %v1374 = vpop.f32.mrf.mxu0
  %v1375 = vadd.f32 0.0, %v1374
  %v1376 = vpop.f32.mrf.mxu0
  %1377 = vmatprep.mubr.f32.mxu0 0.0
  %1378 = vmatmul.mubr.f32.gmra.mxu0 %v1012
  %v1379 = vpop.f32.mrf.mxu0
  %v1380 = vadd.f32 0.0, %v1379
  %v1381 = vpop.f32.mrf.mxu0
  %1382 = vmatprep.mubr.f32.mxu0 0.0
  %1383 = vmatmul.mubr.f32.gmra.mxu0 %v1013
  %v1384 = vpop.f32.mrf.mxu0
  %v1385 = vadd.f32 0.0, %v1384
  %v1386 = vpop.f32.mrf.mxu0
  %1387 = vmatprep.mubr.f32.mxu0 0.0
  %1388 = vmatmul.mubr.f32.gmra.mxu0 %v1014
  %v1389 = vpop.f32.mrf.mxu0
  %v1390 = vadd.f32 0.0, %v1389
  %v1391 = vpop.f32.mrf.mxu0
  %1392 = vmatprep.mubr.f32.mxu0 0.0
  %1393 = vmatmul.mubr.f32.gmra.mxu0 %v1015
  %v1394 = vpop.f32.mrf.mxu0
  %v1395 = vadd.f32 0.0, %v1394
  %v1396 = vpop.f32.mrf.mxu0
  %1397 = vmatprep.mubr.f32.mxu0 0.0
  %1398 = vmatmul.mubr.f32.gmra.mxu0 %v1016
  %v1399 = vpop.f32.mrf.mxu0
  %v1400 = vadd.f32 0.0, %v1399
  %v1401 = vpop.f32.mrf.mxu0
  %1402 = vmatprep.mubr.f32.mxu0 0.0
  %1403 = vmatmul.mubr.f32.gmra.mxu0 %v1017
  %v1404 = vpop.f32.mrf.mxu0
  %v1405 = vadd.f32 0.0, %v1404
  %v1406 = vpop.f32.mrf.mxu0
  %1407 = vmatprep.mubr.f32.mxu0 0.0
  %1408 = vmatmul.mubr.f32.gmra.mxu0 %v1018
  %v1409 = vpop.f32.mrf.mxu0
  %v1410 = vadd.f32 0.0, %v1409
  %v1411 = vpop.f32.mrf.mxu0
  %1412 = vmatprep.mubr.f32.mxu0 0.0
  %1413 = vmatmul.mubr.f32.gmra.mxu0 %v1019
  %v1414 = vpop.f32.mrf.mxu0
  %v1415 = vadd.f32 0.0, %v1414
  %v1416 = vpop.f32.mrf.mxu0
  %1417 = vmatprep.mubr.f32.mxu0 0.0
  %1418 = vmatmul.mubr.f32.gmra.mxu0 %v1020
  %v1419 = vpop.f32.mrf.mxu0
  %v1420 = vadd.f32 0.0, %v1419
  %v1421 = vpop.f32.mrf.mxu0
  %1422 = vdwg.mxu0
  %v1423 = vadd.f32 %v639, %v1105
  %v1424 = vadd.f32 %v644, %v1110
  %v1425 = vadd.f32 %v649, %v1115
  %v1426 = vadd.f32 %v654, %v1120
  %v1427 = vadd.f32 %v659, %v1125
  %v1428 = vadd.f32 %v664, %v1130
  %v1429 = vadd.f32 %v669, %v1135
  %v1430 = vadd.f32 %v674, %v1140
  %v1431 = vadd.f32 %v679, %v1145
  %v1432 = vadd.f32 %v684, %v1150
  %v1433 = vadd.f32 %v689, %v1155
  %v1434 = vadd.f32 %v694, %v1160
  %v1435 = vadd.f32 %v699, %v1165
  %v1436 = vadd.f32 %v704, %v1170
  %v1437 = vadd.f32 %v709, %v1175
  %v1438 = vadd.f32 %v714, %v1180
  %v1439 = vadd.f32 %v719, %v1185
  %v1440 = vadd.f32 %v724, %v1190
  %v1441 = vadd.f32 %v729, %v1195
  %v1442 = vadd.f32 %v734, %v1200
  %v1443 = vadd.f32 %v739, %v1205
  %v1444 = vadd.f32 %v744, %v1210
  %v1445 = vadd.f32 %v749, %v1215
  %v1446 = vadd.f32 %v754, %v1220
  %v1447 = vadd.f32 %v759, %v1225
  %v1448 = vadd.f32 %v764, %v1230
  %v1449 = vadd.f32 %v769, %v1235
  %v1450 = vadd.f32 %v774, %v1240
  %v1451 = vadd.f32 %v779, %v1245
  %v1452 = vadd.f32 %v784, %v1250
  %v1453 = vadd.f32 %v789, %v1255
  %v1454 = vadd.f32 %v794, %v1260
  %v1455 = vadd.f32 %v799, %v1265
  %v1456 = vadd.f32 %v804, %v1270
  %v1457 = vadd.f32 %v809, %v1275
  %v1458 = vadd.f32 %v814, %v1280
  %v1459 = vadd.f32 %v819, %v1285
  %v1460 = vadd.f32 %v824, %v1290
  %v1461 = vadd.f32 %v829, %v1295
  %v1462 = vadd.f32 %v834, %v1300
  %v1463 = vadd.f32 %v839, %v1305
  %v1464 = vadd.f32 %v844, %v1310
  %v1465 = vadd.f32 %v849, %v1315
  %v1466 = vadd.f32 %v854, %v1320
  %v1467 = vadd.f32 %v859, %v1325
  %v1468 = vadd.f32 %v864, %v1330
  %v1469 = vadd.f32 %v869, %v1335
  %v1470 = vadd.f32 %v874, %v1340
  %v1471 = vadd.f32 %v879, %v1345
  %v1472 = vadd.f32 %v884, %v1350
  %v1473 = vadd.f32 %v889, %v1355
  %v1474 = vadd.f32 %v894, %v1360
  %v1475 = vadd.f32 %v899, %v1365
  %v1476 = vadd.f32 %v904, %v1370
  %v1477 = vadd.f32 %v909, %v1375
  %v1478 = vadd.f32 %v914, %v1380
  %v1479 = vadd.f32 %v919, %v1385
  %v1480 = vadd.f32 %v924, %v1390
  %v1481 = vadd.f32 %v929, %v1395
  %v1482 = vadd.f32 %v934, %v1400
  %v1483 = vadd.f32 %v939, %v1405
  %v1484 = vadd.f32 %v944, %v1410
  %v1485 = vadd.f32 %v949, %v1415
  %v1486 = vadd.f32 %v954, %v1420
  %s1487 = scalar_lea.vmem %s0, 24
  %v1488 = vld [vmem:[%s1487] sm:$0xff]
  %v1489 = vld [vmem:[%s1487 + $0x8] sm:$0xff]
  %v1490 = vld [vmem:[%s1487 + $0x18] sm:$0xff]
  %v1491 = vld [vmem:[%s1487 + $0x20] sm:$0xff]
  %v1492 = vld [vmem:[%s1487 + $0x30] sm:$0xff]
  %v1493 = vld [vmem:[%s1487 + $0x38] sm:$0xff]
  %v1494 = vld [vmem:[%s1487 + $0x48] sm:$0xff]
  %v1495 = vld [vmem:[%s1487 + $0x50] sm:$0xff]
  %v1496 = vld [vmem:[%s1487 + $0x60] sm:$0xff]
  %v1497 = vld [vmem:[%s1487 + $0x68] sm:$0xff]
  %v1498 = vld [vmem:[%s1487 + $0x78] sm:$0xff]
  %v1499 = vld [vmem:[%s1487 + $0x80] sm:$0xff]
  %v1500 = vld [vmem:[%s1487 + $0x90] sm:$0xff]
  %v1501 = vld [vmem:[%s1487 + $0x98] sm:$0xff]
  %v1502 = vld [vmem:[%s1487 + $0xa8] sm:$0xff]
  %v1503 = vld [vmem:[%s1487 + $0xb0] sm:$0xff]
  %v1504 = vld [vmem:[%s1487 + $0xc0] sm:$0xff]
  %v1505 = vld [vmem:[%s1487 + $0xc8] sm:$0xff]
  %v1506 = vld [vmem:[%s1487 + $0xd8] sm:$0xff]
  %v1507 = vld [vmem:[%s1487 + $0xe0] sm:$0xff]
  %v1508 = vld [vmem:[%s1487 + $0xf0] sm:$0xff]
  %v1509 = vld [vmem:[%s1487 + $0xf8] sm:$0xff]
  %v1510 = vld [vmem:[%s1487 + $0x108] sm:$0xff]
  %v1511 = vld [vmem:[%s1487 + $0x110] sm:$0xff]
  %v1512 = vld [vmem:[%s1487 + $0x120] sm:$0xff]
  %v1513 = vld [vmem:[%s1487 + $0x128] sm:$0xff]
  %v1514 = vld [vmem:[%s1487 + $0x138] sm:$0xff]
  %v1515 = vld [vmem:[%s1487 + $0x140] sm:$0xff]
  %v1516 = vld [vmem:[%s1487 + $0x150] sm:$0xff]
  %v1517 = vld [vmem:[%s1487 + $0x158] sm:$0xff]
  %v1518 = vld [vmem:[%s1487 + $0x168] sm:$0xff]
  %v1519 = vld [vmem:[%s1487 + $0x170] sm:$0xff]
  %v1520 = vld [vmem:[%s1487 + $0x1b0] sm:$0xff]
  %v1521 = vld [vmem:[%s1487 + $0x1b8] sm:$0xff]
  %v1522 = vld [vmem:[%s1487 + $0x1c8] sm:$0xff]
  %v1523 = vld [vmem:[%s1487 + $0x1d0] sm:$0xff]
  %v1524 = vld [vmem:[%s1487 + $0x1e0] sm:$0xff]
  %v1525 = vld [vmem:[%s1487 + $0x1e8] sm:$0xff]
  %v1526 = vld [vmem:[%s1487 + $0x1f8] sm:$0xff]
  %v1527 = vld [vmem:[%s1487 + $0x200] sm:$0xff]
  %v1528 = vld [vmem:[%s1487 + $0x210] sm:$0xff]
  %v1529 = vld [vmem:[%s1487 + $0x218] sm:$0xff]
  %v1530 = vld [vmem:[%s1487 + $0x228] sm:$0xff]
  %v1531 = vld [vmem:[%s1487 + $0x230] sm:$0xff]
  %v1532 = vld [vmem:[%s1487 + $0x240] sm:$0xff]
  %v1533 = vld [vmem:[%s1487 + $0x248] sm:$0xff]
  %v1534 = vld [vmem:[%s1487 + $0x258] sm:$0xff]
  %v1535 = vld [vmem:[%s1487 + $0x260] sm:$0xff]
  %v1536 = vld [vmem:[%s1487 + $0x270] sm:$0xff]
  %v1537 = vld [vmem:[%s1487 + $0x278] sm:$0xff]
  %v1538 = vld [vmem:[%s1487 + $0x288] sm:$0xff]
  %v1539 = vld [vmem:[%s1487 + $0x290] sm:$0xff]
  %v1540 = vld [vmem:[%s1487 + $0x2a0] sm:$0xff]
  %v1541 = vld [vmem:[%s1487 + $0x2a8] sm:$0xff]
  %v1542 = vld [vmem:[%s1487 + $0x2b8] sm:$0xff]
  %v1543 = vld [vmem:[%s1487 + $0x2c0] sm:$0xff]
  %v1544 = vld [vmem:[%s1487 + $0x2d0] sm:$0xff]
  %v1545 = vld [vmem:[%s1487 + $0x2d8] sm:$0xff]
  %v1546 = vld [vmem:[%s1487 + $0x2e8] sm:$0xff]
  %v1547 = vld [vmem:[%s1487 + $0x2f0] sm:$0xff]
  %v1548 = vld [vmem:[%s1487 + $0x300] sm:$0xff]
  %v1549 = vld [vmem:[%s1487 + $0x308] sm:$0xff]
  %v1550 = vld [vmem:[%s1487 + $0x318] sm:$0xff]
  %v1551 = vld [vmem:[%s1487 + $0x320] sm:$0xff]
  %s1552 = scalar_lea.vmem %s1, 384
  %v1553 = vld [vmem:[%s1552] sm:$0xff]
  %v1554 = vld [vmem:[%s1552 + $0x8] sm:$0xff]
  %v1555 = vld [vmem:[%s1552 + $0x10] sm:$0xff]
  %v1556 = vld [vmem:[%s1552 + $0x18] sm:$0xff]
  %v1557 = vld [vmem:[%s1552 + $0x20] sm:$0xff]
  %v1558 = vld [vmem:[%s1552 + $0x28] sm:$0xff]
  %v1559 = vld [vmem:[%s1552 + $0x30] sm:$0xff]
  %v1560 = vld [vmem:[%s1552 + $0x38] sm:$0xff]
  %v1561 = vld [vmem:[%s1552 + $0x40] sm:$0xff]
  %v1562 = vld [vmem:[%s1552 + $0x48] sm:$0xff]
  %v1563 = vld [vmem:[%s1552 + $0x50] sm:$0xff]
  %v1564 = vld [vmem:[%s1552 + $0x58] sm:$0xff]
  %v1565 = vld [vmem:[%s1552 + $0x60] sm:$0xff]
  %v1566 = vld [vmem:[%s1552 + $0x68] sm:$0xff]
  %v1567 = vld [vmem:[%s1552 + $0x70] sm:$0xff]
  %v1568 = vld [vmem:[%s1552 + $0x78] sm:$0xff]
  %1569 = vmatprep.subr.mxu0 0.0
  %1570 = vmatpush1.msra.mxu0 %v1568
  %1571 = vmatprep.subr.mxu0 0.0
  %1572 = vmatpush1.msra.mxu0 %v1567
  %1573 = vmatprep.subr.mxu0 0.0
  %1574 = vmatpush1.msra.mxu0 %v1566
  %1575 = vmatprep.subr.mxu0 0.0
  %1576 = vmatpush1.msra.mxu0 %v1565
  %1577 = vmatprep.subr.mxu0 0.0
  %1578 = vmatpush1.msra.mxu0 %v1564
  %1579 = vmatprep.subr.mxu0 0.0
  %1580 = vmatpush1.msra.mxu0 %v1563
  %1581 = vmatprep.subr.mxu0 0.0
  %1582 = vmatpush1.msra.mxu0 %v1562
  %1583 = vmatprep.subr.mxu0 0.0
  %1584 = vmatpush1.msra.mxu0 %v1561
  %1585 = vmatprep.subr.mxu0 0.0
  %1586 = vmatpush1.msra.mxu0 %v1560
  %1587 = vmatprep.subr.mxu0 0.0
  %1588 = vmatpush1.msra.mxu0 %v1559
  %1589 = vmatprep.subr.mxu0 0.0
  %1590 = vmatpush1.msra.mxu0 %v1558
  %1591 = vmatprep.subr.mxu0 0.0
  %1592 = vmatpush1.msra.mxu0 %v1557
  %1593 = vmatprep.subr.mxu0 0.0
  %1594 = vmatpush1.msra.mxu0 %v1556
  %1595 = vmatprep.subr.mxu0 0.0
  %1596 = vmatpush1.msra.mxu0 %v1555
  %1597 = vmatprep.subr.mxu0 0.0
  %1598 = vmatpush1.msra.mxu0 %v1554
  %1599 = vmatprep.subr.mxu0 0.0
  %1600 = vmatpush1.msra.mxu0 %v1553
  %1601 = vmatprep.subr.mxu0 0.0
  %1602 = vmatpush2.msra.mxu0 0.0
  %1603 = vmatprep.subr.mxu0 0.0
  %1604 = vmatpush2.msra.mxu0 0.0
  %1605 = vmatprep.subr.mxu0 0.0
  %1606 = vmatpush2.msra.mxu0 0.0
  %1607 = vmatprep.subr.mxu0 0.0
  %1608 = vmatpush2.msra.mxu0 0.0
  %1609 = vmatprep.subr.mxu0 0.0
  %1610 = vmatpush2.msra.mxu0 0.0
  %1611 = vmatprep.subr.mxu0 0.0
  %1612 = vmatpush2.msra.mxu0 0.0
  %1613 = vmatprep.subr.mxu0 0.0
  %1614 = vmatpush2.msra.mxu0 0.0
  %1615 = vmatprep.subr.mxu0 0.0
  %1616 = vmatpush2.msra.mxu0 0.0
  %1617 = vmatprep.subr.mxu0 0.0
  %1618 = vmatpush2.msra.mxu0 0.0
  %1619 = vmatprep.subr.mxu0 0.0
  %1620 = vmatpush2.msra.mxu0 0.0
  %1621 = vmatprep.subr.mxu0 0.0
  %1622 = vmatpush2.msra.mxu0 0.0
  %1623 = vmatprep.subr.mxu0 0.0
  %1624 = vmatpush2.msra.mxu0 0.0
  %1625 = vmatprep.subr.mxu0 0.0
  %1626 = vmatpush2.msra.mxu0 0.0
  %1627 = vmatprep.subr.mxu0 0.0
  %1628 = vmatpush2.msra.mxu0 0.0
  %1629 = vmatprep.subr.mxu0 0.0
  %1630 = vmatpush2.msra.mxu0 0.0
  %1631 = vmatprep.subr.mxu0 0.0
  %1632 = vmatpush2.msra.mxu0 0.0
  %1633 = vmatprep.mubr.f32.mxu0 0.0
  %1634 = vmatmul.mubr.f32.gmra.mxu0 %v1488
  %v1635 = vpop.f32.mrf.mxu0
  %v1636 = vadd.f32 0.0, %v1635
  %v1637 = vpop.f32.mrf.mxu0
  %1638 = vmatprep.mubr.f32.mxu0 0.0
  %1639 = vmatmul.mubr.f32.gmra.mxu0 %v1489
  %v1640 = vpop.f32.mrf.mxu0
  %v1641 = vadd.f32 0.0, %v1640
  %v1642 = vpop.f32.mrf.mxu0
  %1643 = vmatprep.mubr.f32.mxu0 0.0
  %1644 = vmatmul.mubr.f32.gmra.mxu0 %v1490
  %v1645 = vpop.f32.mrf.mxu0
  %v1646 = vadd.f32 0.0, %v1645
  %v1647 = vpop.f32.mrf.mxu0
  %1648 = vmatprep.mubr.f32.mxu0 0.0
  %1649 = vmatmul.mubr.f32.gmra.mxu0 %v1491
  %v1650 = vpop.f32.mrf.mxu0
  %v1651 = vadd.f32 0.0, %v1650
  %v1652 = vpop.f32.mrf.mxu0
  %1653 = vmatprep.mubr.f32.mxu0 0.0
  %1654 = vmatmul.mubr.f32.gmra.mxu0 %v1492
  %v1655 = vpop.f32.mrf.mxu0
  %v1656 = vadd.f32 0.0, %v1655
  %v1657 = vpop.f32.mrf.mxu0
  %1658 = vmatprep.mubr.f32.mxu0 0.0
  %1659 = vmatmul.mubr.f32.gmra.mxu0 %v1493
  %v1660 = vpop.f32.mrf.mxu0
  %v1661 = vadd.f32 0.0, %v1660
  %v1662 = vpop.f32.mrf.mxu0
  %1663 = vmatprep.mubr.f32.mxu0 0.0
  %1664 = vmatmul.mubr.f32.gmra.mxu0 %v1494
  %v1665 = vpop.f32.mrf.mxu0
  %v1666 = vadd.f32 0.0, %v1665
  %v1667 = vpop.f32.mrf.mxu0
  %1668 = vmatprep.mubr.f32.mxu0 0.0
  %1669 = vmatmul.mubr.f32.gmra.mxu0 %v1495
  %v1670 = vpop.f32.mrf.mxu0
  %v1671 = vadd.f32 0.0, %v1670
  %v1672 = vpop.f32.mrf.mxu0
  %1673 = vmatprep.mubr.f32.mxu0 0.0
  %1674 = vmatmul.mubr.f32.gmra.mxu0 %v1496
  %v1675 = vpop.f32.mrf.mxu0
  %v1676 = vadd.f32 0.0, %v1675
  %v1677 = vpop.f32.mrf.mxu0
  %1678 = vmatprep.mubr.f32.mxu0 0.0
  %1679 = vmatmul.mubr.f32.gmra.mxu0 %v1497
  %v1680 = vpop.f32.mrf.mxu0
  %v1681 = vadd.f32 0.0, %v1680
  %v1682 = vpop.f32.mrf.mxu0
  %1683 = vmatprep.mubr.f32.mxu0 0.0
  %1684 = vmatmul.mubr.f32.gmra.mxu0 %v1498
  %v1685 = vpop.f32.mrf.mxu0
  %v1686 = vadd.f32 0.0, %v1685
  %v1687 = vpop.f32.mrf.mxu0
  %1688 = vmatprep.mubr.f32.mxu0 0.0
  %1689 = vmatmul.mubr.f32.gmra.mxu0 %v1499
  %v1690 = vpop.f32.mrf.mxu0
  %v1691 = vadd.f32 0.0, %v1690
  %v1692 = vpop.f32.mrf.mxu0
  %1693 = vmatprep.mubr.f32.mxu0 0.0
  %1694 = vmatmul.mubr.f32.gmra.mxu0 %v1500
  %v1695 = vpop.f32.mrf.mxu0
  %v1696 = vadd.f32 0.0, %v1695
  %v1697 = vpop.f32.mrf.mxu0
  %1698 = vmatprep.mubr.f32.mxu0 0.0
  %1699 = vmatmul.mubr.f32.gmra.mxu0 %v1501
  %v1700 = vpop.f32.mrf.mxu0
  %v1701 = vadd.f32 0.0, %v1700
  %v1702 = vpop.f32.mrf.mxu0
  %1703 = vmatprep.mubr.f32.mxu0 0.0
  %1704 = vmatmul.mubr.f32.gmra.mxu0 %v1502
  %v1705 = vpop.f32.mrf.mxu0
  %v1706 = vadd.f32 0.0, %v1705
  %v1707 = vpop.f32.mrf.mxu0
  %1708 = vmatprep.mubr.f32.mxu0 0.0
  %1709 = vmatmul.mubr.f32.gmra.mxu0 %v1503
  %v1710 = vpop.f32.mrf.mxu0
  %v1711 = vadd.f32 0.0, %v1710
  %v1712 = vpop.f32.mrf.mxu0
  %1713 = vmatprep.mubr.f32.mxu0 0.0
  %1714 = vmatmul.mubr.f32.gmra.mxu0 %v1504
  %v1715 = vpop.f32.mrf.mxu0
  %v1716 = vadd.f32 0.0, %v1715
  %v1717 = vpop.f32.mrf.mxu0
  %1718 = vmatprep.mubr.f32.mxu0 0.0
  %1719 = vmatmul.mubr.f32.gmra.mxu0 %v1505
  %v1720 = vpop.f32.mrf.mxu0
  %v1721 = vadd.f32 0.0, %v1720
  %v1722 = vpop.f32.mrf.mxu0
  %1723 = vmatprep.mubr.f32.mxu0 0.0
  %1724 = vmatmul.mubr.f32.gmra.mxu0 %v1506
  %v1725 = vpop.f32.mrf.mxu0
  %v1726 = vadd.f32 0.0, %v1725
  %v1727 = vpop.f32.mrf.mxu0
  %1728 = vmatprep.mubr.f32.mxu0 0.0
  %1729 = vmatmul.mubr.f32.gmra.mxu0 %v1507
  %v1730 = vpop.f32.mrf.mxu0
  %v1731 = vadd.f32 0.0, %v1730
  %v1732 = vpop.f32.mrf.mxu0
  %1733 = vmatprep.mubr.f32.mxu0 0.0
  %1734 = vmatmul.mubr.f32.gmra.mxu0 %v1508
  %v1735 = vpop.f32.mrf.mxu0
  %v1736 = vadd.f32 0.0, %v1735
  %v1737 = vpop.f32.mrf.mxu0
  %1738 = vmatprep.mubr.f32.mxu0 0.0
  %1739 = vmatmul.mubr.f32.gmra.mxu0 %v1509
  %v1740 = vpop.f32.mrf.mxu0
  %v1741 = vadd.f32 0.0, %v1740
  %v1742 = vpop.f32.mrf.mxu0
  %1743 = vmatprep.mubr.f32.mxu0 0.0
  %1744 = vmatmul.mubr.f32.gmra.mxu0 %v1510
  %v1745 = vpop.f32.mrf.mxu0
  %v1746 = vadd.f32 0.0, %v1745
  %v1747 = vpop.f32.mrf.mxu0
  %1748 = vmatprep.mubr.f32.mxu0 0.0
  %1749 = vmatmul.mubr.f32.gmra.mxu0 %v1511
  %v1750 = vpop.f32.mrf.mxu0
  %v1751 = vadd.f32 0.0, %v1750
  %v1752 = vpop.f32.mrf.mxu0
  %1753 = vmatprep.mubr.f32.mxu0 0.0
  %1754 = vmatmul.mubr.f32.gmra.mxu0 %v1512
  %v1755 = vpop.f32.mrf.mxu0
  %v1756 = vadd.f32 0.0, %v1755
  %v1757 = vpop.f32.mrf.mxu0
  %1758 = vmatprep.mubr.f32.mxu0 0.0
  %1759 = vmatmul.mubr.f32.gmra.mxu0 %v1513
  %v1760 = vpop.f32.mrf.mxu0
  %v1761 = vadd.f32 0.0, %v1760
  %v1762 = vpop.f32.mrf.mxu0
  %1763 = vmatprep.mubr.f32.mxu0 0.0
  %1764 = vmatmul.mubr.f32.gmra.mxu0 %v1514
  %v1765 = vpop.f32.mrf.mxu0
  %v1766 = vadd.f32 0.0, %v1765
  %v1767 = vpop.f32.mrf.mxu0
  %1768 = vmatprep.mubr.f32.mxu0 0.0
  %1769 = vmatmul.mubr.f32.gmra.mxu0 %v1515
  %v1770 = vpop.f32.mrf.mxu0
  %v1771 = vadd.f32 0.0, %v1770
  %v1772 = vpop.f32.mrf.mxu0
  %1773 = vmatprep.mubr.f32.mxu0 0.0
  %1774 = vmatmul.mubr.f32.gmra.mxu0 %v1516
  %v1775 = vpop.f32.mrf.mxu0
  %v1776 = vadd.f32 0.0, %v1775
  %v1777 = vpop.f32.mrf.mxu0
  %1778 = vmatprep.mubr.f32.mxu0 0.0
  %1779 = vmatmul.mubr.f32.gmra.mxu0 %v1517
  %v1780 = vpop.f32.mrf.mxu0
  %v1781 = vadd.f32 0.0, %v1780
  %v1782 = vpop.f32.mrf.mxu0
  %1783 = vmatprep.mubr.f32.mxu0 0.0
  %1784 = vmatmul.mubr.f32.gmra.mxu0 %v1518
  %v1785 = vpop.f32.mrf.mxu0
  %v1786 = vadd.f32 0.0, %v1785
  %v1787 = vpop.f32.mrf.mxu0
  %1788 = vmatprep.mubr.f32.mxu0 0.0
  %1789 = vmatmul.mubr.f32.gmra.mxu0 %v1519
  %v1790 = vpop.f32.mrf.mxu0
  %v1791 = vadd.f32 0.0, %v1790
  %v1792 = vpop.f32.mrf.mxu0
  %1793 = vmatprep.mubr.f32.mxu0 0.0
  %1794 = vmatmul.mubr.f32.gmra.mxu0 %v1520
  %v1795 = vpop.f32.mrf.mxu0
  %v1796 = vadd.f32 0.0, %v1795
  %v1797 = vpop.f32.mrf.mxu0
  %1798 = vmatprep.mubr.f32.mxu0 0.0
  %1799 = vmatmul.mubr.f32.gmra.mxu0 %v1521
  %v1800 = vpop.f32.mrf.mxu0
  %v1801 = vadd.f32 0.0, %v1800
  %v1802 = vpop.f32.mrf.mxu0
  %1803 = vmatprep.mubr.f32.mxu0 0.0
  %1804 = vmatmul.mubr.f32.gmra.mxu0 %v1522
  %v1805 = vpop.f32.mrf.mxu0
  %v1806 = vadd.f32 0.0, %v1805
  %v1807 = vpop.f32.mrf.mxu0
  %1808 = vmatprep.mubr.f32.mxu0 0.0
  %1809 = vmatmul.mubr.f32.gmra.mxu0 %v1523
  %v1810 = vpop.f32.mrf.mxu0
  %v1811 = vadd.f32 0.0, %v1810
  %v1812 = vpop.f32.mrf.mxu0
  %1813 = vmatprep.mubr.f32.mxu0 0.0
  %1814 = vmatmul.mubr.f32.gmra.mxu0 %v1524
  %v1815 = vpop.f32.mrf.mxu0
  %v1816 = vadd.f32 0.0, %v1815
  %v1817 = vpop.f32.mrf.mxu0
  %1818 = vmatprep.mubr.f32.mxu0 0.0
  %1819 = vmatmul.mubr.f32.gmra.mxu0 %v1525
  %v1820 = vpop.f32.mrf.mxu0
  %v1821 = vadd.f32 0.0, %v1820
  %v1822 = vpop.f32.mrf.mxu0
  %1823 = vmatprep.mubr.f32.mxu0 0.0
  %1824 = vmatmul.mubr.f32.gmra.mxu0 %v1526
  %v1825 = vpop.f32.mrf.mxu0
  %v1826 = vadd.f32 0.0, %v1825
  %v1827 = vpop.f32.mrf.mxu0
  %1828 = vmatprep.mubr.f32.mxu0 0.0
  %1829 = vmatmul.mubr.f32.gmra.mxu0 %v1527
  %v1830 = vpop.f32.mrf.mxu0
  %v1831 = vadd.f32 0.0, %v1830
  %v1832 = vpop.f32.mrf.mxu0
  %1833 = vmatprep.mubr.f32.mxu0 0.0
  %1834 = vmatmul.mubr.f32.gmra.mxu0 %v1528
  %v1835 = vpop.f32.mrf.mxu0
  %v1836 = vadd.f32 0.0, %v1835
  %v1837 = vpop.f32.mrf.mxu0
  %1838 = vmatprep.mubr.f32.mxu0 0.0
  %1839 = vmatmul.mubr.f32.gmra.mxu0 %v1529
  %v1840 = vpop.f32.mrf.mxu0
  %v1841 = vadd.f32 0.0, %v1840
  %v1842 = vpop.f32.mrf.mxu0
  %1843 = vmatprep.mubr.f32.mxu0 0.0
  %1844 = vmatmul.mubr.f32.gmra.mxu0 %v1530
  %v1845 = vpop.f32.mrf.mxu0
  %v1846 = vadd.f32 0.0, %v1845
  %v1847 = vpop.f32.mrf.mxu0
  %1848 = vmatprep.mubr.f32.mxu0 0.0
  %1849 = vmatmul.mubr.f32.gmra.mxu0 %v1531
  %v1850 = vpop.f32.mrf.mxu0
  %v1851 = vadd.f32 0.0, %v1850
  %v1852 = vpop.f32.mrf.mxu0
  %1853 = vmatprep.mubr.f32.mxu0 0.0
  %1854 = vmatmul.mubr.f32.gmra.mxu0 %v1532
  %v1855 = vpop.f32.mrf.mxu0
  %v1856 = vadd.f32 0.0, %v1855
  %v1857 = vpop.f32.mrf.mxu0
  %1858 = vmatprep.mubr.f32.mxu0 0.0
  %1859 = vmatmul.mubr.f32.gmra.mxu0 %v1533
  %v1860 = vpop.f32.mrf.mxu0
  %v1861 = vadd.f32 0.0, %v1860
  %v1862 = vpop.f32.mrf.mxu0
  %1863 = vmatprep.mubr.f32.mxu0 0.0
  %1864 = vmatmul.mubr.f32.gmra.mxu0 %v1534
  %v1865 = vpop.f32.mrf.mxu0
  %v1866 = vadd.f32 0.0, %v1865
  %v1867 = vpop.f32.mrf.mxu0
  %1868 = vmatprep.mubr.f32.mxu0 0.0
  %1869 = vmatmul.mubr.f32.gmra.mxu0 %v1535
  %v1870 = vpop.f32.mrf.mxu0
  %v1871 = vadd.f32 0.0, %v1870
  %v1872 = vpop.f32.mrf.mxu0
  %1873 = vmatprep.mubr.f32.mxu0 0.0
  %1874 = vmatmul.mubr.f32.gmra.mxu0 %v1536
  %v1875 = vpop.f32.mrf.mxu0
  %v1876 = vadd.f32 0.0, %v1875
  %v1877 = vpop.f32.mrf.mxu0
  %1878 = vmatprep.mubr.f32.mxu0 0.0
  %1879 = vmatmul.mubr.f32.gmra.mxu0 %v1537
  %v1880 = vpop.f32.mrf.mxu0
  %v1881 = vadd.f32 0.0, %v1880
  %v1882 = vpop.f32.mrf.mxu0
  %1883 = vmatprep.mubr.f32.mxu0 0.0
  %1884 = vmatmul.mubr.f32.gmra.mxu0 %v1538
  %v1885 = vpop.f32.mrf.mxu0
  %v1886 = vadd.f32 0.0, %v1885
  %v1887 = vpop.f32.mrf.mxu0
  %1888 = vmatprep.mubr.f32.mxu0 0.0
  %1889 = vmatmul.mubr.f32.gmra.mxu0 %v1539
  %v1890 = vpop.f32.mrf.mxu0
  %v1891 = vadd.f32 0.0, %v1890
  %v1892 = vpop.f32.mrf.mxu0
  %1893 = vmatprep.mubr.f32.mxu0 0.0
  %1894 = vmatmul.mubr.f32.gmra.mxu0 %v1540
  %v1895 = vpop.f32.mrf.mxu0
  %v1896 = vadd.f32 0.0, %v1895
  %v1897 = vpop.f32.mrf.mxu0
  %1898 = vmatprep.mubr.f32.mxu0 0.0
  %1899 = vmatmul.mubr.f32.gmra.mxu0 %v1541
  %v1900 = vpop.f32.mrf.mxu0
  %v1901 = vadd.f32 0.0, %v1900
  %v1902 = vpop.f32.mrf.mxu0
  %1903 = vmatprep.mubr.f32.mxu0 0.0
  %1904 = vmatmul.mubr.f32.gmra.mxu0 %v1542
  %v1905 = vpop.f32.mrf.mxu0
  %v1906 = vadd.f32 0.0, %v1905
  %v1907 = vpop.f32.mrf.mxu0
  %1908 = vmatprep.mubr.f32.mxu0 0.0
  %1909 = vmatmul.mubr.f32.gmra.mxu0 %v1543
  %v1910 = vpop.f32.mrf.mxu0
  %v1911 = vadd.f32 0.0, %v1910
  %v1912 = vpop.f32.mrf.mxu0
  %1913 = vmatprep.mubr.f32.mxu0 0.0
  %1914 = vmatmul.mubr.f32.gmra.mxu0 %v1544
  %v1915 = vpop.f32.mrf.mxu0
  %v1916 = vadd.f32 0.0, %v1915
  %v1917 = vpop.f32.mrf.mxu0
  %1918 = vmatprep.mubr.f32.mxu0 0.0
  %1919 = vmatmul.mubr.f32.gmra.mxu0 %v1545
  %v1920 = vpop.f32.mrf.mxu0
  %v1921 = vadd.f32 0.0, %v1920
  %v1922 = vpop.f32.mrf.mxu0
  %1923 = vmatprep.mubr.f32.mxu0 0.0
  %1924 = vmatmul.mubr.f32.gmra.mxu0 %v1546
  %v1925 = vpop.f32.mrf.mxu0
  %v1926 = vadd.f32 0.0, %v1925
  %v1927 = vpop.f32.mrf.mxu0
  %1928 = vmatprep.mubr.f32.mxu0 0.0
  %1929 = vmatmul.mubr.f32.gmra.mxu0 %v1547
  %v1930 = vpop.f32.mrf.mxu0
  %v1931 = vadd.f32 0.0, %v1930
  %v1932 = vpop.f32.mrf.mxu0
  %1933 = vmatprep.mubr.f32.mxu0 0.0
  %1934 = vmatmul.mubr.f32.gmra.mxu0 %v1548
  %v1935 = vpop.f32.mrf.mxu0
  %v1936 = vadd.f32 0.0, %v1935
  %v1937 = vpop.f32.mrf.mxu0
  %1938 = vmatprep.mubr.f32.mxu0 0.0
  %1939 = vmatmul.mubr.f32.gmra.mxu0 %v1549
  %v1940 = vpop.f32.mrf.mxu0
  %v1941 = vadd.f32 0.0, %v1940
  %v1942 = vpop.f32.mrf.mxu0
  %1943 = vmatprep.mubr.f32.mxu0 0.0
  %1944 = vmatmul.mubr.f32.gmra.mxu0 %v1550
  %v1945 = vpop.f32.mrf.mxu0
  %v1946 = vadd.f32 0.0, %v1945
  %v1947 = vpop.f32.mrf.mxu0
  %1948 = vmatprep.mubr.f32.mxu0 0.0
  %1949 = vmatmul.mubr.f32.gmra.mxu0 %v1551
  %v1950 = vpop.f32.mrf.mxu0
  %v1951 = vadd.f32 0.0, %v1950
  %v1952 = vpop.f32.mrf.mxu0
  %1953 = vdwg.mxu0
  %v1954 = vadd.f32 %v1423, %v1636
  %v1955 = vadd.f32 %v1424, %v1641
  %v1956 = vadd.f32 %v1425, %v1646
  %v1957 = vadd.f32 %v1426, %v1651
  %v1958 = vadd.f32 %v1427, %v1656
  %v1959 = vadd.f32 %v1428, %v1661
  %v1960 = vadd.f32 %v1429, %v1666
  %v1961 = vadd.f32 %v1430, %v1671
  %v1962 = vadd.f32 %v1431, %v1676
  %v1963 = vadd.f32 %v1432, %v1681
  %v1964 = vadd.f32 %v1433, %v1686
  %v1965 = vadd.f32 %v1434, %v1691
  %v1966 = vadd.f32 %v1435, %v1696
  %v1967 = vadd.f32 %v1436, %v1701
  %v1968 = vadd.f32 %v1437, %v1706
  %v1969 = vadd.f32 %v1438, %v1711
  %v1970 = vadd.f32 %v1439, %v1716
  %v1971 = vadd.f32 %v1440, %v1721
  %v1972 = vadd.f32 %v1441, %v1726
  %v1973 = vadd.f32 %v1442, %v1731
  %v1974 = vadd.f32 %v1443, %v1736
  %v1975 = vadd.f32 %v1444, %v1741
  %v1976 = vadd.f32 %v1445, %v1746
  %v1977 = vadd.f32 %v1446, %v1751
  %v1978 = vadd.f32 %v1447, %v1756
  %v1979 = vadd.f32 %v1448, %v1761
  %v1980 = vadd.f32 %v1449, %v1766
  %v1981 = vadd.f32 %v1450, %v1771
  %v1982 = vadd.f32 %v1451, %v1776
  %v1983 = vadd.f32 %v1452, %v1781
  %v1984 = vadd.f32 %v1453, %v1786
  %v1985 = vadd.f32 %v1454, %v1791
  %v1986 = vadd.f32 %v1455, %v1796
  %v1987 = vadd.f32 %v1456, %v1801
  %v1988 = vadd.f32 %v1457, %v1806
  %v1989 = vadd.f32 %v1458, %v1811
  %v1990 = vadd.f32 %v1459, %v1816
  %v1991 = vadd.f32 %v1460, %v1821
  %v1992 = vadd.f32 %v1461, %v1826
  %v1993 = vadd.f32 %v1462, %v1831
  %v1994 = vadd.f32 %v1463, %v1836
  %v1995 = vadd.f32 %v1464, %v1841
  %v1996 = vadd.f32 %v1465, %v1846
  %v1997 = vadd.f32 %v1466, %v1851
  %v1998 = vadd.f32 %v1467, %v1856
  %v1999 = vadd.f32 %v1468, %v1861
  %v2000 = vadd.f32 %v1469, %v1866
  %v2001 = vadd.f32 %v1470, %v1871
  %v2002 = vadd.f32 %v1471, %v1876
  %v2003 = vadd.f32 %v1472, %v1881
  %v2004 = vadd.f32 %v1473, %v1886
  %v2005 = vadd.f32 %v1474, %v1891
  %v2006 = vadd.f32 %v1475, %v1896
  %v2007 = vadd.f32 %v1476, %v1901
  %v2008 = vadd.f32 %v1477, %v1906
  %v2009 = vadd.f32 %v1478, %v1911
  %v2010 = vadd.f32 %v1479, %v1916
  %v2011 = vadd.f32 %v1480, %v1921
  %v2012 = vadd.f32 %v1481, %v1926
  %v2013 = vadd.f32 %v1482, %v1931
  %v2014 = vadd.f32 %v1483, %v1936
  %v2015 = vadd.f32 %v1484, %v1941
  %v2016 = vadd.f32 %v1485, %v1946
  %v2017 = vadd.f32 %v1486, %v1951
  %v2018 = vld [vmem:[%s1487 + $0x1] sm:$0xff]
  %v2019 = vld [vmem:[%s1487 + $0x9] sm:$0xff]
  %v2020 = vld [vmem:[%s1487 + $0x19] sm:$0xff]
  %v2021 = vld [vmem:[%s1487 + $0x21] sm:$0xff]
  %v2022 = vld [vmem:[%s1487 + $0x31] sm:$0xff]
  %v2023 = vld [vmem:[%s1487 + $0x39] sm:$0xff]
  %v2024 = vld [vmem:[%s1487 + $0x49] sm:$0xff]
  %v2025 = vld [vmem:[%s1487 + $0x51] sm:$0xff]
  %v2026 = vld [vmem:[%s1487 + $0x61] sm:$0xff]
  %v2027 = vld [vmem:[%s1487 + $0x69] sm:$0xff]
  %v2028 = vld [vmem:[%s1487 + $0x79] sm:$0xff]
  %v2029 = vld [vmem:[%s1487 + $0x81] sm:$0xff]
  %v2030 = vld [vmem:[%s1487 + $0x91] sm:$0xff]
  %v2031 = vld [vmem:[%s1487 + $0x99] sm:$0xff]
  %v2032 = vld [vmem:[%s1487 + $0xa9] sm:$0xff]
  %v2033 = vld [vmem:[%s1487 + $0xb1] sm:$0xff]
  %v2034 = vld [vmem:[%s1487 + $0xc1] sm:$0xff]
  %v2035 = vld [vmem:[%s1487 + $0xc9] sm:$0xff]
  %v2036 = vld [vmem:[%s1487 + $0xd9] sm:$0xff]
  %v2037 = vld [vmem:[%s1487 + $0xe1] sm:$0xff]
  %v2038 = vld [vmem:[%s1487 + $0xf1] sm:$0xff]
  %v2039 = vld [vmem:[%s1487 + $0xf9] sm:$0xff]
  %v2040 = vld [vmem:[%s1487 + $0x109] sm:$0xff]
  %v2041 = vld [vmem:[%s1487 + $0x111] sm:$0xff]
  %v2042 = vld [vmem:[%s1487 + $0x121] sm:$0xff]
  %v2043 = vld [vmem:[%s1487 + $0x129] sm:$0xff]
  %v2044 = vld [vmem:[%s1487 + $0x139] sm:$0xff]
  %v2045 = vld [vmem:[%s1487 + $0x141] sm:$0xff]
  %v2046 = vld [vmem:[%s1487 + $0x151] sm:$0xff]
  %v2047 = vld [vmem:[%s1487 + $0x159] sm:$0xff]
  %v2048 = vld [vmem:[%s1487 + $0x169] sm:$0xff]
  %v2049 = vld [vmem:[%s1487 + $0x171] sm:$0xff]
  %v2050 = vld [vmem:[%s1487 + $0x1b1] sm:$0xff]
  %v2051 = vld [vmem:[%s1487 + $0x1b9] sm:$0xff]
  %v2052 = vld [vmem:[%s1487 + $0x1c9] sm:$0xff]
  %v2053 = vld [vmem:[%s1487 + $0x1d1] sm:$0xff]
  %v2054 = vld [vmem:[%s1487 + $0x1e1] sm:$0xff]
  %v2055 = vld [vmem:[%s1487 + $0x1e9] sm:$0xff]
  %v2056 = vld [vmem:[%s1487 + $0x1f9] sm:$0xff]
  %v2057 = vld [vmem:[%s1487 + $0x201] sm:$0xff]
  %v2058 = vld [vmem:[%s1487 + $0x211] sm:$0xff]
  %v2059 = vld [vmem:[%s1487 + $0x219] sm:$0xff]
  %v2060 = vld [vmem:[%s1487 + $0x229] sm:$0xff]
  %v2061 = vld [vmem:[%s1487 + $0x231] sm:$0xff]
  %v2062 = vld [vmem:[%s1487 + $0x241] sm:$0xff]
  %v2063 = vld [vmem:[%s1487 + $0x249] sm:$0xff]
  %v2064 = vld [vmem:[%s1487 + $0x259] sm:$0xff]
  %v2065 = vld [vmem:[%s1487 + $0x261] sm:$0xff]
  %v2066 = vld [vmem:[%s1487 + $0x271] sm:$0xff]
  %v2067 = vld [vmem:[%s1487 + $0x279] sm:$0xff]
  %v2068 = vld [vmem:[%s1487 + $0x289] sm:$0xff]
  %v2069 = vld [vmem:[%s1487 + $0x291] sm:$0xff]
  %v2070 = vld [vmem:[%s1487 + $0x2a1] sm:$0xff]
  %v2071 = vld [vmem:[%s1487 + $0x2a9] sm:$0xff]
  %v2072 = vld [vmem:[%s1487 + $0x2b9] sm:$0xff]
  %v2073 = vld [vmem:[%s1487 + $0x2c1] sm:$0xff]
  %v2074 = vld [vmem:[%s1487 + $0x2d1] sm:$0xff]
  %v2075 = vld [vmem:[%s1487 + $0x2d9] sm:$0xff]
  %v2076 = vld [vmem:[%s1487 + $0x2e9] sm:$0xff]
  %v2077 = vld [vmem:[%s1487 + $0x2f1] sm:$0xff]
  %v2078 = vld [vmem:[%s1487 + $0x301] sm:$0xff]
  %v2079 = vld [vmem:[%s1487 + $0x309] sm:$0xff]
  %v2080 = vld [vmem:[%s1487 + $0x319] sm:$0xff]
  %v2081 = vld [vmem:[%s1487 + $0x321] sm:$0xff]
  %s2082 = scalar_lea.vmem %s1, 512
  %v2083 = vld [vmem:[%s2082] sm:$0xff]
  %v2084 = vld [vmem:[%s2082 + $0x8] sm:$0xff]
  %v2085 = vld [vmem:[%s2082 + $0x10] sm:$0xff]
  %v2086 = vld [vmem:[%s2082 + $0x18] sm:$0xff]
  %v2087 = vld [vmem:[%s2082 + $0x20] sm:$0xff]
  %v2088 = vld [vmem:[%s2082 + $0x28] sm:$0xff]
  %v2089 = vld [vmem:[%s2082 + $0x30] sm:$0xff]
  %v2090 = vld [vmem:[%s2082 + $0x38] sm:$0xff]
  %v2091 = vld [vmem:[%s2082 + $0x40] sm:$0xff]
  %v2092 = vld [vmem:[%s2082 + $0x48] sm:$0xff]
  %v2093 = vld [vmem:[%s2082 + $0x50] sm:$0xff]
  %v2094 = vld [vmem:[%s2082 + $0x58] sm:$0xff]
  %v2095 = vld [vmem:[%s2082 + $0x60] sm:$0xff]
  %v2096 = vld [vmem:[%s2082 + $0x68] sm:$0xff]
  %v2097 = vld [vmem:[%s2082 + $0x70] sm:$0xff]
  %v2098 = vld [vmem:[%s2082 + $0x78] sm:$0xff]
  %2099 = vmatprep.subr.mxu0 0.0
  %2100 = vmatpush1.msra.mxu0 %v2098
  %2101 = vmatprep.subr.mxu0 0.0
  %2102 = vmatpush1.msra.mxu0 %v2097
  %2103 = vmatprep.subr.mxu0 0.0
  %2104 = vmatpush1.msra.mxu0 %v2096
  %2105 = vmatprep.subr.mxu0 0.0
  %2106 = vmatpush1.msra.mxu0 %v2095
  %2107 = vmatprep.subr.mxu0 0.0
  %2108 = vmatpush1.msra.mxu0 %v2094
  %2109 = vmatprep.subr.mxu0 0.0
  %2110 = vmatpush1.msra.mxu0 %v2093
  %2111 = vmatprep.subr.mxu0 0.0
  %2112 = vmatpush1.msra.mxu0 %v2092
  %2113 = vmatprep.subr.mxu0 0.0
  %2114 = vmatpush1.msra.mxu0 %v2091
  %2115 = vmatprep.subr.mxu0 0.0
  %2116 = vmatpush1.msra.mxu0 %v2090
  %2117 = vmatprep.subr.mxu0 0.0
  %2118 = vmatpush1.msra.mxu0 %v2089
  %2119 = vmatprep.subr.mxu0 0.0
  %2120 = vmatpush1.msra.mxu0 %v2088
  %2121 = vmatprep.subr.mxu0 0.0
  %2122 = vmatpush1.msra.mxu0 %v2087
  %2123 = vmatprep.subr.mxu0 0.0
  %2124 = vmatpush1.msra.mxu0 %v2086
  %2125 = vmatprep.subr.mxu0 0.0
  %2126 = vmatpush1.msra.mxu0 %v2085
  %2127 = vmatprep.subr.mxu0 0.0
  %2128 = vmatpush1.msra.mxu0 %v2084
  %2129 = vmatprep.subr.mxu0 0.0
  %2130 = vmatpush1.msra.mxu0 %v2083
  %2131 = vmatprep.subr.mxu0 0.0
  %2132 = vmatpush2.msra.mxu0 0.0
  %2133 = vmatprep.subr.mxu0 0.0
  %2134 = vmatpush2.msra.mxu0 0.0
  %2135 = vmatprep.subr.mxu0 0.0
  %2136 = vmatpush2.msra.mxu0 0.0
  %2137 = vmatprep.subr.mxu0 0.0
  %2138 = vmatpush2.msra.mxu0 0.0
  %2139 = vmatprep.subr.mxu0 0.0
  %2140 = vmatpush2.msra.mxu0 0.0
  %2141 = vmatprep.subr.mxu0 0.0
  %2142 = vmatpush2.msra.mxu0 0.0
  %2143 = vmatprep.subr.mxu0 0.0
  %2144 = vmatpush2.msra.mxu0 0.0
  %2145 = vmatprep.subr.mxu0 0.0
  %2146 = vmatpush2.msra.mxu0 0.0
  %2147 = vmatprep.subr.mxu0 0.0
  %2148 = vmatpush2.msra.mxu0 0.0
  %2149 = vmatprep.subr.mxu0 0.0
  %2150 = vmatpush2.msra.mxu0 0.0
  %2151 = vmatprep.subr.mxu0 0.0
  %2152 = vmatpush2.msra.mxu0 0.0
  %2153 = vmatprep.subr.mxu0 0.0
  %2154 = vmatpush2.msra.mxu0 0.0
  %2155 = vmatprep.subr.mxu0 0.0
  %2156 = vmatpush2.msra.mxu0 0.0
  %2157 = vmatprep.subr.mxu0 0.0
  %2158 = vmatpush2.msra.mxu0 0.0
  %2159 = vmatprep.subr.mxu0 0.0
  %2160 = vmatpush2.msra.mxu0 0.0
  %2161 = vmatprep.subr.mxu0 0.0
  %2162 = vmatpush2.msra.mxu0 0.0
  %2163 = vmatprep.mubr.f32.mxu0 0.0
  %2164 = vmatmul.mubr.f32.gmra.mxu0 %v2018
  %v2165 = vpop.f32.mrf.mxu0
  %v2166 = vadd.f32 0.0, %v2165
  %v2167 = vpop.f32.mrf.mxu0
  %2168 = vmatprep.mubr.f32.mxu0 0.0
  %2169 = vmatmul.mubr.f32.gmra.mxu0 %v2019
  %v2170 = vpop.f32.mrf.mxu0
  %v2171 = vadd.f32 0.0, %v2170
  %v2172 = vpop.f32.mrf.mxu0
  %2173 = vmatprep.mubr.f32.mxu0 0.0
  %2174 = vmatmul.mubr.f32.gmra.mxu0 %v2020
  %v2175 = vpop.f32.mrf.mxu0
  %v2176 = vadd.f32 0.0, %v2175
  %v2177 = vpop.f32.mrf.mxu0
  %2178 = vmatprep.mubr.f32.mxu0 0.0
  %2179 = vmatmul.mubr.f32.gmra.mxu0 %v2021
  %v2180 = vpop.f32.mrf.mxu0
  %v2181 = vadd.f32 0.0, %v2180
  %v2182 = vpop.f32.mrf.mxu0
  %2183 = vmatprep.mubr.f32.mxu0 0.0
  %2184 = vmatmul.mubr.f32.gmra.mxu0 %v2022
  %v2185 = vpop.f32.mrf.mxu0
  %v2186 = vadd.f32 0.0, %v2185
  %v2187 = vpop.f32.mrf.mxu0
  %2188 = vmatprep.mubr.f32.mxu0 0.0
  %2189 = vmatmul.mubr.f32.gmra.mxu0 %v2023
  %v2190 = vpop.f32.mrf.mxu0
  %v2191 = vadd.f32 0.0, %v2190
  %v2192 = vpop.f32.mrf.mxu0
  %2193 = vmatprep.mubr.f32.mxu0 0.0
  %2194 = vmatmul.mubr.f32.gmra.mxu0 %v2024
  %v2195 = vpop.f32.mrf.mxu0
  %v2196 = vadd.f32 0.0, %v2195
  %v2197 = vpop.f32.mrf.mxu0
  %2198 = vmatprep.mubr.f32.mxu0 0.0
  %2199 = vmatmul.mubr.f32.gmra.mxu0 %v2025
  %v2200 = vpop.f32.mrf.mxu0
  %v2201 = vadd.f32 0.0, %v2200
  %v2202 = vpop.f32.mrf.mxu0
  %2203 = vmatprep.mubr.f32.mxu0 0.0
  %2204 = vmatmul.mubr.f32.gmra.mxu0 %v2026
  %v2205 = vpop.f32.mrf.mxu0
  %v2206 = vadd.f32 0.0, %v2205
  %v2207 = vpop.f32.mrf.mxu0
  %2208 = vmatprep.mubr.f32.mxu0 0.0
  %2209 = vmatmul.mubr.f32.gmra.mxu0 %v2027
  %v2210 = vpop.f32.mrf.mxu0
  %v2211 = vadd.f32 0.0, %v2210
  %v2212 = vpop.f32.mrf.mxu0
  %2213 = vmatprep.mubr.f32.mxu0 0.0
  %2214 = vmatmul.mubr.f32.gmra.mxu0 %v2028
  %v2215 = vpop.f32.mrf.mxu0
  %v2216 = vadd.f32 0.0, %v2215
  %v2217 = vpop.f32.mrf.mxu0
  %2218 = vmatprep.mubr.f32.mxu0 0.0
  %2219 = vmatmul.mubr.f32.gmra.mxu0 %v2029
  %v2220 = vpop.f32.mrf.mxu0
  %v2221 = vadd.f32 0.0, %v2220
  %v2222 = vpop.f32.mrf.mxu0
  %2223 = vmatprep.mubr.f32.mxu0 0.0
  %2224 = vmatmul.mubr.f32.gmra.mxu0 %v2030
  %v2225 = vpop.f32.mrf.mxu0
  %v2226 = vadd.f32 0.0, %v2225
  %v2227 = vpop.f32.mrf.mxu0
  %2228 = vmatprep.mubr.f32.mxu0 0.0
  %2229 = vmatmul.mubr.f32.gmra.mxu0 %v2031
  %v2230 = vpop.f32.mrf.mxu0
  %v2231 = vadd.f32 0.0, %v2230
  %v2232 = vpop.f32.mrf.mxu0
  %2233 = vmatprep.mubr.f32.mxu0 0.0
  %2234 = vmatmul.mubr.f32.gmra.mxu0 %v2032
  %v2235 = vpop.f32.mrf.mxu0
  %v2236 = vadd.f32 0.0, %v2235
  %v2237 = vpop.f32.mrf.mxu0
  %2238 = vmatprep.mubr.f32.mxu0 0.0
  %2239 = vmatmul.mubr.f32.gmra.mxu0 %v2033
  %v2240 = vpop.f32.mrf.mxu0
  %v2241 = vadd.f32 0.0, %v2240
  %v2242 = vpop.f32.mrf.mxu0
  %2243 = vmatprep.mubr.f32.mxu0 0.0
  %2244 = vmatmul.mubr.f32.gmra.mxu0 %v2034
  %v2245 = vpop.f32.mrf.mxu0
  %v2246 = vadd.f32 0.0, %v2245
  %v2247 = vpop.f32.mrf.mxu0
  %2248 = vmatprep.mubr.f32.mxu0 0.0
  %2249 = vmatmul.mubr.f32.gmra.mxu0 %v2035
  %v2250 = vpop.f32.mrf.mxu0
  %v2251 = vadd.f32 0.0, %v2250
  %v2252 = vpop.f32.mrf.mxu0
  %2253 = vmatprep.mubr.f32.mxu0 0.0
  %2254 = vmatmul.mubr.f32.gmra.mxu0 %v2036
  %v2255 = vpop.f32.mrf.mxu0
  %v2256 = vadd.f32 0.0, %v2255
  %v2257 = vpop.f32.mrf.mxu0
  %2258 = vmatprep.mubr.f32.mxu0 0.0
  %2259 = vmatmul.mubr.f32.gmra.mxu0 %v2037
  %v2260 = vpop.f32.mrf.mxu0
  %v2261 = vadd.f32 0.0, %v2260
  %v2262 = vpop.f32.mrf.mxu0
  %2263 = vmatprep.mubr.f32.mxu0 0.0
  %2264 = vmatmul.mubr.f32.gmra.mxu0 %v2038
  %v2265 = vpop.f32.mrf.mxu0
  %v2266 = vadd.f32 0.0, %v2265
  %v2267 = vpop.f32.mrf.mxu0
  %2268 = vmatprep.mubr.f32.mxu0 0.0
  %2269 = vmatmul.mubr.f32.gmra.mxu0 %v2039
  %v2270 = vpop.f32.mrf.mxu0
  %v2271 = vadd.f32 0.0, %v2270
  %v2272 = vpop.f32.mrf.mxu0
  %2273 = vmatprep.mubr.f32.mxu0 0.0
  %2274 = vmatmul.mubr.f32.gmra.mxu0 %v2040
  %v2275 = vpop.f32.mrf.mxu0
  %v2276 = vadd.f32 0.0, %v2275
  %v2277 = vpop.f32.mrf.mxu0
  %2278 = vmatprep.mubr.f32.mxu0 0.0
  %2279 = vmatmul.mubr.f32.gmra.mxu0 %v2041
  %v2280 = vpop.f32.mrf.mxu0
  %v2281 = vadd.f32 0.0, %v2280
  %v2282 = vpop.f32.mrf.mxu0
  %2283 = vmatprep.mubr.f32.mxu0 0.0
  %2284 = vmatmul.mubr.f32.gmra.mxu0 %v2042
  %v2285 = vpop.f32.mrf.mxu0
  %v2286 = vadd.f32 0.0, %v2285
  %v2287 = vpop.f32.mrf.mxu0
  %2288 = vmatprep.mubr.f32.mxu0 0.0
  %2289 = vmatmul.mubr.f32.gmra.mxu0 %v2043
  %v2290 = vpop.f32.mrf.mxu0
  %v2291 = vadd.f32 0.0, %v2290
  %v2292 = vpop.f32.mrf.mxu0
  %2293 = vmatprep.mubr.f32.mxu0 0.0
  %2294 = vmatmul.mubr.f32.gmra.mxu0 %v2044
  %v2295 = vpop.f32.mrf.mxu0
  %v2296 = vadd.f32 0.0, %v2295
  %v2297 = vpop.f32.mrf.mxu0
  %2298 = vmatprep.mubr.f32.mxu0 0.0
  %2299 = vmatmul.mubr.f32.gmra.mxu0 %v2045
  %v2300 = vpop.f32.mrf.mxu0
  %v2301 = vadd.f32 0.0, %v2300
  %v2302 = vpop.f32.mrf.mxu0
  %2303 = vmatprep.mubr.f32.mxu0 0.0
  %2304 = vmatmul.mubr.f32.gmra.mxu0 %v2046
  %v2305 = vpop.f32.mrf.mxu0
  %v2306 = vadd.f32 0.0, %v2305
  %v2307 = vpop.f32.mrf.mxu0
  %2308 = vmatprep.mubr.f32.mxu0 0.0
  %2309 = vmatmul.mubr.f32.gmra.mxu0 %v2047
  %v2310 = vpop.f32.mrf.mxu0
  %v2311 = vadd.f32 0.0, %v2310
  %v2312 = vpop.f32.mrf.mxu0
  %2313 = vmatprep.mubr.f32.mxu0 0.0
  %2314 = vmatmul.mubr.f32.gmra.mxu0 %v2048
  %v2315 = vpop.f32.mrf.mxu0
  %v2316 = vadd.f32 0.0, %v2315
  %v2317 = vpop.f32.mrf.mxu0
  %2318 = vmatprep.mubr.f32.mxu0 0.0
  %2319 = vmatmul.mubr.f32.gmra.mxu0 %v2049
  %v2320 = vpop.f32.mrf.mxu0
  %v2321 = vadd.f32 0.0, %v2320
  %v2322 = vpop.f32.mrf.mxu0
  %2323 = vmatprep.mubr.f32.mxu0 0.0
  %2324 = vmatmul.mubr.f32.gmra.mxu0 %v2050
  %v2325 = vpop.f32.mrf.mxu0
  %v2326 = vadd.f32 0.0, %v2325
  %v2327 = vpop.f32.mrf.mxu0
  %2328 = vmatprep.mubr.f32.mxu0 0.0
  %2329 = vmatmul.mubr.f32.gmra.mxu0 %v2051
  %v2330 = vpop.f32.mrf.mxu0
  %v2331 = vadd.f32 0.0, %v2330
  %v2332 = vpop.f32.mrf.mxu0
  %2333 = vmatprep.mubr.f32.mxu0 0.0
  %2334 = vmatmul.mubr.f32.gmra.mxu0 %v2052
  %v2335 = vpop.f32.mrf.mxu0
  %v2336 = vadd.f32 0.0, %v2335
  %v2337 = vpop.f32.mrf.mxu0
  %2338 = vmatprep.mubr.f32.mxu0 0.0
  %2339 = vmatmul.mubr.f32.gmra.mxu0 %v2053
  %v2340 = vpop.f32.mrf.mxu0
  %v2341 = vadd.f32 0.0, %v2340
  %v2342 = vpop.f32.mrf.mxu0
  %2343 = vmatprep.mubr.f32.mxu0 0.0
  %2344 = vmatmul.mubr.f32.gmra.mxu0 %v2054
  %v2345 = vpop.f32.mrf.mxu0
  %v2346 = vadd.f32 0.0, %v2345
  %v2347 = vpop.f32.mrf.mxu0
  %2348 = vmatprep.mubr.f32.mxu0 0.0
  %2349 = vmatmul.mubr.f32.gmra.mxu0 %v2055
  %v2350 = vpop.f32.mrf.mxu0
  %v2351 = vadd.f32 0.0, %v2350
  %v2352 = vpop.f32.mrf.mxu0
  %2353 = vmatprep.mubr.f32.mxu0 0.0
  %2354 = vmatmul.mubr.f32.gmra.mxu0 %v2056
  %v2355 = vpop.f32.mrf.mxu0
  %v2356 = vadd.f32 0.0, %v2355
  %v2357 = vpop.f32.mrf.mxu0
  %2358 = vmatprep.mubr.f32.mxu0 0.0
  %2359 = vmatmul.mubr.f32.gmra.mxu0 %v2057
  %v2360 = vpop.f32.mrf.mxu0
  %v2361 = vadd.f32 0.0, %v2360
  %v2362 = vpop.f32.mrf.mxu0
  %2363 = vmatprep.mubr.f32.mxu0 0.0
  %2364 = vmatmul.mubr.f32.gmra.mxu0 %v2058
  %v2365 = vpop.f32.mrf.mxu0
  %v2366 = vadd.f32 0.0, %v2365
  %v2367 = vpop.f32.mrf.mxu0
  %2368 = vmatprep.mubr.f32.mxu0 0.0
  %2369 = vmatmul.mubr.f32.gmra.mxu0 %v2059
  %v2370 = vpop.f32.mrf.mxu0
  %v2371 = vadd.f32 0.0, %v2370
  %v2372 = vpop.f32.mrf.mxu0
  %2373 = vmatprep.mubr.f32.mxu0 0.0
  %2374 = vmatmul.mubr.f32.gmra.mxu0 %v2060
  %v2375 = vpop.f32.mrf.mxu0
  %v2376 = vadd.f32 0.0, %v2375
  %v2377 = vpop.f32.mrf.mxu0
  %2378 = vmatprep.mubr.f32.mxu0 0.0
  %2379 = vmatmul.mubr.f32.gmra.mxu0 %v2061
  %v2380 = vpop.f32.mrf.mxu0
  %v2381 = vadd.f32 0.0, %v2380
  %v2382 = vpop.f32.mrf.mxu0
  %2383 = vmatprep.mubr.f32.mxu0 0.0
  %2384 = vmatmul.mubr.f32.gmra.mxu0 %v2062
  %v2385 = vpop.f32.mrf.mxu0
  %v2386 = vadd.f32 0.0, %v2385
  %v2387 = vpop.f32.mrf.mxu0
  %2388 = vmatprep.mubr.f32.mxu0 0.0
  %2389 = vmatmul.mubr.f32.gmra.mxu0 %v2063
  %v2390 = vpop.f32.mrf.mxu0
  %v2391 = vadd.f32 0.0, %v2390
  %v2392 = vpop.f32.mrf.mxu0
  %2393 = vmatprep.mubr.f32.mxu0 0.0
  %2394 = vmatmul.mubr.f32.gmra.mxu0 %v2064
  %v2395 = vpop.f32.mrf.mxu0
  %v2396 = vadd.f32 0.0, %v2395
  %v2397 = vpop.f32.mrf.mxu0
  %2398 = vmatprep.mubr.f32.mxu0 0.0
  %2399 = vmatmul.mubr.f32.gmra.mxu0 %v2065
  %v2400 = vpop.f32.mrf.mxu0
  %v2401 = vadd.f32 0.0, %v2400
  %v2402 = vpop.f32.mrf.mxu0
  %2403 = vmatprep.mubr.f32.mxu0 0.0
  %2404 = vmatmul.mubr.f32.gmra.mxu0 %v2066
  %v2405 = vpop.f32.mrf.mxu0
  %v2406 = vadd.f32 0.0, %v2405
  %v2407 = vpop.f32.mrf.mxu0
  %2408 = vmatprep.mubr.f32.mxu0 0.0
  %2409 = vmatmul.mubr.f32.gmra.mxu0 %v2067
  %v2410 = vpop.f32.mrf.mxu0
  %v2411 = vadd.f32 0.0, %v2410
  %v2412 = vpop.f32.mrf.mxu0
  %2413 = vmatprep.mubr.f32.mxu0 0.0
  %2414 = vmatmul.mubr.f32.gmra.mxu0 %v2068
  %v2415 = vpop.f32.mrf.mxu0
  %v2416 = vadd.f32 0.0, %v2415
  %v2417 = vpop.f32.mrf.mxu0
  %2418 = vmatprep.mubr.f32.mxu0 0.0
  %2419 = vmatmul.mubr.f32.gmra.mxu0 %v2069
  %v2420 = vpop.f32.mrf.mxu0
  %v2421 = vadd.f32 0.0, %v2420
  %v2422 = vpop.f32.mrf.mxu0
  %2423 = vmatprep.mubr.f32.mxu0 0.0
  %2424 = vmatmul.mubr.f32.gmra.mxu0 %v2070
  %v2425 = vpop.f32.mrf.mxu0
  %v2426 = vadd.f32 0.0, %v2425
  %v2427 = vpop.f32.mrf.mxu0
  %2428 = vmatprep.mubr.f32.mxu0 0.0
  %2429 = vmatmul.mubr.f32.gmra.mxu0 %v2071
  %v2430 = vpop.f32.mrf.mxu0
  %v2431 = vadd.f32 0.0, %v2430
  %v2432 = vpop.f32.mrf.mxu0
  %2433 = vmatprep.mubr.f32.mxu0 0.0
  %2434 = vmatmul.mubr.f32.gmra.mxu0 %v2072
  %v2435 = vpop.f32.mrf.mxu0
  %v2436 = vadd.f32 0.0, %v2435
  %v2437 = vpop.f32.mrf.mxu0
  %2438 = vmatprep.mubr.f32.mxu0 0.0
  %2439 = vmatmul.mubr.f32.gmra.mxu0 %v2073
  %v2440 = vpop.f32.mrf.mxu0
  %v2441 = vadd.f32 0.0, %v2440
  %v2442 = vpop.f32.mrf.mxu0
  %2443 = vmatprep.mubr.f32.mxu0 0.0
  %2444 = vmatmul.mubr.f32.gmra.mxu0 %v2074
  %v2445 = vpop.f32.mrf.mxu0
  %v2446 = vadd.f32 0.0, %v2445
  %v2447 = vpop.f32.mrf.mxu0
  %2448 = vmatprep.mubr.f32.mxu0 0.0
  %2449 = vmatmul.mubr.f32.gmra.mxu0 %v2075
  %v2450 = vpop.f32.mrf.mxu0
  %v2451 = vadd.f32 0.0, %v2450
  %v2452 = vpop.f32.mrf.mxu0
  %2453 = vmatprep.mubr.f32.mxu0 0.0
  %2454 = vmatmul.mubr.f32.gmra.mxu0 %v2076
  %v2455 = vpop.f32.mrf.mxu0
  %v2456 = vadd.f32 0.0, %v2455
  %v2457 = vpop.f32.mrf.mxu0
  %2458 = vmatprep.mubr.f32.mxu0 0.0
  %2459 = vmatmul.mubr.f32.gmra.mxu0 %v2077
  %v2460 = vpop.f32.mrf.mxu0
  %v2461 = vadd.f32 0.0, %v2460
  %v2462 = vpop.f32.mrf.mxu0
  %2463 = vmatprep.mubr.f32.mxu0 0.0
  %2464 = vmatmul.mubr.f32.gmra.mxu0 %v2078
  %v2465 = vpop.f32.mrf.mxu0
  %v2466 = vadd.f32 0.0, %v2465
  %v2467 = vpop.f32.mrf.mxu0
  %2468 = vmatprep.mubr.f32.mxu0 0.0
  %2469 = vmatmul.mubr.f32.gmra.mxu0 %v2079
  %v2470 = vpop.f32.mrf.mxu0
  %v2471 = vadd.f32 0.0, %v2470
  %v2472 = vpop.f32.mrf.mxu0
  %2473 = vmatprep.mubr.f32.mxu0 0.0
  %2474 = vmatmul.mubr.f32.gmra.mxu0 %v2080
  %v2475 = vpop.f32.mrf.mxu0
  %v2476 = vadd.f32 0.0, %v2475
  %v2477 = vpop.f32.mrf.mxu0
  %2478 = vmatprep.mubr.f32.mxu0 0.0
  %2479 = vmatmul.mubr.f32.gmra.mxu0 %v2081
  %v2480 = vpop.f32.mrf.mxu0
  %v2481 = vadd.f32 0.0, %v2480
  %v2482 = vpop.f32.mrf.mxu0
  %2483 = vdwg.mxu0
  %v2484 = vadd.f32 %v1954, %v2166
  %v2485 = vadd.f32 %v1955, %v2171
  %v2486 = vadd.f32 %v1956, %v2176
  %v2487 = vadd.f32 %v1957, %v2181
  %v2488 = vadd.f32 %v1958, %v2186
  %v2489 = vadd.f32 %v1959, %v2191
  %v2490 = vadd.f32 %v1960, %v2196
  %v2491 = vadd.f32 %v1961, %v2201
  %v2492 = vadd.f32 %v1962, %v2206
  %v2493 = vadd.f32 %v1963, %v2211
  %v2494 = vadd.f32 %v1964, %v2216
  %v2495 = vadd.f32 %v1965, %v2221
  %v2496 = vadd.f32 %v1966, %v2226
  %v2497 = vadd.f32 %v1967, %v2231
  %v2498 = vadd.f32 %v1968, %v2236
  %v2499 = vadd.f32 %v1969, %v2241
  %v2500 = vadd.f32 %v1970, %v2246
  %v2501 = vadd.f32 %v1971, %v2251
  %v2502 = vadd.f32 %v1972, %v2256
  %v2503 = vadd.f32 %v1973, %v2261
  %v2504 = vadd.f32 %v1974, %v2266
  %v2505 = vadd.f32 %v1975, %v2271
  %v2506 = vadd.f32 %v1976, %v2276
  %v2507 = vadd.f32 %v1977, %v2281
  %v2508 = vadd.f32 %v1978, %v2286
  %v2509 = vadd.f32 %v1979, %v2291
  %v2510 = vadd.f32 %v1980, %v2296
  %v2511 = vadd.f32 %v1981, %v2301
  %v2512 = vadd.f32 %v1982, %v2306
  %v2513 = vadd.f32 %v1983, %v2311
  %v2514 = vadd.f32 %v1984, %v2316
  %v2515 = vadd.f32 %v1985, %v2321
  %v2516 = vadd.f32 %v1986, %v2326
  %v2517 = vadd.f32 %v1987, %v2331
  %v2518 = vadd.f32 %v1988, %v2336
  %v2519 = vadd.f32 %v1989, %v2341
  %v2520 = vadd.f32 %v1990, %v2346
  %v2521 = vadd.f32 %v1991, %v2351
  %v2522 = vadd.f32 %v1992, %v2356
  %v2523 = vadd.f32 %v1993, %v2361
  %v2524 = vadd.f32 %v1994, %v2366
  %v2525 = vadd.f32 %v1995, %v2371
  %v2526 = vadd.f32 %v1996, %v2376
  %v2527 = vadd.f32 %v1997, %v2381
  %v2528 = vadd.f32 %v1998, %v2386
  %v2529 = vadd.f32 %v1999, %v2391
  %v2530 = vadd.f32 %v2000, %v2396
  %v2531 = vadd.f32 %v2001, %v2401
  %v2532 = vadd.f32 %v2002, %v2406
  %v2533 = vadd.f32 %v2003, %v2411
  %v2534 = vadd.f32 %v2004, %v2416
  %v2535 = vadd.f32 %v2005, %v2421
  %v2536 = vadd.f32 %v2006, %v2426
  %v2537 = vadd.f32 %v2007, %v2431
  %v2538 = vadd.f32 %v2008, %v2436
  %v2539 = vadd.f32 %v2009, %v2441
  %v2540 = vadd.f32 %v2010, %v2446
  %v2541 = vadd.f32 %v2011, %v2451
  %v2542 = vadd.f32 %v2012, %v2456
  %v2543 = vadd.f32 %v2013, %v2461
  %v2544 = vadd.f32 %v2014, %v2466
  %v2545 = vadd.f32 %v2015, %v2471
  %v2546 = vadd.f32 %v2016, %v2476
  %v2547 = vadd.f32 %v2017, %v2481
  %v2548 = vld [vmem:[%s1487 + $0x2] sm:$0xff]
  %v2549 = vld [vmem:[%s1487 + $0xa] sm:$0xff]
  %v2550 = vld [vmem:[%s1487 + $0x1a] sm:$0xff]
  %v2551 = vld [vmem:[%s1487 + $0x22] sm:$0xff]
  %v2552 = vld [vmem:[%s1487 + $0x32] sm:$0xff]
  %v2553 = vld [vmem:[%s1487 + $0x3a] sm:$0xff]
  %v2554 = vld [vmem:[%s1487 + $0x4a] sm:$0xff]
  %v2555 = vld [vmem:[%s1487 + $0x52] sm:$0xff]
  %v2556 = vld [vmem:[%s1487 + $0x62] sm:$0xff]
  %v2557 = vld [vmem:[%s1487 + $0x6a] sm:$0xff]
  %v2558 = vld [vmem:[%s1487 + $0x7a] sm:$0xff]
  %v2559 = vld [vmem:[%s1487 + $0x82] sm:$0xff]
  %v2560 = vld [vmem:[%s1487 + $0x92] sm:$0xff]
  %v2561 = vld [vmem:[%s1487 + $0x9a] sm:$0xff]
  %v2562 = vld [vmem:[%s1487 + $0xaa] sm:$0xff]
  %v2563 = vld [vmem:[%s1487 + $0xb2] sm:$0xff]
  %v2564 = vld [vmem:[%s1487 + $0xc2] sm:$0xff]
  %v2565 = vld [vmem:[%s1487 + $0xca] sm:$0xff]
  %v2566 = vld [vmem:[%s1487 + $0xda] sm:$0xff]
  %v2567 = vld [vmem:[%s1487 + $0xe2] sm:$0xff]
  %v2568 = vld [vmem:[%s1487 + $0xf2] sm:$0xff]
  %v2569 = vld [vmem:[%s1487 + $0xfa] sm:$0xff]
  %v2570 = vld [vmem:[%s1487 + $0x10a] sm:$0xff]
  %v2571 = vld [vmem:[%s1487 + $0x112] sm:$0xff]
  %v2572 = vld [vmem:[%s1487 + $0x122] sm:$0xff]
  %v2573 = vld [vmem:[%s1487 + $0x12a] sm:$0xff]
  %v2574 = vld [vmem:[%s1487 + $0x13a] sm:$0xff]
  %v2575 = vld [vmem:[%s1487 + $0x142] sm:$0xff]
  %v2576 = vld [vmem:[%s1487 + $0x152] sm:$0xff]
  %v2577 = vld [vmem:[%s1487 + $0x15a] sm:$0xff]
  %v2578 = vld [vmem:[%s1487 + $0x16a] sm:$0xff]
  %v2579 = vld [vmem:[%s1487 + $0x172] sm:$0xff]
  %v2580 = vld [vmem:[%s1487 + $0x1b2] sm:$0xff]
  %v2581 = vld [vmem:[%s1487 + $0x1ba] sm:$0xff]
  %v2582 = vld [vmem:[%s1487 + $0x1ca] sm:$0xff]
  %v2583 = vld [vmem:[%s1487 + $0x1d2] sm:$0xff]
  %v2584 = vld [vmem:[%s1487 + $0x1e2] sm:$0xff]
  %v2585 = vld [vmem:[%s1487 + $0x1ea] sm:$0xff]
  %v2586 = vld [vmem:[%s1487 + $0x1fa] sm:$0xff]
  %v2587 = vld [vmem:[%s1487 + $0x202] sm:$0xff]
  %v2588 = vld [vmem:[%s1487 + $0x212] sm:$0xff]
  %v2589 = vld [vmem:[%s1487 + $0x21a] sm:$0xff]
  %v2590 = vld [vmem:[%s1487 + $0x22a] sm:$0xff]
  %v2591 = vld [vmem:[%s1487 + $0x232] sm:$0xff]
  %v2592 = vld [vmem:[%s1487 + $0x242] sm:$0xff]
  %v2593 = vld [vmem:[%s1487 + $0x24a] sm:$0xff]
  %v2594 = vld [vmem:[%s1487 + $0x25a] sm:$0xff]
  %v2595 = vld [vmem:[%s1487 + $0x262] sm:$0xff]
  %v2596 = vld [vmem:[%s1487 + $0x272] sm:$0xff]
  %v2597 = vld [vmem:[%s1487 + $0x27a] sm:$0xff]
  %v2598 = vld [vmem:[%s1487 + $0x28a] sm:$0xff]
  %v2599 = vld [vmem:[%s1487 + $0x292] sm:$0xff]
  %v2600 = vld [vmem:[%s1487 + $0x2a2] sm:$0xff]
  %v2601 = vld [vmem:[%s1487 + $0x2aa] sm:$0xff]
  %v2602 = vld [vmem:[%s1487 + $0x2ba] sm:$0xff]
  %v2603 = vld [vmem:[%s1487 + $0x2c2] sm:$0xff]
  %v2604 = vld [vmem:[%s1487 + $0x2d2] sm:$0xff]
  %v2605 = vld [vmem:[%s1487 + $0x2da] sm:$0xff]
  %v2606 = vld [vmem:[%s1487 + $0x2ea] sm:$0xff]
  %v2607 = vld [vmem:[%s1487 + $0x2f2] sm:$0xff]
  %v2608 = vld [vmem:[%s1487 + $0x302] sm:$0xff]
  %v2609 = vld [vmem:[%s1487 + $0x30a] sm:$0xff]
  %v2610 = vld [vmem:[%s1487 + $0x31a] sm:$0xff]
  %v2611 = vld [vmem:[%s1487 + $0x322] sm:$0xff]
  %s2612 = scalar_lea.vmem %s1, 640
  %v2613 = vld [vmem:[%s2612] sm:$0xff]
  %v2614 = vld [vmem:[%s2612 + $0x8] sm:$0xff]
  %v2615 = vld [vmem:[%s2612 + $0x10] sm:$0xff]
  %v2616 = vld [vmem:[%s2612 + $0x18] sm:$0xff]
  %v2617 = vld [vmem:[%s2612 + $0x20] sm:$0xff]
  %v2618 = vld [vmem:[%s2612 + $0x28] sm:$0xff]
  %v2619 = vld [vmem:[%s2612 + $0x30] sm:$0xff]
  %v2620 = vld [vmem:[%s2612 + $0x38] sm:$0xff]
  %v2621 = vld [vmem:[%s2612 + $0x40] sm:$0xff]
  %v2622 = vld [vmem:[%s2612 + $0x48] sm:$0xff]
  %v2623 = vld [vmem:[%s2612 + $0x50] sm:$0xff]
  %v2624 = vld [vmem:[%s2612 + $0x58] sm:$0xff]
  %v2625 = vld [vmem:[%s2612 + $0x60] sm:$0xff]
  %v2626 = vld [vmem:[%s2612 + $0x68] sm:$0xff]
  %v2627 = vld [vmem:[%s2612 + $0x70] sm:$0xff]
  %v2628 = vld [vmem:[%s2612 + $0x78] sm:$0xff]
  %2629 = vmatprep.subr.mxu0 0.0
  %2630 = vmatpush1.msra.mxu0 %v2628
  %2631 = vmatprep.subr.mxu0 0.0
  %2632 = vmatpush1.msra.mxu0 %v2627
  %2633 = vmatprep.subr.mxu0 0.0
  %2634 = vmatpush1.msra.mxu0 %v2626
  %2635 = vmatprep.subr.mxu0 0.0
  %2636 = vmatpush1.msra.mxu0 %v2625
  %2637 = vmatprep.subr.mxu0 0.0
  %2638 = vmatpush1.msra.mxu0 %v2624
  %2639 = vmatprep.subr.mxu0 0.0
  %2640 = vmatpush1.msra.mxu0 %v2623
  %2641 = vmatprep.subr.mxu0 0.0
  %2642 = vmatpush1.msra.mxu0 %v2622
  %2643 = vmatprep.subr.mxu0 0.0
  %2644 = vmatpush1.msra.mxu0 %v2621
  %2645 = vmatprep.subr.mxu0 0.0
  %2646 = vmatpush1.msra.mxu0 %v2620
  %2647 = vmatprep.subr.mxu0 0.0
  %2648 = vmatpush1.msra.mxu0 %v2619
  %2649 = vmatprep.subr.mxu0 0.0
  %2650 = vmatpush1.msra.mxu0 %v2618
  %2651 = vmatprep.subr.mxu0 0.0
  %2652 = vmatpush1.msra.mxu0 %v2617
  %2653 = vmatprep.subr.mxu0 0.0
  %2654 = vmatpush1.msra.mxu0 %v2616
  %2655 = vmatprep.subr.mxu0 0.0
  %2656 = vmatpush1.msra.mxu0 %v2615
  %2657 = vmatprep.subr.mxu0 0.0
  %2658 = vmatpush1.msra.mxu0 %v2614
  %2659 = vmatprep.subr.mxu0 0.0
  %2660 = vmatpush1.msra.mxu0 %v2613
  %2661 = vmatprep.subr.mxu0 0.0
  %2662 = vmatpush2.msra.mxu0 0.0
  %2663 = vmatprep.subr.mxu0 0.0
  %2664 = vmatpush2.msra.mxu0 0.0
  %2665 = vmatprep.subr.mxu0 0.0
  %2666 = vmatpush2.msra.mxu0 0.0
  %2667 = vmatprep.subr.mxu0 0.0
  %2668 = vmatpush2.msra.mxu0 0.0
  %2669 = vmatprep.subr.mxu0 0.0
  %2670 = vmatpush2.msra.mxu0 0.0
  %2671 = vmatprep.subr.mxu0 0.0
  %2672 = vmatpush2.msra.mxu0 0.0
  %2673 = vmatprep.subr.mxu0 0.0
  %2674 = vmatpush2.msra.mxu0 0.0
  %2675 = vmatprep.subr.mxu0 0.0
  %2676 = vmatpush2.msra.mxu0 0.0
  %2677 = vmatprep.subr.mxu0 0.0
  %2678 = vmatpush2.msra.mxu0 0.0
  %2679 = vmatprep.subr.mxu0 0.0
  %2680 = vmatpush2.msra.mxu0 0.0
  %2681 = vmatprep.subr.mxu0 0.0
  %2682 = vmatpush2.msra.mxu0 0.0
  %2683 = vmatprep.subr.mxu0 0.0
  %2684 = vmatpush2.msra.mxu0 0.0
  %2685 = vmatprep.subr.mxu0 0.0
  %2686 = vmatpush2.msra.mxu0 0.0
  %2687 = vmatprep.subr.mxu0 0.0
  %2688 = vmatpush2.msra.mxu0 0.0
  %2689 = vmatprep.subr.mxu0 0.0
  %2690 = vmatpush2.msra.mxu0 0.0
  %2691 = vmatprep.subr.mxu0 0.0
  %2692 = vmatpush2.msra.mxu0 0.0
  %2693 = vmatprep.mubr.f32.mxu0 0.0
  %2694 = vmatmul.mubr.f32.gmra.mxu0 %v2548
  %v2695 = vpop.f32.mrf.mxu0
  %v2696 = vadd.f32 0.0, %v2695
  %v2697 = vpop.f32.mrf.mxu0
  %2698 = vmatprep.mubr.f32.mxu0 0.0
  %2699 = vmatmul.mubr.f32.gmra.mxu0 %v2549
  %v2700 = vpop.f32.mrf.mxu0
  %v2701 = vadd.f32 0.0, %v2700
  %v2702 = vpop.f32.mrf.mxu0
  %2703 = vmatprep.mubr.f32.mxu0 0.0
  %2704 = vmatmul.mubr.f32.gmra.mxu0 %v2550
  %v2705 = vpop.f32.mrf.mxu0
  %v2706 = vadd.f32 0.0, %v2705
  %v2707 = vpop.f32.mrf.mxu0
  %2708 = vmatprep.mubr.f32.mxu0 0.0
  %2709 = vmatmul.mubr.f32.gmra.mxu0 %v2551
  %v2710 = vpop.f32.mrf.mxu0
  %v2711 = vadd.f32 0.0, %v2710
  %v2712 = vpop.f32.mrf.mxu0
  %2713 = vmatprep.mubr.f32.mxu0 0.0
  %2714 = vmatmul.mubr.f32.gmra.mxu0 %v2552
  %v2715 = vpop.f32.mrf.mxu0
  %v2716 = vadd.f32 0.0, %v2715
  %v2717 = vpop.f32.mrf.mxu0
  %2718 = vmatprep.mubr.f32.mxu0 0.0
  %2719 = vmatmul.mubr.f32.gmra.mxu0 %v2553
  %v2720 = vpop.f32.mrf.mxu0
  %v2721 = vadd.f32 0.0, %v2720
  %v2722 = vpop.f32.mrf.mxu0
  %2723 = vmatprep.mubr.f32.mxu0 0.0
  %2724 = vmatmul.mubr.f32.gmra.mxu0 %v2554
  %v2725 = vpop.f32.mrf.mxu0
  %v2726 = vadd.f32 0.0, %v2725
  %v2727 = vpop.f32.mrf.mxu0
  %2728 = vmatprep.mubr.f32.mxu0 0.0
  %2729 = vmatmul.mubr.f32.gmra.mxu0 %v2555
  %v2730 = vpop.f32.mrf.mxu0
  %v2731 = vadd.f32 0.0, %v2730
  %v2732 = vpop.f32.mrf.mxu0
  %2733 = vmatprep.mubr.f32.mxu0 0.0
  %2734 = vmatmul.mubr.f32.gmra.mxu0 %v2556
  %v2735 = vpop.f32.mrf.mxu0
  %v2736 = vadd.f32 0.0, %v2735
  %v2737 = vpop.f32.mrf.mxu0
  %2738 = vmatprep.mubr.f32.mxu0 0.0
  %2739 = vmatmul.mubr.f32.gmra.mxu0 %v2557
  %v2740 = vpop.f32.mrf.mxu0
  %v2741 = vadd.f32 0.0, %v2740
  %v2742 = vpop.f32.mrf.mxu0
  %2743 = vmatprep.mubr.f32.mxu0 0.0
  %2744 = vmatmul.mubr.f32.gmra.mxu0 %v2558
  %v2745 = vpop.f32.mrf.mxu0
  %v2746 = vadd.f32 0.0, %v2745
  %v2747 = vpop.f32.mrf.mxu0
  %2748 = vmatprep.mubr.f32.mxu0 0.0
  %2749 = vmatmul.mubr.f32.gmra.mxu0 %v2559
  %v2750 = vpop.f32.mrf.mxu0
  %v2751 = vadd.f32 0.0, %v2750
  %v2752 = vpop.f32.mrf.mxu0
  %2753 = vmatprep.mubr.f32.mxu0 0.0
  %2754 = vmatmul.mubr.f32.gmra.mxu0 %v2560
  %v2755 = vpop.f32.mrf.mxu0
  %v2756 = vadd.f32 0.0, %v2755
  %v2757 = vpop.f32.mrf.mxu0
  %2758 = vmatprep.mubr.f32.mxu0 0.0
  %2759 = vmatmul.mubr.f32.gmra.mxu0 %v2561
  %v2760 = vpop.f32.mrf.mxu0
  %v2761 = vadd.f32 0.0, %v2760
  %v2762 = vpop.f32.mrf.mxu0
  %2763 = vmatprep.mubr.f32.mxu0 0.0
  %2764 = vmatmul.mubr.f32.gmra.mxu0 %v2562
  %v2765 = vpop.f32.mrf.mxu0
  %v2766 = vadd.f32 0.0, %v2765
  %v2767 = vpop.f32.mrf.mxu0
  %2768 = vmatprep.mubr.f32.mxu0 0.0
  %2769 = vmatmul.mubr.f32.gmra.mxu0 %v2563
  %v2770 = vpop.f32.mrf.mxu0
  %v2771 = vadd.f32 0.0, %v2770
  %v2772 = vpop.f32.mrf.mxu0
  %2773 = vmatprep.mubr.f32.mxu0 0.0
  %2774 = vmatmul.mubr.f32.gmra.mxu0 %v2564
  %v2775 = vpop.f32.mrf.mxu0
  %v2776 = vadd.f32 0.0, %v2775
  %v2777 = vpop.f32.mrf.mxu0
  %2778 = vmatprep.mubr.f32.mxu0 0.0
  %2779 = vmatmul.mubr.f32.gmra.mxu0 %v2565
  %v2780 = vpop.f32.mrf.mxu0
  %v2781 = vadd.f32 0.0, %v2780
  %v2782 = vpop.f32.mrf.mxu0
  %2783 = vmatprep.mubr.f32.mxu0 0.0
  %2784 = vmatmul.mubr.f32.gmra.mxu0 %v2566
  %v2785 = vpop.f32.mrf.mxu0
  %v2786 = vadd.f32 0.0, %v2785
  %v2787 = vpop.f32.mrf.mxu0
  %2788 = vmatprep.mubr.f32.mxu0 0.0
  %2789 = vmatmul.mubr.f32.gmra.mxu0 %v2567
  %v2790 = vpop.f32.mrf.mxu0
  %v2791 = vadd.f32 0.0, %v2790
  %v2792 = vpop.f32.mrf.mxu0
  %2793 = vmatprep.mubr.f32.mxu0 0.0
  %2794 = vmatmul.mubr.f32.gmra.mxu0 %v2568
  %v2795 = vpop.f32.mrf.mxu0
  %v2796 = vadd.f32 0.0, %v2795
  %v2797 = vpop.f32.mrf.mxu0
  %2798 = vmatprep.mubr.f32.mxu0 0.0
  %2799 = vmatmul.mubr.f32.gmra.mxu0 %v2569
  %v2800 = vpop.f32.mrf.mxu0
  %v2801 = vadd.f32 0.0, %v2800
  %v2802 = vpop.f32.mrf.mxu0
  %2803 = vmatprep.mubr.f32.mxu0 0.0
  %2804 = vmatmul.mubr.f32.gmra.mxu0 %v2570
  %v2805 = vpop.f32.mrf.mxu0
  %v2806 = vadd.f32 0.0, %v2805
  %v2807 = vpop.f32.mrf.mxu0
  %2808 = vmatprep.mubr.f32.mxu0 0.0
  %2809 = vmatmul.mubr.f32.gmra.mxu0 %v2571
  %v2810 = vpop.f32.mrf.mxu0
  %v2811 = vadd.f32 0.0, %v2810
  %v2812 = vpop.f32.mrf.mxu0
  %2813 = vmatprep.mubr.f32.mxu0 0.0
  %2814 = vmatmul.mubr.f32.gmra.mxu0 %v2572
  %v2815 = vpop.f32.mrf.mxu0
  %v2816 = vadd.f32 0.0, %v2815
  %v2817 = vpop.f32.mrf.mxu0
  %2818 = vmatprep.mubr.f32.mxu0 0.0
  %2819 = vmatmul.mubr.f32.gmra.mxu0 %v2573
  %v2820 = vpop.f32.mrf.mxu0
  %v2821 = vadd.f32 0.0, %v2820
  %v2822 = vpop.f32.mrf.mxu0
  %2823 = vmatprep.mubr.f32.mxu0 0.0
  %2824 = vmatmul.mubr.f32.gmra.mxu0 %v2574
  %v2825 = vpop.f32.mrf.mxu0
  %v2826 = vadd.f32 0.0, %v2825
  %v2827 = vpop.f32.mrf.mxu0
  %2828 = vmatprep.mubr.f32.mxu0 0.0
  %2829 = vmatmul.mubr.f32.gmra.mxu0 %v2575
  %v2830 = vpop.f32.mrf.mxu0
  %v2831 = vadd.f32 0.0, %v2830
  %v2832 = vpop.f32.mrf.mxu0
  %2833 = vmatprep.mubr.f32.mxu0 0.0
  %2834 = vmatmul.mubr.f32.gmra.mxu0 %v2576
  %v2835 = vpop.f32.mrf.mxu0
  %v2836 = vadd.f32 0.0, %v2835
  %v2837 = vpop.f32.mrf.mxu0
  %2838 = vmatprep.mubr.f32.mxu0 0.0
  %2839 = vmatmul.mubr.f32.gmra.mxu0 %v2577
  %v2840 = vpop.f32.mrf.mxu0
  %v2841 = vadd.f32 0.0, %v2840
  %v2842 = vpop.f32.mrf.mxu0
  %2843 = vmatprep.mubr.f32.mxu0 0.0
  %2844 = vmatmul.mubr.f32.gmra.mxu0 %v2578
  %v2845 = vpop.f32.mrf.mxu0
  %v2846 = vadd.f32 0.0, %v2845
  %v2847 = vpop.f32.mrf.mxu0
  %2848 = vmatprep.mubr.f32.mxu0 0.0
  %2849 = vmatmul.mubr.f32.gmra.mxu0 %v2579
  %v2850 = vpop.f32.mrf.mxu0
  %v2851 = vadd.f32 0.0, %v2850
  %v2852 = vpop.f32.mrf.mxu0
  %2853 = vmatprep.mubr.f32.mxu0 0.0
  %2854 = vmatmul.mubr.f32.gmra.mxu0 %v2580
  %v2855 = vpop.f32.mrf.mxu0
  %v2856 = vadd.f32 0.0, %v2855
  %v2857 = vpop.f32.mrf.mxu0
  %2858 = vmatprep.mubr.f32.mxu0 0.0
  %2859 = vmatmul.mubr.f32.gmra.mxu0 %v2581
  %v2860 = vpop.f32.mrf.mxu0
  %v2861 = vadd.f32 0.0, %v2860
  %v2862 = vpop.f32.mrf.mxu0
  %2863 = vmatprep.mubr.f32.mxu0 0.0
  %2864 = vmatmul.mubr.f32.gmra.mxu0 %v2582
  %v2865 = vpop.f32.mrf.mxu0
  %v2866 = vadd.f32 0.0, %v2865
  %v2867 = vpop.f32.mrf.mxu0
  %2868 = vmatprep.mubr.f32.mxu0 0.0
  %2869 = vmatmul.mubr.f32.gmra.mxu0 %v2583
  %v2870 = vpop.f32.mrf.mxu0
  %v2871 = vadd.f32 0.0, %v2870
  %v2872 = vpop.f32.mrf.mxu0
  %2873 = vmatprep.mubr.f32.mxu0 0.0
  %2874 = vmatmul.mubr.f32.gmra.mxu0 %v2584
  %v2875 = vpop.f32.mrf.mxu0
  %v2876 = vadd.f32 0.0, %v2875
  %v2877 = vpop.f32.mrf.mxu0
  %2878 = vmatprep.mubr.f32.mxu0 0.0
  %2879 = vmatmul.mubr.f32.gmra.mxu0 %v2585
  %v2880 = vpop.f32.mrf.mxu0
  %v2881 = vadd.f32 0.0, %v2880
  %v2882 = vpop.f32.mrf.mxu0
  %2883 = vmatprep.mubr.f32.mxu0 0.0
  %2884 = vmatmul.mubr.f32.gmra.mxu0 %v2586
  %v2885 = vpop.f32.mrf.mxu0
  %v2886 = vadd.f32 0.0, %v2885
  %v2887 = vpop.f32.mrf.mxu0
  %2888 = vmatprep.mubr.f32.mxu0 0.0
  %2889 = vmatmul.mubr.f32.gmra.mxu0 %v2587
  %v2890 = vpop.f32.mrf.mxu0
  %v2891 = vadd.f32 0.0, %v2890
  %v2892 = vpop.f32.mrf.mxu0
  %2893 = vmatprep.mubr.f32.mxu0 0.0
  %2894 = vmatmul.mubr.f32.gmra.mxu0 %v2588
  %v2895 = vpop.f32.mrf.mxu0
  %v2896 = vadd.f32 0.0, %v2895
  %v2897 = vpop.f32.mrf.mxu0
  %2898 = vmatprep.mubr.f32.mxu0 0.0
  %2899 = vmatmul.mubr.f32.gmra.mxu0 %v2589
  %v2900 = vpop.f32.mrf.mxu0
  %v2901 = vadd.f32 0.0, %v2900
  %v2902 = vpop.f32.mrf.mxu0
  %2903 = vmatprep.mubr.f32.mxu0 0.0
  %2904 = vmatmul.mubr.f32.gmra.mxu0 %v2590
  %v2905 = vpop.f32.mrf.mxu0
  %v2906 = vadd.f32 0.0, %v2905
  %v2907 = vpop.f32.mrf.mxu0
  %2908 = vmatprep.mubr.f32.mxu0 0.0
  %2909 = vmatmul.mubr.f32.gmra.mxu0 %v2591
  %v2910 = vpop.f32.mrf.mxu0
  %v2911 = vadd.f32 0.0, %v2910
  %v2912 = vpop.f32.mrf.mxu0
  %2913 = vmatprep.mubr.f32.mxu0 0.0
  %2914 = vmatmul.mubr.f32.gmra.mxu0 %v2592
  %v2915 = vpop.f32.mrf.mxu0
  %v2916 = vadd.f32 0.0, %v2915
  %v2917 = vpop.f32.mrf.mxu0
  %2918 = vmatprep.mubr.f32.mxu0 0.0
  %2919 = vmatmul.mubr.f32.gmra.mxu0 %v2593
  %v2920 = vpop.f32.mrf.mxu0
  %v2921 = vadd.f32 0.0, %v2920
  %v2922 = vpop.f32.mrf.mxu0
  %2923 = vmatprep.mubr.f32.mxu0 0.0
  %2924 = vmatmul.mubr.f32.gmra.mxu0 %v2594
  %v2925 = vpop.f32.mrf.mxu0
  %v2926 = vadd.f32 0.0, %v2925
  %v2927 = vpop.f32.mrf.mxu0
  %2928 = vmatprep.mubr.f32.mxu0 0.0
  %2929 = vmatmul.mubr.f32.gmra.mxu0 %v2595
  %v2930 = vpop.f32.mrf.mxu0
  %v2931 = vadd.f32 0.0, %v2930
  %v2932 = vpop.f32.mrf.mxu0
  %2933 = vmatprep.mubr.f32.mxu0 0.0
  %2934 = vmatmul.mubr.f32.gmra.mxu0 %v2596
  %v2935 = vpop.f32.mrf.mxu0
  %v2936 = vadd.f32 0.0, %v2935
  %v2937 = vpop.f32.mrf.mxu0
  %2938 = vmatprep.mubr.f32.mxu0 0.0
  %2939 = vmatmul.mubr.f32.gmra.mxu0 %v2597
  %v2940 = vpop.f32.mrf.mxu0
  %v2941 = vadd.f32 0.0, %v2940
  %v2942 = vpop.f32.mrf.mxu0
  %2943 = vmatprep.mubr.f32.mxu0 0.0
  %2944 = vmatmul.mubr.f32.gmra.mxu0 %v2598
  %v2945 = vpop.f32.mrf.mxu0
  %v2946 = vadd.f32 0.0, %v2945
  %v2947 = vpop.f32.mrf.mxu0
  %2948 = vmatprep.mubr.f32.mxu0 0.0
  %2949 = vmatmul.mubr.f32.gmra.mxu0 %v2599
  %v2950 = vpop.f32.mrf.mxu0
  %v2951 = vadd.f32 0.0, %v2950
  %v2952 = vpop.f32.mrf.mxu0
  %2953 = vmatprep.mubr.f32.mxu0 0.0
  %2954 = vmatmul.mubr.f32.gmra.mxu0 %v2600
  %v2955 = vpop.f32.mrf.mxu0
  %v2956 = vadd.f32 0.0, %v2955
  %v2957 = vpop.f32.mrf.mxu0
  %2958 = vmatprep.mubr.f32.mxu0 0.0
  %2959 = vmatmul.mubr.f32.gmra.mxu0 %v2601
  %v2960 = vpop.f32.mrf.mxu0
  %v2961 = vadd.f32 0.0, %v2960
  %v2962 = vpop.f32.mrf.mxu0
  %2963 = vmatprep.mubr.f32.mxu0 0.0
  %2964 = vmatmul.mubr.f32.gmra.mxu0 %v2602
  %v2965 = vpop.f32.mrf.mxu0
  %v2966 = vadd.f32 0.0, %v2965
  %v2967 = vpop.f32.mrf.mxu0
  %2968 = vmatprep.mubr.f32.mxu0 0.0
  %2969 = vmatmul.mubr.f32.gmra.mxu0 %v2603
  %v2970 = vpop.f32.mrf.mxu0
  %v2971 = vadd.f32 0.0, %v2970
  %v2972 = vpop.f32.mrf.mxu0
  %2973 = vmatprep.mubr.f32.mxu0 0.0
  %2974 = vmatmul.mubr.f32.gmra.mxu0 %v2604
  %v2975 = vpop.f32.mrf.mxu0
  %v2976 = vadd.f32 0.0, %v2975
  %v2977 = vpop.f32.mrf.mxu0
  %2978 = vmatprep.mubr.f32.mxu0 0.0
  %2979 = vmatmul.mubr.f32.gmra.mxu0 %v2605
  %v2980 = vpop.f32.mrf.mxu0
  %v2981 = vadd.f32 0.0, %v2980
  %v2982 = vpop.f32.mrf.mxu0
  %2983 = vmatprep.mubr.f32.mxu0 0.0
  %2984 = vmatmul.mubr.f32.gmra.mxu0 %v2606
  %v2985 = vpop.f32.mrf.mxu0
  %v2986 = vadd.f32 0.0, %v2985
  %v2987 = vpop.f32.mrf.mxu0
  %2988 = vmatprep.mubr.f32.mxu0 0.0
  %2989 = vmatmul.mubr.f32.gmra.mxu0 %v2607
  %v2990 = vpop.f32.mrf.mxu0
  %v2991 = vadd.f32 0.0, %v2990
  %v2992 = vpop.f32.mrf.mxu0
  %2993 = vmatprep.mubr.f32.mxu0 0.0
  %2994 = vmatmul.mubr.f32.gmra.mxu0 %v2608
  %v2995 = vpop.f32.mrf.mxu0
  %v2996 = vadd.f32 0.0, %v2995
  %v2997 = vpop.f32.mrf.mxu0
  %2998 = vmatprep.mubr.f32.mxu0 0.0
  %2999 = vmatmul.mubr.f32.gmra.mxu0 %v2609
  %v3000 = vpop.f32.mrf.mxu0
  %v3001 = vadd.f32 0.0, %v3000
  %v3002 = vpop.f32.mrf.mxu0
  %3003 = vmatprep.mubr.f32.mxu0 0.0
  %3004 = vmatmul.mubr.f32.gmra.mxu0 %v2610
  %v3005 = vpop.f32.mrf.mxu0
  %v3006 = vadd.f32 0.0, %v3005
  %v3007 = vpop.f32.mrf.mxu0
  %3008 = vmatprep.mubr.f32.mxu0 0.0
  %3009 = vmatmul.mubr.f32.gmra.mxu0 %v2611
  %v3010 = vpop.f32.mrf.mxu0
  %v3011 = vadd.f32 0.0, %v3010
  %v3012 = vpop.f32.mrf.mxu0
  %3013 = vdwg.mxu0
  %v3014 = vadd.f32 %v2484, %v2696
  %v3015 = vadd.f32 %v2485, %v2701
  %v3016 = vadd.f32 %v2486, %v2706
  %v3017 = vadd.f32 %v2487, %v2711
  %v3018 = vadd.f32 %v2488, %v2716
  %v3019 = vadd.f32 %v2489, %v2721
  %v3020 = vadd.f32 %v2490, %v2726
  %v3021 = vadd.f32 %v2491, %v2731
  %v3022 = vadd.f32 %v2492, %v2736
  %v3023 = vadd.f32 %v2493, %v2741
  %v3024 = vadd.f32 %v2494, %v2746
  %v3025 = vadd.f32 %v2495, %v2751
  %v3026 = vadd.f32 %v2496, %v2756
  %v3027 = vadd.f32 %v2497, %v2761
  %v3028 = vadd.f32 %v2498, %v2766
  %v3029 = vadd.f32 %v2499, %v2771
  %v3030 = vadd.f32 %v2500, %v2776
  %v3031 = vadd.f32 %v2501, %v2781
  %v3032 = vadd.f32 %v2502, %v2786
  %v3033 = vadd.f32 %v2503, %v2791
  %v3034 = vadd.f32 %v2504, %v2796
  %v3035 = vadd.f32 %v2505, %v2801
  %v3036 = vadd.f32 %v2506, %v2806
  %v3037 = vadd.f32 %v2507, %v2811
  %v3038 = vadd.f32 %v2508, %v2816
  %v3039 = vadd.f32 %v2509, %v2821
  %v3040 = vadd.f32 %v2510, %v2826
  %v3041 = vadd.f32 %v2511, %v2831
  %v3042 = vadd.f32 %v2512, %v2836
  %v3043 = vadd.f32 %v2513, %v2841
  %v3044 = vadd.f32 %v2514, %v2846
  %v3045 = vadd.f32 %v2515, %v2851
  %v3046 = vadd.f32 %v2516, %v2856
  %v3047 = vadd.f32 %v2517, %v2861
  %v3048 = vadd.f32 %v2518, %v2866
  %v3049 = vadd.f32 %v2519, %v2871
  %v3050 = vadd.f32 %v2520, %v2876
  %v3051 = vadd.f32 %v2521, %v2881
  %v3052 = vadd.f32 %v2522, %v2886
  %v3053 = vadd.f32 %v2523, %v2891
  %v3054 = vadd.f32 %v2524, %v2896
  %v3055 = vadd.f32 %v2525, %v2901
  %v3056 = vadd.f32 %v2526, %v2906
  %v3057 = vadd.f32 %v2527, %v2911
  %v3058 = vadd.f32 %v2528, %v2916
  %v3059 = vadd.f32 %v2529, %v2921
  %v3060 = vadd.f32 %v2530, %v2926
  %v3061 = vadd.f32 %v2531, %v2931
  %v3062 = vadd.f32 %v2532, %v2936
  %v3063 = vadd.f32 %v2533, %v2941
  %v3064 = vadd.f32 %v2534, %v2946
  %v3065 = vadd.f32 %v2535, %v2951
  %v3066 = vadd.f32 %v2536, %v2956
  %v3067 = vadd.f32 %v2537, %v2961
  %v3068 = vadd.f32 %v2538, %v2966
  %v3069 = vadd.f32 %v2539, %v2971
  %v3070 = vadd.f32 %v2540, %v2976
  %v3071 = vadd.f32 %v2541, %v2981
  %v3072 = vadd.f32 %v2542, %v2986
  %v3073 = vadd.f32 %v2543, %v2991
  %v3074 = vadd.f32 %v2544, %v2996
  %v3075 = vadd.f32 %v2545, %v3001
  %v3076 = vadd.f32 %v2546, %v3006
  %v3077 = vadd.f32 %v2547, %v3011
  %s3078 = scalar_lea.vmem %s0, 48
  %v3079 = vld [vmem:[%s3078] sm:$0xff]
  %v3080 = vld [vmem:[%s3078 + $0x8] sm:$0xff]
  %v3081 = vld [vmem:[%s3078 + $0x18] sm:$0xff]
  %v3082 = vld [vmem:[%s3078 + $0x20] sm:$0xff]
  %v3083 = vld [vmem:[%s3078 + $0x30] sm:$0xff]
  %v3084 = vld [vmem:[%s3078 + $0x38] sm:$0xff]
  %v3085 = vld [vmem:[%s3078 + $0x48] sm:$0xff]
  %v3086 = vld [vmem:[%s3078 + $0x50] sm:$0xff]
  %v3087 = vld [vmem:[%s3078 + $0x60] sm:$0xff]
  %v3088 = vld [vmem:[%s3078 + $0x68] sm:$0xff]
  %v3089 = vld [vmem:[%s3078 + $0x78] sm:$0xff]
  %v3090 = vld [vmem:[%s3078 + $0x80] sm:$0xff]
  %v3091 = vld [vmem:[%s3078 + $0x90] sm:$0xff]
  %v3092 = vld [vmem:[%s3078 + $0x98] sm:$0xff]
  %v3093 = vld [vmem:[%s3078 + $0xa8] sm:$0xff]
  %v3094 = vld [vmem:[%s3078 + $0xb0] sm:$0xff]
  %v3095 = vld [vmem:[%s3078 + $0xc0] sm:$0xff]
  %v3096 = vld [vmem:[%s3078 + $0xc8] sm:$0xff]
  %v3097 = vld [vmem:[%s3078 + $0xd8] sm:$0xff]
  %v3098 = vld [vmem:[%s3078 + $0xe0] sm:$0xff]
  %v3099 = vld [vmem:[%s3078 + $0xf0] sm:$0xff]
  %v3100 = vld [vmem:[%s3078 + $0xf8] sm:$0xff]
  %v3101 = vld [vmem:[%s3078 + $0x108] sm:$0xff]
  %v3102 = vld [vmem:[%s3078 + $0x110] sm:$0xff]
  %v3103 = vld [vmem:[%s3078 + $0x120] sm:$0xff]
  %v3104 = vld [vmem:[%s3078 + $0x128] sm:$0xff]
  %v3105 = vld [vmem:[%s3078 + $0x138] sm:$0xff]
  %v3106 = vld [vmem:[%s3078 + $0x140] sm:$0xff]
  %v3107 = vld [vmem:[%s3078 + $0x150] sm:$0xff]
  %v3108 = vld [vmem:[%s3078 + $0x158] sm:$0xff]
  %v3109 = vld [vmem:[%s3078 + $0x168] sm:$0xff]
  %v3110 = vld [vmem:[%s3078 + $0x170] sm:$0xff]
  %v3111 = vld [vmem:[%s3078 + $0x1b0] sm:$0xff]
  %v3112 = vld [vmem:[%s3078 + $0x1b8] sm:$0xff]
  %v3113 = vld [vmem:[%s3078 + $0x1c8] sm:$0xff]
  %v3114 = vld [vmem:[%s3078 + $0x1d0] sm:$0xff]
  %v3115 = vld [vmem:[%s3078 + $0x1e0] sm:$0xff]
  %v3116 = vld [vmem:[%s3078 + $0x1e8] sm:$0xff]
  %v3117 = vld [vmem:[%s3078 + $0x1f8] sm:$0xff]
  %v3118 = vld [vmem:[%s3078 + $0x200] sm:$0xff]
  %v3119 = vld [vmem:[%s3078 + $0x210] sm:$0xff]
  %v3120 = vld [vmem:[%s3078 + $0x218] sm:$0xff]
  %v3121 = vld [vmem:[%s3078 + $0x228] sm:$0xff]
  %v3122 = vld [vmem:[%s3078 + $0x230] sm:$0xff]
  %v3123 = vld [vmem:[%s3078 + $0x240] sm:$0xff]
  %v3124 = vld [vmem:[%s3078 + $0x248] sm:$0xff]
  %v3125 = vld [vmem:[%s3078 + $0x258] sm:$0xff]
  %v3126 = vld [vmem:[%s3078 + $0x260] sm:$0xff]
  %v3127 = vld [vmem:[%s3078 + $0x270] sm:$0xff]
  %v3128 = vld [vmem:[%s3078 + $0x278] sm:$0xff]
  %v3129 = vld [vmem:[%s3078 + $0x288] sm:$0xff]
  %v3130 = vld [vmem:[%s3078 + $0x290] sm:$0xff]
  %v3131 = vld [vmem:[%s3078 + $0x2a0] sm:$0xff]
  %v3132 = vld [vmem:[%s3078 + $0x2a8] sm:$0xff]
  %v3133 = vld [vmem:[%s3078 + $0x2b8] sm:$0xff]
  %v3134 = vld [vmem:[%s3078 + $0x2c0] sm:$0xff]
  %v3135 = vld [vmem:[%s3078 + $0x2d0] sm:$0xff]
  %v3136 = vld [vmem:[%s3078 + $0x2d8] sm:$0xff]
  %v3137 = vld [vmem:[%s3078 + $0x2e8] sm:$0xff]
  %v3138 = vld [vmem:[%s3078 + $0x2f0] sm:$0xff]
  %v3139 = vld [vmem:[%s3078 + $0x300] sm:$0xff]
  %v3140 = vld [vmem:[%s3078 + $0x308] sm:$0xff]
  %v3141 = vld [vmem:[%s3078 + $0x318] sm:$0xff]
  %v3142 = vld [vmem:[%s3078 + $0x320] sm:$0xff]
  %s3143 = scalar_lea.vmem %s1, 768
  %v3144 = vld [vmem:[%s3143] sm:$0xff]
  %v3145 = vld [vmem:[%s3143 + $0x8] sm:$0xff]
  %v3146 = vld [vmem:[%s3143 + $0x10] sm:$0xff]
  %v3147 = vld [vmem:[%s3143 + $0x18] sm:$0xff]
  %v3148 = vld [vmem:[%s3143 + $0x20] sm:$0xff]
  %v3149 = vld [vmem:[%s3143 + $0x28] sm:$0xff]
  %v3150 = vld [vmem:[%s3143 + $0x30] sm:$0xff]
  %v3151 = vld [vmem:[%s3143 + $0x38] sm:$0xff]
  %v3152 = vld [vmem:[%s3143 + $0x40] sm:$0xff]
  %v3153 = vld [vmem:[%s3143 + $0x48] sm:$0xff]
  %v3154 = vld [vmem:[%s3143 + $0x50] sm:$0xff]
  %v3155 = vld [vmem:[%s3143 + $0x58] sm:$0xff]
  %v3156 = vld [vmem:[%s3143 + $0x60] sm:$0xff]
  %v3157 = vld [vmem:[%s3143 + $0x68] sm:$0xff]
  %v3158 = vld [vmem:[%s3143 + $0x70] sm:$0xff]
  %v3159 = vld [vmem:[%s3143 + $0x78] sm:$0xff]
  %3160 = vmatprep.subr.mxu0 0.0
  %3161 = vmatpush1.msra.mxu0 %v3159
  %3162 = vmatprep.subr.mxu0 0.0
  %3163 = vmatpush1.msra.mxu0 %v3158
  %3164 = vmatprep.subr.mxu0 0.0
  %3165 = vmatpush1.msra.mxu0 %v3157
  %3166 = vmatprep.subr.mxu0 0.0
  %3167 = vmatpush1.msra.mxu0 %v3156
  %3168 = vmatprep.subr.mxu0 0.0
  %3169 = vmatpush1.msra.mxu0 %v3155
  %3170 = vmatprep.subr.mxu0 0.0
  %3171 = vmatpush1.msra.mxu0 %v3154
  %3172 = vmatprep.subr.mxu0 0.0
  %3173 = vmatpush1.msra.mxu0 %v3153
  %3174 = vmatprep.subr.mxu0 0.0
  %3175 = vmatpush1.msra.mxu0 %v3152
  %3176 = vmatprep.subr.mxu0 0.0
  %3177 = vmatpush1.msra.mxu0 %v3151
  %3178 = vmatprep.subr.mxu0 0.0
  %3179 = vmatpush1.msra.mxu0 %v3150
  %3180 = vmatprep.subr.mxu0 0.0
  %3181 = vmatpush1.msra.mxu0 %v3149
  %3182 = vmatprep.subr.mxu0 0.0
  %3183 = vmatpush1.msra.mxu0 %v3148
  %3184 = vmatprep.subr.mxu0 0.0
  %3185 = vmatpush1.msra.mxu0 %v3147
  %3186 = vmatprep.subr.mxu0 0.0
  %3187 = vmatpush1.msra.mxu0 %v3146
  %3188 = vmatprep.subr.mxu0 0.0
  %3189 = vmatpush1.msra.mxu0 %v3145
  %3190 = vmatprep.subr.mxu0 0.0
  %3191 = vmatpush1.msra.mxu0 %v3144
  %3192 = vmatprep.subr.mxu0 0.0
  %3193 = vmatpush2.msra.mxu0 0.0
  %3194 = vmatprep.subr.mxu0 0.0
  %3195 = vmatpush2.msra.mxu0 0.0
  %3196 = vmatprep.subr.mxu0 0.0
  %3197 = vmatpush2.msra.mxu0 0.0
  %3198 = vmatprep.subr.mxu0 0.0
  %3199 = vmatpush2.msra.mxu0 0.0
  %3200 = vmatprep.subr.mxu0 0.0
  %3201 = vmatpush2.msra.mxu0 0.0
  %3202 = vmatprep.subr.mxu0 0.0
  %3203 = vmatpush2.msra.mxu0 0.0
  %3204 = vmatprep.subr.mxu0 0.0
  %3205 = vmatpush2.msra.mxu0 0.0
  %3206 = vmatprep.subr.mxu0 0.0
  %3207 = vmatpush2.msra.mxu0 0.0
  %3208 = vmatprep.subr.mxu0 0.0
  %3209 = vmatpush2.msra.mxu0 0.0
  %3210 = vmatprep.subr.mxu0 0.0
  %3211 = vmatpush2.msra.mxu0 0.0
  %3212 = vmatprep.subr.mxu0 0.0
  %3213 = vmatpush2.msra.mxu0 0.0
  %3214 = vmatprep.subr.mxu0 0.0
  %3215 = vmatpush2.msra.mxu0 0.0
  %3216 = vmatprep.subr.mxu0 0.0
  %3217 = vmatpush2.msra.mxu0 0.0
  %3218 = vmatprep.subr.mxu0 0.0
  %3219 = vmatpush2.msra.mxu0 0.0
  %3220 = vmatprep.subr.mxu0 0.0
  %3221 = vmatpush2.msra.mxu0 0.0
  %3222 = vmatprep.subr.mxu0 0.0
  %3223 = vmatpush2.msra.mxu0 0.0
  %3224 = vmatprep.mubr.f32.mxu0 0.0
  %3225 = vmatmul.mubr.f32.gmra.mxu0 %v3079
  %v3226 = vpop.f32.mrf.mxu0
  %v3227 = vadd.f32 0.0, %v3226
  %v3228 = vpop.f32.mrf.mxu0
  %3229 = vmatprep.mubr.f32.mxu0 0.0
  %3230 = vmatmul.mubr.f32.gmra.mxu0 %v3080
  %v3231 = vpop.f32.mrf.mxu0
  %v3232 = vadd.f32 0.0, %v3231
  %v3233 = vpop.f32.mrf.mxu0
  %3234 = vmatprep.mubr.f32.mxu0 0.0
  %3235 = vmatmul.mubr.f32.gmra.mxu0 %v3081
  %v3236 = vpop.f32.mrf.mxu0
  %v3237 = vadd.f32 0.0, %v3236
  %v3238 = vpop.f32.mrf.mxu0
  %3239 = vmatprep.mubr.f32.mxu0 0.0
  %3240 = vmatmul.mubr.f32.gmra.mxu0 %v3082
  %v3241 = vpop.f32.mrf.mxu0
  %v3242 = vadd.f32 0.0, %v3241
  %v3243 = vpop.f32.mrf.mxu0
  %3244 = vmatprep.mubr.f32.mxu0 0.0
  %3245 = vmatmul.mubr.f32.gmra.mxu0 %v3083
  %v3246 = vpop.f32.mrf.mxu0
  %v3247 = vadd.f32 0.0, %v3246
  %v3248 = vpop.f32.mrf.mxu0
  %3249 = vmatprep.mubr.f32.mxu0 0.0
  %3250 = vmatmul.mubr.f32.gmra.mxu0 %v3084
  %v3251 = vpop.f32.mrf.mxu0
  %v3252 = vadd.f32 0.0, %v3251
  %v3253 = vpop.f32.mrf.mxu0
  %3254 = vmatprep.mubr.f32.mxu0 0.0
  %3255 = vmatmul.mubr.f32.gmra.mxu0 %v3085
  %v3256 = vpop.f32.mrf.mxu0
  %v3257 = vadd.f32 0.0, %v3256
  %v3258 = vpop.f32.mrf.mxu0
  %3259 = vmatprep.mubr.f32.mxu0 0.0
  %3260 = vmatmul.mubr.f32.gmra.mxu0 %v3086
  %v3261 = vpop.f32.mrf.mxu0
  %v3262 = vadd.f32 0.0, %v3261
  %v3263 = vpop.f32.mrf.mxu0
  %3264 = vmatprep.mubr.f32.mxu0 0.0
  %3265 = vmatmul.mubr.f32.gmra.mxu0 %v3087
  %v3266 = vpop.f32.mrf.mxu0
  %v3267 = vadd.f32 0.0, %v3266
  %v3268 = vpop.f32.mrf.mxu0
  %3269 = vmatprep.mubr.f32.mxu0 0.0
  %3270 = vmatmul.mubr.f32.gmra.mxu0 %v3088
  %v3271 = vpop.f32.mrf.mxu0
  %v3272 = vadd.f32 0.0, %v3271
  %v3273 = vpop.f32.mrf.mxu0
  %3274 = vmatprep.mubr.f32.mxu0 0.0
  %3275 = vmatmul.mubr.f32.gmra.mxu0 %v3089
  %v3276 = vpop.f32.mrf.mxu0
  %v3277 = vadd.f32 0.0, %v3276
  %v3278 = vpop.f32.mrf.mxu0
  %3279 = vmatprep.mubr.f32.mxu0 0.0
  %3280 = vmatmul.mubr.f32.gmra.mxu0 %v3090
  %v3281 = vpop.f32.mrf.mxu0
  %v3282 = vadd.f32 0.0, %v3281
  %v3283 = vpop.f32.mrf.mxu0
  %3284 = vmatprep.mubr.f32.mxu0 0.0
  %3285 = vmatmul.mubr.f32.gmra.mxu0 %v3091
  %v3286 = vpop.f32.mrf.mxu0
  %v3287 = vadd.f32 0.0, %v3286
  %v3288 = vpop.f32.mrf.mxu0
  %3289 = vmatprep.mubr.f32.mxu0 0.0
  %3290 = vmatmul.mubr.f32.gmra.mxu0 %v3092
  %v3291 = vpop.f32.mrf.mxu0
  %v3292 = vadd.f32 0.0, %v3291
  %v3293 = vpop.f32.mrf.mxu0
  %3294 = vmatprep.mubr.f32.mxu0 0.0
  %3295 = vmatmul.mubr.f32.gmra.mxu0 %v3093
  %v3296 = vpop.f32.mrf.mxu0
  %v3297 = vadd.f32 0.0, %v3296
  %v3298 = vpop.f32.mrf.mxu0
  %3299 = vmatprep.mubr.f32.mxu0 0.0
  %3300 = vmatmul.mubr.f32.gmra.mxu0 %v3094
  %v3301 = vpop.f32.mrf.mxu0
  %v3302 = vadd.f32 0.0, %v3301
  %v3303 = vpop.f32.mrf.mxu0
  %3304 = vmatprep.mubr.f32.mxu0 0.0
  %3305 = vmatmul.mubr.f32.gmra.mxu0 %v3095
  %v3306 = vpop.f32.mrf.mxu0
  %v3307 = vadd.f32 0.0, %v3306
  %v3308 = vpop.f32.mrf.mxu0
  %3309 = vmatprep.mubr.f32.mxu0 0.0
  %3310 = vmatmul.mubr.f32.gmra.mxu0 %v3096
  %v3311 = vpop.f32.mrf.mxu0
  %v3312 = vadd.f32 0.0, %v3311
  %v3313 = vpop.f32.mrf.mxu0
  %3314 = vmatprep.mubr.f32.mxu0 0.0
  %3315 = vmatmul.mubr.f32.gmra.mxu0 %v3097
  %v3316 = vpop.f32.mrf.mxu0
  %v3317 = vadd.f32 0.0, %v3316
  %v3318 = vpop.f32.mrf.mxu0
  %3319 = vmatprep.mubr.f32.mxu0 0.0
  %3320 = vmatmul.mubr.f32.gmra.mxu0 %v3098
  %v3321 = vpop.f32.mrf.mxu0
  %v3322 = vadd.f32 0.0, %v3321
  %v3323 = vpop.f32.mrf.mxu0
  %3324 = vmatprep.mubr.f32.mxu0 0.0
  %3325 = vmatmul.mubr.f32.gmra.mxu0 %v3099
  %v3326 = vpop.f32.mrf.mxu0
  %v3327 = vadd.f32 0.0, %v3326
  %v3328 = vpop.f32.mrf.mxu0
  %3329 = vmatprep.mubr.f32.mxu0 0.0
  %3330 = vmatmul.mubr.f32.gmra.mxu0 %v3100
  %v3331 = vpop.f32.mrf.mxu0
  %v3332 = vadd.f32 0.0, %v3331
  %v3333 = vpop.f32.mrf.mxu0
  %3334 = vmatprep.mubr.f32.mxu0 0.0
  %3335 = vmatmul.mubr.f32.gmra.mxu0 %v3101
  %v3336 = vpop.f32.mrf.mxu0
  %v3337 = vadd.f32 0.0, %v3336
  %v3338 = vpop.f32.mrf.mxu0
  %3339 = vmatprep.mubr.f32.mxu0 0.0
  %3340 = vmatmul.mubr.f32.gmra.mxu0 %v3102
  %v3341 = vpop.f32.mrf.mxu0
  %v3342 = vadd.f32 0.0, %v3341
  %v3343 = vpop.f32.mrf.mxu0
  %3344 = vmatprep.mubr.f32.mxu0 0.0
  %3345 = vmatmul.mubr.f32.gmra.mxu0 %v3103
  %v3346 = vpop.f32.mrf.mxu0
  %v3347 = vadd.f32 0.0, %v3346
  %v3348 = vpop.f32.mrf.mxu0
  %3349 = vmatprep.mubr.f32.mxu0 0.0
  %3350 = vmatmul.mubr.f32.gmra.mxu0 %v3104
  %v3351 = vpop.f32.mrf.mxu0
  %v3352 = vadd.f32 0.0, %v3351
  %v3353 = vpop.f32.mrf.mxu0
  %3354 = vmatprep.mubr.f32.mxu0 0.0
  %3355 = vmatmul.mubr.f32.gmra.mxu0 %v3105
  %v3356 = vpop.f32.mrf.mxu0
  %v3357 = vadd.f32 0.0, %v3356
  %v3358 = vpop.f32.mrf.mxu0
  %3359 = vmatprep.mubr.f32.mxu0 0.0
  %3360 = vmatmul.mubr.f32.gmra.mxu0 %v3106
  %v3361 = vpop.f32.mrf.mxu0
  %v3362 = vadd.f32 0.0, %v3361
  %v3363 = vpop.f32.mrf.mxu0
  %3364 = vmatprep.mubr.f32.mxu0 0.0
  %3365 = vmatmul.mubr.f32.gmra.mxu0 %v3107
  %v3366 = vpop.f32.mrf.mxu0
  %v3367 = vadd.f32 0.0, %v3366
  %v3368 = vpop.f32.mrf.mxu0
  %3369 = vmatprep.mubr.f32.mxu0 0.0
  %3370 = vmatmul.mubr.f32.gmra.mxu0 %v3108
  %v3371 = vpop.f32.mrf.mxu0
  %v3372 = vadd.f32 0.0, %v3371
  %v3373 = vpop.f32.mrf.mxu0
  %3374 = vmatprep.mubr.f32.mxu0 0.0
  %3375 = vmatmul.mubr.f32.gmra.mxu0 %v3109
  %v3376 = vpop.f32.mrf.mxu0
  %v3377 = vadd.f32 0.0, %v3376
  %v3378 = vpop.f32.mrf.mxu0
  %3379 = vmatprep.mubr.f32.mxu0 0.0
  %3380 = vmatmul.mubr.f32.gmra.mxu0 %v3110
  %v3381 = vpop.f32.mrf.mxu0
  %v3382 = vadd.f32 0.0, %v3381
  %v3383 = vpop.f32.mrf.mxu0
  %3384 = vmatprep.mubr.f32.mxu0 0.0
  %3385 = vmatmul.mubr.f32.gmra.mxu0 %v3111
  %v3386 = vpop.f32.mrf.mxu0
  %v3387 = vadd.f32 0.0, %v3386
  %v3388 = vpop.f32.mrf.mxu0
  %3389 = vmatprep.mubr.f32.mxu0 0.0
  %3390 = vmatmul.mubr.f32.gmra.mxu0 %v3112
  %v3391 = vpop.f32.mrf.mxu0
  %v3392 = vadd.f32 0.0, %v3391
  %v3393 = vpop.f32.mrf.mxu0
  %3394 = vmatprep.mubr.f32.mxu0 0.0
  %3395 = vmatmul.mubr.f32.gmra.mxu0 %v3113
  %v3396 = vpop.f32.mrf.mxu0
  %v3397 = vadd.f32 0.0, %v3396
  %v3398 = vpop.f32.mrf.mxu0
  %3399 = vmatprep.mubr.f32.mxu0 0.0
  %3400 = vmatmul.mubr.f32.gmra.mxu0 %v3114
  %v3401 = vpop.f32.mrf.mxu0
  %v3402 = vadd.f32 0.0, %v3401
  %v3403 = vpop.f32.mrf.mxu0
  %3404 = vmatprep.mubr.f32.mxu0 0.0
  %3405 = vmatmul.mubr.f32.gmra.mxu0 %v3115
  %v3406 = vpop.f32.mrf.mxu0
  %v3407 = vadd.f32 0.0, %v3406
  %v3408 = vpop.f32.mrf.mxu0
  %3409 = vmatprep.mubr.f32.mxu0 0.0
  %3410 = vmatmul.mubr.f32.gmra.mxu0 %v3116
  %v3411 = vpop.f32.mrf.mxu0
  %v3412 = vadd.f32 0.0, %v3411
  %v3413 = vpop.f32.mrf.mxu0
  %3414 = vmatprep.mubr.f32.mxu0 0.0
  %3415 = vmatmul.mubr.f32.gmra.mxu0 %v3117
  %v3416 = vpop.f32.mrf.mxu0
  %v3417 = vadd.f32 0.0, %v3416
  %v3418 = vpop.f32.mrf.mxu0
  %3419 = vmatprep.mubr.f32.mxu0 0.0
  %3420 = vmatmul.mubr.f32.gmra.mxu0 %v3118
  %v3421 = vpop.f32.mrf.mxu0
  %v3422 = vadd.f32 0.0, %v3421
  %v3423 = vpop.f32.mrf.mxu0
  %3424 = vmatprep.mubr.f32.mxu0 0.0
  %3425 = vmatmul.mubr.f32.gmra.mxu0 %v3119
  %v3426 = vpop.f32.mrf.mxu0
  %v3427 = vadd.f32 0.0, %v3426
  %v3428 = vpop.f32.mrf.mxu0
  %3429 = vmatprep.mubr.f32.mxu0 0.0
  %3430 = vmatmul.mubr.f32.gmra.mxu0 %v3120
  %v3431 = vpop.f32.mrf.mxu0
  %v3432 = vadd.f32 0.0, %v3431
  %v3433 = vpop.f32.mrf.mxu0
  %3434 = vmatprep.mubr.f32.mxu0 0.0
  %3435 = vmatmul.mubr.f32.gmra.mxu0 %v3121
  %v3436 = vpop.f32.mrf.mxu0
  %v3437 = vadd.f32 0.0, %v3436
  %v3438 = vpop.f32.mrf.mxu0
  %3439 = vmatprep.mubr.f32.mxu0 0.0
  %3440 = vmatmul.mubr.f32.gmra.mxu0 %v3122
  %v3441 = vpop.f32.mrf.mxu0
  %v3442 = vadd.f32 0.0, %v3441
  %v3443 = vpop.f32.mrf.mxu0
  %3444 = vmatprep.mubr.f32.mxu0 0.0
  %3445 = vmatmul.mubr.f32.gmra.mxu0 %v3123
  %v3446 = vpop.f32.mrf.mxu0
  %v3447 = vadd.f32 0.0, %v3446
  %v3448 = vpop.f32.mrf.mxu0
  %3449 = vmatprep.mubr.f32.mxu0 0.0
  %3450 = vmatmul.mubr.f32.gmra.mxu0 %v3124
  %v3451 = vpop.f32.mrf.mxu0
  %v3452 = vadd.f32 0.0, %v3451
  %v3453 = vpop.f32.mrf.mxu0
  %3454 = vmatprep.mubr.f32.mxu0 0.0
  %3455 = vmatmul.mubr.f32.gmra.mxu0 %v3125
  %v3456 = vpop.f32.mrf.mxu0
  %v3457 = vadd.f32 0.0, %v3456
  %v3458 = vpop.f32.mrf.mxu0
  %3459 = vmatprep.mubr.f32.mxu0 0.0
  %3460 = vmatmul.mubr.f32.gmra.mxu0 %v3126
  %v3461 = vpop.f32.mrf.mxu0
  %v3462 = vadd.f32 0.0, %v3461
  %v3463 = vpop.f32.mrf.mxu0
  %3464 = vmatprep.mubr.f32.mxu0 0.0
  %3465 = vmatmul.mubr.f32.gmra.mxu0 %v3127
  %v3466 = vpop.f32.mrf.mxu0
  %v3467 = vadd.f32 0.0, %v3466
  %v3468 = vpop.f32.mrf.mxu0
  %3469 = vmatprep.mubr.f32.mxu0 0.0
  %3470 = vmatmul.mubr.f32.gmra.mxu0 %v3128
  %v3471 = vpop.f32.mrf.mxu0
  %v3472 = vadd.f32 0.0, %v3471
  %v3473 = vpop.f32.mrf.mxu0
  %3474 = vmatprep.mubr.f32.mxu0 0.0
  %3475 = vmatmul.mubr.f32.gmra.mxu0 %v3129
  %v3476 = vpop.f32.mrf.mxu0
  %v3477 = vadd.f32 0.0, %v3476
  %v3478 = vpop.f32.mrf.mxu0
  %3479 = vmatprep.mubr.f32.mxu0 0.0
  %3480 = vmatmul.mubr.f32.gmra.mxu0 %v3130
  %v3481 = vpop.f32.mrf.mxu0
  %v3482 = vadd.f32 0.0, %v3481
  %v3483 = vpop.f32.mrf.mxu0
  %3484 = vmatprep.mubr.f32.mxu0 0.0
  %3485 = vmatmul.mubr.f32.gmra.mxu0 %v3131
  %v3486 = vpop.f32.mrf.mxu0
  %v3487 = vadd.f32 0.0, %v3486
  %v3488 = vpop.f32.mrf.mxu0
  %3489 = vmatprep.mubr.f32.mxu0 0.0
  %3490 = vmatmul.mubr.f32.gmra.mxu0 %v3132
  %v3491 = vpop.f32.mrf.mxu0
  %v3492 = vadd.f32 0.0, %v3491
  %v3493 = vpop.f32.mrf.mxu0
  %3494 = vmatprep.mubr.f32.mxu0 0.0
  %3495 = vmatmul.mubr.f32.gmra.mxu0 %v3133
  %v3496 = vpop.f32.mrf.mxu0
  %v3497 = vadd.f32 0.0, %v3496
  %v3498 = vpop.f32.mrf.mxu0
  %3499 = vmatprep.mubr.f32.mxu0 0.0
  %3500 = vmatmul.mubr.f32.gmra.mxu0 %v3134
  %v3501 = vpop.f32.mrf.mxu0
  %v3502 = vadd.f32 0.0, %v3501
  %v3503 = vpop.f32.mrf.mxu0
  %3504 = vmatprep.mubr.f32.mxu0 0.0
  %3505 = vmatmul.mubr.f32.gmra.mxu0 %v3135
  %v3506 = vpop.f32.mrf.mxu0
  %v3507 = vadd.f32 0.0, %v3506
  %v3508 = vpop.f32.mrf.mxu0
  %3509 = vmatprep.mubr.f32.mxu0 0.0
  %3510 = vmatmul.mubr.f32.gmra.mxu0 %v3136
  %v3511 = vpop.f32.mrf.mxu0
  %v3512 = vadd.f32 0.0, %v3511
  %v3513 = vpop.f32.mrf.mxu0
  %3514 = vmatprep.mubr.f32.mxu0 0.0
  %3515 = vmatmul.mubr.f32.gmra.mxu0 %v3137
  %v3516 = vpop.f32.mrf.mxu0
  %v3517 = vadd.f32 0.0, %v3516
  %v3518 = vpop.f32.mrf.mxu0
  %3519 = vmatprep.mubr.f32.mxu0 0.0
  %3520 = vmatmul.mubr.f32.gmra.mxu0 %v3138
  %v3521 = vpop.f32.mrf.mxu0
  %v3522 = vadd.f32 0.0, %v3521
  %v3523 = vpop.f32.mrf.mxu0
  %3524 = vmatprep.mubr.f32.mxu0 0.0
  %3525 = vmatmul.mubr.f32.gmra.mxu0 %v3139
  %v3526 = vpop.f32.mrf.mxu0
  %v3527 = vadd.f32 0.0, %v3526
  %v3528 = vpop.f32.mrf.mxu0
  %3529 = vmatprep.mubr.f32.mxu0 0.0
  %3530 = vmatmul.mubr.f32.gmra.mxu0 %v3140
  %v3531 = vpop.f32.mrf.mxu0
  %v3532 = vadd.f32 0.0, %v3531
  %v3533 = vpop.f32.mrf.mxu0
  %3534 = vmatprep.mubr.f32.mxu0 0.0
  %3535 = vmatmul.mubr.f32.gmra.mxu0 %v3141
  %v3536 = vpop.f32.mrf.mxu0
  %v3537 = vadd.f32 0.0, %v3536
  %v3538 = vpop.f32.mrf.mxu0
  %3539 = vmatprep.mubr.f32.mxu0 0.0
  %3540 = vmatmul.mubr.f32.gmra.mxu0 %v3142
  %v3541 = vpop.f32.mrf.mxu0
  %v3542 = vadd.f32 0.0, %v3541
  %v3543 = vpop.f32.mrf.mxu0
  %3544 = vdwg.mxu0
  %v3545 = vadd.f32 %v3014, %v3227
  %v3546 = vadd.f32 %v3015, %v3232
  %v3547 = vadd.f32 %v3016, %v3237
  %v3548 = vadd.f32 %v3017, %v3242
  %v3549 = vadd.f32 %v3018, %v3247
  %v3550 = vadd.f32 %v3019, %v3252
  %v3551 = vadd.f32 %v3020, %v3257
  %v3552 = vadd.f32 %v3021, %v3262
  %v3553 = vadd.f32 %v3022, %v3267
  %v3554 = vadd.f32 %v3023, %v3272
  %v3555 = vadd.f32 %v3024, %v3277
  %v3556 = vadd.f32 %v3025, %v3282
  %v3557 = vadd.f32 %v3026, %v3287
  %v3558 = vadd.f32 %v3027, %v3292
  %v3559 = vadd.f32 %v3028, %v3297
  %v3560 = vadd.f32 %v3029, %v3302
  %v3561 = vadd.f32 %v3030, %v3307
  %v3562 = vadd.f32 %v3031, %v3312
  %v3563 = vadd.f32 %v3032, %v3317
  %v3564 = vadd.f32 %v3033, %v3322
  %v3565 = vadd.f32 %v3034, %v3327
  %v3566 = vadd.f32 %v3035, %v3332
  %v3567 = vadd.f32 %v3036, %v3337
  %v3568 = vadd.f32 %v3037, %v3342
  %v3569 = vadd.f32 %v3038, %v3347
  %v3570 = vadd.f32 %v3039, %v3352
  %v3571 = vadd.f32 %v3040, %v3357
  %v3572 = vadd.f32 %v3041, %v3362
  %v3573 = vadd.f32 %v3042, %v3367
  %v3574 = vadd.f32 %v3043, %v3372
  %v3575 = vadd.f32 %v3044, %v3377
  %v3576 = vadd.f32 %v3045, %v3382
  %v3577 = vadd.f32 %v3046, %v3387
  %v3578 = vadd.f32 %v3047, %v3392
  %v3579 = vadd.f32 %v3048, %v3397
  %v3580 = vadd.f32 %v3049, %v3402
  %v3581 = vadd.f32 %v3050, %v3407
  %v3582 = vadd.f32 %v3051, %v3412
  %v3583 = vadd.f32 %v3052, %v3417
  %v3584 = vadd.f32 %v3053, %v3422
  %v3585 = vadd.f32 %v3054, %v3427
  %v3586 = vadd.f32 %v3055, %v3432
  %v3587 = vadd.f32 %v3056, %v3437
  %v3588 = vadd.f32 %v3057, %v3442
  %v3589 = vadd.f32 %v3058, %v3447
  %v3590 = vadd.f32 %v3059, %v3452
  %v3591 = vadd.f32 %v3060, %v3457
  %v3592 = vadd.f32 %v3061, %v3462
  %v3593 = vadd.f32 %v3062, %v3467
  %v3594 = vadd.f32 %v3063, %v3472
  %v3595 = vadd.f32 %v3064, %v3477
  %v3596 = vadd.f32 %v3065, %v3482
  %v3597 = vadd.f32 %v3066, %v3487
  %v3598 = vadd.f32 %v3067, %v3492
  %v3599 = vadd.f32 %v3068, %v3497
  %v3600 = vadd.f32 %v3069, %v3502
  %v3601 = vadd.f32 %v3070, %v3507
  %v3602 = vadd.f32 %v3071, %v3512
  %v3603 = vadd.f32 %v3072, %v3517
  %v3604 = vadd.f32 %v3073, %v3522
  %v3605 = vadd.f32 %v3074, %v3527
  %v3606 = vadd.f32 %v3075, %v3532
  %v3607 = vadd.f32 %v3076, %v3537
  %v3608 = vadd.f32 %v3077, %v3542
  %v3609 = vld [vmem:[%s3078 + $0x1] sm:$0xff]
  %v3610 = vld [vmem:[%s3078 + $0x9] sm:$0xff]
  %v3611 = vld [vmem:[%s3078 + $0x19] sm:$0xff]
  %v3612 = vld [vmem:[%s3078 + $0x21] sm:$0xff]
  %v3613 = vld [vmem:[%s3078 + $0x31] sm:$0xff]
  %v3614 = vld [vmem:[%s3078 + $0x39] sm:$0xff]
  %v3615 = vld [vmem:[%s3078 + $0x49] sm:$0xff]
  %v3616 = vld [vmem:[%s3078 + $0x51] sm:$0xff]
  %v3617 = vld [vmem:[%s3078 + $0x61] sm:$0xff]
  %v3618 = vld [vmem:[%s3078 + $0x69] sm:$0xff]
  %v3619 = vld [vmem:[%s3078 + $0x79] sm:$0xff]
  %v3620 = vld [vmem:[%s3078 + $0x81] sm:$0xff]
  %v3621 = vld [vmem:[%s3078 + $0x91] sm:$0xff]
  %v3622 = vld [vmem:[%s3078 + $0x99] sm:$0xff]
  %v3623 = vld [vmem:[%s3078 + $0xa9] sm:$0xff]
  %v3624 = vld [vmem:[%s3078 + $0xb1] sm:$0xff]
  %v3625 = vld [vmem:[%s3078 + $0xc1] sm:$0xff]
  %v3626 = vld [vmem:[%s3078 + $0xc9] sm:$0xff]
  %v3627 = vld [vmem:[%s3078 + $0xd9] sm:$0xff]
  %v3628 = vld [vmem:[%s3078 + $0xe1] sm:$0xff]
  %v3629 = vld [vmem:[%s3078 + $0xf1] sm:$0xff]
  %v3630 = vld [vmem:[%s3078 + $0xf9] sm:$0xff]
  %v3631 = vld [vmem:[%s3078 + $0x109] sm:$0xff]
  %v3632 = vld [vmem:[%s3078 + $0x111] sm:$0xff]
  %v3633 = vld [vmem:[%s3078 + $0x121] sm:$0xff]
  %v3634 = vld [vmem:[%s3078 + $0x129] sm:$0xff]
  %v3635 = vld [vmem:[%s3078 + $0x139] sm:$0xff]
  %v3636 = vld [vmem:[%s3078 + $0x141] sm:$0xff]
  %v3637 = vld [vmem:[%s3078 + $0x151] sm:$0xff]
  %v3638 = vld [vmem:[%s3078 + $0x159] sm:$0xff]
  %v3639 = vld [vmem:[%s3078 + $0x169] sm:$0xff]
  %v3640 = vld [vmem:[%s3078 + $0x171] sm:$0xff]
  %v3641 = vld [vmem:[%s3078 + $0x1b1] sm:$0xff]
  %v3642 = vld [vmem:[%s3078 + $0x1b9] sm:$0xff]
  %v3643 = vld [vmem:[%s3078 + $0x1c9] sm:$0xff]
  %v3644 = vld [vmem:[%s3078 + $0x1d1] sm:$0xff]
  %v3645 = vld [vmem:[%s3078 + $0x1e1] sm:$0xff]
  %v3646 = vld [vmem:[%s3078 + $0x1e9] sm:$0xff]
  %v3647 = vld [vmem:[%s3078 + $0x1f9] sm:$0xff]
  %v3648 = vld [vmem:[%s3078 + $0x201] sm:$0xff]
  %v3649 = vld [vmem:[%s3078 + $0x211] sm:$0xff]
  %v3650 = vld [vmem:[%s3078 + $0x219] sm:$0xff]
  %v3651 = vld [vmem:[%s3078 + $0x229] sm:$0xff]
  %v3652 = vld [vmem:[%s3078 + $0x231] sm:$0xff]
  %v3653 = vld [vmem:[%s3078 + $0x241] sm:$0xff]
  %v3654 = vld [vmem:[%s3078 + $0x249] sm:$0xff]
  %v3655 = vld [vmem:[%s3078 + $0x259] sm:$0xff]
  %v3656 = vld [vmem:[%s3078 + $0x261] sm:$0xff]
  %v3657 = vld [vmem:[%s3078 + $0x271] sm:$0xff]
  %v3658 = vld [vmem:[%s3078 + $0x279] sm:$0xff]
  %v3659 = vld [vmem:[%s3078 + $0x289] sm:$0xff]
  %v3660 = vld [vmem:[%s3078 + $0x291] sm:$0xff]
  %v3661 = vld [vmem:[%s3078 + $0x2a1] sm:$0xff]
  %v3662 = vld [vmem:[%s3078 + $0x2a9] sm:$0xff]
  %v3663 = vld [vmem:[%s3078 + $0x2b9] sm:$0xff]
  %v3664 = vld [vmem:[%s3078 + $0x2c1] sm:$0xff]
  %v3665 = vld [vmem:[%s3078 + $0x2d1] sm:$0xff]
  %v3666 = vld [vmem:[%s3078 + $0x2d9] sm:$0xff]
  %v3667 = vld [vmem:[%s3078 + $0x2e9] sm:$0xff]
  %v3668 = vld [vmem:[%s3078 + $0x2f1] sm:$0xff]
  %v3669 = vld [vmem:[%s3078 + $0x301] sm:$0xff]
  %v3670 = vld [vmem:[%s3078 + $0x309] sm:$0xff]
  %v3671 = vld [vmem:[%s3078 + $0x319] sm:$0xff]
  %v3672 = vld [vmem:[%s3078 + $0x321] sm:$0xff]
  %s3673 = scalar_lea.vmem %s1, 896
  %v3674 = vld [vmem:[%s3673] sm:$0xff]
  %v3675 = vld [vmem:[%s3673 + $0x8] sm:$0xff]
  %v3676 = vld [vmem:[%s3673 + $0x10] sm:$0xff]
  %v3677 = vld [vmem:[%s3673 + $0x18] sm:$0xff]
  %v3678 = vld [vmem:[%s3673 + $0x20] sm:$0xff]
  %v3679 = vld [vmem:[%s3673 + $0x28] sm:$0xff]
  %v3680 = vld [vmem:[%s3673 + $0x30] sm:$0xff]
  %v3681 = vld [vmem:[%s3673 + $0x38] sm:$0xff]
  %v3682 = vld [vmem:[%s3673 + $0x40] sm:$0xff]
  %v3683 = vld [vmem:[%s3673 + $0x48] sm:$0xff]
  %v3684 = vld [vmem:[%s3673 + $0x50] sm:$0xff]
  %v3685 = vld [vmem:[%s3673 + $0x58] sm:$0xff]
  %v3686 = vld [vmem:[%s3673 + $0x60] sm:$0xff]
  %v3687 = vld [vmem:[%s3673 + $0x68] sm:$0xff]
  %v3688 = vld [vmem:[%s3673 + $0x70] sm:$0xff]
  %v3689 = vld [vmem:[%s3673 + $0x78] sm:$0xff]
  %3690 = vmatprep.subr.mxu0 0.0
  %3691 = vmatpush1.msra.mxu0 %v3689
  %3692 = vmatprep.subr.mxu0 0.0
  %3693 = vmatpush1.msra.mxu0 %v3688
  %3694 = vmatprep.subr.mxu0 0.0
  %3695 = vmatpush1.msra.mxu0 %v3687
  %3696 = vmatprep.subr.mxu0 0.0
  %3697 = vmatpush1.msra.mxu0 %v3686
  %3698 = vmatprep.subr.mxu0 0.0
  %3699 = vmatpush1.msra.mxu0 %v3685
  %3700 = vmatprep.subr.mxu0 0.0
  %3701 = vmatpush1.msra.mxu0 %v3684
  %3702 = vmatprep.subr.mxu0 0.0
  %3703 = vmatpush1.msra.mxu0 %v3683
  %3704 = vmatprep.subr.mxu0 0.0
  %3705 = vmatpush1.msra.mxu0 %v3682
  %3706 = vmatprep.subr.mxu0 0.0
  %3707 = vmatpush1.msra.mxu0 %v3681
  %3708 = vmatprep.subr.mxu0 0.0
  %3709 = vmatpush1.msra.mxu0 %v3680
  %3710 = vmatprep.subr.mxu0 0.0
  %3711 = vmatpush1.msra.mxu0 %v3679
  %3712 = vmatprep.subr.mxu0 0.0
  %3713 = vmatpush1.msra.mxu0 %v3678
  %3714 = vmatprep.subr.mxu0 0.0
  %3715 = vmatpush1.msra.mxu0 %v3677
  %3716 = vmatprep.subr.mxu0 0.0
  %3717 = vmatpush1.msra.mxu0 %v3676
  %3718 = vmatprep.subr.mxu0 0.0
  %3719 = vmatpush1.msra.mxu0 %v3675
  %3720 = vmatprep.subr.mxu0 0.0
  %3721 = vmatpush1.msra.mxu0 %v3674
  %3722 = vmatprep.subr.mxu0 0.0
  %3723 = vmatpush2.msra.mxu0 0.0
  %3724 = vmatprep.subr.mxu0 0.0
  %3725 = vmatpush2.msra.mxu0 0.0
  %3726 = vmatprep.subr.mxu0 0.0
  %3727 = vmatpush2.msra.mxu0 0.0
  %3728 = vmatprep.subr.mxu0 0.0
  %3729 = vmatpush2.msra.mxu0 0.0
  %3730 = vmatprep.subr.mxu0 0.0
  %3731 = vmatpush2.msra.mxu0 0.0
  %3732 = vmatprep.subr.mxu0 0.0
  %3733 = vmatpush2.msra.mxu0 0.0
  %3734 = vmatprep.subr.mxu0 0.0
  %3735 = vmatpush2.msra.mxu0 0.0
  %3736 = vmatprep.subr.mxu0 0.0
  %3737 = vmatpush2.msra.mxu0 0.0
  %3738 = vmatprep.subr.mxu0 0.0
  %3739 = vmatpush2.msra.mxu0 0.0
  %3740 = vmatprep.subr.mxu0 0.0
  %3741 = vmatpush2.msra.mxu0 0.0
  %3742 = vmatprep.subr.mxu0 0.0
  %3743 = vmatpush2.msra.mxu0 0.0
  %3744 = vmatprep.subr.mxu0 0.0
  %3745 = vmatpush2.msra.mxu0 0.0
  %3746 = vmatprep.subr.mxu0 0.0
  %3747 = vmatpush2.msra.mxu0 0.0
  %3748 = vmatprep.subr.mxu0 0.0
  %3749 = vmatpush2.msra.mxu0 0.0
  %3750 = vmatprep.subr.mxu0 0.0
  %3751 = vmatpush2.msra.mxu0 0.0
  %3752 = vmatprep.subr.mxu0 0.0
  %3753 = vmatpush2.msra.mxu0 0.0
  %3754 = vmatprep.mubr.f32.mxu0 0.0
  %3755 = vmatmul.mubr.f32.gmra.mxu0 %v3609
  %v3756 = vpop.f32.mrf.mxu0
  %v3757 = vadd.f32 0.0, %v3756
  %v3758 = vpop.f32.mrf.mxu0
  %3759 = vmatprep.mubr.f32.mxu0 0.0
  %3760 = vmatmul.mubr.f32.gmra.mxu0 %v3610
  %v3761 = vpop.f32.mrf.mxu0
  %v3762 = vadd.f32 0.0, %v3761
  %v3763 = vpop.f32.mrf.mxu0
  %3764 = vmatprep.mubr.f32.mxu0 0.0
  %3765 = vmatmul.mubr.f32.gmra.mxu0 %v3611
  %v3766 = vpop.f32.mrf.mxu0
  %v3767 = vadd.f32 0.0, %v3766
  %v3768 = vpop.f32.mrf.mxu0
  %3769 = vmatprep.mubr.f32.mxu0 0.0
  %3770 = vmatmul.mubr.f32.gmra.mxu0 %v3612
  %v3771 = vpop.f32.mrf.mxu0
  %v3772 = vadd.f32 0.0, %v3771
  %v3773 = vpop.f32.mrf.mxu0
  %3774 = vmatprep.mubr.f32.mxu0 0.0
  %3775 = vmatmul.mubr.f32.gmra.mxu0 %v3613
  %v3776 = vpop.f32.mrf.mxu0
  %v3777 = vadd.f32 0.0, %v3776
  %v3778 = vpop.f32.mrf.mxu0
  %3779 = vmatprep.mubr.f32.mxu0 0.0
  %3780 = vmatmul.mubr.f32.gmra.mxu0 %v3614
  %v3781 = vpop.f32.mrf.mxu0
  %v3782 = vadd.f32 0.0, %v3781
  %v3783 = vpop.f32.mrf.mxu0
  %3784 = vmatprep.mubr.f32.mxu0 0.0
  %3785 = vmatmul.mubr.f32.gmra.mxu0 %v3615
  %v3786 = vpop.f32.mrf.mxu0
  %v3787 = vadd.f32 0.0, %v3786
  %v3788 = vpop.f32.mrf.mxu0
  %3789 = vmatprep.mubr.f32.mxu0 0.0
  %3790 = vmatmul.mubr.f32.gmra.mxu0 %v3616
  %v3791 = vpop.f32.mrf.mxu0
  %v3792 = vadd.f32 0.0, %v3791
  %v3793 = vpop.f32.mrf.mxu0
  %3794 = vmatprep.mubr.f32.mxu0 0.0
  %3795 = vmatmul.mubr.f32.gmra.mxu0 %v3617
  %v3796 = vpop.f32.mrf.mxu0
  %v3797 = vadd.f32 0.0, %v3796
  %v3798 = vpop.f32.mrf.mxu0
  %3799 = vmatprep.mubr.f32.mxu0 0.0
  %3800 = vmatmul.mubr.f32.gmra.mxu0 %v3618
  %v3801 = vpop.f32.mrf.mxu0
  %v3802 = vadd.f32 0.0, %v3801
  %v3803 = vpop.f32.mrf.mxu0
  %3804 = vmatprep.mubr.f32.mxu0 0.0
  %3805 = vmatmul.mubr.f32.gmra.mxu0 %v3619
  %v3806 = vpop.f32.mrf.mxu0
  %v3807 = vadd.f32 0.0, %v3806
  %v3808 = vpop.f32.mrf.mxu0
  %3809 = vmatprep.mubr.f32.mxu0 0.0
  %3810 = vmatmul.mubr.f32.gmra.mxu0 %v3620
  %v3811 = vpop.f32.mrf.mxu0
  %v3812 = vadd.f32 0.0, %v3811
  %v3813 = vpop.f32.mrf.mxu0
  %3814 = vmatprep.mubr.f32.mxu0 0.0
  %3815 = vmatmul.mubr.f32.gmra.mxu0 %v3621
  %v3816 = vpop.f32.mrf.mxu0
  %v3817 = vadd.f32 0.0, %v3816
  %v3818 = vpop.f32.mrf.mxu0
  %3819 = vmatprep.mubr.f32.mxu0 0.0
  %3820 = vmatmul.mubr.f32.gmra.mxu0 %v3622
  %v3821 = vpop.f32.mrf.mxu0
  %v3822 = vadd.f32 0.0, %v3821
  %v3823 = vpop.f32.mrf.mxu0
  %3824 = vmatprep.mubr.f32.mxu0 0.0
  %3825 = vmatmul.mubr.f32.gmra.mxu0 %v3623
  %v3826 = vpop.f32.mrf.mxu0
  %v3827 = vadd.f32 0.0, %v3826
  %v3828 = vpop.f32.mrf.mxu0
  %3829 = vmatprep.mubr.f32.mxu0 0.0
  %3830 = vmatmul.mubr.f32.gmra.mxu0 %v3624
  %v3831 = vpop.f32.mrf.mxu0
  %v3832 = vadd.f32 0.0, %v3831
  %v3833 = vpop.f32.mrf.mxu0
  %3834 = vmatprep.mubr.f32.mxu0 0.0
  %3835 = vmatmul.mubr.f32.gmra.mxu0 %v3625
  %v3836 = vpop.f32.mrf.mxu0
  %v3837 = vadd.f32 0.0, %v3836
  %v3838 = vpop.f32.mrf.mxu0
  %3839 = vmatprep.mubr.f32.mxu0 0.0
  %3840 = vmatmul.mubr.f32.gmra.mxu0 %v3626
  %v3841 = vpop.f32.mrf.mxu0
  %v3842 = vadd.f32 0.0, %v3841
  %v3843 = vpop.f32.mrf.mxu0
  %3844 = vmatprep.mubr.f32.mxu0 0.0
  %3845 = vmatmul.mubr.f32.gmra.mxu0 %v3627
  %v3846 = vpop.f32.mrf.mxu0
  %v3847 = vadd.f32 0.0, %v3846
  %v3848 = vpop.f32.mrf.mxu0
  %3849 = vmatprep.mubr.f32.mxu0 0.0
  %3850 = vmatmul.mubr.f32.gmra.mxu0 %v3628
  %v3851 = vpop.f32.mrf.mxu0
  %v3852 = vadd.f32 0.0, %v3851
  %v3853 = vpop.f32.mrf.mxu0
  %3854 = vmatprep.mubr.f32.mxu0 0.0
  %3855 = vmatmul.mubr.f32.gmra.mxu0 %v3629
  %v3856 = vpop.f32.mrf.mxu0
  %v3857 = vadd.f32 0.0, %v3856
  %v3858 = vpop.f32.mrf.mxu0
  %3859 = vmatprep.mubr.f32.mxu0 0.0
  %3860 = vmatmul.mubr.f32.gmra.mxu0 %v3630
  %v3861 = vpop.f32.mrf.mxu0
  %v3862 = vadd.f32 0.0, %v3861
  %v3863 = vpop.f32.mrf.mxu0
  %3864 = vmatprep.mubr.f32.mxu0 0.0
  %3865 = vmatmul.mubr.f32.gmra.mxu0 %v3631
  %v3866 = vpop.f32.mrf.mxu0
  %v3867 = vadd.f32 0.0, %v3866
  %v3868 = vpop.f32.mrf.mxu0
  %3869 = vmatprep.mubr.f32.mxu0 0.0
  %3870 = vmatmul.mubr.f32.gmra.mxu0 %v3632
  %v3871 = vpop.f32.mrf.mxu0
  %v3872 = vadd.f32 0.0, %v3871
  %v3873 = vpop.f32.mrf.mxu0
  %3874 = vmatprep.mubr.f32.mxu0 0.0
  %3875 = vmatmul.mubr.f32.gmra.mxu0 %v3633
  %v3876 = vpop.f32.mrf.mxu0
  %v3877 = vadd.f32 0.0, %v3876
  %v3878 = vpop.f32.mrf.mxu0
  %3879 = vmatprep.mubr.f32.mxu0 0.0
  %3880 = vmatmul.mubr.f32.gmra.mxu0 %v3634
  %v3881 = vpop.f32.mrf.mxu0
  %v3882 = vadd.f32 0.0, %v3881
  %v3883 = vpop.f32.mrf.mxu0
  %3884 = vmatprep.mubr.f32.mxu0 0.0
  %3885 = vmatmul.mubr.f32.gmra.mxu0 %v3635
  %v3886 = vpop.f32.mrf.mxu0
  %v3887 = vadd.f32 0.0, %v3886
  %v3888 = vpop.f32.mrf.mxu0
  %3889 = vmatprep.mubr.f32.mxu0 0.0
  %3890 = vmatmul.mubr.f32.gmra.mxu0 %v3636
  %v3891 = vpop.f32.mrf.mxu0
  %v3892 = vadd.f32 0.0, %v3891
  %v3893 = vpop.f32.mrf.mxu0
  %3894 = vmatprep.mubr.f32.mxu0 0.0
  %3895 = vmatmul.mubr.f32.gmra.mxu0 %v3637
  %v3896 = vpop.f32.mrf.mxu0
  %v3897 = vadd.f32 0.0, %v3896
  %v3898 = vpop.f32.mrf.mxu0
  %3899 = vmatprep.mubr.f32.mxu0 0.0
  %3900 = vmatmul.mubr.f32.gmra.mxu0 %v3638
  %v3901 = vpop.f32.mrf.mxu0
  %v3902 = vadd.f32 0.0, %v3901
  %v3903 = vpop.f32.mrf.mxu0
  %3904 = vmatprep.mubr.f32.mxu0 0.0
  %3905 = vmatmul.mubr.f32.gmra.mxu0 %v3639
  %v3906 = vpop.f32.mrf.mxu0
  %v3907 = vadd.f32 0.0, %v3906
  %v3908 = vpop.f32.mrf.mxu0
  %3909 = vmatprep.mubr.f32.mxu0 0.0
  %3910 = vmatmul.mubr.f32.gmra.mxu0 %v3640
  %v3911 = vpop.f32.mrf.mxu0
  %v3912 = vadd.f32 0.0, %v3911
  %v3913 = vpop.f32.mrf.mxu0
  %3914 = vmatprep.mubr.f32.mxu0 0.0
  %3915 = vmatmul.mubr.f32.gmra.mxu0 %v3641
  %v3916 = vpop.f32.mrf.mxu0
  %v3917 = vadd.f32 0.0, %v3916
  %v3918 = vpop.f32.mrf.mxu0
  %3919 = vmatprep.mubr.f32.mxu0 0.0
  %3920 = vmatmul.mubr.f32.gmra.mxu0 %v3642
  %v3921 = vpop.f32.mrf.mxu0
  %v3922 = vadd.f32 0.0, %v3921
  %v3923 = vpop.f32.mrf.mxu0
  %3924 = vmatprep.mubr.f32.mxu0 0.0
  %3925 = vmatmul.mubr.f32.gmra.mxu0 %v3643
  %v3926 = vpop.f32.mrf.mxu0
  %v3927 = vadd.f32 0.0, %v3926
  %v3928 = vpop.f32.mrf.mxu0
  %3929 = vmatprep.mubr.f32.mxu0 0.0
  %3930 = vmatmul.mubr.f32.gmra.mxu0 %v3644
  %v3931 = vpop.f32.mrf.mxu0
  %v3932 = vadd.f32 0.0, %v3931
  %v3933 = vpop.f32.mrf.mxu0
  %3934 = vmatprep.mubr.f32.mxu0 0.0
  %3935 = vmatmul.mubr.f32.gmra.mxu0 %v3645
  %v3936 = vpop.f32.mrf.mxu0
  %v3937 = vadd.f32 0.0, %v3936
  %v3938 = vpop.f32.mrf.mxu0
  %3939 = vmatprep.mubr.f32.mxu0 0.0
  %3940 = vmatmul.mubr.f32.gmra.mxu0 %v3646
  %v3941 = vpop.f32.mrf.mxu0
  %v3942 = vadd.f32 0.0, %v3941
  %v3943 = vpop.f32.mrf.mxu0
  %3944 = vmatprep.mubr.f32.mxu0 0.0
  %3945 = vmatmul.mubr.f32.gmra.mxu0 %v3647
  %v3946 = vpop.f32.mrf.mxu0
  %v3947 = vadd.f32 0.0, %v3946
  %v3948 = vpop.f32.mrf.mxu0
  %3949 = vmatprep.mubr.f32.mxu0 0.0
  %3950 = vmatmul.mubr.f32.gmra.mxu0 %v3648
  %v3951 = vpop.f32.mrf.mxu0
  %v3952 = vadd.f32 0.0, %v3951
  %v3953 = vpop.f32.mrf.mxu0
  %3954 = vmatprep.mubr.f32.mxu0 0.0
  %3955 = vmatmul.mubr.f32.gmra.mxu0 %v3649
  %v3956 = vpop.f32.mrf.mxu0
  %v3957 = vadd.f32 0.0, %v3956
  %v3958 = vpop.f32.mrf.mxu0
  %3959 = vmatprep.mubr.f32.mxu0 0.0
  %3960 = vmatmul.mubr.f32.gmra.mxu0 %v3650
  %v3961 = vpop.f32.mrf.mxu0
  %v3962 = vadd.f32 0.0, %v3961
  %v3963 = vpop.f32.mrf.mxu0
  %3964 = vmatprep.mubr.f32.mxu0 0.0
  %3965 = vmatmul.mubr.f32.gmra.mxu0 %v3651
  %v3966 = vpop.f32.mrf.mxu0
  %v3967 = vadd.f32 0.0, %v3966
  %v3968 = vpop.f32.mrf.mxu0
  %3969 = vmatprep.mubr.f32.mxu0 0.0
  %3970 = vmatmul.mubr.f32.gmra.mxu0 %v3652
  %v3971 = vpop.f32.mrf.mxu0
  %v3972 = vadd.f32 0.0, %v3971
  %v3973 = vpop.f32.mrf.mxu0
  %3974 = vmatprep.mubr.f32.mxu0 0.0
  %3975 = vmatmul.mubr.f32.gmra.mxu0 %v3653
  %v3976 = vpop.f32.mrf.mxu0
  %v3977 = vadd.f32 0.0, %v3976
  %v3978 = vpop.f32.mrf.mxu0
  %3979 = vmatprep.mubr.f32.mxu0 0.0
  %3980 = vmatmul.mubr.f32.gmra.mxu0 %v3654
  %v3981 = vpop.f32.mrf.mxu0
  %v3982 = vadd.f32 0.0, %v3981
  %v3983 = vpop.f32.mrf.mxu0
  %3984 = vmatprep.mubr.f32.mxu0 0.0
  %3985 = vmatmul.mubr.f32.gmra.mxu0 %v3655
  %v3986 = vpop.f32.mrf.mxu0
  %v3987 = vadd.f32 0.0, %v3986
  %v3988 = vpop.f32.mrf.mxu0
  %3989 = vmatprep.mubr.f32.mxu0 0.0
  %3990 = vmatmul.mubr.f32.gmra.mxu0 %v3656
  %v3991 = vpop.f32.mrf.mxu0
  %v3992 = vadd.f32 0.0, %v3991
  %v3993 = vpop.f32.mrf.mxu0
  %3994 = vmatprep.mubr.f32.mxu0 0.0
  %3995 = vmatmul.mubr.f32.gmra.mxu0 %v3657
  %v3996 = vpop.f32.mrf.mxu0
  %v3997 = vadd.f32 0.0, %v3996
  %v3998 = vpop.f32.mrf.mxu0
  %3999 = vmatprep.mubr.f32.mxu0 0.0
  %4000 = vmatmul.mubr.f32.gmra.mxu0 %v3658
  %v4001 = vpop.f32.mrf.mxu0
  %v4002 = vadd.f32 0.0, %v4001
  %v4003 = vpop.f32.mrf.mxu0
  %4004 = vmatprep.mubr.f32.mxu0 0.0
  %4005 = vmatmul.mubr.f32.gmra.mxu0 %v3659
  %v4006 = vpop.f32.mrf.mxu0
  %v4007 = vadd.f32 0.0, %v4006
  %v4008 = vpop.f32.mrf.mxu0
  %4009 = vmatprep.mubr.f32.mxu0 0.0
  %4010 = vmatmul.mubr.f32.gmra.mxu0 %v3660
  %v4011 = vpop.f32.mrf.mxu0
  %v4012 = vadd.f32 0.0, %v4011
  %v4013 = vpop.f32.mrf.mxu0
  %4014 = vmatprep.mubr.f32.mxu0 0.0
  %4015 = vmatmul.mubr.f32.gmra.mxu0 %v3661
  %v4016 = vpop.f32.mrf.mxu0
  %v4017 = vadd.f32 0.0, %v4016
  %v4018 = vpop.f32.mrf.mxu0
  %4019 = vmatprep.mubr.f32.mxu0 0.0
  %4020 = vmatmul.mubr.f32.gmra.mxu0 %v3662
  %v4021 = vpop.f32.mrf.mxu0
  %v4022 = vadd.f32 0.0, %v4021
  %v4023 = vpop.f32.mrf.mxu0
  %4024 = vmatprep.mubr.f32.mxu0 0.0
  %4025 = vmatmul.mubr.f32.gmra.mxu0 %v3663
  %v4026 = vpop.f32.mrf.mxu0
  %v4027 = vadd.f32 0.0, %v4026
  %v4028 = vpop.f32.mrf.mxu0
  %4029 = vmatprep.mubr.f32.mxu0 0.0
  %4030 = vmatmul.mubr.f32.gmra.mxu0 %v3664
  %v4031 = vpop.f32.mrf.mxu0
  %v4032 = vadd.f32 0.0, %v4031
  %v4033 = vpop.f32.mrf.mxu0
  %4034 = vmatprep.mubr.f32.mxu0 0.0
  %4035 = vmatmul.mubr.f32.gmra.mxu0 %v3665
  %v4036 = vpop.f32.mrf.mxu0
  %v4037 = vadd.f32 0.0, %v4036
  %v4038 = vpop.f32.mrf.mxu0
  %4039 = vmatprep.mubr.f32.mxu0 0.0
  %4040 = vmatmul.mubr.f32.gmra.mxu0 %v3666
  %v4041 = vpop.f32.mrf.mxu0
  %v4042 = vadd.f32 0.0, %v4041
  %v4043 = vpop.f32.mrf.mxu0
  %4044 = vmatprep.mubr.f32.mxu0 0.0
  %4045 = vmatmul.mubr.f32.gmra.mxu0 %v3667
  %v4046 = vpop.f32.mrf.mxu0
  %v4047 = vadd.f32 0.0, %v4046
  %v4048 = vpop.f32.mrf.mxu0
  %4049 = vmatprep.mubr.f32.mxu0 0.0
  %4050 = vmatmul.mubr.f32.gmra.mxu0 %v3668
  %v4051 = vpop.f32.mrf.mxu0
  %v4052 = vadd.f32 0.0, %v4051
  %v4053 = vpop.f32.mrf.mxu0
  %4054 = vmatprep.mubr.f32.mxu0 0.0
  %4055 = vmatmul.mubr.f32.gmra.mxu0 %v3669
  %v4056 = vpop.f32.mrf.mxu0
  %v4057 = vadd.f32 0.0, %v4056
  %v4058 = vpop.f32.mrf.mxu0
  %4059 = vmatprep.mubr.f32.mxu0 0.0
  %4060 = vmatmul.mubr.f32.gmra.mxu0 %v3670
  %v4061 = vpop.f32.mrf.mxu0
  %v4062 = vadd.f32 0.0, %v4061
  %v4063 = vpop.f32.mrf.mxu0
  %4064 = vmatprep.mubr.f32.mxu0 0.0
  %4065 = vmatmul.mubr.f32.gmra.mxu0 %v3671
  %v4066 = vpop.f32.mrf.mxu0
  %v4067 = vadd.f32 0.0, %v4066
  %v4068 = vpop.f32.mrf.mxu0
  %4069 = vmatprep.mubr.f32.mxu0 0.0
  %4070 = vmatmul.mubr.f32.gmra.mxu0 %v3672
  %v4071 = vpop.f32.mrf.mxu0
  %v4072 = vadd.f32 0.0, %v4071
  %v4073 = vpop.f32.mrf.mxu0
  %4074 = vdwg.mxu0
  %v4075 = vadd.f32 %v3545, %v3757
  %v4076 = vadd.f32 %v3546, %v3762
  %v4077 = vadd.f32 %v3547, %v3767
  %v4078 = vadd.f32 %v3548, %v3772
  %v4079 = vadd.f32 %v3549, %v3777
  %v4080 = vadd.f32 %v3550, %v3782
  %v4081 = vadd.f32 %v3551, %v3787
  %v4082 = vadd.f32 %v3552, %v3792
  %v4083 = vadd.f32 %v3553, %v3797
  %v4084 = vadd.f32 %v3554, %v3802
  %v4085 = vadd.f32 %v3555, %v3807
  %v4086 = vadd.f32 %v3556, %v3812
  %v4087 = vadd.f32 %v3557, %v3817
  %v4088 = vadd.f32 %v3558, %v3822
  %v4089 = vadd.f32 %v3559, %v3827
  %v4090 = vadd.f32 %v3560, %v3832
  %v4091 = vadd.f32 %v3561, %v3837
  %v4092 = vadd.f32 %v3562, %v3842
  %v4093 = vadd.f32 %v3563, %v3847
  %v4094 = vadd.f32 %v3564, %v3852
  %v4095 = vadd.f32 %v3565, %v3857
  %v4096 = vadd.f32 %v3566, %v3862
  %v4097 = vadd.f32 %v3567, %v3867
  %v4098 = vadd.f32 %v3568, %v3872
  %v4099 = vadd.f32 %v3569, %v3877
  %v4100 = vadd.f32 %v3570, %v3882
  %v4101 = vadd.f32 %v3571, %v3887
  %v4102 = vadd.f32 %v3572, %v3892
  %v4103 = vadd.f32 %v3573, %v3897
  %v4104 = vadd.f32 %v3574, %v3902
  %v4105 = vadd.f32 %v3575, %v3907
  %v4106 = vadd.f32 %v3576, %v3912
  %v4107 = vadd.f32 %v3577, %v3917
  %v4108 = vadd.f32 %v3578, %v3922
  %v4109 = vadd.f32 %v3579, %v3927
  %v4110 = vadd.f32 %v3580, %v3932
  %v4111 = vadd.f32 %v3581, %v3937
  %v4112 = vadd.f32 %v3582, %v3942
  %v4113 = vadd.f32 %v3583, %v3947
  %v4114 = vadd.f32 %v3584, %v3952
  %v4115 = vadd.f32 %v3585, %v3957
  %v4116 = vadd.f32 %v3586, %v3962
  %v4117 = vadd.f32 %v3587, %v3967
  %v4118 = vadd.f32 %v3588, %v3972
  %v4119 = vadd.f32 %v3589, %v3977
  %v4120 = vadd.f32 %v3590, %v3982
  %v4121 = vadd.f32 %v3591, %v3987
  %v4122 = vadd.f32 %v3592, %v3992
  %v4123 = vadd.f32 %v3593, %v3997
  %v4124 = vadd.f32 %v3594, %v4002
  %v4125 = vadd.f32 %v3595, %v4007
  %v4126 = vadd.f32 %v3596, %v4012
  %v4127 = vadd.f32 %v3597, %v4017
  %v4128 = vadd.f32 %v3598, %v4022
  %v4129 = vadd.f32 %v3599, %v4027
  %v4130 = vadd.f32 %v3600, %v4032
  %v4131 = vadd.f32 %v3601, %v4037
  %v4132 = vadd.f32 %v3602, %v4042
  %v4133 = vadd.f32 %v3603, %v4047
  %v4134 = vadd.f32 %v3604, %v4052
  %v4135 = vadd.f32 %v3605, %v4057
  %v4136 = vadd.f32 %v3606, %v4062
  %v4137 = vadd.f32 %v3607, %v4067
  %v4138 = vadd.f32 %v3608, %v4072
  %v4139 = vld [vmem:[%s3078 + $0x2] sm:$0xff]
  %v4140 = vld [vmem:[%s3078 + $0xa] sm:$0xff]
  %v4141 = vld [vmem:[%s3078 + $0x1a] sm:$0xff]
  %v4142 = vld [vmem:[%s3078 + $0x22] sm:$0xff]
  %v4143 = vld [vmem:[%s3078 + $0x32] sm:$0xff]
  %v4144 = vld [vmem:[%s3078 + $0x3a] sm:$0xff]
  %v4145 = vld [vmem:[%s3078 + $0x4a] sm:$0xff]
  %v4146 = vld [vmem:[%s3078 + $0x52] sm:$0xff]
  %v4147 = vld [vmem:[%s3078 + $0x62] sm:$0xff]
  %v4148 = vld [vmem:[%s3078 + $0x6a] sm:$0xff]
  %v4149 = vld [vmem:[%s3078 + $0x7a] sm:$0xff]
  %v4150 = vld [vmem:[%s3078 + $0x82] sm:$0xff]
  %v4151 = vld [vmem:[%s3078 + $0x92] sm:$0xff]
  %v4152 = vld [vmem:[%s3078 + $0x9a] sm:$0xff]
  %v4153 = vld [vmem:[%s3078 + $0xaa] sm:$0xff]
  %v4154 = vld [vmem:[%s3078 + $0xb2] sm:$0xff]
  %v4155 = vld [vmem:[%s3078 + $0xc2] sm:$0xff]
  %v4156 = vld [vmem:[%s3078 + $0xca] sm:$0xff]
  %v4157 = vld [vmem:[%s3078 + $0xda] sm:$0xff]
  %v4158 = vld [vmem:[%s3078 + $0xe2] sm:$0xff]
  %v4159 = vld [vmem:[%s3078 + $0xf2] sm:$0xff]
  %v4160 = vld [vmem:[%s3078 + $0xfa] sm:$0xff]
  %v4161 = vld [vmem:[%s3078 + $0x10a] sm:$0xff]
  %v4162 = vld [vmem:[%s3078 + $0x112] sm:$0xff]
  %v4163 = vld [vmem:[%s3078 + $0x122] sm:$0xff]
  %v4164 = vld [vmem:[%s3078 + $0x12a] sm:$0xff]
  %v4165 = vld [vmem:[%s3078 + $0x13a] sm:$0xff]
  %v4166 = vld [vmem:[%s3078 + $0x142] sm:$0xff]
  %v4167 = vld [vmem:[%s3078 + $0x152] sm:$0xff]
  %v4168 = vld [vmem:[%s3078 + $0x15a] sm:$0xff]
  %v4169 = vld [vmem:[%s3078 + $0x16a] sm:$0xff]
  %v4170 = vld [vmem:[%s3078 + $0x172] sm:$0xff]
  %v4171 = vld [vmem:[%s3078 + $0x1b2] sm:$0xff]
  %v4172 = vld [vmem:[%s3078 + $0x1ba] sm:$0xff]
  %v4173 = vld [vmem:[%s3078 + $0x1ca] sm:$0xff]
  %v4174 = vld [vmem:[%s3078 + $0x1d2] sm:$0xff]
  %v4175 = vld [vmem:[%s3078 + $0x1e2] sm:$0xff]
  %v4176 = vld [vmem:[%s3078 + $0x1ea] sm:$0xff]
  %v4177 = vld [vmem:[%s3078 + $0x1fa] sm:$0xff]
  %v4178 = vld [vmem:[%s3078 + $0x202] sm:$0xff]
  %v4179 = vld [vmem:[%s3078 + $0x212] sm:$0xff]
  %v4180 = vld [vmem:[%s3078 + $0x21a] sm:$0xff]
  %v4181 = vld [vmem:[%s3078 + $0x22a] sm:$0xff]
  %v4182 = vld [vmem:[%s3078 + $0x232] sm:$0xff]
  %v4183 = vld [vmem:[%s3078 + $0x242] sm:$0xff]
  %v4184 = vld [vmem:[%s3078 + $0x24a] sm:$0xff]
  %v4185 = vld [vmem:[%s3078 + $0x25a] sm:$0xff]
  %v4186 = vld [vmem:[%s3078 + $0x262] sm:$0xff]
  %v4187 = vld [vmem:[%s3078 + $0x272] sm:$0xff]
  %v4188 = vld [vmem:[%s3078 + $0x27a] sm:$0xff]
  %v4189 = vld [vmem:[%s3078 + $0x28a] sm:$0xff]
  %v4190 = vld [vmem:[%s3078 + $0x292] sm:$0xff]
  %v4191 = vld [vmem:[%s3078 + $0x2a2] sm:$0xff]
  %v4192 = vld [vmem:[%s3078 + $0x2aa] sm:$0xff]
  %v4193 = vld [vmem:[%s3078 + $0x2ba] sm:$0xff]
  %v4194 = vld [vmem:[%s3078 + $0x2c2] sm:$0xff]
  %v4195 = vld [vmem:[%s3078 + $0x2d2] sm:$0xff]
  %v4196 = vld [vmem:[%s3078 + $0x2da] sm:$0xff]
  %v4197 = vld [vmem:[%s3078 + $0x2ea] sm:$0xff]
  %v4198 = vld [vmem:[%s3078 + $0x2f2] sm:$0xff]
  %v4199 = vld [vmem:[%s3078 + $0x302] sm:$0xff]
  %v4200 = vld [vmem:[%s3078 + $0x30a] sm:$0xff]
  %v4201 = vld [vmem:[%s3078 + $0x31a] sm:$0xff]
  %v4202 = vld [vmem:[%s3078 + $0x322] sm:$0xff]
  %s4203 = scalar_lea.vmem %s1, 1024
  %v4204 = vld [vmem:[%s4203] sm:$0xff]
  %v4205 = vld [vmem:[%s4203 + $0x8] sm:$0xff]
  %v4206 = vld [vmem:[%s4203 + $0x10] sm:$0xff]
  %v4207 = vld [vmem:[%s4203 + $0x18] sm:$0xff]
  %v4208 = vld [vmem:[%s4203 + $0x20] sm:$0xff]
  %v4209 = vld [vmem:[%s4203 + $0x28] sm:$0xff]
  %v4210 = vld [vmem:[%s4203 + $0x30] sm:$0xff]
  %v4211 = vld [vmem:[%s4203 + $0x38] sm:$0xff]
  %v4212 = vld [vmem:[%s4203 + $0x40] sm:$0xff]
  %v4213 = vld [vmem:[%s4203 + $0x48] sm:$0xff]
  %v4214 = vld [vmem:[%s4203 + $0x50] sm:$0xff]
  %v4215 = vld [vmem:[%s4203 + $0x58] sm:$0xff]
  %v4216 = vld [vmem:[%s4203 + $0x60] sm:$0xff]
  %v4217 = vld [vmem:[%s4203 + $0x68] sm:$0xff]
  %v4218 = vld [vmem:[%s4203 + $0x70] sm:$0xff]
  %v4219 = vld [vmem:[%s4203 + $0x78] sm:$0xff]
  %4220 = vmatprep.subr.mxu0 0.0
  %4221 = vmatpush1.msra.mxu0 %v4219
  %4222 = vmatprep.subr.mxu0 0.0
  %4223 = vmatpush1.msra.mxu0 %v4218
  %4224 = vmatprep.subr.mxu0 0.0
  %4225 = vmatpush1.msra.mxu0 %v4217
  %4226 = vmatprep.subr.mxu0 0.0
  %4227 = vmatpush1.msra.mxu0 %v4216
  %4228 = vmatprep.subr.mxu0 0.0
  %4229 = vmatpush1.msra.mxu0 %v4215
  %4230 = vmatprep.subr.mxu0 0.0
  %4231 = vmatpush1.msra.mxu0 %v4214
  %4232 = vmatprep.subr.mxu0 0.0
  %4233 = vmatpush1.msra.mxu0 %v4213
  %4234 = vmatprep.subr.mxu0 0.0
  %4235 = vmatpush1.msra.mxu0 %v4212
  %4236 = vmatprep.subr.mxu0 0.0
  %4237 = vmatpush1.msra.mxu0 %v4211
  %4238 = vmatprep.subr.mxu0 0.0
  %4239 = vmatpush1.msra.mxu0 %v4210
  %4240 = vmatprep.subr.mxu0 0.0
  %4241 = vmatpush1.msra.mxu0 %v4209
  %4242 = vmatprep.subr.mxu0 0.0
  %4243 = vmatpush1.msra.mxu0 %v4208
  %4244 = vmatprep.subr.mxu0 0.0
  %4245 = vmatpush1.msra.mxu0 %v4207
  %4246 = vmatprep.subr.mxu0 0.0
  %4247 = vmatpush1.msra.mxu0 %v4206
  %4248 = vmatprep.subr.mxu0 0.0
  %4249 = vmatpush1.msra.mxu0 %v4205
  %4250 = vmatprep.subr.mxu0 0.0
  %4251 = vmatpush1.msra.mxu0 %v4204
  %4252 = vmatprep.subr.mxu0 0.0
  %4253 = vmatpush2.msra.mxu0 0.0
  %4254 = vmatprep.subr.mxu0 0.0
  %4255 = vmatpush2.msra.mxu0 0.0
  %4256 = vmatprep.subr.mxu0 0.0
  %4257 = vmatpush2.msra.mxu0 0.0
  %4258 = vmatprep.subr.mxu0 0.0
  %4259 = vmatpush2.msra.mxu0 0.0
  %4260 = vmatprep.subr.mxu0 0.0
  %4261 = vmatpush2.msra.mxu0 0.0
  %4262 = vmatprep.subr.mxu0 0.0
  %4263 = vmatpush2.msra.mxu0 0.0
  %4264 = vmatprep.subr.mxu0 0.0
  %4265 = vmatpush2.msra.mxu0 0.0
  %4266 = vmatprep.subr.mxu0 0.0
  %4267 = vmatpush2.msra.mxu0 0.0
  %4268 = vmatprep.subr.mxu0 0.0
  %4269 = vmatpush2.msra.mxu0 0.0
  %4270 = vmatprep.subr.mxu0 0.0
  %4271 = vmatpush2.msra.mxu0 0.0
  %4272 = vmatprep.subr.mxu0 0.0
  %4273 = vmatpush2.msra.mxu0 0.0
  %4274 = vmatprep.subr.mxu0 0.0
  %4275 = vmatpush2.msra.mxu0 0.0
  %4276 = vmatprep.subr.mxu0 0.0
  %4277 = vmatpush2.msra.mxu0 0.0
  %4278 = vmatprep.subr.mxu0 0.0
  %4279 = vmatpush2.msra.mxu0 0.0
  %4280 = vmatprep.subr.mxu0 0.0
  %4281 = vmatpush2.msra.mxu0 0.0
  %4282 = vmatprep.subr.mxu0 0.0
  %4283 = vmatpush2.msra.mxu0 0.0
  %4284 = vmatprep.mubr.f32.mxu0 0.0
  %4285 = vmatmul.mubr.f32.gmra.mxu0 %v4139
  %v4286 = vpop.f32.mrf.mxu0
  %v4287 = vadd.f32 0.0, %v4286
  %v4288 = vpop.f32.mrf.mxu0
  %4289 = vmatprep.mubr.f32.mxu0 0.0
  %4290 = vmatmul.mubr.f32.gmra.mxu0 %v4140
  %v4291 = vpop.f32.mrf.mxu0
  %v4292 = vadd.f32 0.0, %v4291
  %v4293 = vpop.f32.mrf.mxu0
  %4294 = vmatprep.mubr.f32.mxu0 0.0
  %4295 = vmatmul.mubr.f32.gmra.mxu0 %v4141
  %v4296 = vpop.f32.mrf.mxu0
  %v4297 = vadd.f32 0.0, %v4296
  %v4298 = vpop.f32.mrf.mxu0
  %4299 = vmatprep.mubr.f32.mxu0 0.0
  %4300 = vmatmul.mubr.f32.gmra.mxu0 %v4142
  %v4301 = vpop.f32.mrf.mxu0
  %v4302 = vadd.f32 0.0, %v4301
  %v4303 = vpop.f32.mrf.mxu0
  %4304 = vmatprep.mubr.f32.mxu0 0.0
  %4305 = vmatmul.mubr.f32.gmra.mxu0 %v4143
  %v4306 = vpop.f32.mrf.mxu0
  %v4307 = vadd.f32 0.0, %v4306
  %v4308 = vpop.f32.mrf.mxu0
  %4309 = vmatprep.mubr.f32.mxu0 0.0
  %4310 = vmatmul.mubr.f32.gmra.mxu0 %v4144
  %v4311 = vpop.f32.mrf.mxu0
  %v4312 = vadd.f32 0.0, %v4311
  %v4313 = vpop.f32.mrf.mxu0
  %4314 = vmatprep.mubr.f32.mxu0 0.0
  %4315 = vmatmul.mubr.f32.gmra.mxu0 %v4145
  %v4316 = vpop.f32.mrf.mxu0
  %v4317 = vadd.f32 0.0, %v4316
  %v4318 = vpop.f32.mrf.mxu0
  %4319 = vmatprep.mubr.f32.mxu0 0.0
  %4320 = vmatmul.mubr.f32.gmra.mxu0 %v4146
  %v4321 = vpop.f32.mrf.mxu0
  %v4322 = vadd.f32 0.0, %v4321
  %v4323 = vpop.f32.mrf.mxu0
  %4324 = vmatprep.mubr.f32.mxu0 0.0
  %4325 = vmatmul.mubr.f32.gmra.mxu0 %v4147
  %v4326 = vpop.f32.mrf.mxu0
  %v4327 = vadd.f32 0.0, %v4326
  %v4328 = vpop.f32.mrf.mxu0
  %4329 = vmatprep.mubr.f32.mxu0 0.0
  %4330 = vmatmul.mubr.f32.gmra.mxu0 %v4148
  %v4331 = vpop.f32.mrf.mxu0
  %v4332 = vadd.f32 0.0, %v4331
  %v4333 = vpop.f32.mrf.mxu0
  %4334 = vmatprep.mubr.f32.mxu0 0.0
  %4335 = vmatmul.mubr.f32.gmra.mxu0 %v4149
  %v4336 = vpop.f32.mrf.mxu0
  %v4337 = vadd.f32 0.0, %v4336
  %v4338 = vpop.f32.mrf.mxu0
  %4339 = vmatprep.mubr.f32.mxu0 0.0
  %4340 = vmatmul.mubr.f32.gmra.mxu0 %v4150
  %v4341 = vpop.f32.mrf.mxu0
  %v4342 = vadd.f32 0.0, %v4341
  %v4343 = vpop.f32.mrf.mxu0
  %4344 = vmatprep.mubr.f32.mxu0 0.0
  %4345 = vmatmul.mubr.f32.gmra.mxu0 %v4151
  %v4346 = vpop.f32.mrf.mxu0
  %v4347 = vadd.f32 0.0, %v4346
  %v4348 = vpop.f32.mrf.mxu0
  %4349 = vmatprep.mubr.f32.mxu0 0.0
  %4350 = vmatmul.mubr.f32.gmra.mxu0 %v4152
  %v4351 = vpop.f32.mrf.mxu0
  %v4352 = vadd.f32 0.0, %v4351
  %v4353 = vpop.f32.mrf.mxu0
  %4354 = vmatprep.mubr.f32.mxu0 0.0
  %4355 = vmatmul.mubr.f32.gmra.mxu0 %v4153
  %v4356 = vpop.f32.mrf.mxu0
  %v4357 = vadd.f32 0.0, %v4356
  %v4358 = vpop.f32.mrf.mxu0
  %4359 = vmatprep.mubr.f32.mxu0 0.0
  %4360 = vmatmul.mubr.f32.gmra.mxu0 %v4154
  %v4361 = vpop.f32.mrf.mxu0
  %v4362 = vadd.f32 0.0, %v4361
  %v4363 = vpop.f32.mrf.mxu0
  %4364 = vmatprep.mubr.f32.mxu0 0.0
  %4365 = vmatmul.mubr.f32.gmra.mxu0 %v4155
  %v4366 = vpop.f32.mrf.mxu0
  %v4367 = vadd.f32 0.0, %v4366
  %v4368 = vpop.f32.mrf.mxu0
  %4369 = vmatprep.mubr.f32.mxu0 0.0
  %4370 = vmatmul.mubr.f32.gmra.mxu0 %v4156
  %v4371 = vpop.f32.mrf.mxu0
  %v4372 = vadd.f32 0.0, %v4371
  %v4373 = vpop.f32.mrf.mxu0
  %4374 = vmatprep.mubr.f32.mxu0 0.0
  %4375 = vmatmul.mubr.f32.gmra.mxu0 %v4157
  %v4376 = vpop.f32.mrf.mxu0
  %v4377 = vadd.f32 0.0, %v4376
  %v4378 = vpop.f32.mrf.mxu0
  %4379 = vmatprep.mubr.f32.mxu0 0.0
  %4380 = vmatmul.mubr.f32.gmra.mxu0 %v4158
  %v4381 = vpop.f32.mrf.mxu0
  %v4382 = vadd.f32 0.0, %v4381
  %v4383 = vpop.f32.mrf.mxu0
  %4384 = vmatprep.mubr.f32.mxu0 0.0
  %4385 = vmatmul.mubr.f32.gmra.mxu0 %v4159
  %v4386 = vpop.f32.mrf.mxu0
  %v4387 = vadd.f32 0.0, %v4386
  %v4388 = vpop.f32.mrf.mxu0
  %4389 = vmatprep.mubr.f32.mxu0 0.0
  %4390 = vmatmul.mubr.f32.gmra.mxu0 %v4160
  %v4391 = vpop.f32.mrf.mxu0
  %v4392 = vadd.f32 0.0, %v4391
  %v4393 = vpop.f32.mrf.mxu0
  %4394 = vmatprep.mubr.f32.mxu0 0.0
  %4395 = vmatmul.mubr.f32.gmra.mxu0 %v4161
  %v4396 = vpop.f32.mrf.mxu0
  %v4397 = vadd.f32 0.0, %v4396
  %v4398 = vpop.f32.mrf.mxu0
  %4399 = vmatprep.mubr.f32.mxu0 0.0
  %4400 = vmatmul.mubr.f32.gmra.mxu0 %v4162
  %v4401 = vpop.f32.mrf.mxu0
  %v4402 = vadd.f32 0.0, %v4401
  %v4403 = vpop.f32.mrf.mxu0
  %4404 = vmatprep.mubr.f32.mxu0 0.0
  %4405 = vmatmul.mubr.f32.gmra.mxu0 %v4163
  %v4406 = vpop.f32.mrf.mxu0
  %v4407 = vadd.f32 0.0, %v4406
  %v4408 = vpop.f32.mrf.mxu0
  %4409 = vmatprep.mubr.f32.mxu0 0.0
  %4410 = vmatmul.mubr.f32.gmra.mxu0 %v4164
  %v4411 = vpop.f32.mrf.mxu0
  %v4412 = vadd.f32 0.0, %v4411
  %v4413 = vpop.f32.mrf.mxu0
  %4414 = vmatprep.mubr.f32.mxu0 0.0
  %4415 = vmatmul.mubr.f32.gmra.mxu0 %v4165
  %v4416 = vpop.f32.mrf.mxu0
  %v4417 = vadd.f32 0.0, %v4416
  %v4418 = vpop.f32.mrf.mxu0
  %4419 = vmatprep.mubr.f32.mxu0 0.0
  %4420 = vmatmul.mubr.f32.gmra.mxu0 %v4166
  %v4421 = vpop.f32.mrf.mxu0
  %v4422 = vadd.f32 0.0, %v4421
  %v4423 = vpop.f32.mrf.mxu0
  %4424 = vmatprep.mubr.f32.mxu0 0.0
  %4425 = vmatmul.mubr.f32.gmra.mxu0 %v4167
  %v4426 = vpop.f32.mrf.mxu0
  %v4427 = vadd.f32 0.0, %v4426
  %v4428 = vpop.f32.mrf.mxu0
  %4429 = vmatprep.mubr.f32.mxu0 0.0
  %4430 = vmatmul.mubr.f32.gmra.mxu0 %v4168
  %v4431 = vpop.f32.mrf.mxu0
  %v4432 = vadd.f32 0.0, %v4431
  %v4433 = vpop.f32.mrf.mxu0
  %4434 = vmatprep.mubr.f32.mxu0 0.0
  %4435 = vmatmul.mubr.f32.gmra.mxu0 %v4169
  %v4436 = vpop.f32.mrf.mxu0
  %v4437 = vadd.f32 0.0, %v4436
  %v4438 = vpop.f32.mrf.mxu0
  %4439 = vmatprep.mubr.f32.mxu0 0.0
  %4440 = vmatmul.mubr.f32.gmra.mxu0 %v4170
  %v4441 = vpop.f32.mrf.mxu0
  %v4442 = vadd.f32 0.0, %v4441
  %v4443 = vpop.f32.mrf.mxu0
  %4444 = vmatprep.mubr.f32.mxu0 0.0
  %4445 = vmatmul.mubr.f32.gmra.mxu0 %v4171
  %v4446 = vpop.f32.mrf.mxu0
  %v4447 = vadd.f32 0.0, %v4446
  %v4448 = vpop.f32.mrf.mxu0
  %4449 = vmatprep.mubr.f32.mxu0 0.0
  %4450 = vmatmul.mubr.f32.gmra.mxu0 %v4172
  %v4451 = vpop.f32.mrf.mxu0
  %v4452 = vadd.f32 0.0, %v4451
  %v4453 = vpop.f32.mrf.mxu0
  %4454 = vmatprep.mubr.f32.mxu0 0.0
  %4455 = vmatmul.mubr.f32.gmra.mxu0 %v4173
  %v4456 = vpop.f32.mrf.mxu0
  %v4457 = vadd.f32 0.0, %v4456
  %v4458 = vpop.f32.mrf.mxu0
  %4459 = vmatprep.mubr.f32.mxu0 0.0
  %4460 = vmatmul.mubr.f32.gmra.mxu0 %v4174
  %v4461 = vpop.f32.mrf.mxu0
  %v4462 = vadd.f32 0.0, %v4461
  %v4463 = vpop.f32.mrf.mxu0
  %4464 = vmatprep.mubr.f32.mxu0 0.0
  %4465 = vmatmul.mubr.f32.gmra.mxu0 %v4175
  %v4466 = vpop.f32.mrf.mxu0
  %v4467 = vadd.f32 0.0, %v4466
  %v4468 = vpop.f32.mrf.mxu0
  %4469 = vmatprep.mubr.f32.mxu0 0.0
  %4470 = vmatmul.mubr.f32.gmra.mxu0 %v4176
  %v4471 = vpop.f32.mrf.mxu0
  %v4472 = vadd.f32 0.0, %v4471
  %v4473 = vpop.f32.mrf.mxu0
  %4474 = vmatprep.mubr.f32.mxu0 0.0
  %4475 = vmatmul.mubr.f32.gmra.mxu0 %v4177
  %v4476 = vpop.f32.mrf.mxu0
  %v4477 = vadd.f32 0.0, %v4476
  %v4478 = vpop.f32.mrf.mxu0
  %4479 = vmatprep.mubr.f32.mxu0 0.0
  %4480 = vmatmul.mubr.f32.gmra.mxu0 %v4178
  %v4481 = vpop.f32.mrf.mxu0
  %v4482 = vadd.f32 0.0, %v4481
  %v4483 = vpop.f32.mrf.mxu0
  %4484 = vmatprep.mubr.f32.mxu0 0.0
  %4485 = vmatmul.mubr.f32.gmra.mxu0 %v4179
  %v4486 = vpop.f32.mrf.mxu0
  %v4487 = vadd.f32 0.0, %v4486
  %v4488 = vpop.f32.mrf.mxu0
  %4489 = vmatprep.mubr.f32.mxu0 0.0
  %4490 = vmatmul.mubr.f32.gmra.mxu0 %v4180
  %v4491 = vpop.f32.mrf.mxu0
  %v4492 = vadd.f32 0.0, %v4491
  %v4493 = vpop.f32.mrf.mxu0
  %4494 = vmatprep.mubr.f32.mxu0 0.0
  %4495 = vmatmul.mubr.f32.gmra.mxu0 %v4181
  %v4496 = vpop.f32.mrf.mxu0
  %v4497 = vadd.f32 0.0, %v4496
  %v4498 = vpop.f32.mrf.mxu0
  %4499 = vmatprep.mubr.f32.mxu0 0.0
  %4500 = vmatmul.mubr.f32.gmra.mxu0 %v4182
  %v4501 = vpop.f32.mrf.mxu0
  %v4502 = vadd.f32 0.0, %v4501
  %v4503 = vpop.f32.mrf.mxu0
  %4504 = vmatprep.mubr.f32.mxu0 0.0
  %4505 = vmatmul.mubr.f32.gmra.mxu0 %v4183
  %v4506 = vpop.f32.mrf.mxu0
  %v4507 = vadd.f32 0.0, %v4506
  %v4508 = vpop.f32.mrf.mxu0
  %4509 = vmatprep.mubr.f32.mxu0 0.0
  %4510 = vmatmul.mubr.f32.gmra.mxu0 %v4184
  %v4511 = vpop.f32.mrf.mxu0
  %v4512 = vadd.f32 0.0, %v4511
  %v4513 = vpop.f32.mrf.mxu0
  %4514 = vmatprep.mubr.f32.mxu0 0.0
  %4515 = vmatmul.mubr.f32.gmra.mxu0 %v4185
  %v4516 = vpop.f32.mrf.mxu0
  %v4517 = vadd.f32 0.0, %v4516
  %v4518 = vpop.f32.mrf.mxu0
  %4519 = vmatprep.mubr.f32.mxu0 0.0
  %4520 = vmatmul.mubr.f32.gmra.mxu0 %v4186
  %v4521 = vpop.f32.mrf.mxu0
  %v4522 = vadd.f32 0.0, %v4521
  %v4523 = vpop.f32.mrf.mxu0
  %4524 = vmatprep.mubr.f32.mxu0 0.0
  %4525 = vmatmul.mubr.f32.gmra.mxu0 %v4187
  %v4526 = vpop.f32.mrf.mxu0
  %v4527 = vadd.f32 0.0, %v4526
  %v4528 = vpop.f32.mrf.mxu0
  %4529 = vmatprep.mubr.f32.mxu0 0.0
  %4530 = vmatmul.mubr.f32.gmra.mxu0 %v4188
  %v4531 = vpop.f32.mrf.mxu0
  %v4532 = vadd.f32 0.0, %v4531
  %v4533 = vpop.f32.mrf.mxu0
  %4534 = vmatprep.mubr.f32.mxu0 0.0
  %4535 = vmatmul.mubr.f32.gmra.mxu0 %v4189
  %v4536 = vpop.f32.mrf.mxu0
  %v4537 = vadd.f32 0.0, %v4536
  %v4538 = vpop.f32.mrf.mxu0
  %4539 = vmatprep.mubr.f32.mxu0 0.0
  %4540 = vmatmul.mubr.f32.gmra.mxu0 %v4190
  %v4541 = vpop.f32.mrf.mxu0
  %v4542 = vadd.f32 0.0, %v4541
  %v4543 = vpop.f32.mrf.mxu0
  %4544 = vmatprep.mubr.f32.mxu0 0.0
  %4545 = vmatmul.mubr.f32.gmra.mxu0 %v4191
  %v4546 = vpop.f32.mrf.mxu0
  %v4547 = vadd.f32 0.0, %v4546
  %v4548 = vpop.f32.mrf.mxu0
  %4549 = vmatprep.mubr.f32.mxu0 0.0
  %4550 = vmatmul.mubr.f32.gmra.mxu0 %v4192
  %v4551 = vpop.f32.mrf.mxu0
  %v4552 = vadd.f32 0.0, %v4551
  %v4553 = vpop.f32.mrf.mxu0
  %4554 = vmatprep.mubr.f32.mxu0 0.0
  %4555 = vmatmul.mubr.f32.gmra.mxu0 %v4193
  %v4556 = vpop.f32.mrf.mxu0
  %v4557 = vadd.f32 0.0, %v4556
  %v4558 = vpop.f32.mrf.mxu0
  %4559 = vmatprep.mubr.f32.mxu0 0.0
  %4560 = vmatmul.mubr.f32.gmra.mxu0 %v4194
  %v4561 = vpop.f32.mrf.mxu0
  %v4562 = vadd.f32 0.0, %v4561
  %v4563 = vpop.f32.mrf.mxu0
  %4564 = vmatprep.mubr.f32.mxu0 0.0
  %4565 = vmatmul.mubr.f32.gmra.mxu0 %v4195
  %v4566 = vpop.f32.mrf.mxu0
  %v4567 = vadd.f32 0.0, %v4566
  %v4568 = vpop.f32.mrf.mxu0
  %4569 = vmatprep.mubr.f32.mxu0 0.0
  %4570 = vmatmul.mubr.f32.gmra.mxu0 %v4196
  %v4571 = vpop.f32.mrf.mxu0
  %v4572 = vadd.f32 0.0, %v4571
  %v4573 = vpop.f32.mrf.mxu0
  %4574 = vmatprep.mubr.f32.mxu0 0.0
  %4575 = vmatmul.mubr.f32.gmra.mxu0 %v4197
  %v4576 = vpop.f32.mrf.mxu0
  %v4577 = vadd.f32 0.0, %v4576
  %v4578 = vpop.f32.mrf.mxu0
  %4579 = vmatprep.mubr.f32.mxu0 0.0
  %4580 = vmatmul.mubr.f32.gmra.mxu0 %v4198
  %v4581 = vpop.f32.mrf.mxu0
  %v4582 = vadd.f32 0.0, %v4581
  %v4583 = vpop.f32.mrf.mxu0
  %4584 = vmatprep.mubr.f32.mxu0 0.0
  %4585 = vmatmul.mubr.f32.gmra.mxu0 %v4199
  %v4586 = vpop.f32.mrf.mxu0
  %v4587 = vadd.f32 0.0, %v4586
  %v4588 = vpop.f32.mrf.mxu0
  %4589 = vmatprep.mubr.f32.mxu0 0.0
  %4590 = vmatmul.mubr.f32.gmra.mxu0 %v4200
  %v4591 = vpop.f32.mrf.mxu0
  %v4592 = vadd.f32 0.0, %v4591
  %v4593 = vpop.f32.mrf.mxu0
  %4594 = vmatprep.mubr.f32.mxu0 0.0
  %4595 = vmatmul.mubr.f32.gmra.mxu0 %v4201
  %v4596 = vpop.f32.mrf.mxu0
  %v4597 = vadd.f32 0.0, %v4596
  %v4598 = vpop.f32.mrf.mxu0
  %4599 = vmatprep.mubr.f32.mxu0 0.0
  %4600 = vmatmul.mubr.f32.gmra.mxu0 %v4202
  %v4601 = vpop.f32.mrf.mxu0
  %v4602 = vadd.f32 0.0, %v4601
  %v4603 = vpop.f32.mrf.mxu0
  %4604 = vdwg.mxu0
  %v4605 = vadd.f32 %v4075, %v4287
  %v4606 = vadd.f32 %v4076, %v4292
  %v4607 = vadd.f32 %v4077, %v4297
  %v4608 = vadd.f32 %v4078, %v4302
  %v4609 = vadd.f32 %v4079, %v4307
  %v4610 = vadd.f32 %v4080, %v4312
  %v4611 = vadd.f32 %v4081, %v4317
  %v4612 = vadd.f32 %v4082, %v4322
  %v4613 = vadd.f32 %v4083, %v4327
  %v4614 = vadd.f32 %v4084, %v4332
  %v4615 = vadd.f32 %v4085, %v4337
  %v4616 = vadd.f32 %v4086, %v4342
  %v4617 = vadd.f32 %v4087, %v4347
  %v4618 = vadd.f32 %v4088, %v4352
  %v4619 = vadd.f32 %v4089, %v4357
  %v4620 = vadd.f32 %v4090, %v4362
  %v4621 = vadd.f32 %v4091, %v4367
  %v4622 = vadd.f32 %v4092, %v4372
  %v4623 = vadd.f32 %v4093, %v4377
  %v4624 = vadd.f32 %v4094, %v4382
  %v4625 = vadd.f32 %v4095, %v4387
  %v4626 = vadd.f32 %v4096, %v4392
  %v4627 = vadd.f32 %v4097, %v4397
  %v4628 = vadd.f32 %v4098, %v4402
  %v4629 = vadd.f32 %v4099, %v4407
  %v4630 = vadd.f32 %v4100, %v4412
  %v4631 = vadd.f32 %v4101, %v4417
  %v4632 = vadd.f32 %v4102, %v4422
  %v4633 = vadd.f32 %v4103, %v4427
  %v4634 = vadd.f32 %v4104, %v4432
  %v4635 = vadd.f32 %v4105, %v4437
  %v4636 = vadd.f32 %v4106, %v4442
  %v4637 = vadd.f32 %v4107, %v4447
  %v4638 = vadd.f32 %v4108, %v4452
  %v4639 = vadd.f32 %v4109, %v4457
  %v4640 = vadd.f32 %v4110, %v4462
  %v4641 = vadd.f32 %v4111, %v4467
  %v4642 = vadd.f32 %v4112, %v4472
  %v4643 = vadd.f32 %v4113, %v4477
  %v4644 = vadd.f32 %v4114, %v4482
  %v4645 = vadd.f32 %v4115, %v4487
  %v4646 = vadd.f32 %v4116, %v4492
  %v4647 = vadd.f32 %v4117, %v4497
  %v4648 = vadd.f32 %v4118, %v4502
  %v4649 = vadd.f32 %v4119, %v4507
  %v4650 = vadd.f32 %v4120, %v4512
  %v4651 = vadd.f32 %v4121, %v4517
  %v4652 = vadd.f32 %v4122, %v4522
  %v4653 = vadd.f32 %v4123, %v4527
  %v4654 = vadd.f32 %v4124, %v4532
  %v4655 = vadd.f32 %v4125, %v4537
  %v4656 = vadd.f32 %v4126, %v4542
  %v4657 = vadd.f32 %v4127, %v4547
  %v4658 = vadd.f32 %v4128, %v4552
  %v4659 = vadd.f32 %v4129, %v4557
  %v4660 = vadd.f32 %v4130, %v4562
  %v4661 = vadd.f32 %v4131, %v4567
  %v4662 = vadd.f32 %v4132, %v4572
  %v4663 = vadd.f32 %v4133, %v4577
  %v4664 = vadd.f32 %v4134, %v4582
  %v4665 = vadd.f32 %v4135, %v4587
  %v4666 = vadd.f32 %v4136, %v4592
  %v4667 = vadd.f32 %v4137, %v4597
  %v4668 = vadd.f32 %v4138, %v4602
  %v4669 = vld [vmem:[%s3] sm:$0x1]
  %v4670 = vld [vmem:[%s4] sm:$0x1]
  %v4671 = vadd.f32 %v4605, %v4606
  %v4672 = vadd.f32 %v4671, %v4607
  %v4673 = vadd.f32 %v4672, %v4608
  %v4674 = vadd.f32 %v4673, %v4609
  %v4675 = vadd.f32 %v4674, %v4610
  %v4676 = vadd.f32 %v4675, %v4611
  %v4677 = vadd.f32 %v4676, %v4612
  %v4678 = vadd.f32 %v4677, %v4613
  %v4679 = vadd.f32 %v4678, %v4614
  %v4680 = vadd.f32 %v4679, %v4615
  %v4681 = vadd.f32 %v4680, %v4616
  %v4682 = vadd.f32 %v4681, %v4617
  %v4683 = vadd.f32 %v4682, %v4618
  %v4684 = vadd.f32 %v4683, %v4619
  %v4685 = vadd.f32 %v4684, %v4620
  %v4686 = vadd.f32 %v4685, %v4621
  %v4687 = vadd.f32 %v4686, %v4622
  %v4688 = vadd.f32 %v4687, %v4623
  %v4689 = vadd.f32 %v4688, %v4624
  %v4690 = vadd.f32 %v4689, %v4625
  %v4691 = vadd.f32 %v4690, %v4626
  %v4692 = vadd.f32 %v4691, %v4627
  %v4693 = vadd.f32 %v4692, %v4628
  %v4694 = vadd.f32 %v4693, %v4629
  %v4695 = vadd.f32 %v4694, %v4630
  %v4696 = vadd.f32 %v4695, %v4631
  %v4697 = vadd.f32 %v4696, %v4632
  %v4698 = vadd.f32 %v4697, %v4633
  %v4699 = vadd.f32 %v4698, %v4634
  %v4700 = vadd.f32 %v4699, %v4635
  %v4701 = vadd.f32 %v4700, %v4636
  %v4702 = vadd.f32 %v4701, %v4637
  %v4703 = vadd.f32 %v4702, %v4638
  %v4704 = vadd.f32 %v4703, %v4639
  %v4705 = vadd.f32 %v4704, %v4640
  %v4706 = vadd.f32 %v4705, %v4641
  %v4707 = vadd.f32 %v4706, %v4642
  %v4708 = vadd.f32 %v4707, %v4643
  %v4709 = vadd.f32 %v4708, %v4644
  %v4710 = vadd.f32 %v4709, %v4645
  %v4711 = vadd.f32 %v4710, %v4646
  %v4712 = vadd.f32 %v4711, %v4647
  %v4713 = vadd.f32 %v4712, %v4648
  %v4714 = vadd.f32 %v4713, %v4649
  %v4715 = vadd.f32 %v4714, %v4650
  %v4716 = vadd.f32 %v4715, %v4651
  %v4717 = vadd.f32 %v4716, %v4652
  %v4718 = vadd.f32 %v4717, %v4653
  %v4719 = vadd.f32 %v4718, %v4654
  %v4720 = vadd.f32 %v4719, %v4655
  %v4721 = vadd.f32 %v4720, %v4656
  %v4722 = vadd.f32 %v4721, %v4657
  %v4723 = vadd.f32 %v4722, %v4658
  %v4724 = vadd.f32 %v4723, %v4659
  %v4725 = vadd.f32 %v4724, %v4660
  %v4726 = vadd.f32 %v4725, %v4661
  %v4727 = vadd.f32 %v4726, %v4662
  %v4728 = vadd.f32 %v4727, %v4663
  %v4729 = vadd.f32 %v4728, %v4664
  %v4730 = vadd.f32 %v4729, %v4665
  %v4731 = vadd.f32 %v4730, %v4666
  %v4732 = vadd.f32 %v4731, %v4667
  %v4733 = vadd.f32 %v4732, %v4668
  %v4734 = vrot.slane %v4733, 4
  %v4735 = vadd.f32 %v4733, %v4734
  %v4736 = vrot.slane %v4735, 2
  %v4737 = vadd.f32 %v4735, %v4736
  %v4738 = vrot.slane %v4737, 1
  %v4739 = vadd.f32 %v4737, %v4738
  %v4740 = vmul.f32 %v4739, 0.001953125
  %v4741 = vmul.f32 %v4605, %v4605
  %v4742 = vmul.f32 %v4606, %v4606
  %v4743 = vmul.f32 %v4607, %v4607
  %v4744 = vmul.f32 %v4608, %v4608
  %v4745 = vmul.f32 %v4609, %v4609
  %v4746 = vmul.f32 %v4610, %v4610
  %v4747 = vmul.f32 %v4611, %v4611
  %v4748 = vmul.f32 %v4612, %v4612
  %v4749 = vmul.f32 %v4613, %v4613
  %v4750 = vmul.f32 %v4614, %v4614
  %v4751 = vmul.f32 %v4615, %v4615
  %v4752 = vmul.f32 %v4616, %v4616
  %v4753 = vmul.f32 %v4617, %v4617
  %v4754 = vmul.f32 %v4618, %v4618
  %v4755 = vmul.f32 %v4619, %v4619
  %v4756 = vmul.f32 %v4620, %v4620
  %v4757 = vmul.f32 %v4621, %v4621
  %v4758 = vmul.f32 %v4622, %v4622
  %v4759 = vmul.f32 %v4623, %v4623
  %v4760 = vmul.f32 %v4624, %v4624
  %v4761 = vmul.f32 %v4625, %v4625
  %v4762 = vmul.f32 %v4626, %v4626
  %v4763 = vmul.f32 %v4627, %v4627
  %v4764 = vmul.f32 %v4628, %v4628
  %v4765 = vmul.f32 %v4629, %v4629
  %v4766 = vmul.f32 %v4630, %v4630
  %v4767 = vmul.f32 %v4631, %v4631
  %v4768 = vmul.f32 %v4632, %v4632
  %v4769 = vmul.f32 %v4633, %v4633
  %v4770 = vmul.f32 %v4634, %v4634
  %v4771 = vmul.f32 %v4635, %v4635
  %v4772 = vmul.f32 %v4636, %v4636
  %v4773 = vmul.f32 %v4637, %v4637
  %v4774 = vmul.f32 %v4638, %v4638
  %v4775 = vmul.f32 %v4639, %v4639
  %v4776 = vmul.f32 %v4640, %v4640
  %v4777 = vmul.f32 %v4641, %v4641
  %v4778 = vmul.f32 %v4642, %v4642
  %v4779 = vmul.f32 %v4643, %v4643
  %v4780 = vmul.f32 %v4644, %v4644
  %v4781 = vmul.f32 %v4645, %v4645
  %v4782 = vmul.f32 %v4646, %v4646
  %v4783 = vmul.f32 %v4647, %v4647
  %v4784 = vmul.f32 %v4648, %v4648
  %v4785 = vmul.f32 %v4649, %v4649
  %v4786 = vmul.f32 %v4650, %v4650
  %v4787 = vmul.f32 %v4651, %v4651
  %v4788 = vmul.f32 %v4652, %v4652
  %v4789 = vmul.f32 %v4653, %v4653
  %v4790 = vmul.f32 %v4654, %v4654
  %v4791 = vmul.f32 %v4655, %v4655
  %v4792 = vmul.f32 %v4656, %v4656
  %v4793 = vmul.f32 %v4657, %v4657
  %v4794 = vmul.f32 %v4658, %v4658
  %v4795 = vmul.f32 %v4659, %v4659
  %v4796 = vmul.f32 %v4660, %v4660
  %v4797 = vmul.f32 %v4661, %v4661
  %v4798 = vmul.f32 %v4662, %v4662
  %v4799 = vmul.f32 %v4663, %v4663
  %v4800 = vmul.f32 %v4664, %v4664
  %v4801 = vmul.f32 %v4665, %v4665
  %v4802 = vmul.f32 %v4666, %v4666
  %v4803 = vmul.f32 %v4667, %v4667
  %v4804 = vmul.f32 %v4668, %v4668
  %v4805 = vadd.f32 %v4741, %v4742
  %v4806 = vadd.f32 %v4805, %v4743
  %v4807 = vadd.f32 %v4806, %v4744
  %v4808 = vadd.f32 %v4807, %v4745
  %v4809 = vadd.f32 %v4808, %v4746
  %v4810 = vadd.f32 %v4809, %v4747
  %v4811 = vadd.f32 %v4810, %v4748
  %v4812 = vadd.f32 %v4811, %v4749
  %v4813 = vadd.f32 %v4812, %v4750
  %v4814 = vadd.f32 %v4813, %v4751
  %v4815 = vadd.f32 %v4814, %v4752
  %v4816 = vadd.f32 %v4815, %v4753
  %v4817 = vadd.f32 %v4816, %v4754
  %v4818 = vadd.f32 %v4817, %v4755
  %v4819 = vadd.f32 %v4818, %v4756
  %v4820 = vadd.f32 %v4819, %v4757
  %v4821 = vadd.f32 %v4820, %v4758
  %v4822 = vadd.f32 %v4821, %v4759
  %v4823 = vadd.f32 %v4822, %v4760
  %v4824 = vadd.f32 %v4823, %v4761
  %v4825 = vadd.f32 %v4824, %v4762
  %v4826 = vadd.f32 %v4825, %v4763
  %v4827 = vadd.f32 %v4826, %v4764
  %v4828 = vadd.f32 %v4827, %v4765
  %v4829 = vadd.f32 %v4828, %v4766
  %v4830 = vadd.f32 %v4829, %v4767
  %v4831 = vadd.f32 %v4830, %v4768
  %v4832 = vadd.f32 %v4831, %v4769
  %v4833 = vadd.f32 %v4832, %v4770
  %v4834 = vadd.f32 %v4833, %v4771
  %v4835 = vadd.f32 %v4834, %v4772
  %v4836 = vadd.f32 %v4835, %v4773
  %v4837 = vadd.f32 %v4836, %v4774
  %v4838 = vadd.f32 %v4837, %v4775
  %v4839 = vadd.f32 %v4838, %v4776
  %v4840 = vadd.f32 %v4839, %v4777
  %v4841 = vadd.f32 %v4840, %v4778
  %v4842 = vadd.f32 %v4841, %v4779
  %v4843 = vadd.f32 %v4842, %v4780
  %v4844 = vadd.f32 %v4843, %v4781
  %v4845 = vadd.f32 %v4844, %v4782
  %v4846 = vadd.f32 %v4845, %v4783
  %v4847 = vadd.f32 %v4846, %v4784
  %v4848 = vadd.f32 %v4847, %v4785
  %v4849 = vadd.f32 %v4848, %v4786
  %v4850 = vadd.f32 %v4849, %v4787
  %v4851 = vadd.f32 %v4850, %v4788
  %v4852 = vadd.f32 %v4851, %v4789
  %v4853 = vadd.f32 %v4852, %v4790
  %v4854 = vadd.f32 %v4853, %v4791
  %v4855 = vadd.f32 %v4854, %v4792
  %v4856 = vadd.f32 %v4855, %v4793
  %v4857 = vadd.f32 %v4856, %v4794
  %v4858 = vadd.f32 %v4857, %v4795
  %v4859 = vadd.f32 %v4858, %v4796
  %v4860 = vadd.f32 %v4859, %v4797
  %v4861 = vadd.f32 %v4860, %v4798
  %v4862 = vadd.f32 %v4861, %v4799
  %v4863 = vadd.f32 %v4862, %v4800
  %v4864 = vadd.f32 %v4863, %v4801
  %v4865 = vadd.f32 %v4864, %v4802
  %v4866 = vadd.f32 %v4865, %v4803
  %v4867 = vadd.f32 %v4866, %v4804
  %v4868 = vrot.slane %v4867, 4
  %v4869 = vadd.f32 %v4867, %v4868
  %v4870 = vrot.slane %v4869, 2
  %v4871 = vadd.f32 %v4869, %v4870
  %v4872 = vrot.slane %v4871, 1
  %v4873 = vadd.f32 %v4871, %v4872
  %v4874 = vmul.f32 %v4873, 0.001953125
  %v4875 = vmul.f32 %v4740, %v4740
  %v4876 = vsub.f32 %v4874, %v4875
  %v4877 = vmax.f32 %v4876, 0.0
  %v4878 = vsub.f32 %v4605, %v4740
  %v4879 = vsub.f32 %v4606, %v4740
  %v4880 = vsub.f32 %v4607, %v4740
  %v4881 = vsub.f32 %v4608, %v4740
  %v4882 = vsub.f32 %v4609, %v4740
  %v4883 = vsub.f32 %v4610, %v4740
  %v4884 = vsub.f32 %v4611, %v4740
  %v4885 = vsub.f32 %v4612, %v4740
  %v4886 = vsub.f32 %v4613, %v4740
  %v4887 = vsub.f32 %v4614, %v4740
  %v4888 = vsub.f32 %v4615, %v4740
  %v4889 = vsub.f32 %v4616, %v4740
  %v4890 = vsub.f32 %v4617, %v4740
  %v4891 = vsub.f32 %v4618, %v4740
  %v4892 = vsub.f32 %v4619, %v4740
  %v4893 = vsub.f32 %v4620, %v4740
  %v4894 = vsub.f32 %v4621, %v4740
  %v4895 = vsub.f32 %v4622, %v4740
  %v4896 = vsub.f32 %v4623, %v4740
  %v4897 = vsub.f32 %v4624, %v4740
  %v4898 = vsub.f32 %v4625, %v4740
  %v4899 = vsub.f32 %v4626, %v4740
  %v4900 = vsub.f32 %v4627, %v4740
  %v4901 = vsub.f32 %v4628, %v4740
  %v4902 = vsub.f32 %v4629, %v4740
  %v4903 = vsub.f32 %v4630, %v4740
  %v4904 = vsub.f32 %v4631, %v4740
  %v4905 = vsub.f32 %v4632, %v4740
  %v4906 = vsub.f32 %v4633, %v4740
  %v4907 = vsub.f32 %v4634, %v4740
  %v4908 = vsub.f32 %v4635, %v4740
  %v4909 = vsub.f32 %v4636, %v4740
  %v4910 = vsub.f32 %v4637, %v4740
  %v4911 = vsub.f32 %v4638, %v4740
  %v4912 = vsub.f32 %v4639, %v4740
  %v4913 = vsub.f32 %v4640, %v4740
  %v4914 = vsub.f32 %v4641, %v4740
  %v4915 = vsub.f32 %v4642, %v4740
  %v4916 = vsub.f32 %v4643, %v4740
  %v4917 = vsub.f32 %v4644, %v4740
  %v4918 = vsub.f32 %v4645, %v4740
  %v4919 = vsub.f32 %v4646, %v4740
  %v4920 = vsub.f32 %v4647, %v4740
  %v4921 = vsub.f32 %v4648, %v4740
  %v4922 = vsub.f32 %v4649, %v4740
  %v4923 = vsub.f32 %v4650, %v4740
  %v4924 = vsub.f32 %v4651, %v4740
  %v4925 = vsub.f32 %v4652, %v4740
  %v4926 = vsub.f32 %v4653, %v4740
  %v4927 = vsub.f32 %v4654, %v4740
  %v4928 = vsub.f32 %v4655, %v4740
  %v4929 = vsub.f32 %v4656, %v4740
  %v4930 = vsub.f32 %v4657, %v4740
  %v4931 = vsub.f32 %v4658, %v4740
  %v4932 = vsub.f32 %v4659, %v4740
  %v4933 = vsub.f32 %v4660, %v4740
  %v4934 = vsub.f32 %v4661, %v4740
  %v4935 = vsub.f32 %v4662, %v4740
  %v4936 = vsub.f32 %v4663, %v4740
  %v4937 = vsub.f32 %v4664, %v4740
  %v4938 = vsub.f32 %v4665, %v4740
  %v4939 = vsub.f32 %v4666, %v4740
  %v4940 = vsub.f32 %v4667, %v4740
  %v4941 = vsub.f32 %v4668, %v4740
  %v4942 = vadd.f32 %v4877, 1e-05
  %v4943 = vrsqrt.pop %v4942
  %v4944 = vmul.f32 %v4878, %v4943
  %v4945 = vmul.f32 %v4879, %v4943
  %v4946 = vmul.f32 %v4880, %v4943
  %v4947 = vmul.f32 %v4881, %v4943
  %v4948 = vmul.f32 %v4882, %v4943
  %v4949 = vmul.f32 %v4883, %v4943
  %v4950 = vmul.f32 %v4884, %v4943
  %v4951 = vmul.f32 %v4885, %v4943
  %v4952 = vmul.f32 %v4886, %v4943
  %v4953 = vmul.f32 %v4887, %v4943
  %v4954 = vmul.f32 %v4888, %v4943
  %v4955 = vmul.f32 %v4889, %v4943
  %v4956 = vmul.f32 %v4890, %v4943
  %v4957 = vmul.f32 %v4891, %v4943
  %v4958 = vmul.f32 %v4892, %v4943
  %v4959 = vmul.f32 %v4893, %v4943
  %v4960 = vmul.f32 %v4894, %v4943
  %v4961 = vmul.f32 %v4895, %v4943
  %v4962 = vmul.f32 %v4896, %v4943
  %v4963 = vmul.f32 %v4897, %v4943
  %v4964 = vmul.f32 %v4898, %v4943
  %v4965 = vmul.f32 %v4899, %v4943
  %v4966 = vmul.f32 %v4900, %v4943
  %v4967 = vmul.f32 %v4901, %v4943
  %v4968 = vmul.f32 %v4902, %v4943
  %v4969 = vmul.f32 %v4903, %v4943
  %v4970 = vmul.f32 %v4904, %v4943
  %v4971 = vmul.f32 %v4905, %v4943
  %v4972 = vmul.f32 %v4906, %v4943
  %v4973 = vmul.f32 %v4907, %v4943
  %v4974 = vmul.f32 %v4908, %v4943
  %v4975 = vmul.f32 %v4909, %v4943
  %v4976 = vmul.f32 %v4910, %v4943
  %v4977 = vmul.f32 %v4911, %v4943
  %v4978 = vmul.f32 %v4912, %v4943
  %v4979 = vmul.f32 %v4913, %v4943
  %v4980 = vmul.f32 %v4914, %v4943
  %v4981 = vmul.f32 %v4915, %v4943
  %v4982 = vmul.f32 %v4916, %v4943
  %v4983 = vmul.f32 %v4917, %v4943
  %v4984 = vmul.f32 %v4918, %v4943
  %v4985 = vmul.f32 %v4919, %v4943
  %v4986 = vmul.f32 %v4920, %v4943
  %v4987 = vmul.f32 %v4921, %v4943
  %v4988 = vmul.f32 %v4922, %v4943
  %v4989 = vmul.f32 %v4923, %v4943
  %v4990 = vmul.f32 %v4924, %v4943
  %v4991 = vmul.f32 %v4925, %v4943
  %v4992 = vmul.f32 %v4926, %v4943
  %v4993 = vmul.f32 %v4927, %v4943
  %v4994 = vmul.f32 %v4928, %v4943
  %v4995 = vmul.f32 %v4929, %v4943
  %v4996 = vmul.f32 %v4930, %v4943
  %v4997 = vmul.f32 %v4931, %v4943
  %v4998 = vmul.f32 %v4932, %v4943
  %v4999 = vmul.f32 %v4933, %v4943
  %v5000 = vmul.f32 %v4934, %v4943
  %v5001 = vmul.f32 %v4935, %v4943
  %v5002 = vmul.f32 %v4936, %v4943
  %v5003 = vmul.f32 %v4937, %v4943
  %v5004 = vmul.f32 %v4938, %v4943
  %v5005 = vmul.f32 %v4939, %v4943
  %v5006 = vmul.f32 %v4940, %v4943
  %v5007 = vmul.f32 %v4941, %v4943
  %v5009 = vlaneseq
  %v5010 = vshrl.u32 %v5009, 7
  %v5011 = vsub.s32 0, %v5010
  %v5012 = vrot.slane %v4669, %v5011
  %v5014 = vmul.f32 %v4944, %v5012
  %v5015 = vmul.f32 %v4945, %v5012
  %v5016 = vmul.f32 %v4946, %v5012
  %v5017 = vmul.f32 %v4947, %v5012
  %v5018 = vmul.f32 %v4948, %v5012
  %v5019 = vmul.f32 %v4949, %v5012
  %v5020 = vmul.f32 %v4950, %v5012
  %v5021 = vmul.f32 %v4951, %v5012
  %v5022 = vmul.f32 %v4952, %v5012
  %v5023 = vmul.f32 %v4953, %v5012
  %v5024 = vmul.f32 %v4954, %v5012
  %v5025 = vmul.f32 %v4955, %v5012
  %v5026 = vmul.f32 %v4956, %v5012
  %v5027 = vmul.f32 %v4957, %v5012
  %v5028 = vmul.f32 %v4958, %v5012
  %v5029 = vmul.f32 %v4959, %v5012
  %v5030 = vmul.f32 %v4960, %v5012
  %v5031 = vmul.f32 %v4961, %v5012
  %v5032 = vmul.f32 %v4962, %v5012
  %v5033 = vmul.f32 %v4963, %v5012
  %v5034 = vmul.f32 %v4964, %v5012
  %v5035 = vmul.f32 %v4965, %v5012
  %v5036 = vmul.f32 %v4966, %v5012
  %v5037 = vmul.f32 %v4967, %v5012
  %v5038 = vmul.f32 %v4968, %v5012
  %v5039 = vmul.f32 %v4969, %v5012
  %v5040 = vmul.f32 %v4970, %v5012
  %v5041 = vmul.f32 %v4971, %v5012
  %v5042 = vmul.f32 %v4972, %v5012
  %v5043 = vmul.f32 %v4973, %v5012
  %v5044 = vmul.f32 %v4974, %v5012
  %v5045 = vmul.f32 %v4975, %v5012
  %v5046 = vmul.f32 %v4976, %v5012
  %v5047 = vmul.f32 %v4977, %v5012
  %v5048 = vmul.f32 %v4978, %v5012
  %v5049 = vmul.f32 %v4979, %v5012
  %v5050 = vmul.f32 %v4980, %v5012
  %v5051 = vmul.f32 %v4981, %v5012
  %v5052 = vmul.f32 %v4982, %v5012
  %v5053 = vmul.f32 %v4983, %v5012
  %v5054 = vmul.f32 %v4984, %v5012
  %v5055 = vmul.f32 %v4985, %v5012
  %v5056 = vmul.f32 %v4986, %v5012
  %v5057 = vmul.f32 %v4987, %v5012
  %v5058 = vmul.f32 %v4988, %v5012
  %v5059 = vmul.f32 %v4989, %v5012
  %v5060 = vmul.f32 %v4990, %v5012
  %v5061 = vmul.f32 %v4991, %v5012
  %v5062 = vmul.f32 %v4992, %v5012
  %v5063 = vmul.f32 %v4993, %v5012
  %v5064 = vmul.f32 %v4994, %v5012
  %v5065 = vmul.f32 %v4995, %v5012
  %v5066 = vmul.f32 %v4996, %v5012
  %v5067 = vmul.f32 %v4997, %v5012
  %v5068 = vmul.f32 %v4998, %v5012
  %v5069 = vmul.f32 %v4999, %v5012
  %v5070 = vmul.f32 %v5000, %v5012
  %v5071 = vmul.f32 %v5001, %v5012
  %v5072 = vmul.f32 %v5002, %v5012
  %v5073 = vmul.f32 %v5003, %v5012
  %v5074 = vmul.f32 %v5004, %v5012
  %v5075 = vmul.f32 %v5005, %v5012
  %v5076 = vmul.f32 %v5006, %v5012
  %v5077 = vmul.f32 %v5007, %v5012
  %v5079 = vlaneseq
  %v5080 = vshrl.u32 %v5079, 7
  %v5081 = vsub.s32 0, %v5080
  %v5082 = vrot.slane %v4670, %v5081
  %v5084 = vadd.f32 %v5014, %v5082
  %v5085 = vadd.f32 %v5015, %v5082
  %v5086 = vadd.f32 %v5016, %v5082
  %v5087 = vadd.f32 %v5017, %v5082
  %v5088 = vadd.f32 %v5018, %v5082
  %v5089 = vadd.f32 %v5019, %v5082
  %v5090 = vadd.f32 %v5020, %v5082
  %v5091 = vadd.f32 %v5021, %v5082
  %v5092 = vadd.f32 %v5022, %v5082
  %v5093 = vadd.f32 %v5023, %v5082
  %v5094 = vadd.f32 %v5024, %v5082
  %v5095 = vadd.f32 %v5025, %v5082
  %v5096 = vadd.f32 %v5026, %v5082
  %v5097 = vadd.f32 %v5027, %v5082
  %v5098 = vadd.f32 %v5028, %v5082
  %v5099 = vadd.f32 %v5029, %v5082
  %v5100 = vadd.f32 %v5030, %v5082
  %v5101 = vadd.f32 %v5031, %v5082
  %v5102 = vadd.f32 %v5032, %v5082
  %v5103 = vadd.f32 %v5033, %v5082
  %v5104 = vadd.f32 %v5034, %v5082
  %v5105 = vadd.f32 %v5035, %v5082
  %v5106 = vadd.f32 %v5036, %v5082
  %v5107 = vadd.f32 %v5037, %v5082
  %v5108 = vadd.f32 %v5038, %v5082
  %v5109 = vadd.f32 %v5039, %v5082
  %v5110 = vadd.f32 %v5040, %v5082
  %v5111 = vadd.f32 %v5041, %v5082
  %v5112 = vadd.f32 %v5042, %v5082
  %v5113 = vadd.f32 %v5043, %v5082
  %v5114 = vadd.f32 %v5044, %v5082
  %v5115 = vadd.f32 %v5045, %v5082
  %v5116 = vadd.f32 %v5046, %v5082
  %v5117 = vadd.f32 %v5047, %v5082
  %v5118 = vadd.f32 %v5048, %v5082
  %v5119 = vadd.f32 %v5049, %v5082
  %v5120 = vadd.f32 %v5050, %v5082
  %v5121 = vadd.f32 %v5051, %v5082
  %v5122 = vadd.f32 %v5052, %v5082
  %v5123 = vadd.f32 %v5053, %v5082
  %v5124 = vadd.f32 %v5054, %v5082
  %v5125 = vadd.f32 %v5055, %v5082
  %v5126 = vadd.f32 %v5056, %v5082
  %v5127 = vadd.f32 %v5057, %v5082
  %v5128 = vadd.f32 %v5058, %v5082
  %v5129 = vadd.f32 %v5059, %v5082
  %v5130 = vadd.f32 %v5060, %v5082
  %v5131 = vadd.f32 %v5061, %v5082
  %v5132 = vadd.f32 %v5062, %v5082
  %v5133 = vadd.f32 %v5063, %v5082
  %v5134 = vadd.f32 %v5064, %v5082
  %v5135 = vadd.f32 %v5065, %v5082
  %v5136 = vadd.f32 %v5066, %v5082
  %v5137 = vadd.f32 %v5067, %v5082
  %v5138 = vadd.f32 %v5068, %v5082
  %v5139 = vadd.f32 %v5069, %v5082
  %v5140 = vadd.f32 %v5070, %v5082
  %v5141 = vadd.f32 %v5071, %v5082
  %v5142 = vadd.f32 %v5072, %v5082
  %v5143 = vadd.f32 %v5073, %v5082
  %v5144 = vadd.f32 %v5074, %v5082
  %v5145 = vadd.f32 %v5075, %v5082
  %v5146 = vadd.f32 %v5076, %v5082
  %v5147 = vadd.f32 %v5077, %v5082
  %v5148 = vmax.f32 %v5084, 0.0
  %v5149 = vmax.f32 %v5085, 0.0
  %v5150 = vmax.f32 %v5086, 0.0
  %v5151 = vmax.f32 %v5087, 0.0
  %v5152 = vmax.f32 %v5088, 0.0
  %v5153 = vmax.f32 %v5089, 0.0
  %v5154 = vmax.f32 %v5090, 0.0
  %v5155 = vmax.f32 %v5091, 0.0
  %v5156 = vmax.f32 %v5092, 0.0
  %v5157 = vmax.f32 %v5093, 0.0
  %v5158 = vmax.f32 %v5094, 0.0
  %v5159 = vmax.f32 %v5095, 0.0
  %v5160 = vmax.f32 %v5096, 0.0
  %v5161 = vmax.f32 %v5097, 0.0
  %v5162 = vmax.f32 %v5098, 0.0
  %v5163 = vmax.f32 %v5099, 0.0
  %v5164 = vmax.f32 %v5100, 0.0
  %v5165 = vmax.f32 %v5101, 0.0
  %v5166 = vmax.f32 %v5102, 0.0
  %v5167 = vmax.f32 %v5103, 0.0
  %v5168 = vmax.f32 %v5104, 0.0
  %v5169 = vmax.f32 %v5105, 0.0
  %v5170 = vmax.f32 %v5106, 0.0
  %v5171 = vmax.f32 %v5107, 0.0
  %v5172 = vmax.f32 %v5108, 0.0
  %v5173 = vmax.f32 %v5109, 0.0
  %v5174 = vmax.f32 %v5110, 0.0
  %v5175 = vmax.f32 %v5111, 0.0
  %v5176 = vmax.f32 %v5112, 0.0
  %v5177 = vmax.f32 %v5113, 0.0
  %v5178 = vmax.f32 %v5114, 0.0
  %v5179 = vmax.f32 %v5115, 0.0
  %v5180 = vmax.f32 %v5116, 0.0
  %v5181 = vmax.f32 %v5117, 0.0
  %v5182 = vmax.f32 %v5118, 0.0
  %v5183 = vmax.f32 %v5119, 0.0
  %v5184 = vmax.f32 %v5120, 0.0
  %v5185 = vmax.f32 %v5121, 0.0
  %v5186 = vmax.f32 %v5122, 0.0
  %v5187 = vmax.f32 %v5123, 0.0
  %v5188 = vmax.f32 %v5124, 0.0
  %v5189 = vmax.f32 %v5125, 0.0
  %v5190 = vmax.f32 %v5126, 0.0
  %v5191 = vmax.f32 %v5127, 0.0
  %v5192 = vmax.f32 %v5128, 0.0
  %v5193 = vmax.f32 %v5129, 0.0
  %v5194 = vmax.f32 %v5130, 0.0
  %v5195 = vmax.f32 %v5131, 0.0
  %v5196 = vmax.f32 %v5132, 0.0
  %v5197 = vmax.f32 %v5133, 0.0
  %v5198 = vmax.f32 %v5134, 0.0
  %v5199 = vmax.f32 %v5135, 0.0
  %v5200 = vmax.f32 %v5136, 0.0
  %v5201 = vmax.f32 %v5137, 0.0
  %v5202 = vmax.f32 %v5138, 0.0
  %v5203 = vmax.f32 %v5139, 0.0
  %v5204 = vmax.f32 %v5140, 0.0
  %v5205 = vmax.f32 %v5141, 0.0
  %v5206 = vmax.f32 %v5142, 0.0
  %v5207 = vmax.f32 %v5143, 0.0
  %v5208 = vmax.f32 %v5144, 0.0
  %v5209 = vmax.f32 %v5145, 0.0
  %v5210 = vmax.f32 %v5146, 0.0
  %v5211 = vmax.f32 %v5147, 0.0
  %5212 = vst [vmem:[#allocation2] sm:$0xff] 0.0
  %5213 = vst [vmem:[#allocation2 + $0x8] sm:$0xff] 0.0
  %5214 = vst [vmem:[#allocation2 + $0x10] sm:$0x3] 0.0
  %5215 = vst [vmem:[#allocation2 + $0x18] sm:$0xff] 0.0
  %5216 = vst [vmem:[#allocation2 + $0x20] sm:$0xff] 0.0
  %5217 = vst [vmem:[#allocation2 + $0x28] sm:$0x3] 0.0
  %5218 = vst [vmem:[#allocation2 + $0x30] sm:$0xff] 0.0
  %5219 = vst [vmem:[#allocation2 + $0x38] sm:$0xff] 0.0
  %5220 = vst [vmem:[#allocation2 + $0x40] sm:$0x3] 0.0
  %5221 = vst [vmem:[#allocation2 + $0x48] sm:$0xff] 0.0
  %5222 = vst [vmem:[#allocation2 + $0x50] sm:$0xff] 0.0
  %5223 = vst [vmem:[#allocation2 + $0x58] sm:$0x3] 0.0
  %5224 = vst [vmem:[#allocation2 + $0x60] sm:$0xff] 0.0
  %5225 = vst [vmem:[#allocation2 + $0x68] sm:$0xff] 0.0
  %5226 = vst [vmem:[#allocation2 + $0x70] sm:$0x3] 0.0
  %5227 = vst [vmem:[#allocation2 + $0x78] sm:$0xff] 0.0
  %5228 = vst [vmem:[#allocation2 + $0x80] sm:$0xff] 0.0
  %5229 = vst [vmem:[#allocation2 + $0x88] sm:$0x3] 0.0
  %5230 = vst [vmem:[#allocation2 + $0x90] sm:$0xff] 0.0
  %5231 = vst [vmem:[#allocation2 + $0x98] sm:$0xff] 0.0
  %5232 = vst [vmem:[#allocation2 + $0xa0] sm:$0x3] 0.0
  %5233 = vst [vmem:[#allocation2 + $0xa8] sm:$0xff] 0.0
  %5234 = vst [vmem:[#allocation2 + $0xb0] sm:$0xff] 0.0
  %5235 = vst [vmem:[#allocation2 + $0xb8] sm:$0x3] 0.0
  %5236 = vst [vmem:[#allocation2 + $0xc0] sm:$0xff] 0.0
  %5237 = vst [vmem:[#allocation2 + $0xc8] sm:$0xff] 0.0
  %5238 = vst [vmem:[#allocation2 + $0xd0] sm:$0x3] 0.0
  %5239 = vst [vmem:[#allocation2 + $0xd8] sm:$0xff] 0.0
  %5240 = vst [vmem:[#allocation2 + $0xe0] sm:$0xff] 0.0
  %5241 = vst [vmem:[#allocation2 + $0xe8] sm:$0x3] 0.0
  %5242 = vst [vmem:[#allocation2 + $0xf0] sm:$0xff] 0.0
  %5243 = vst [vmem:[#allocation2 + $0xf8] sm:$0xff] 0.0
  %5244 = vst [vmem:[#allocation2 + $0x100] sm:$0x3] 0.0
  %5245 = vst [vmem:[#allocation2 + $0x108] sm:$0xff] 0.0
  %5246 = vst [vmem:[#allocation2 + $0x110] sm:$0xff] 0.0
  %5247 = vst [vmem:[#allocation2 + $0x118] sm:$0x3] 0.0
  %5248 = vst [vmem:[#allocation2 + $0x120] sm:$0xff] 0.0
  %5249 = vst [vmem:[#allocation2 + $0x128] sm:$0xff] 0.0
  %5250 = vst [vmem:[#allocation2 + $0x130] sm:$0x3] 0.0
  %5251 = vst [vmem:[#allocation2 + $0x138] sm:$0xff] 0.0
  %5252 = vst [vmem:[#allocation2 + $0x140] sm:$0xff] 0.0
  %5253 = vst [vmem:[#allocation2 + $0x148] sm:$0x3] 0.0
  %5254 = vst [vmem:[#allocation2 + $0x150] sm:$0xff] 0.0
  %5255 = vst [vmem:[#allocation2 + $0x158] sm:$0xff] 0.0
  %5256 = vst [vmem:[#allocation2 + $0x160] sm:$0x3] 0.0
  %5257 = vst [vmem:[#allocation2 + $0x168] sm:$0xff] 0.0
  %5258 = vst [vmem:[#allocation2 + $0x170] sm:$0xff] 0.0
  %5259 = vst [vmem:[#allocation2 + $0x178] sm:$0x3] 0.0
  %5260 = vst [vmem:[#allocation2 + $0x180] sm:$0xff] 0.0
  %5261 = vst [vmem:[#allocation2 + $0x188] sm:$0xff] 0.0
  %5262 = vst [vmem:[#allocation2 + $0x190] sm:$0x3] 0.0
  %5263 = vst [vmem:[#allocation2 + $0x198] sm:$0xff] 0.0
  %5264 = vst [vmem:[#allocation2 + $0x1a0] sm:$0xff] 0.0
  %5265 = vst [vmem:[#allocation2 + $0x1a8] sm:$0x3] 0.0
  %5266 = vst [vmem:[#allocation2 + $0x1b0] sm:$0xff] 0.0
  %5267 = vst [vmem:[#allocation2 + $0x1b8] sm:$0xff] 0.0
  %5268 = vst [vmem:[#allocation2 + $0x1c0] sm:$0x3] 0.0
  %5269 = vst [vmem:[#allocation2 + $0x1c8] sm:$0xff] 0.0
  %5270 = vst [vmem:[#allocation2 + $0x1d0] sm:$0xff] 0.0
  %5271 = vst [vmem:[#allocation2 + $0x1d8] sm:$0x3] 0.0
  %5272 = vst [vmem:[#allocation2 + $0x1e0] sm:$0xff] 0.0
  %5273 = vst [vmem:[#allocation2 + $0x1e8] sm:$0xff] 0.0
  %5274 = vst [vmem:[#allocation2 + $0x1f0] sm:$0x3] 0.0
  %5275 = vst [vmem:[#allocation2 + $0x1f8] sm:$0xff] 0.0
  %5276 = vst [vmem:[#allocation2 + $0x200] sm:$0xff] 0.0
  %5277 = vst [vmem:[#allocation2 + $0x208] sm:$0x3] 0.0
  %5278 = vst [vmem:[#allocation2 + $0x210] sm:$0xff] 0.0
  %5279 = vst [vmem:[#allocation2 + $0x218] sm:$0xff] 0.0
  %5280 = vst [vmem:[#allocation2 + $0x220] sm:$0x3] 0.0
  %5281 = vst [vmem:[#allocation2 + $0x228] sm:$0xff] 0.0
  %5282 = vst [vmem:[#allocation2 + $0x230] sm:$0xff] 0.0
  %5283 = vst [vmem:[#allocation2 + $0x238] sm:$0x3] 0.0
  %5284 = vst [vmem:[#allocation2 + $0x240] sm:$0xff] 0.0
  %5285 = vst [vmem:[#allocation2 + $0x248] sm:$0xff] 0.0
  %5286 = vst [vmem:[#allocation2 + $0x250] sm:$0x3] 0.0
  %5287 = vst [vmem:[#allocation2 + $0x258] sm:$0xff] 0.0
  %5288 = vst [vmem:[#allocation2 + $0x260] sm:$0xff] 0.0
  %5289 = vst [vmem:[#allocation2 + $0x268] sm:$0x3] 0.0
  %5290 = vst [vmem:[#allocation2 + $0x270] sm:$0xff] 0.0
  %5291 = vst [vmem:[#allocation2 + $0x278] sm:$0xff] 0.0
  %5292 = vst [vmem:[#allocation2 + $0x280] sm:$0x3] 0.0
  %5293 = vst [vmem:[#allocation2 + $0x288] sm:$0xff] 0.0
  %5294 = vst [vmem:[#allocation2 + $0x290] sm:$0xff] 0.0
  %5295 = vst [vmem:[#allocation2 + $0x298] sm:$0x3] 0.0
  %5296 = vst [vmem:[#allocation2 + $0x2a0] sm:$0xff] 0.0
  %5297 = vst [vmem:[#allocation2 + $0x2a8] sm:$0xff] 0.0
  %5298 = vst [vmem:[#allocation2 + $0x2b0] sm:$0x3] 0.0
  %5299 = vst [vmem:[#allocation2 + $0x2b8] sm:$0xff] 0.0
  %5300 = vst [vmem:[#allocation2 + $0x2c0] sm:$0xff] 0.0
  %5301 = vst [vmem:[#allocation2 + $0x2c8] sm:$0x3] 0.0
  %5302 = vst [vmem:[#allocation2 + $0x2d0] sm:$0xff] 0.0
  %5303 = vst [vmem:[#allocation2 + $0x2d8] sm:$0xff] 0.0
  %5304 = vst [vmem:[#allocation2 + $0x2e0] sm:$0x3] 0.0
  %5305 = vst [vmem:[#allocation2 + $0x2e8] sm:$0xff] 0.0
  %5306 = vst [vmem:[#allocation2 + $0x2f0] sm:$0xff] 0.0
  %5307 = vst [vmem:[#allocation2 + $0x2f8] sm:$0x3] 0.0
  %5308 = vst [vmem:[#allocation2 + $0x300] sm:$0xff] 0.0
  %5309 = vst [vmem:[#allocation2 + $0x308] sm:$0xff] 0.0
  %5310 = vst [vmem:[#allocation2 + $0x310] sm:$0x3] 0.0
  %5311 = vst [vmem:[#allocation2 + $0x318] sm:$0xff] 0.0
  %5312 = vst [vmem:[#allocation2 + $0x320] sm:$0xff] 0.0
  %5313 = vst [vmem:[#allocation2 + $0x328] sm:$0x3] 0.0
  %5314 = vst [vmem:[#allocation2 + $0x330] sm:$0xff] 0.0
  %5315 = vst [vmem:[#allocation2 + $0x338] sm:$0xff] 0.0
  %5316 = vst [vmem:[#allocation2 + $0x340] sm:$0x3] 0.0
  %5317 = vst [vmem:[#allocation2 + $0x348] sm:$0xff] 0.0
  %5318 = vst [vmem:[#allocation2 + $0x350] sm:$0xff] 0.0
  %5319 = vst [vmem:[#allocation2 + $0x358] sm:$0x3] 0.0
  %s5320 = scalar_lea.vmem [#allocation2], 24
  %5321 = vst [vmem:[%s5320 + $0x1] sm:$0xff] %v5148
  %5322 = vst [vmem:[%s5320 + $0x9] sm:$0xff] %v5149
  %5323 = vst [vmem:[%s5320 + $0x19] sm:$0xff] %v5150
  %5324 = vst [vmem:[%s5320 + $0x21] sm:$0xff] %v5151
  %5325 = vst [vmem:[%s5320 + $0x31] sm:$0xff] %v5152
  %5326 = vst [vmem:[%s5320 + $0x39] sm:$0xff] %v5153
  %5327 = vst [vmem:[%s5320 + $0x49] sm:$0xff] %v5154
  %5328 = vst [vmem:[%s5320 + $0x51] sm:$0xff] %v5155
  %5329 = vst [vmem:[%s5320 + $0x61] sm:$0xff] %v5156
  %5330 = vst [vmem:[%s5320 + $0x69] sm:$0xff] %v5157
  %5331 = vst [vmem:[%s5320 + $0x79] sm:$0xff] %v5158
  %5332 = vst [vmem:[%s5320 + $0x81] sm:$0xff] %v5159
  %5333 = vst [vmem:[%s5320 + $0x91] sm:$0xff] %v5160
  %5334 = vst [vmem:[%s5320 + $0x99] sm:$0xff] %v5161
  %5335 = vst [vmem:[%s5320 + $0xa9] sm:$0xff] %v5162
  %5336 = vst [vmem:[%s5320 + $0xb1] sm:$0xff] %v5163
  %5337 = vst [vmem:[%s5320 + $0xc1] sm:$0xff] %v5164
  %5338 = vst [vmem:[%s5320 + $0xc9] sm:$0xff] %v5165
  %5339 = vst [vmem:[%s5320 + $0xd9] sm:$0xff] %v5166
  %5340 = vst [vmem:[%s5320 + $0xe1] sm:$0xff] %v5167
  %5341 = vst [vmem:[%s5320 + $0xf1] sm:$0xff] %v5168
  %5342 = vst [vmem:[%s5320 + $0xf9] sm:$0xff] %v5169
  %5343 = vst [vmem:[%s5320 + $0x109] sm:$0xff] %v5170
  %5344 = vst [vmem:[%s5320 + $0x111] sm:$0xff] %v5171
  %5345 = vst [vmem:[%s5320 + $0x121] sm:$0xff] %v5172
  %5346 = vst [vmem:[%s5320 + $0x129] sm:$0xff] %v5173
  %5347 = vst [vmem:[%s5320 + $0x139] sm:$0xff] %v5174
  %5348 = vst [vmem:[%s5320 + $0x141] sm:$0xff] %v5175
  %5349 = vst [vmem:[%s5320 + $0x151] sm:$0xff] %v5176
  %5350 = vst [vmem:[%s5320 + $0x159] sm:$0xff] %v5177
  %5351 = vst [vmem:[%s5320 + $0x169] sm:$0xff] %v5178
  %5352 = vst [vmem:[%s5320 + $0x171] sm:$0xff] %v5179
  %5353 = vst [vmem:[%s5320 + $0x1b1] sm:$0xff] %v5180
  %5354 = vst [vmem:[%s5320 + $0x1b9] sm:$0xff] %v5181
  %5355 = vst [vmem:[%s5320 + $0x1c9] sm:$0xff] %v5182
  %5356 = vst [vmem:[%s5320 + $0x1d1] sm:$0xff] %v5183
  %5357 = vst [vmem:[%s5320 + $0x1e1] sm:$0xff] %v5184
  %5358 = vst [vmem:[%s5320 + $0x1e9] sm:$0xff] %v5185
  %5359 = vst [vmem:[%s5320 + $0x1f9] sm:$0xff] %v5186
  %5360 = vst [vmem:[%s5320 + $0x201] sm:$0xff] %v5187
  %5361 = vst [vmem:[%s5320 + $0x211] sm:$0xff] %v5188
  %5362 = vst [vmem:[%s5320 + $0x219] sm:$0xff] %v5189
  %5363 = vst [vmem:[%s5320 + $0x229] sm:$0xff] %v5190
  %5364 = vst [vmem:[%s5320 + $0x231] sm:$0xff] %v5191
  %5365 = vst [vmem:[%s5320 + $0x241] sm:$0xff] %v5192
  %5366 = vst [vmem:[%s5320 + $0x249] sm:$0xff] %v5193
  %5367 = vst [vmem:[%s5320 + $0x259] sm:$0xff] %v5194
  %5368 = vst [vmem:[%s5320 + $0x261] sm:$0xff] %v5195
  %5369 = vst [vmem:[%s5320 + $0x271] sm:$0xff] %v5196
  %5370 = vst [vmem:[%s5320 + $0x279] sm:$0xff] %v5197
  %5371 = vst [vmem:[%s5320 + $0x289] sm:$0xff] %v5198
  %5372 = vst [vmem:[%s5320 + $0x291] sm:$0xff] %v5199
  %5373 = vst [vmem:[%s5320 + $0x2a1] sm:$0xff] %v5200
  %5374 = vst [vmem:[%s5320 + $0x2a9] sm:$0xff] %v5201
  %5375 = vst [vmem:[%s5320 + $0x2b9] sm:$0xff] %v5202
  %5376 = vst [vmem:[%s5320 + $0x2c1] sm:$0xff] %v5203
  %5377 = vst [vmem:[%s5320 + $0x2d1] sm:$0xff] %v5204
  %5378 = vst [vmem:[%s5320 + $0x2d9] sm:$0xff] %v5205
  %5379 = vst [vmem:[%s5320 + $0x2e9] sm:$0xff] %v5206
  %5380 = vst [vmem:[%s5320 + $0x2f1] sm:$0xff] %v5207
  %5381 = vst [vmem:[%s5320 + $0x301] sm:$0xff] %v5208
  %5382 = vst [vmem:[%s5320 + $0x309] sm:$0xff] %v5209
  %5383 = vst [vmem:[%s5320 + $0x319] sm:$0xff] %v5210
  %5384 = vst [vmem:[%s5320 + $0x321] sm:$0xff] %v5211
  %v5385 = vld [vmem:[#allocation2] sm:$0xff]
  %v5386 = vld [vmem:[#allocation2 + $0x8] sm:$0xff]
  %v5387 = vld [vmem:[#allocation2 + $0x18] sm:$0xff]
  %v5388 = vld [vmem:[#allocation2 + $0x20] sm:$0xff]
  %v5389 = vld [vmem:[#allocation2 + $0x30] sm:$0xff]
  %v5390 = vld [vmem:[#allocation2 + $0x38] sm:$0xff]
  %v5391 = vld [vmem:[#allocation2 + $0x48] sm:$0xff]
  %v5392 = vld [vmem:[#allocation2 + $0x50] sm:$0xff]
  %v5393 = vld [vmem:[#allocation2 + $0x60] sm:$0xff]
  %v5394 = vld [vmem:[#allocation2 + $0x68] sm:$0xff]
  %v5395 = vld [vmem:[#allocation2 + $0x78] sm:$0xff]
  %v5396 = vld [vmem:[#allocation2 + $0x80] sm:$0xff]
  %v5397 = vld [vmem:[#allocation2 + $0x90] sm:$0xff]
  %v5398 = vld [vmem:[#allocation2 + $0x98] sm:$0xff]
  %v5399 = vld [vmem:[#allocation2 + $0xa8] sm:$0xff]
  %v5400 = vld [vmem:[#allocation2 + $0xb0] sm:$0xff]
  %v5401 = vld [vmem:[#allocation2 + $0xc0] sm:$0xff]
  %v5402 = vld [vmem:[#allocation2 + $0xc8] sm:$0xff]
  %v5403 = vld [vmem:[#allocation2 + $0xd8] sm:$0xff]
  %v5404 = vld [vmem:[#allocation2 + $0xe0] sm:$0xff]
  %v5405 = vld [vmem:[#allocation2 + $0xf0] sm:$0xff]
  %v5406 = vld [vmem:[#allocation2 + $0xf8] sm:$0xff]
  %v5407 = vld [vmem:[#allocation2 + $0x108] sm:$0xff]
  %v5408 = vld [vmem:[#allocation2 + $0x110] sm:$0xff]
  %v5409 = vld [vmem:[#allocation2 + $0x120] sm:$0xff]
  %v5410 = vld [vmem:[#allocation2 + $0x128] sm:$0xff]
  %v5411 = vld [vmem:[#allocation2 + $0x138] sm:$0xff]
  %v5412 = vld [vmem:[#allocation2 + $0x140] sm:$0xff]
  %v5413 = vld [vmem:[#allocation2 + $0x150] sm:$0xff]
  %v5414 = vld [vmem:[#allocation2 + $0x158] sm:$0xff]
  %v5415 = vld [vmem:[#allocation2 + $0x168] sm:$0xff]
  %v5416 = vld [vmem:[#allocation2 + $0x170] sm:$0xff]
  %v5417 = vld [vmem:[#allocation2 + $0x1b0] sm:$0xff]
  %v5418 = vld [vmem:[#allocation2 + $0x1b8] sm:$0xff]
  %v5419 = vld [vmem:[#allocation2 + $0x1c8] sm:$0xff]
  %v5420 = vld [vmem:[#allocation2 + $0x1d0] sm:$0xff]
  %v5421 = vld [vmem:[#allocation2 + $0x1e0] sm:$0xff]
  %v5422 = vld [vmem:[#allocation2 + $0x1e8] sm:$0xff]
  %v5423 = vld [vmem:[#allocation2 + $0x1f8] sm:$0xff]
  %v5424 = vld [vmem:[#allocation2 + $0x200] sm:$0xff]
  %v5425 = vld [vmem:[#allocation2 + $0x210] sm:$0xff]
  %v5426 = vld [vmem:[#allocation2 + $0x218] sm:$0xff]
  %v5427 = vld [vmem:[#allocation2 + $0x228] sm:$0xff]
  %v5428 = vld [vmem:[#allocation2 + $0x230] sm:$0xff]
  %v5429 = vld [vmem:[#allocation2 + $0x240] sm:$0xff]
  %v5430 = vld [vmem:[#allocation2 + $0x248] sm:$0xff]
  %v5431 = vld [vmem:[#allocation2 + $0x258] sm:$0xff]
  %v5432 = vld [vmem:[#allocation2 + $0x260] sm:$0xff]
  %v5433 = vld [vmem:[#allocation2 + $0x270] sm:$0xff]
  %v5434 = vld [vmem:[#allocation2 + $0x278] sm:$0xff]
  %v5435 = vld [vmem:[#allocation2 + $0x288] sm:$0xff]
  %v5436 = vld [vmem:[#allocation2 + $0x290] sm:$0xff]
  %v5437 = vld [vmem:[#allocation2 + $0x2a0] sm:$0xff]
  %v5438 = vld [vmem:[#allocation2 + $0x2a8] sm:$0xff]
  %v5439 = vld [vmem:[#allocation2 + $0x2b8] sm:$0xff]
  %v5440 = vld [vmem:[#allocation2 + $0x2c0] sm:$0xff]
  %v5441 = vld [vmem:[#allocation2 + $0x2d0] sm:$0xff]
  %v5442 = vld [vmem:[#allocation2 + $0x2d8] sm:$0xff]
  %v5443 = vld [vmem:[#allocation2 + $0x2e8] sm:$0xff]
  %v5444 = vld [vmem:[#allocation2 + $0x2f0] sm:$0xff]
  %v5445 = vld [vmem:[#allocation2 + $0x300] sm:$0xff]
  %v5446 = vld [vmem:[#allocation2 + $0x308] sm:$0xff]
  %v5447 = vld [vmem:[#allocation2 + $0x318] sm:$0xff]
  %v5448 = vld [vmem:[#allocation2 + $0x320] sm:$0xff]
  %v5449 = vld [vmem:[%s2] sm:$0xff]
  %v5450 = vld [vmem:[%s2 + $0x8] sm:$0xff]
  %v5451 = vld [vmem:[%s2 + $0x10] sm:$0xff]
  %v5452 = vld [vmem:[%s2 + $0x18] sm:$0xff]
  %v5453 = vld [vmem:[%s2 + $0x20] sm:$0xff]
  %v5454 = vld [vmem:[%s2 + $0x28] sm:$0xff]
  %v5455 = vld [vmem:[%s2 + $0x30] sm:$0xff]
  %v5456 = vld [vmem:[%s2 + $0x38] sm:$0xff]
  %v5457 = vld [vmem:[%s2 + $0x40] sm:$0xff]
  %v5458 = vld [vmem:[%s2 + $0x48] sm:$0xff]
  %v5459 = vld [vmem:[%s2 + $0x50] sm:$0xff]
  %v5460 = vld [vmem:[%s2 + $0x58] sm:$0xff]
  %v5461 = vld [vmem:[%s2 + $0x60] sm:$0xff]
  %v5462 = vld [vmem:[%s2 + $0x68] sm:$0xff]
  %v5463 = vld [vmem:[%s2 + $0x70] sm:$0xff]
  %v5464 = vld [vmem:[%s2 + $0x78] sm:$0xff]
  %v5465 = vld [vmem:[#allocation2 + $0x1] sm:$0xff]
  %v5466 = vld [vmem:[#allocation2 + $0x9] sm:$0xff]
  %v5467 = vld [vmem:[#allocation2 + $0x19] sm:$0xff]
  %v5468 = vld [vmem:[#allocation2 + $0x21] sm:$0xff]
  %v5469 = vld [vmem:[#allocation2 + $0x31] sm:$0xff]
  %v5470 = vld [vmem:[#allocation2 + $0x39] sm:$0xff]
  %v5471 = vld [vmem:[#allocation2 + $0x49] sm:$0xff]
  %v5472 = vld [vmem:[#allocation2 + $0x51] sm:$0xff]
  %v5473 = vld [vmem:[#allocation2 + $0x61] sm:$0xff]
  %v5474 = vld [vmem:[#allocation2 + $0x69] sm:$0xff]
  %v5475 = vld [vmem:[#allocation2 + $0x79] sm:$0xff]
  %v5476 = vld [vmem:[#allocation2 + $0x81] sm:$0xff]
  %v5477 = vld [vmem:[#allocation2 + $0x91] sm:$0xff]
  %v5478 = vld [vmem:[#allocation2 + $0x99] sm:$0xff]
  %v5479 = vld [vmem:[#allocation2 + $0xa9] sm:$0xff]
  %v5480 = vld [vmem:[#allocation2 + $0xb1] sm:$0xff]
  %v5481 = vld [vmem:[#allocation2 + $0xc1] sm:$0xff]
  %v5482 = vld [vmem:[#allocation2 + $0xc9] sm:$0xff]
  %v5483 = vld [vmem:[#allocation2 + $0xd9] sm:$0xff]
  %v5484 = vld [vmem:[#allocation2 + $0xe1] sm:$0xff]
  %v5485 = vld [vmem:[#allocation2 + $0xf1] sm:$0xff]
  %v5486 = vld [vmem:[#allocation2 + $0xf9] sm:$0xff]
  %v5487 = vld [vmem:[#allocation2 + $0x109] sm:$0xff]
  %v5488 = vld [vmem:[#allocation2 + $0x111] sm:$0xff]
  %v5489 = vld [vmem:[#allocation2 + $0x121] sm:$0xff]
  %v5490 = vld [vmem:[#allocation2 + $0x129] sm:$0xff]
  %v5491 = vld [vmem:[#allocation2 + $0x139] sm:$0xff]
  %v5492 = vld [vmem:[#allocation2 + $0x141] sm:$0xff]
  %v5493 = vld [vmem:[#allocation2 + $0x151] sm:$0xff]
  %v5494 = vld [vmem:[#allocation2 + $0x159] sm:$0xff]
  %v5495 = vld [vmem:[#allocation2 + $0x169] sm:$0xff]
  %v5496 = vld [vmem:[#allocation2 + $0x171] sm:$0xff]
  %v5497 = vld [vmem:[#allocation2 + $0x1b1] sm:$0xff]
  %v5498 = vld [vmem:[#allocation2 + $0x1b9] sm:$0xff]
  %v5499 = vld [vmem:[#allocation2 + $0x1c9] sm:$0xff]
  %v5500 = vld [vmem:[#allocation2 + $0x1d1] sm:$0xff]
  %v5501 = vld [vmem:[#allocation2 + $0x1e1] sm:$0xff]
  %v5502 = vld [vmem:[#allocation2 + $0x1e9] sm:$0xff]
  %v5503 = vld [vmem:[#allocation2 + $0x1f9] sm:$0xff]
  %v5504 = vld [vmem:[#allocation2 + $0x201] sm:$0xff]
  %v5505 = vld [vmem:[#allocation2 + $0x211] sm:$0xff]
  %v5506 = vld [vmem:[#allocation2 + $0x219] sm:$0xff]
  %v5507 = vld [vmem:[#allocation2 + $0x229] sm:$0xff]
  %v5508 = vld [vmem:[#allocation2 + $0x231] sm:$0xff]
  %v5509 = vld [vmem:[#allocation2 + $0x241] sm:$0xff]
  %v5510 = vld [vmem:[#allocation2 + $0x249] sm:$0xff]
  %v5511 = vld [vmem:[#allocation2 + $0x259] sm:$0xff]
  %v5512 = vld [vmem:[#allocation2 + $0x261] sm:$0xff]
  %v5513 = vld [vmem:[#allocation2 + $0x271] sm:$0xff]
  %v5514 = vld [vmem:[#allocation2 + $0x279] sm:$0xff]
  %v5515 = vld [vmem:[#allocation2 + $0x289] sm:$0xff]
  %v5516 = vld [vmem:[#allocation2 + $0x291] sm:$0xff]
  %v5517 = vld [vmem:[#allocation2 + $0x2a1] sm:$0xff]
  %v5518 = vld [vmem:[#allocation2 + $0x2a9] sm:$0xff]
  %v5519 = vld [vmem:[#allocation2 + $0x2b9] sm:$0xff]
  %v5520 = vld [vmem:[#allocation2 + $0x2c1] sm:$0xff]
  %v5521 = vld [vmem:[#allocation2 + $0x2d1] sm:$0xff]
  %v5522 = vld [vmem:[#allocation2 + $0x2d9] sm:$0xff]
  %v5523 = vld [vmem:[#allocation2 + $0x2e9] sm:$0xff]
  %v5524 = vld [vmem:[#allocation2 + $0x2f1] sm:$0xff]
  %v5525 = vld [vmem:[#allocation2 + $0x301] sm:$0xff]
  %v5526 = vld [vmem:[#allocation2 + $0x309] sm:$0xff]
  %v5527 = vld [vmem:[#allocation2 + $0x319] sm:$0xff]
  %v5528 = vld [vmem:[#allocation2 + $0x321] sm:$0xff]
  %s5529 = scalar_lea.vmem %s2, 128
  %v5530 = vld [vmem:[%s5529] sm:$0xff]
  %v5531 = vld [vmem:[%s5529 + $0x8] sm:$0xff]
  %v5532 = vld [vmem:[%s5529 + $0x10] sm:$0xff]
  %v5533 = vld [vmem:[%s5529 + $0x18] sm:$0xff]
  %v5534 = vld [vmem:[%s5529 + $0x20] sm:$0xff]
  %v5535 = vld [vmem:[%s5529 + $0x28] sm:$0xff]
  %v5536 = vld [vmem:[%s5529 + $0x30] sm:$0xff]
  %v5537 = vld [vmem:[%s5529 + $0x38] sm:$0xff]
  %v5538 = vld [vmem:[%s5529 + $0x40] sm:$0xff]
  %v5539 = vld [vmem:[%s5529 + $0x48] sm:$0xff]
  %v5540 = vld [vmem:[%s5529 + $0x50] sm:$0xff]
  %v5541 = vld [vmem:[%s5529 + $0x58] sm:$0xff]
  %v5542 = vld [vmem:[%s5529 + $0x60] sm:$0xff]
  %v5543 = vld [vmem:[%s5529 + $0x68] sm:$0xff]
  %v5544 = vld [vmem:[%s5529 + $0x70] sm:$0xff]
  %v5545 = vld [vmem:[%s5529 + $0x78] sm:$0xff]
  %5546 = vmatprep.subr.mxu0 0.0
  %5547 = vmatpush1.msra.mxu0 %v5545
  %5548 = vmatprep.subr.mxu0 0.0
  %5549 = vmatpush1.msra.mxu0 %v5544
  %5550 = vmatprep.subr.mxu0 0.0
  %5551 = vmatpush1.msra.mxu0 %v5543
  %5552 = vmatprep.subr.mxu0 0.0
  %5553 = vmatpush1.msra.mxu0 %v5542
  %5554 = vmatprep.subr.mxu0 0.0
  %5555 = vmatpush1.msra.mxu0 %v5541
  %5556 = vmatprep.subr.mxu0 0.0
  %5557 = vmatpush1.msra.mxu0 %v5540
  %5558 = vmatprep.subr.mxu0 0.0
  %5559 = vmatpush1.msra.mxu0 %v5539
  %5560 = vmatprep.subr.mxu0 0.0
  %5561 = vmatpush1.msra.mxu0 %v5538
  %5562 = vmatprep.subr.mxu0 0.0
  %5563 = vmatpush1.msra.mxu0 %v5537
  %5564 = vmatprep.subr.mxu0 0.0
  %5565 = vmatpush1.msra.mxu0 %v5536
  %5566 = vmatprep.subr.mxu0 0.0
  %5567 = vmatpush1.msra.mxu0 %v5535
  %5568 = vmatprep.subr.mxu0 0.0
  %5569 = vmatpush1.msra.mxu0 %v5534
  %5570 = vmatprep.subr.mxu0 0.0
  %5571 = vmatpush1.msra.mxu0 %v5533
  %5572 = vmatprep.subr.mxu0 0.0
  %5573 = vmatpush1.msra.mxu0 %v5532
  %5574 = vmatprep.subr.mxu0 0.0
  %5575 = vmatpush1.msra.mxu0 %v5531
  %5576 = vmatprep.subr.mxu0 0.0
  %5577 = vmatpush1.msra.mxu0 %v5530
  %5578 = vmatprep.subr.mxu0 0.0
  %5579 = vmatpush2.msra.mxu0 0.0
  %5580 = vmatprep.subr.mxu0 0.0
  %5581 = vmatpush2.msra.mxu0 0.0
  %5582 = vmatprep.subr.mxu0 0.0
  %5583 = vmatpush2.msra.mxu0 0.0
  %5584 = vmatprep.subr.mxu0 0.0
  %5585 = vmatpush2.msra.mxu0 0.0
  %5586 = vmatprep.subr.mxu0 0.0
  %5587 = vmatpush2.msra.mxu0 0.0
  %5588 = vmatprep.subr.mxu0 0.0
  %5589 = vmatpush2.msra.mxu0 0.0
  %5590 = vmatprep.subr.mxu0 0.0
  %5591 = vmatpush2.msra.mxu0 0.0
  %5592 = vmatprep.subr.mxu0 0.0
  %5593 = vmatpush2.msra.mxu0 0.0
  %5594 = vmatprep.subr.mxu0 0.0
  %5595 = vmatpush2.msra.mxu0 0.0
  %5596 = vmatprep.subr.mxu0 0.0
  %5597 = vmatpush2.msra.mxu0 0.0
  %5598 = vmatprep.subr.mxu0 0.0
  %5599 = vmatpush2.msra.mxu0 0.0
  %5600 = vmatprep.subr.mxu0 0.0
  %5601 = vmatpush2.msra.mxu0 0.0
  %5602 = vmatprep.subr.mxu0 0.0
  %5603 = vmatpush2.msra.mxu0 0.0
  %5604 = vmatprep.subr.mxu0 0.0
  %5605 = vmatpush2.msra.mxu0 0.0
  %5606 = vmatprep.subr.mxu0 0.0
  %5607 = vmatpush2.msra.mxu0 0.0
  %5608 = vmatprep.subr.mxu0 0.0
  %5609 = vmatpush2.msra.mxu0 0.0
  %5610 = vmatprep.mubr.f32.mxu0 0.0
  %5611 = vmatmul.mubr.f32.gmra.mxu0 %v5465
  %v5612 = vpop.f32.mrf.mxu0
  %v5613 = vadd.f32 0.0, %v5612
  %v5614 = vpop.f32.mrf.mxu0
  %5615 = vmatprep.mubr.f32.mxu0 0.0
  %5616 = vmatmul.mubr.f32.gmra.mxu0 %v5466
  %v5617 = vpop.f32.mrf.mxu0
  %v5618 = vadd.f32 0.0, %v5617
  %v5619 = vpop.f32.mrf.mxu0
  %5620 = vmatprep.mubr.f32.mxu0 0.0
  %5621 = vmatmul.mubr.f32.gmra.mxu0 %v5467
  %v5622 = vpop.f32.mrf.mxu0
  %v5623 = vadd.f32 0.0, %v5622
  %v5624 = vpop.f32.mrf.mxu0
  %5625 = vmatprep.mubr.f32.mxu0 0.0
  %5626 = vmatmul.mubr.f32.gmra.mxu0 %v5468
  %v5627 = vpop.f32.mrf.mxu0
  %v5628 = vadd.f32 0.0, %v5627
  %v5629 = vpop.f32.mrf.mxu0
  %5630 = vmatprep.mubr.f32.mxu0 0.0
  %5631 = vmatmul.mubr.f32.gmra.mxu0 %v5469
  %v5632 = vpop.f32.mrf.mxu0
  %v5633 = vadd.f32 0.0, %v5632
  %v5634 = vpop.f32.mrf.mxu0
  %5635 = vmatprep.mubr.f32.mxu0 0.0
  %5636 = vmatmul.mubr.f32.gmra.mxu0 %v5470
  %v5637 = vpop.f32.mrf.mxu0
  %v5638 = vadd.f32 0.0, %v5637
  %v5639 = vpop.f32.mrf.mxu0
  %5640 = vmatprep.mubr.f32.mxu0 0.0
  %5641 = vmatmul.mubr.f32.gmra.mxu0 %v5471
  %v5642 = vpop.f32.mrf.mxu0
  %v5643 = vadd.f32 0.0, %v5642
  %v5644 = vpop.f32.mrf.mxu0
  %5645 = vmatprep.mubr.f32.mxu0 0.0
  %5646 = vmatmul.mubr.f32.gmra.mxu0 %v5472
  %v5647 = vpop.f32.mrf.mxu0
  %v5648 = vadd.f32 0.0, %v5647
  %v5649 = vpop.f32.mrf.mxu0
  %5650 = vmatprep.mubr.f32.mxu0 0.0
  %5651 = vmatmul.mubr.f32.gmra.mxu0 %v5473
  %v5652 = vpop.f32.mrf.mxu0
  %v5653 = vadd.f32 0.0, %v5652
  %v5654 = vpop.f32.mrf.mxu0
  %5655 = vmatprep.mubr.f32.mxu0 0.0
  %5656 = vmatmul.mubr.f32.gmra.mxu0 %v5474
  %v5657 = vpop.f32.mrf.mxu0
  %v5658 = vadd.f32 0.0, %v5657
  %v5659 = vpop.f32.mrf.mxu0
  %5660 = vmatprep.mubr.f32.mxu0 0.0
  %5661 = vmatmul.mubr.f32.gmra.mxu0 %v5475
  %v5662 = vpop.f32.mrf.mxu0
  %v5663 = vadd.f32 0.0, %v5662
  %v5664 = vpop.f32.mrf.mxu0
  %5665 = vmatprep.mubr.f32.mxu0 0.0
  %5666 = vmatmul.mubr.f32.gmra.mxu0 %v5476
  %v5667 = vpop.f32.mrf.mxu0
  %v5668 = vadd.f32 0.0, %v5667
  %v5669 = vpop.f32.mrf.mxu0
  %5670 = vmatprep.mubr.f32.mxu0 0.0
  %5671 = vmatmul.mubr.f32.gmra.mxu0 %v5477
  %v5672 = vpop.f32.mrf.mxu0
  %v5673 = vadd.f32 0.0, %v5672
  %v5674 = vpop.f32.mrf.mxu0
  %5675 = vmatprep.mubr.f32.mxu0 0.0
  %5676 = vmatmul.mubr.f32.gmra.mxu0 %v5478
  %v5677 = vpop.f32.mrf.mxu0
  %v5678 = vadd.f32 0.0, %v5677
  %v5679 = vpop.f32.mrf.mxu0
  %5680 = vmatprep.mubr.f32.mxu0 0.0
  %5681 = vmatmul.mubr.f32.gmra.mxu0 %v5479
  %v5682 = vpop.f32.mrf.mxu0
  %v5683 = vadd.f32 0.0, %v5682
  %v5684 = vpop.f32.mrf.mxu0
  %5685 = vmatprep.mubr.f32.mxu0 0.0
  %5686 = vmatmul.mubr.f32.gmra.mxu0 %v5480
  %v5687 = vpop.f32.mrf.mxu0
  %v5688 = vadd.f32 0.0, %v5687
  %v5689 = vpop.f32.mrf.mxu0
  %5690 = vmatprep.mubr.f32.mxu0 0.0
  %5691 = vmatmul.mubr.f32.gmra.mxu0 %v5481
  %v5692 = vpop.f32.mrf.mxu0
  %v5693 = vadd.f32 0.0, %v5692
  %v5694 = vpop.f32.mrf.mxu0
  %5695 = vmatprep.mubr.f32.mxu0 0.0
  %5696 = vmatmul.mubr.f32.gmra.mxu0 %v5482
  %v5697 = vpop.f32.mrf.mxu0
  %v5698 = vadd.f32 0.0, %v5697
  %v5699 = vpop.f32.mrf.mxu0
  %5700 = vmatprep.mubr.f32.mxu0 0.0
  %5701 = vmatmul.mubr.f32.gmra.mxu0 %v5483
  %v5702 = vpop.f32.mrf.mxu0
  %v5703 = vadd.f32 0.0, %v5702
  %v5704 = vpop.f32.mrf.mxu0
  %5705 = vmatprep.mubr.f32.mxu0 0.0
  %5706 = vmatmul.mubr.f32.gmra.mxu0 %v5484
  %v5707 = vpop.f32.mrf.mxu0
  %v5708 = vadd.f32 0.0, %v5707
  %v5709 = vpop.f32.mrf.mxu0
  %5710 = vmatprep.mubr.f32.mxu0 0.0
  %5711 = vmatmul.mubr.f32.gmra.mxu0 %v5485
  %v5712 = vpop.f32.mrf.mxu0
  %v5713 = vadd.f32 0.0, %v5712
  %v5714 = vpop.f32.mrf.mxu0
  %5715 = vmatprep.mubr.f32.mxu0 0.0
  %5716 = vmatmul.mubr.f32.gmra.mxu0 %v5486
  %v5717 = vpop.f32.mrf.mxu0
  %v5718 = vadd.f32 0.0, %v5717
  %v5719 = vpop.f32.mrf.mxu0
  %5720 = vmatprep.mubr.f32.mxu0 0.0
  %5721 = vmatmul.mubr.f32.gmra.mxu0 %v5487
  %v5722 = vpop.f32.mrf.mxu0
  %v5723 = vadd.f32 0.0, %v5722
  %v5724 = vpop.f32.mrf.mxu0
  %5725 = vmatprep.mubr.f32.mxu0 0.0
  %5726 = vmatmul.mubr.f32.gmra.mxu0 %v5488
  %v5727 = vpop.f32.mrf.mxu0
  %v5728 = vadd.f32 0.0, %v5727
  %v5729 = vpop.f32.mrf.mxu0
  %5730 = vmatprep.mubr.f32.mxu0 0.0
  %5731 = vmatmul.mubr.f32.gmra.mxu0 %v5489
  %v5732 = vpop.f32.mrf.mxu0
  %v5733 = vadd.f32 0.0, %v5732
  %v5734 = vpop.f32.mrf.mxu0
  %5735 = vmatprep.mubr.f32.mxu0 0.0
  %5736 = vmatmul.mubr.f32.gmra.mxu0 %v5490
  %v5737 = vpop.f32.mrf.mxu0
  %v5738 = vadd.f32 0.0, %v5737
  %v5739 = vpop.f32.mrf.mxu0
  %5740 = vmatprep.mubr.f32.mxu0 0.0
  %5741 = vmatmul.mubr.f32.gmra.mxu0 %v5491
  %v5742 = vpop.f32.mrf.mxu0
  %v5743 = vadd.f32 0.0, %v5742
  %v5744 = vpop.f32.mrf.mxu0
  %5745 = vmatprep.mubr.f32.mxu0 0.0
  %5746 = vmatmul.mubr.f32.gmra.mxu0 %v5492
  %v5747 = vpop.f32.mrf.mxu0
  %v5748 = vadd.f32 0.0, %v5747
  %v5749 = vpop.f32.mrf.mxu0
  %5750 = vmatprep.mubr.f32.mxu0 0.0
  %5751 = vmatmul.mubr.f32.gmra.mxu0 %v5493
  %v5752 = vpop.f32.mrf.mxu0
  %v5753 = vadd.f32 0.0, %v5752
  %v5754 = vpop.f32.mrf.mxu0
  %5755 = vmatprep.mubr.f32.mxu0 0.0
  %5756 = vmatmul.mubr.f32.gmra.mxu0 %v5494
  %v5757 = vpop.f32.mrf.mxu0
  %v5758 = vadd.f32 0.0, %v5757
  %v5759 = vpop.f32.mrf.mxu0
  %5760 = vmatprep.mubr.f32.mxu0 0.0
  %5761 = vmatmul.mubr.f32.gmra.mxu0 %v5495
  %v5762 = vpop.f32.mrf.mxu0
  %v5763 = vadd.f32 0.0, %v5762
  %v5764 = vpop.f32.mrf.mxu0
  %5765 = vmatprep.mubr.f32.mxu0 0.0
  %5766 = vmatmul.mubr.f32.gmra.mxu0 %v5496
  %v5767 = vpop.f32.mrf.mxu0
  %v5768 = vadd.f32 0.0, %v5767
  %v5769 = vpop.f32.mrf.mxu0
  %5770 = vmatprep.mubr.f32.mxu0 0.0
  %5771 = vmatmul.mubr.f32.gmra.mxu0 %v5497
  %v5772 = vpop.f32.mrf.mxu0
  %v5773 = vadd.f32 0.0, %v5772
  %v5774 = vpop.f32.mrf.mxu0
  %5775 = vmatprep.mubr.f32.mxu0 0.0
  %5776 = vmatmul.mubr.f32.gmra.mxu0 %v5498
  %v5777 = vpop.f32.mrf.mxu0
  %v5778 = vadd.f32 0.0, %v5777
  %v5779 = vpop.f32.mrf.mxu0
  %5780 = vmatprep.mubr.f32.mxu0 0.0
  %5781 = vmatmul.mubr.f32.gmra.mxu0 %v5499
  %v5782 = vpop.f32.mrf.mxu0
  %v5783 = vadd.f32 0.0, %v5782
  %v5784 = vpop.f32.mrf.mxu0
  %5785 = vmatprep.mubr.f32.mxu0 0.0
  %5786 = vmatmul.mubr.f32.gmra.mxu0 %v5500
  %v5787 = vpop.f32.mrf.mxu0
  %v5788 = vadd.f32 0.0, %v5787
  %v5789 = vpop.f32.mrf.mxu0
  %5790 = vmatprep.mubr.f32.mxu0 0.0
  %5791 = vmatmul.mubr.f32.gmra.mxu0 %v5501
  %v5792 = vpop.f32.mrf.mxu0
  %v5793 = vadd.f32 0.0, %v5792
  %v5794 = vpop.f32.mrf.mxu0
  %5795 = vmatprep.mubr.f32.mxu0 0.0
  %5796 = vmatmul.mubr.f32.gmra.mxu0 %v5502
  %v5797 = vpop.f32.mrf.mxu0
  %v5798 = vadd.f32 0.0, %v5797
  %v5799 = vpop.f32.mrf.mxu0
  %5800 = vmatprep.mubr.f32.mxu0 0.0
  %5801 = vmatmul.mubr.f32.gmra.mxu0 %v5503
  %v5802 = vpop.f32.mrf.mxu0
  %v5803 = vadd.f32 0.0, %v5802
  %v5804 = vpop.f32.mrf.mxu0
  %5805 = vmatprep.mubr.f32.mxu0 0.0
  %5806 = vmatmul.mubr.f32.gmra.mxu0 %v5504
  %v5807 = vpop.f32.mrf.mxu0
  %v5808 = vadd.f32 0.0, %v5807
  %v5809 = vpop.f32.mrf.mxu0
  %5810 = vmatprep.mubr.f32.mxu0 0.0
  %5811 = vmatmul.mubr.f32.gmra.mxu0 %v5505
  %v5812 = vpop.f32.mrf.mxu0
  %v5813 = vadd.f32 0.0, %v5812
  %v5814 = vpop.f32.mrf.mxu0
  %5815 = vmatprep.mubr.f32.mxu0 0.0
  %5816 = vmatmul.mubr.f32.gmra.mxu0 %v5506
  %v5817 = vpop.f32.mrf.mxu0
  %v5818 = vadd.f32 0.0, %v5817
  %v5819 = vpop.f32.mrf.mxu0
  %5820 = vmatprep.mubr.f32.mxu0 0.0
  %5821 = vmatmul.mubr.f32.gmra.mxu0 %v5507
  %v5822 = vpop.f32.mrf.mxu0
  %v5823 = vadd.f32 0.0, %v5822
  %v5824 = vpop.f32.mrf.mxu0
  %5825 = vmatprep.mubr.f32.mxu0 0.0
  %5826 = vmatmul.mubr.f32.gmra.mxu0 %v5508
  %v5827 = vpop.f32.mrf.mxu0
  %v5828 = vadd.f32 0.0, %v5827
  %v5829 = vpop.f32.mrf.mxu0
  %5830 = vmatprep.mubr.f32.mxu0 0.0
  %5831 = vmatmul.mubr.f32.gmra.mxu0 %v5509
  %v5832 = vpop.f32.mrf.mxu0
  %v5833 = vadd.f32 0.0, %v5832
  %v5834 = vpop.f32.mrf.mxu0
  %5835 = vmatprep.mubr.f32.mxu0 0.0
  %5836 = vmatmul.mubr.f32.gmra.mxu0 %v5510
  %v5837 = vpop.f32.mrf.mxu0
  %v5838 = vadd.f32 0.0, %v5837
  %v5839 = vpop.f32.mrf.mxu0
  %5840 = vmatprep.mubr.f32.mxu0 0.0
  %5841 = vmatmul.mubr.f32.gmra.mxu0 %v5511
  %v5842 = vpop.f32.mrf.mxu0
  %v5843 = vadd.f32 0.0, %v5842
  %v5844 = vpop.f32.mrf.mxu0
  %5845 = vmatprep.mubr.f32.mxu0 0.0
  %5846 = vmatmul.mubr.f32.gmra.mxu0 %v5512
  %v5847 = vpop.f32.mrf.mxu0
  %v5848 = vadd.f32 0.0, %v5847
  %v5849 = vpop.f32.mrf.mxu0
  %5850 = vmatprep.mubr.f32.mxu0 0.0
  %5851 = vmatmul.mubr.f32.gmra.mxu0 %v5513
  %v5852 = vpop.f32.mrf.mxu0
  %v5853 = vadd.f32 0.0, %v5852
  %v5854 = vpop.f32.mrf.mxu0
  %5855 = vmatprep.mubr.f32.mxu0 0.0
  %5856 = vmatmul.mubr.f32.gmra.mxu0 %v5514
  %v5857 = vpop.f32.mrf.mxu0
  %v5858 = vadd.f32 0.0, %v5857
  %v5859 = vpop.f32.mrf.mxu0
  %5860 = vmatprep.mubr.f32.mxu0 0.0
  %5861 = vmatmul.mubr.f32.gmra.mxu0 %v5515
  %v5862 = vpop.f32.mrf.mxu0
  %v5863 = vadd.f32 0.0, %v5862
  %v5864 = vpop.f32.mrf.mxu0
  %5865 = vmatprep.mubr.f32.mxu0 0.0
  %5866 = vmatmul.mubr.f32.gmra.mxu0 %v5516
  %v5867 = vpop.f32.mrf.mxu0
  %v5868 = vadd.f32 0.0, %v5867
  %v5869 = vpop.f32.mrf.mxu0
  %5870 = vmatprep.mubr.f32.mxu0 0.0
  %5871 = vmatmul.mubr.f32.gmra.mxu0 %v5517
  %v5872 = vpop.f32.mrf.mxu0
  %v5873 = vadd.f32 0.0, %v5872
  %v5874 = vpop.f32.mrf.mxu0
  %5875 = vmatprep.mubr.f32.mxu0 0.0
  %5876 = vmatmul.mubr.f32.gmra.mxu0 %v5518
  %v5877 = vpop.f32.mrf.mxu0
  %v5878 = vadd.f32 0.0, %v5877
  %v5879 = vpop.f32.mrf.mxu0
  %5880 = vmatprep.mubr.f32.mxu0 0.0
  %5881 = vmatmul.mubr.f32.gmra.mxu0 %v5519
  %v5882 = vpop.f32.mrf.mxu0
  %v5883 = vadd.f32 0.0, %v5882
  %v5884 = vpop.f32.mrf.mxu0
  %5885 = vmatprep.mubr.f32.mxu0 0.0
  %5886 = vmatmul.mubr.f32.gmra.mxu0 %v5520
  %v5887 = vpop.f32.mrf.mxu0
  %v5888 = vadd.f32 0.0, %v5887
  %v5889 = vpop.f32.mrf.mxu0
  %5890 = vmatprep.mubr.f32.mxu0 0.0
  %5891 = vmatmul.mubr.f32.gmra.mxu0 %v5521
  %v5892 = vpop.f32.mrf.mxu0
  %v5893 = vadd.f32 0.0, %v5892
  %v5894 = vpop.f32.mrf.mxu0
  %5895 = vmatprep.mubr.f32.mxu0 0.0
  %5896 = vmatmul.mubr.f32.gmra.mxu0 %v5522
  %v5897 = vpop.f32.mrf.mxu0
  %v5898 = vadd.f32 0.0, %v5897
  %v5899 = vpop.f32.mrf.mxu0
  %5900 = vmatprep.mubr.f32.mxu0 0.0
  %5901 = vmatmul.mubr.f32.gmra.mxu0 %v5523
  %v5902 = vpop.f32.mrf.mxu0
  %v5903 = vadd.f32 0.0, %v5902
  %v5904 = vpop.f32.mrf.mxu0
  %5905 = vmatprep.mubr.f32.mxu0 0.0
  %5906 = vmatmul.mubr.f32.gmra.mxu0 %v5524
  %v5907 = vpop.f32.mrf.mxu0
  %v5908 = vadd.f32 0.0, %v5907
  %v5909 = vpop.f32.mrf.mxu0
  %5910 = vmatprep.mubr.f32.mxu0 0.0
  %5911 = vmatmul.mubr.f32.gmra.mxu0 %v5525
  %v5912 = vpop.f32.mrf.mxu0
  %v5913 = vadd.f32 0.0, %v5912
  %v5914 = vpop.f32.mrf.mxu0
  %5915 = vmatprep.mubr.f32.mxu0 0.0
  %5916 = vmatmul.mubr.f32.gmra.mxu0 %v5526
  %v5917 = vpop.f32.mrf.mxu0
  %v5918 = vadd.f32 0.0, %v5917
  %v5919 = vpop.f32.mrf.mxu0
  %5920 = vmatprep.mubr.f32.mxu0 0.0
  %5921 = vmatmul.mubr.f32.gmra.mxu0 %v5527
  %v5922 = vpop.f32.mrf.mxu0
  %v5923 = vadd.f32 0.0, %v5922
  %v5924 = vpop.f32.mrf.mxu0
  %5925 = vmatprep.mubr.f32.mxu0 0.0
  %5926 = vmatmul.mubr.f32.gmra.mxu0 %v5528
  %v5927 = vpop.f32.mrf.mxu0
  %v5928 = vadd.f32 0.0, %v5927
  %v5929 = vpop.f32.mrf.mxu0
  %5930 = vdwg.mxu0
  %5931 = vmatprep.subr.mxu0 0.0
  %5932 = vmatpush1.msra.mxu0 %v5464
  %5933 = vmatprep.subr.mxu0 0.0
  %5934 = vmatpush1.msra.mxu0 %v5463
  %5935 = vmatprep.subr.mxu0 0.0
  %5936 = vmatpush1.msra.mxu0 %v5462
  %5937 = vmatprep.subr.mxu0 0.0
  %5938 = vmatpush1.msra.mxu0 %v5461
  %5939 = vmatprep.subr.mxu0 0.0
  %5940 = vmatpush1.msra.mxu0 %v5460
  %5941 = vmatprep.subr.mxu0 0.0
  %5942 = vmatpush1.msra.mxu0 %v5459
  %5943 = vmatprep.subr.mxu0 0.0
  %5944 = vmatpush1.msra.mxu0 %v5458
  %5945 = vmatprep.subr.mxu0 0.0
  %5946 = vmatpush1.msra.mxu0 %v5457
  %5947 = vmatprep.subr.mxu0 0.0
  %5948 = vmatpush1.msra.mxu0 %v5456
  %5949 = vmatprep.subr.mxu0 0.0
  %5950 = vmatpush1.msra.mxu0 %v5455
  %5951 = vmatprep.subr.mxu0 0.0
  %5952 = vmatpush1.msra.mxu0 %v5454
  %5953 = vmatprep.subr.mxu0 0.0
  %5954 = vmatpush1.msra.mxu0 %v5453
  %5955 = vmatprep.subr.mxu0 0.0
  %5956 = vmatpush1.msra.mxu0 %v5452
  %5957 = vmatprep.subr.mxu0 0.0
  %5958 = vmatpush1.msra.mxu0 %v5451
  %5959 = vmatprep.subr.mxu0 0.0
  %5960 = vmatpush1.msra.mxu0 %v5450
  %5961 = vmatprep.subr.mxu0 0.0
  %5962 = vmatpush1.msra.mxu0 %v5449
  %5963 = vmatprep.subr.mxu0 0.0
  %5964 = vmatpush2.msra.mxu0 0.0
  %5965 = vmatprep.subr.mxu0 0.0
  %5966 = vmatpush2.msra.mxu0 0.0
  %5967 = vmatprep.subr.mxu0 0.0
  %5968 = vmatpush2.msra.mxu0 0.0
  %5969 = vmatprep.subr.mxu0 0.0
  %5970 = vmatpush2.msra.mxu0 0.0
  %5971 = vmatprep.subr.mxu0 0.0
  %5972 = vmatpush2.msra.mxu0 0.0
  %5973 = vmatprep.subr.mxu0 0.0
  %5974 = vmatpush2.msra.mxu0 0.0
  %5975 = vmatprep.subr.mxu0 0.0
  %5976 = vmatpush2.msra.mxu0 0.0
  %5977 = vmatprep.subr.mxu0 0.0
  %5978 = vmatpush2.msra.mxu0 0.0
  %5979 = vmatprep.subr.mxu0 0.0
  %5980 = vmatpush2.msra.mxu0 0.0
  %5981 = vmatprep.subr.mxu0 0.0
  %5982 = vmatpush2.msra.mxu0 0.0
  %5983 = vmatprep.subr.mxu0 0.0
  %5984 = vmatpush2.msra.mxu0 0.0
  %5985 = vmatprep.subr.mxu0 0.0
  %5986 = vmatpush2.msra.mxu0 0.0
  %5987 = vmatprep.subr.mxu0 0.0
  %5988 = vmatpush2.msra.mxu0 0.0
  %5989 = vmatprep.subr.mxu0 0.0
  %5990 = vmatpush2.msra.mxu0 0.0
  %5991 = vmatprep.subr.mxu0 0.0
  %5992 = vmatpush2.msra.mxu0 0.0
  %5993 = vmatprep.subr.mxu0 0.0
  %5994 = vmatpush2.msra.mxu0 0.0
  %5995 = vmatprep.mubr.f32.mxu0 0.0
  %5996 = vmatmul.mubr.f32.gmra.mxu0 %v5385
  %v5997 = vpop.f32.mrf.mxu0
  %v5998 = vadd.f32 %v5613, %v5997
  %v5999 = vpop.f32.mrf.mxu0
  %6000 = vmatprep.mubr.f32.mxu0 0.0
  %6001 = vmatmul.mubr.f32.gmra.mxu0 %v5386
  %v6002 = vpop.f32.mrf.mxu0
  %v6003 = vadd.f32 %v5618, %v6002
  %v6004 = vpop.f32.mrf.mxu0
  %6005 = vmatprep.mubr.f32.mxu0 0.0
  %6006 = vmatmul.mubr.f32.gmra.mxu0 %v5387
  %v6007 = vpop.f32.mrf.mxu0
  %v6008 = vadd.f32 %v5623, %v6007
  %v6009 = vpop.f32.mrf.mxu0
  %6010 = vmatprep.mubr.f32.mxu0 0.0
  %6011 = vmatmul.mubr.f32.gmra.mxu0 %v5388
  %v6012 = vpop.f32.mrf.mxu0
  %v6013 = vadd.f32 %v5628, %v6012
  %v6014 = vpop.f32.mrf.mxu0
  %6015 = vmatprep.mubr.f32.mxu0 0.0
  %6016 = vmatmul.mubr.f32.gmra.mxu0 %v5389
  %v6017 = vpop.f32.mrf.mxu0
  %v6018 = vadd.f32 %v5633, %v6017
  %v6019 = vpop.f32.mrf.mxu0
  %6020 = vmatprep.mubr.f32.mxu0 0.0
  %6021 = vmatmul.mubr.f32.gmra.mxu0 %v5390
  %v6022 = vpop.f32.mrf.mxu0
  %v6023 = vadd.f32 %v5638, %v6022
  %v6024 = vpop.f32.mrf.mxu0
  %6025 = vmatprep.mubr.f32.mxu0 0.0
  %6026 = vmatmul.mubr.f32.gmra.mxu0 %v5391
  %v6027 = vpop.f32.mrf.mxu0
  %v6028 = vadd.f32 %v5643, %v6027
  %v6029 = vpop.f32.mrf.mxu0
  %6030 = vmatprep.mubr.f32.mxu0 0.0
  %6031 = vmatmul.mubr.f32.gmra.mxu0 %v5392
  %v6032 = vpop.f32.mrf.mxu0
  %v6033 = vadd.f32 %v5648, %v6032
  %v6034 = vpop.f32.mrf.mxu0
  %6035 = vmatprep.mubr.f32.mxu0 0.0
  %6036 = vmatmul.mubr.f32.gmra.mxu0 %v5393
  %v6037 = vpop.f32.mrf.mxu0
  %v6038 = vadd.f32 %v5653, %v6037
  %v6039 = vpop.f32.mrf.mxu0
  %6040 = vmatprep.mubr.f32.mxu0 0.0
  %6041 = vmatmul.mubr.f32.gmra.mxu0 %v5394
  %v6042 = vpop.f32.mrf.mxu0
  %v6043 = vadd.f32 %v5658, %v6042
  %v6044 = vpop.f32.mrf.mxu0
  %6045 = vmatprep.mubr.f32.mxu0 0.0
  %6046 = vmatmul.mubr.f32.gmra.mxu0 %v5395
  %v6047 = vpop.f32.mrf.mxu0
  %v6048 = vadd.f32 %v5663, %v6047
  %v6049 = vpop.f32.mrf.mxu0
  %6050 = vmatprep.mubr.f32.mxu0 0.0
  %6051 = vmatmul.mubr.f32.gmra.mxu0 %v5396
  %v6052 = vpop.f32.mrf.mxu0
  %v6053 = vadd.f32 %v5668, %v6052
  %v6054 = vpop.f32.mrf.mxu0
  %6055 = vmatprep.mubr.f32.mxu0 0.0
  %6056 = vmatmul.mubr.f32.gmra.mxu0 %v5397
  %v6057 = vpop.f32.mrf.mxu0
  %v6058 = vadd.f32 %v5673, %v6057
  %v6059 = vpop.f32.mrf.mxu0
  %6060 = vmatprep.mubr.f32.mxu0 0.0
  %6061 = vmatmul.mubr.f32.gmra.mxu0 %v5398
  %v6062 = vpop.f32.mrf.mxu0
  %v6063 = vadd.f32 %v5678, %v6062
  %v6064 = vpop.f32.mrf.mxu0
  %6065 = vmatprep.mubr.f32.mxu0 0.0
  %6066 = vmatmul.mubr.f32.gmra.mxu0 %v5399
  %v6067 = vpop.f32.mrf.mxu0
  %v6068 = vadd.f32 %v5683, %v6067
  %v6069 = vpop.f32.mrf.mxu0
  %6070 = vmatprep.mubr.f32.mxu0 0.0
  %6071 = vmatmul.mubr.f32.gmra.mxu0 %v5400
  %v6072 = vpop.f32.mrf.mxu0
  %v6073 = vadd.f32 %v5688, %v6072
  %v6074 = vpop.f32.mrf.mxu0
  %6075 = vmatprep.mubr.f32.mxu0 0.0
  %6076 = vmatmul.mubr.f32.gmra.mxu0 %v5401
  %v6077 = vpop.f32.mrf.mxu0
  %v6078 = vadd.f32 %v5693, %v6077
  %v6079 = vpop.f32.mrf.mxu0
  %6080 = vmatprep.mubr.f32.mxu0 0.0
  %6081 = vmatmul.mubr.f32.gmra.mxu0 %v5402
  %v6082 = vpop.f32.mrf.mxu0
  %v6083 = vadd.f32 %v5698, %v6082
  %v6084 = vpop.f32.mrf.mxu0
  %6085 = vmatprep.mubr.f32.mxu0 0.0
  %6086 = vmatmul.mubr.f32.gmra.mxu0 %v5403
  %v6087 = vpop.f32.mrf.mxu0
  %v6088 = vadd.f32 %v5703, %v6087
  %v6089 = vpop.f32.mrf.mxu0
  %6090 = vmatprep.mubr.f32.mxu0 0.0
  %6091 = vmatmul.mubr.f32.gmra.mxu0 %v5404
  %v6092 = vpop.f32.mrf.mxu0
  %v6093 = vadd.f32 %v5708, %v6092
  %v6094 = vpop.f32.mrf.mxu0
  %6095 = vmatprep.mubr.f32.mxu0 0.0
  %6096 = vmatmul.mubr.f32.gmra.mxu0 %v5405
  %v6097 = vpop.f32.mrf.mxu0
  %v6098 = vadd.f32 %v5713, %v6097
  %v6099 = vpop.f32.mrf.mxu0
  %6100 = vmatprep.mubr.f32.mxu0 0.0
  %6101 = vmatmul.mubr.f32.gmra.mxu0 %v5406
  %v6102 = vpop.f32.mrf.mxu0
  %v6103 = vadd.f32 %v5718, %v6102
  %v6104 = vpop.f32.mrf.mxu0
  %6105 = vmatprep.mubr.f32.mxu0 0.0
  %6106 = vmatmul.mubr.f32.gmra.mxu0 %v5407
  %v6107 = vpop.f32.mrf.mxu0
  %v6108 = vadd.f32 %v5723, %v6107
  %v6109 = vpop.f32.mrf.mxu0
  %6110 = vmatprep.mubr.f32.mxu0 0.0
  %6111 = vmatmul.mubr.f32.gmra.mxu0 %v5408
  %v6112 = vpop.f32.mrf.mxu0
  %v6113 = vadd.f32 %v5728, %v6112
  %v6114 = vpop.f32.mrf.mxu0
  %6115 = vmatprep.mubr.f32.mxu0 0.0
  %6116 = vmatmul.mubr.f32.gmra.mxu0 %v5409
  %v6117 = vpop.f32.mrf.mxu0
  %v6118 = vadd.f32 %v5733, %v6117
  %v6119 = vpop.f32.mrf.mxu0
  %6120 = vmatprep.mubr.f32.mxu0 0.0
  %6121 = vmatmul.mubr.f32.gmra.mxu0 %v5410
  %v6122 = vpop.f32.mrf.mxu0
  %v6123 = vadd.f32 %v5738, %v6122
  %v6124 = vpop.f32.mrf.mxu0
  %6125 = vmatprep.mubr.f32.mxu0 0.0
  %6126 = vmatmul.mubr.f32.gmra.mxu0 %v5411
  %v6127 = vpop.f32.mrf.mxu0
  %v6128 = vadd.f32 %v5743, %v6127
  %v6129 = vpop.f32.mrf.mxu0
  %6130 = vmatprep.mubr.f32.mxu0 0.0
  %6131 = vmatmul.mubr.f32.gmra.mxu0 %v5412
  %v6132 = vpop.f32.mrf.mxu0
  %v6133 = vadd.f32 %v5748, %v6132
  %v6134 = vpop.f32.mrf.mxu0
  %6135 = vmatprep.mubr.f32.mxu0 0.0
  %6136 = vmatmul.mubr.f32.gmra.mxu0 %v5413
  %v6137 = vpop.f32.mrf.mxu0
  %v6138 = vadd.f32 %v5753, %v6137
  %v6139 = vpop.f32.mrf.mxu0
  %6140 = vmatprep.mubr.f32.mxu0 0.0
  %6141 = vmatmul.mubr.f32.gmra.mxu0 %v5414
  %v6142 = vpop.f32.mrf.mxu0
  %v6143 = vadd.f32 %v5758, %v6142
  %v6144 = vpop.f32.mrf.mxu0
  %6145 = vmatprep.mubr.f32.mxu0 0.0
  %6146 = vmatmul.mubr.f32.gmra.mxu0 %v5415
  %v6147 = vpop.f32.mrf.mxu0
  %v6148 = vadd.f32 %v5763, %v6147
  %v6149 = vpop.f32.mrf.mxu0
  %6150 = vmatprep.mubr.f32.mxu0 0.0
  %6151 = vmatmul.mubr.f32.gmra.mxu0 %v5416
  %v6152 = vpop.f32.mrf.mxu0
  %v6153 = vadd.f32 %v5768, %v6152
  %v6154 = vpop.f32.mrf.mxu0
  %6155 = vmatprep.mubr.f32.mxu0 0.0
  %6156 = vmatmul.mubr.f32.gmra.mxu0 %v5417
  %v6157 = vpop.f32.mrf.mxu0
  %v6158 = vadd.f32 %v5773, %v6157
  %v6159 = vpop.f32.mrf.mxu0
  %6160 = vmatprep.mubr.f32.mxu0 0.0
  %6161 = vmatmul.mubr.f32.gmra.mxu0 %v5418
  %v6162 = vpop.f32.mrf.mxu0
  %v6163 = vadd.f32 %v5778, %v6162
  %v6164 = vpop.f32.mrf.mxu0
  %6165 = vmatprep.mubr.f32.mxu0 0.0
  %6166 = vmatmul.mubr.f32.gmra.mxu0 %v5419
  %v6167 = vpop.f32.mrf.mxu0
  %v6168 = vadd.f32 %v5783, %v6167
  %v6169 = vpop.f32.mrf.mxu0
  %6170 = vmatprep.mubr.f32.mxu0 0.0
  %6171 = vmatmul.mubr.f32.gmra.mxu0 %v5420
  %v6172 = vpop.f32.mrf.mxu0
  %v6173 = vadd.f32 %v5788, %v6172
  %v6174 = vpop.f32.mrf.mxu0
  %6175 = vmatprep.mubr.f32.mxu0 0.0
  %6176 = vmatmul.mubr.f32.gmra.mxu0 %v5421
  %v6177 = vpop.f32.mrf.mxu0
  %v6178 = vadd.f32 %v5793, %v6177
  %v6179 = vpop.f32.mrf.mxu0
  %6180 = vmatprep.mubr.f32.mxu0 0.0
  %6181 = vmatmul.mubr.f32.gmra.mxu0 %v5422
  %v6182 = vpop.f32.mrf.mxu0
  %v6183 = vadd.f32 %v5798, %v6182
  %v6184 = vpop.f32.mrf.mxu0
  %6185 = vmatprep.mubr.f32.mxu0 0.0
  %6186 = vmatmul.mubr.f32.gmra.mxu0 %v5423
  %v6187 = vpop.f32.mrf.mxu0
  %v6188 = vadd.f32 %v5803, %v6187
  %v6189 = vpop.f32.mrf.mxu0
  %6190 = vmatprep.mubr.f32.mxu0 0.0
  %6191 = vmatmul.mubr.f32.gmra.mxu0 %v5424
  %v6192 = vpop.f32.mrf.mxu0
  %v6193 = vadd.f32 %v5808, %v6192
  %v6194 = vpop.f32.mrf.mxu0
  %6195 = vmatprep.mubr.f32.mxu0 0.0
  %6196 = vmatmul.mubr.f32.gmra.mxu0 %v5425
  %v6197 = vpop.f32.mrf.mxu0
  %v6198 = vadd.f32 %v5813, %v6197
  %v6199 = vpop.f32.mrf.mxu0
  %6200 = vmatprep.mubr.f32.mxu0 0.0
  %6201 = vmatmul.mubr.f32.gmra.mxu0 %v5426
  %v6202 = vpop.f32.mrf.mxu0
  %v6203 = vadd.f32 %v5818, %v6202
  %v6204 = vpop.f32.mrf.mxu0
  %6205 = vmatprep.mubr.f32.mxu0 0.0
  %6206 = vmatmul.mubr.f32.gmra.mxu0 %v5427
  %v6207 = vpop.f32.mrf.mxu0
  %v6208 = vadd.f32 %v5823, %v6207
  %v6209 = vpop.f32.mrf.mxu0
  %6210 = vmatprep.mubr.f32.mxu0 0.0
  %6211 = vmatmul.mubr.f32.gmra.mxu0 %v5428
  %v6212 = vpop.f32.mrf.mxu0
  %v6213 = vadd.f32 %v5828, %v6212
  %v6214 = vpop.f32.mrf.mxu0
  %6215 = vmatprep.mubr.f32.mxu0 0.0
  %6216 = vmatmul.mubr.f32.gmra.mxu0 %v5429
  %v6217 = vpop.f32.mrf.mxu0
  %v6218 = vadd.f32 %v5833, %v6217
  %v6219 = vpop.f32.mrf.mxu0
  %6220 = vmatprep.mubr.f32.mxu0 0.0
  %6221 = vmatmul.mubr.f32.gmra.mxu0 %v5430
  %v6222 = vpop.f32.mrf.mxu0
  %v6223 = vadd.f32 %v5838, %v6222
  %v6224 = vpop.f32.mrf.mxu0
  %6225 = vmatprep.mubr.f32.mxu0 0.0
  %6226 = vmatmul.mubr.f32.gmra.mxu0 %v5431
  %v6227 = vpop.f32.mrf.mxu0
  %v6228 = vadd.f32 %v5843, %v6227
  %v6229 = vpop.f32.mrf.mxu0
  %6230 = vmatprep.mubr.f32.mxu0 0.0
  %6231 = vmatmul.mubr.f32.gmra.mxu0 %v5432
  %v6232 = vpop.f32.mrf.mxu0
  %v6233 = vadd.f32 %v5848, %v6232
  %v6234 = vpop.f32.mrf.mxu0
  %6235 = vmatprep.mubr.f32.mxu0 0.0
  %6236 = vmatmul.mubr.f32.gmra.mxu0 %v5433
  %v6237 = vpop.f32.mrf.mxu0
  %v6238 = vadd.f32 %v5853, %v6237
  %v6239 = vpop.f32.mrf.mxu0
  %6240 = vmatprep.mubr.f32.mxu0 0.0
  %6241 = vmatmul.mubr.f32.gmra.mxu0 %v5434
  %v6242 = vpop.f32.mrf.mxu0
  %v6243 = vadd.f32 %v5858, %v6242
  %v6244 = vpop.f32.mrf.mxu0
  %6245 = vmatprep.mubr.f32.mxu0 0.0
  %6246 = vmatmul.mubr.f32.gmra.mxu0 %v5435
  %v6247 = vpop.f32.mrf.mxu0
  %v6248 = vadd.f32 %v5863, %v6247
  %v6249 = vpop.f32.mrf.mxu0
  %6250 = vmatprep.mubr.f32.mxu0 0.0
  %6251 = vmatmul.mubr.f32.gmra.mxu0 %v5436
  %v6252 = vpop.f32.mrf.mxu0
  %v6253 = vadd.f32 %v5868, %v6252
  %v6254 = vpop.f32.mrf.mxu0
  %6255 = vmatprep.mubr.f32.mxu0 0.0
  %6256 = vmatmul.mubr.f32.gmra.mxu0 %v5437
  %v6257 = vpop.f32.mrf.mxu0
  %v6258 = vadd.f32 %v5873, %v6257
  %v6259 = vpop.f32.mrf.mxu0
  %6260 = vmatprep.mubr.f32.mxu0 0.0
  %6261 = vmatmul.mubr.f32.gmra.mxu0 %v5438
  %v6262 = vpop.f32.mrf.mxu0
  %v6263 = vadd.f32 %v5878, %v6262
  %v6264 = vpop.f32.mrf.mxu0
  %6265 = vmatprep.mubr.f32.mxu0 0.0
  %6266 = vmatmul.mubr.f32.gmra.mxu0 %v5439
  %v6267 = vpop.f32.mrf.mxu0
  %v6268 = vadd.f32 %v5883, %v6267
  %v6269 = vpop.f32.mrf.mxu0
  %6270 = vmatprep.mubr.f32.mxu0 0.0
  %6271 = vmatmul.mubr.f32.gmra.mxu0 %v5440
  %v6272 = vpop.f32.mrf.mxu0
  %v6273 = vadd.f32 %v5888, %v6272
  %v6274 = vpop.f32.mrf.mxu0
  %6275 = vmatprep.mubr.f32.mxu0 0.0
  %6276 = vmatmul.mubr.f32.gmra.mxu0 %v5441
  %v6277 = vpop.f32.mrf.mxu0
  %v6278 = vadd.f32 %v5893, %v6277
  %v6279 = vpop.f32.mrf.mxu0
  %6280 = vmatprep.mubr.f32.mxu0 0.0
  %6281 = vmatmul.mubr.f32.gmra.mxu0 %v5442
  %v6282 = vpop.f32.mrf.mxu0
  %v6283 = vadd.f32 %v5898, %v6282
  %v6284 = vpop.f32.mrf.mxu0
  %6285 = vmatprep.mubr.f32.mxu0 0.0
  %6286 = vmatmul.mubr.f32.gmra.mxu0 %v5443
  %v6287 = vpop.f32.mrf.mxu0
  %v6288 = vadd.f32 %v5903, %v6287
  %v6289 = vpop.f32.mrf.mxu0
  %6290 = vmatprep.mubr.f32.mxu0 0.0
  %6291 = vmatmul.mubr.f32.gmra.mxu0 %v5444
  %v6292 = vpop.f32.mrf.mxu0
  %v6293 = vadd.f32 %v5908, %v6292
  %v6294 = vpop.f32.mrf.mxu0
  %6295 = vmatprep.mubr.f32.mxu0 0.0
  %6296 = vmatmul.mubr.f32.gmra.mxu0 %v5445
  %v6297 = vpop.f32.mrf.mxu0
  %v6298 = vadd.f32 %v5913, %v6297
  %v6299 = vpop.f32.mrf.mxu0
  %6300 = vmatprep.mubr.f32.mxu0 0.0
  %6301 = vmatmul.mubr.f32.gmra.mxu0 %v5446
  %v6302 = vpop.f32.mrf.mxu0
  %v6303 = vadd.f32 %v5918, %v6302
  %v6304 = vpop.f32.mrf.mxu0
  %6305 = vmatprep.mubr.f32.mxu0 0.0
  %6306 = vmatmul.mubr.f32.gmra.mxu0 %v5447
  %v6307 = vpop.f32.mrf.mxu0
  %v6308 = vadd.f32 %v5923, %v6307
  %v6309 = vpop.f32.mrf.mxu0
  %6310 = vmatprep.mubr.f32.mxu0 0.0
  %6311 = vmatmul.mubr.f32.gmra.mxu0 %v5448
  %v6312 = vpop.f32.mrf.mxu0
  %v6313 = vadd.f32 %v5928, %v6312
  %v6314 = vpop.f32.mrf.mxu0
  %6315 = vdwg.mxu0
  %v6316 = vld [vmem:[#allocation2 + $0x2] sm:$0xff]
  %v6317 = vld [vmem:[#allocation2 + $0xa] sm:$0xff]
  %v6318 = vld [vmem:[#allocation2 + $0x1a] sm:$0xff]
  %v6319 = vld [vmem:[#allocation2 + $0x22] sm:$0xff]
  %v6320 = vld [vmem:[#allocation2 + $0x32] sm:$0xff]
  %v6321 = vld [vmem:[#allocation2 + $0x3a] sm:$0xff]
  %v6322 = vld [vmem:[#allocation2 + $0x4a] sm:$0xff]
  %v6323 = vld [vmem:[#allocation2 + $0x52] sm:$0xff]
  %v6324 = vld [vmem:[#allocation2 + $0x62] sm:$0xff]
  %v6325 = vld [vmem:[#allocation2 + $0x6a] sm:$0xff]
  %v6326 = vld [vmem:[#allocation2 + $0x7a] sm:$0xff]
  %v6327 = vld [vmem:[#allocation2 + $0x82] sm:$0xff]
  %v6328 = vld [vmem:[#allocation2 + $0x92] sm:$0xff]
  %v6329 = vld [vmem:[#allocation2 + $0x9a] sm:$0xff]
  %v6330 = vld [vmem:[#allocation2 + $0xaa] sm:$0xff]
  %v6331 = vld [vmem:[#allocation2 + $0xb2] sm:$0xff]
  %v6332 = vld [vmem:[#allocation2 + $0xc2] sm:$0xff]
  %v6333 = vld [vmem:[#allocation2 + $0xca] sm:$0xff]
  %v6334 = vld [vmem:[#allocation2 + $0xda] sm:$0xff]
  %v6335 = vld [vmem:[#allocation2 + $0xe2] sm:$0xff]
  %v6336 = vld [vmem:[#allocation2 + $0xf2] sm:$0xff]
  %v6337 = vld [vmem:[#allocation2 + $0xfa] sm:$0xff]
  %v6338 = vld [vmem:[#allocation2 + $0x10a] sm:$0xff]
  %v6339 = vld [vmem:[#allocation2 + $0x112] sm:$0xff]
  %v6340 = vld [vmem:[#allocation2 + $0x122] sm:$0xff]
  %v6341 = vld [vmem:[#allocation2 + $0x12a] sm:$0xff]
  %v6342 = vld [vmem:[#allocation2 + $0x13a] sm:$0xff]
  %v6343 = vld [vmem:[#allocation2 + $0x142] sm:$0xff]
  %v6344 = vld [vmem:[#allocation2 + $0x152] sm:$0xff]
  %v6345 = vld [vmem:[#allocation2 + $0x15a] sm:$0xff]
  %v6346 = vld [vmem:[#allocation2 + $0x16a] sm:$0xff]
  %v6347 = vld [vmem:[#allocation2 + $0x172] sm:$0xff]
  %v6348 = vld [vmem:[#allocation2 + $0x1b2] sm:$0xff]
  %v6349 = vld [vmem:[#allocation2 + $0x1ba] sm:$0xff]
  %v6350 = vld [vmem:[#allocation2 + $0x1ca] sm:$0xff]
  %v6351 = vld [vmem:[#allocation2 + $0x1d2] sm:$0xff]
  %v6352 = vld [vmem:[#allocation2 + $0x1e2] sm:$0xff]
  %v6353 = vld [vmem:[#allocation2 + $0x1ea] sm:$0xff]
  %v6354 = vld [vmem:[#allocation2 + $0x1fa] sm:$0xff]
  %v6355 = vld [vmem:[#allocation2 + $0x202] sm:$0xff]
  %v6356 = vld [vmem:[#allocation2 + $0x212] sm:$0xff]
  %v6357 = vld [vmem:[#allocation2 + $0x21a] sm:$0xff]
  %v6358 = vld [vmem:[#allocation2 + $0x22a] sm:$0xff]
  %v6359 = vld [vmem:[#allocation2 + $0x232] sm:$0xff]
  %v6360 = vld [vmem:[#allocation2 + $0x242] sm:$0xff]
  %v6361 = vld [vmem:[#allocation2 + $0x24a] sm:$0xff]
  %v6362 = vld [vmem:[#allocation2 + $0x25a] sm:$0xff]
  %v6363 = vld [vmem:[#allocation2 + $0x262] sm:$0xff]
  %v6364 = vld [vmem:[#allocation2 + $0x272] sm:$0xff]
  %v6365 = vld [vmem:[#allocation2 + $0x27a] sm:$0xff]
  %v6366 = vld [vmem:[#allocation2 + $0x28a] sm:$0xff]
  %v6367 = vld [vmem:[#allocation2 + $0x292] sm:$0xff]
  %v6368 = vld [vmem:[#allocation2 + $0x2a2] sm:$0xff]
  %v6369 = vld [vmem:[#allocation2 + $0x2aa] sm:$0xff]
  %v6370 = vld [vmem:[#allocation2 + $0x2ba] sm:$0xff]
  %v6371 = vld [vmem:[#allocation2 + $0x2c2] sm:$0xff]
  %v6372 = vld [vmem:[#allocation2 + $0x2d2] sm:$0xff]
  %v6373 = vld [vmem:[#allocation2 + $0x2da] sm:$0xff]
  %v6374 = vld [vmem:[#allocation2 + $0x2ea] sm:$0xff]
  %v6375 = vld [vmem:[#allocation2 + $0x2f2] sm:$0xff]
  %v6376 = vld [vmem:[#allocation2 + $0x302] sm:$0xff]
  %v6377 = vld [vmem:[#allocation2 + $0x30a] sm:$0xff]
  %v6378 = vld [vmem:[#allocation2 + $0x31a] sm:$0xff]
  %v6379 = vld [vmem:[#allocation2 + $0x322] sm:$0xff]
  %s6380 = scalar_lea.vmem %s2, 256
  %v6381 = vld [vmem:[%s6380] sm:$0xff]
  %v6382 = vld [vmem:[%s6380 + $0x8] sm:$0xff]
  %v6383 = vld [vmem:[%s6380 + $0x10] sm:$0xff]
  %v6384 = vld [vmem:[%s6380 + $0x18] sm:$0xff]
  %v6385 = vld [vmem:[%s6380 + $0x20] sm:$0xff]
  %v6386 = vld [vmem:[%s6380 + $0x28] sm:$0xff]
  %v6387 = vld [vmem:[%s6380 + $0x30] sm:$0xff]
  %v6388 = vld [vmem:[%s6380 + $0x38] sm:$0xff]
  %v6389 = vld [vmem:[%s6380 + $0x40] sm:$0xff]
  %v6390 = vld [vmem:[%s6380 + $0x48] sm:$0xff]
  %v6391 = vld [vmem:[%s6380 + $0x50] sm:$0xff]
  %v6392 = vld [vmem:[%s6380 + $0x58] sm:$0xff]
  %v6393 = vld [vmem:[%s6380 + $0x60] sm:$0xff]
  %v6394 = vld [vmem:[%s6380 + $0x68] sm:$0xff]
  %v6395 = vld [vmem:[%s6380 + $0x70] sm:$0xff]
  %v6396 = vld [vmem:[%s6380 + $0x78] sm:$0xff]
  %6397 = vmatprep.subr.mxu0 0.0
  %6398 = vmatpush1.msra.mxu0 %v6396
  %6399 = vmatprep.subr.mxu0 0.0
  %6400 = vmatpush1.msra.mxu0 %v6395
  %6401 = vmatprep.subr.mxu0 0.0
  %6402 = vmatpush1.msra.mxu0 %v6394
  %6403 = vmatprep.subr.mxu0 0.0
  %6404 = vmatpush1.msra.mxu0 %v6393
  %6405 = vmatprep.subr.mxu0 0.0
  %6406 = vmatpush1.msra.mxu0 %v6392
  %6407 = vmatprep.subr.mxu0 0.0
  %6408 = vmatpush1.msra.mxu0 %v6391
  %6409 = vmatprep.subr.mxu0 0.0
  %6410 = vmatpush1.msra.mxu0 %v6390
  %6411 = vmatprep.subr.mxu0 0.0
  %6412 = vmatpush1.msra.mxu0 %v6389
  %6413 = vmatprep.subr.mxu0 0.0
  %6414 = vmatpush1.msra.mxu0 %v6388
  %6415 = vmatprep.subr.mxu0 0.0
  %6416 = vmatpush1.msra.mxu0 %v6387
  %6417 = vmatprep.subr.mxu0 0.0
  %6418 = vmatpush1.msra.mxu0 %v6386
  %6419 = vmatprep.subr.mxu0 0.0
  %6420 = vmatpush1.msra.mxu0 %v6385
  %6421 = vmatprep.subr.mxu0 0.0
  %6422 = vmatpush1.msra.mxu0 %v6384
  %6423 = vmatprep.subr.mxu0 0.0
  %6424 = vmatpush1.msra.mxu0 %v6383
  %6425 = vmatprep.subr.mxu0 0.0
  %6426 = vmatpush1.msra.mxu0 %v6382
  %6427 = vmatprep.subr.mxu0 0.0
  %6428 = vmatpush1.msra.mxu0 %v6381
  %6429 = vmatprep.subr.mxu0 0.0
  %6430 = vmatpush2.msra.mxu0 0.0
  %6431 = vmatprep.subr.mxu0 0.0
  %6432 = vmatpush2.msra.mxu0 0.0
  %6433 = vmatprep.subr.mxu0 0.0
  %6434 = vmatpush2.msra.mxu0 0.0
  %6435 = vmatprep.subr.mxu0 0.0
  %6436 = vmatpush2.msra.mxu0 0.0
  %6437 = vmatprep.subr.mxu0 0.0
  %6438 = vmatpush2.msra.mxu0 0.0
  %6439 = vmatprep.subr.mxu0 0.0
  %6440 = vmatpush2.msra.mxu0 0.0
  %6441 = vmatprep.subr.mxu0 0.0
  %6442 = vmatpush2.msra.mxu0 0.0
  %6443 = vmatprep.subr.mxu0 0.0
  %6444 = vmatpush2.msra.mxu0 0.0
  %6445 = vmatprep.subr.mxu0 0.0
  %6446 = vmatpush2.msra.mxu0 0.0
  %6447 = vmatprep.subr.mxu0 0.0
  %6448 = vmatpush2.msra.mxu0 0.0
  %6449 = vmatprep.subr.mxu0 0.0
  %6450 = vmatpush2.msra.mxu0 0.0
  %6451 = vmatprep.subr.mxu0 0.0
  %6452 = vmatpush2.msra.mxu0 0.0
  %6453 = vmatprep.subr.mxu0 0.0
  %6454 = vmatpush2.msra.mxu0 0.0
  %6455 = vmatprep.subr.mxu0 0.0
  %6456 = vmatpush2.msra.mxu0 0.0
  %6457 = vmatprep.subr.mxu0 0.0
  %6458 = vmatpush2.msra.mxu0 0.0
  %6459 = vmatprep.subr.mxu0 0.0
  %6460 = vmatpush2.msra.mxu0 0.0
  %6461 = vmatprep.mubr.f32.mxu0 0.0
  %6462 = vmatmul.mubr.f32.gmra.mxu0 %v6316
  %v6463 = vpop.f32.mrf.mxu0
  %v6464 = vadd.f32 0.0, %v6463
  %v6465 = vpop.f32.mrf.mxu0
  %6466 = vmatprep.mubr.f32.mxu0 0.0
  %6467 = vmatmul.mubr.f32.gmra.mxu0 %v6317
  %v6468 = vpop.f32.mrf.mxu0
  %v6469 = vadd.f32 0.0, %v6468
  %v6470 = vpop.f32.mrf.mxu0
  %6471 = vmatprep.mubr.f32.mxu0 0.0
  %6472 = vmatmul.mubr.f32.gmra.mxu0 %v6318
  %v6473 = vpop.f32.mrf.mxu0
  %v6474 = vadd.f32 0.0, %v6473
  %v6475 = vpop.f32.mrf.mxu0
  %6476 = vmatprep.mubr.f32.mxu0 0.0
  %6477 = vmatmul.mubr.f32.gmra.mxu0 %v6319
  %v6478 = vpop.f32.mrf.mxu0
  %v6479 = vadd.f32 0.0, %v6478
  %v6480 = vpop.f32.mrf.mxu0
  %6481 = vmatprep.mubr.f32.mxu0 0.0
  %6482 = vmatmul.mubr.f32.gmra.mxu0 %v6320
  %v6483 = vpop.f32.mrf.mxu0
  %v6484 = vadd.f32 0.0, %v6483
  %v6485 = vpop.f32.mrf.mxu0
  %6486 = vmatprep.mubr.f32.mxu0 0.0
  %6487 = vmatmul.mubr.f32.gmra.mxu0 %v6321
  %v6488 = vpop.f32.mrf.mxu0
  %v6489 = vadd.f32 0.0, %v6488
  %v6490 = vpop.f32.mrf.mxu0
  %6491 = vmatprep.mubr.f32.mxu0 0.0
  %6492 = vmatmul.mubr.f32.gmra.mxu0 %v6322
  %v6493 = vpop.f32.mrf.mxu0
  %v6494 = vadd.f32 0.0, %v6493
  %v6495 = vpop.f32.mrf.mxu0
  %6496 = vmatprep.mubr.f32.mxu0 0.0
  %6497 = vmatmul.mubr.f32.gmra.mxu0 %v6323
  %v6498 = vpop.f32.mrf.mxu0
  %v6499 = vadd.f32 0.0, %v6498
  %v6500 = vpop.f32.mrf.mxu0
  %6501 = vmatprep.mubr.f32.mxu0 0.0
  %6502 = vmatmul.mubr.f32.gmra.mxu0 %v6324
  %v6503 = vpop.f32.mrf.mxu0
  %v6504 = vadd.f32 0.0, %v6503
  %v6505 = vpop.f32.mrf.mxu0
  %6506 = vmatprep.mubr.f32.mxu0 0.0
  %6507 = vmatmul.mubr.f32.gmra.mxu0 %v6325
  %v6508 = vpop.f32.mrf.mxu0
  %v6509 = vadd.f32 0.0, %v6508
  %v6510 = vpop.f32.mrf.mxu0
  %6511 = vmatprep.mubr.f32.mxu0 0.0
  %6512 = vmatmul.mubr.f32.gmra.mxu0 %v6326
  %v6513 = vpop.f32.mrf.mxu0
  %v6514 = vadd.f32 0.0, %v6513
  %v6515 = vpop.f32.mrf.mxu0
  %6516 = vmatprep.mubr.f32.mxu0 0.0
  %6517 = vmatmul.mubr.f32.gmra.mxu0 %v6327
  %v6518 = vpop.f32.mrf.mxu0
  %v6519 = vadd.f32 0.0, %v6518
  %v6520 = vpop.f32.mrf.mxu0
  %6521 = vmatprep.mubr.f32.mxu0 0.0
  %6522 = vmatmul.mubr.f32.gmra.mxu0 %v6328
  %v6523 = vpop.f32.mrf.mxu0
  %v6524 = vadd.f32 0.0, %v6523
  %v6525 = vpop.f32.mrf.mxu0
  %6526 = vmatprep.mubr.f32.mxu0 0.0
  %6527 = vmatmul.mubr.f32.gmra.mxu0 %v6329
  %v6528 = vpop.f32.mrf.mxu0
  %v6529 = vadd.f32 0.0, %v6528
  %v6530 = vpop.f32.mrf.mxu0
  %6531 = vmatprep.mubr.f32.mxu0 0.0
  %6532 = vmatmul.mubr.f32.gmra.mxu0 %v6330
  %v6533 = vpop.f32.mrf.mxu0
  %v6534 = vadd.f32 0.0, %v6533
  %v6535 = vpop.f32.mrf.mxu0
  %6536 = vmatprep.mubr.f32.mxu0 0.0
  %6537 = vmatmul.mubr.f32.gmra.mxu0 %v6331
  %v6538 = vpop.f32.mrf.mxu0
  %v6539 = vadd.f32 0.0, %v6538
  %v6540 = vpop.f32.mrf.mxu0
  %6541 = vmatprep.mubr.f32.mxu0 0.0
  %6542 = vmatmul.mubr.f32.gmra.mxu0 %v6332
  %v6543 = vpop.f32.mrf.mxu0
  %v6544 = vadd.f32 0.0, %v6543
  %v6545 = vpop.f32.mrf.mxu0
  %6546 = vmatprep.mubr.f32.mxu0 0.0
  %6547 = vmatmul.mubr.f32.gmra.mxu0 %v6333
  %v6548 = vpop.f32.mrf.mxu0
  %v6549 = vadd.f32 0.0, %v6548
  %v6550 = vpop.f32.mrf.mxu0
  %6551 = vmatprep.mubr.f32.mxu0 0.0
  %6552 = vmatmul.mubr.f32.gmra.mxu0 %v6334
  %v6553 = vpop.f32.mrf.mxu0
  %v6554 = vadd.f32 0.0, %v6553
  %v6555 = vpop.f32.mrf.mxu0
  %6556 = vmatprep.mubr.f32.mxu0 0.0
  %6557 = vmatmul.mubr.f32.gmra.mxu0 %v6335
  %v6558 = vpop.f32.mrf.mxu0
  %v6559 = vadd.f32 0.0, %v6558
  %v6560 = vpop.f32.mrf.mxu0
  %6561 = vmatprep.mubr.f32.mxu0 0.0
  %6562 = vmatmul.mubr.f32.gmra.mxu0 %v6336
  %v6563 = vpop.f32.mrf.mxu0
  %v6564 = vadd.f32 0.0, %v6563
  %v6565 = vpop.f32.mrf.mxu0
  %6566 = vmatprep.mubr.f32.mxu0 0.0
  %6567 = vmatmul.mubr.f32.gmra.mxu0 %v6337
  %v6568 = vpop.f32.mrf.mxu0
  %v6569 = vadd.f32 0.0, %v6568
  %v6570 = vpop.f32.mrf.mxu0
  %6571 = vmatprep.mubr.f32.mxu0 0.0
  %6572 = vmatmul.mubr.f32.gmra.mxu0 %v6338
  %v6573 = vpop.f32.mrf.mxu0
  %v6574 = vadd.f32 0.0, %v6573
  %v6575 = vpop.f32.mrf.mxu0
  %6576 = vmatprep.mubr.f32.mxu0 0.0
  %6577 = vmatmul.mubr.f32.gmra.mxu0 %v6339
  %v6578 = vpop.f32.mrf.mxu0
  %v6579 = vadd.f32 0.0, %v6578
  %v6580 = vpop.f32.mrf.mxu0
  %6581 = vmatprep.mubr.f32.mxu0 0.0
  %6582 = vmatmul.mubr.f32.gmra.mxu0 %v6340
  %v6583 = vpop.f32.mrf.mxu0
  %v6584 = vadd.f32 0.0, %v6583
  %v6585 = vpop.f32.mrf.mxu0
  %6586 = vmatprep.mubr.f32.mxu0 0.0
  %6587 = vmatmul.mubr.f32.gmra.mxu0 %v6341
  %v6588 = vpop.f32.mrf.mxu0
  %v6589 = vadd.f32 0.0, %v6588
  %v6590 = vpop.f32.mrf.mxu0
  %6591 = vmatprep.mubr.f32.mxu0 0.0
  %6592 = vmatmul.mubr.f32.gmra.mxu0 %v6342
  %v6593 = vpop.f32.mrf.mxu0
  %v6594 = vadd.f32 0.0, %v6593
  %v6595 = vpop.f32.mrf.mxu0
  %6596 = vmatprep.mubr.f32.mxu0 0.0
  %6597 = vmatmul.mubr.f32.gmra.mxu0 %v6343
  %v6598 = vpop.f32.mrf.mxu0
  %v6599 = vadd.f32 0.0, %v6598
  %v6600 = vpop.f32.mrf.mxu0
  %6601 = vmatprep.mubr.f32.mxu0 0.0
  %6602 = vmatmul.mubr.f32.gmra.mxu0 %v6344
  %v6603 = vpop.f32.mrf.mxu0
  %v6604 = vadd.f32 0.0, %v6603
  %v6605 = vpop.f32.mrf.mxu0
  %6606 = vmatprep.mubr.f32.mxu0 0.0
  %6607 = vmatmul.mubr.f32.gmra.mxu0 %v6345
  %v6608 = vpop.f32.mrf.mxu0
  %v6609 = vadd.f32 0.0, %v6608
  %v6610 = vpop.f32.mrf.mxu0
  %6611 = vmatprep.mubr.f32.mxu0 0.0
  %6612 = vmatmul.mubr.f32.gmra.mxu0 %v6346
  %v6613 = vpop.f32.mrf.mxu0
  %v6614 = vadd.f32 0.0, %v6613
  %v6615 = vpop.f32.mrf.mxu0
  %6616 = vmatprep.mubr.f32.mxu0 0.0
  %6617 = vmatmul.mubr.f32.gmra.mxu0 %v6347
  %v6618 = vpop.f32.mrf.mxu0
  %v6619 = vadd.f32 0.0, %v6618
  %v6620 = vpop.f32.mrf.mxu0
  %6621 = vmatprep.mubr.f32.mxu0 0.0
  %6622 = vmatmul.mubr.f32.gmra.mxu0 %v6348
  %v6623 = vpop.f32.mrf.mxu0
  %v6624 = vadd.f32 0.0, %v6623
  %v6625 = vpop.f32.mrf.mxu0
  %6626 = vmatprep.mubr.f32.mxu0 0.0
  %6627 = vmatmul.mubr.f32.gmra.mxu0 %v6349
  %v6628 = vpop.f32.mrf.mxu0
  %v6629 = vadd.f32 0.0, %v6628
  %v6630 = vpop.f32.mrf.mxu0
  %6631 = vmatprep.mubr.f32.mxu0 0.0
  %6632 = vmatmul.mubr.f32.gmra.mxu0 %v6350
  %v6633 = vpop.f32.mrf.mxu0
  %v6634 = vadd.f32 0.0, %v6633
  %v6635 = vpop.f32.mrf.mxu0
  %6636 = vmatprep.mubr.f32.mxu0 0.0
  %6637 = vmatmul.mubr.f32.gmra.mxu0 %v6351
  %v6638 = vpop.f32.mrf.mxu0
  %v6639 = vadd.f32 0.0, %v6638
  %v6640 = vpop.f32.mrf.mxu0
  %6641 = vmatprep.mubr.f32.mxu0 0.0
  %6642 = vmatmul.mubr.f32.gmra.mxu0 %v6352
  %v6643 = vpop.f32.mrf.mxu0
  %v6644 = vadd.f32 0.0, %v6643
  %v6645 = vpop.f32.mrf.mxu0
  %6646 = vmatprep.mubr.f32.mxu0 0.0
  %6647 = vmatmul.mubr.f32.gmra.mxu0 %v6353
  %v6648 = vpop.f32.mrf.mxu0
  %v6649 = vadd.f32 0.0, %v6648
  %v6650 = vpop.f32.mrf.mxu0
  %6651 = vmatprep.mubr.f32.mxu0 0.0
  %6652 = vmatmul.mubr.f32.gmra.mxu0 %v6354
  %v6653 = vpop.f32.mrf.mxu0
  %v6654 = vadd.f32 0.0, %v6653
  %v6655 = vpop.f32.mrf.mxu0
  %6656 = vmatprep.mubr.f32.mxu0 0.0
  %6657 = vmatmul.mubr.f32.gmra.mxu0 %v6355
  %v6658 = vpop.f32.mrf.mxu0
  %v6659 = vadd.f32 0.0, %v6658
  %v6660 = vpop.f32.mrf.mxu0
  %6661 = vmatprep.mubr.f32.mxu0 0.0
  %6662 = vmatmul.mubr.f32.gmra.mxu0 %v6356
  %v6663 = vpop.f32.mrf.mxu0
  %v6664 = vadd.f32 0.0, %v6663
  %v6665 = vpop.f32.mrf.mxu0
  %6666 = vmatprep.mubr.f32.mxu0 0.0
  %6667 = vmatmul.mubr.f32.gmra.mxu0 %v6357
  %v6668 = vpop.f32.mrf.mxu0
  %v6669 = vadd.f32 0.0, %v6668
  %v6670 = vpop.f32.mrf.mxu0
  %6671 = vmatprep.mubr.f32.mxu0 0.0
  %6672 = vmatmul.mubr.f32.gmra.mxu0 %v6358
  %v6673 = vpop.f32.mrf.mxu0
  %v6674 = vadd.f32 0.0, %v6673
  %v6675 = vpop.f32.mrf.mxu0
  %6676 = vmatprep.mubr.f32.mxu0 0.0
  %6677 = vmatmul.mubr.f32.gmra.mxu0 %v6359
  %v6678 = vpop.f32.mrf.mxu0
  %v6679 = vadd.f32 0.0, %v6678
  %v6680 = vpop.f32.mrf.mxu0
  %6681 = vmatprep.mubr.f32.mxu0 0.0
  %6682 = vmatmul.mubr.f32.gmra.mxu0 %v6360
  %v6683 = vpop.f32.mrf.mxu0
  %v6684 = vadd.f32 0.0, %v6683
  %v6685 = vpop.f32.mrf.mxu0
  %6686 = vmatprep.mubr.f32.mxu0 0.0
  %6687 = vmatmul.mubr.f32.gmra.mxu0 %v6361
  %v6688 = vpop.f32.mrf.mxu0
  %v6689 = vadd.f32 0.0, %v6688
  %v6690 = vpop.f32.mrf.mxu0
  %6691 = vmatprep.mubr.f32.mxu0 0.0
  %6692 = vmatmul.mubr.f32.gmra.mxu0 %v6362
  %v6693 = vpop.f32.mrf.mxu0
  %v6694 = vadd.f32 0.0, %v6693
  %v6695 = vpop.f32.mrf.mxu0
  %6696 = vmatprep.mubr.f32.mxu0 0.0
  %6697 = vmatmul.mubr.f32.gmra.mxu0 %v6363
  %v6698 = vpop.f32.mrf.mxu0
  %v6699 = vadd.f32 0.0, %v6698
  %v6700 = vpop.f32.mrf.mxu0
  %6701 = vmatprep.mubr.f32.mxu0 0.0
  %6702 = vmatmul.mubr.f32.gmra.mxu0 %v6364
  %v6703 = vpop.f32.mrf.mxu0
  %v6704 = vadd.f32 0.0, %v6703
  %v6705 = vpop.f32.mrf.mxu0
  %6706 = vmatprep.mubr.f32.mxu0 0.0
  %6707 = vmatmul.mubr.f32.gmra.mxu0 %v6365
  %v6708 = vpop.f32.mrf.mxu0
  %v6709 = vadd.f32 0.0, %v6708
  %v6710 = vpop.f32.mrf.mxu0
  %6711 = vmatprep.mubr.f32.mxu0 0.0
  %6712 = vmatmul.mubr.f32.gmra.mxu0 %v6366
  %v6713 = vpop.f32.mrf.mxu0
  %v6714 = vadd.f32 0.0, %v6713
  %v6715 = vpop.f32.mrf.mxu0
  %6716 = vmatprep.mubr.f32.mxu0 0.0
  %6717 = vmatmul.mubr.f32.gmra.mxu0 %v6367
  %v6718 = vpop.f32.mrf.mxu0
  %v6719 = vadd.f32 0.0, %v6718
  %v6720 = vpop.f32.mrf.mxu0
  %6721 = vmatprep.mubr.f32.mxu0 0.0
  %6722 = vmatmul.mubr.f32.gmra.mxu0 %v6368
  %v6723 = vpop.f32.mrf.mxu0
  %v6724 = vadd.f32 0.0, %v6723
  %v6725 = vpop.f32.mrf.mxu0
  %6726 = vmatprep.mubr.f32.mxu0 0.0
  %6727 = vmatmul.mubr.f32.gmra.mxu0 %v6369
  %v6728 = vpop.f32.mrf.mxu0
  %v6729 = vadd.f32 0.0, %v6728
  %v6730 = vpop.f32.mrf.mxu0
  %6731 = vmatprep.mubr.f32.mxu0 0.0
  %6732 = vmatmul.mubr.f32.gmra.mxu0 %v6370
  %v6733 = vpop.f32.mrf.mxu0
  %v6734 = vadd.f32 0.0, %v6733
  %v6735 = vpop.f32.mrf.mxu0
  %6736 = vmatprep.mubr.f32.mxu0 0.0
  %6737 = vmatmul.mubr.f32.gmra.mxu0 %v6371
  %v6738 = vpop.f32.mrf.mxu0
  %v6739 = vadd.f32 0.0, %v6738
  %v6740 = vpop.f32.mrf.mxu0
  %6741 = vmatprep.mubr.f32.mxu0 0.0
  %6742 = vmatmul.mubr.f32.gmra.mxu0 %v6372
  %v6743 = vpop.f32.mrf.mxu0
  %v6744 = vadd.f32 0.0, %v6743
  %v6745 = vpop.f32.mrf.mxu0
  %6746 = vmatprep.mubr.f32.mxu0 0.0
  %6747 = vmatmul.mubr.f32.gmra.mxu0 %v6373
  %v6748 = vpop.f32.mrf.mxu0
  %v6749 = vadd.f32 0.0, %v6748
  %v6750 = vpop.f32.mrf.mxu0
  %6751 = vmatprep.mubr.f32.mxu0 0.0
  %6752 = vmatmul.mubr.f32.gmra.mxu0 %v6374
  %v6753 = vpop.f32.mrf.mxu0
  %v6754 = vadd.f32 0.0, %v6753
  %v6755 = vpop.f32.mrf.mxu0
  %6756 = vmatprep.mubr.f32.mxu0 0.0
  %6757 = vmatmul.mubr.f32.gmra.mxu0 %v6375
  %v6758 = vpop.f32.mrf.mxu0
  %v6759 = vadd.f32 0.0, %v6758
  %v6760 = vpop.f32.mrf.mxu0
  %6761 = vmatprep.mubr.f32.mxu0 0.0
  %6762 = vmatmul.mubr.f32.gmra.mxu0 %v6376
  %v6763 = vpop.f32.mrf.mxu0
  %v6764 = vadd.f32 0.0, %v6763
  %v6765 = vpop.f32.mrf.mxu0
  %6766 = vmatprep.mubr.f32.mxu0 0.0
  %6767 = vmatmul.mubr.f32.gmra.mxu0 %v6377
  %v6768 = vpop.f32.mrf.mxu0
  %v6769 = vadd.f32 0.0, %v6768
  %v6770 = vpop.f32.mrf.mxu0
  %6771 = vmatprep.mubr.f32.mxu0 0.0
  %6772 = vmatmul.mubr.f32.gmra.mxu0 %v6378
  %v6773 = vpop.f32.mrf.mxu0
  %v6774 = vadd.f32 0.0, %v6773
  %v6775 = vpop.f32.mrf.mxu0
  %6776 = vmatprep.mubr.f32.mxu0 0.0
  %6777 = vmatmul.mubr.f32.gmra.mxu0 %v6379
  %v6778 = vpop.f32.mrf.mxu0
  %v6779 = vadd.f32 0.0, %v6778
  %v6780 = vpop.f32.mrf.mxu0
  %6781 = vdwg.mxu0
  %v6782 = vadd.f32 %v5998, %v6464
  %v6783 = vadd.f32 %v6003, %v6469
  %v6784 = vadd.f32 %v6008, %v6474
  %v6785 = vadd.f32 %v6013, %v6479
  %v6786 = vadd.f32 %v6018, %v6484
  %v6787 = vadd.f32 %v6023, %v6489
  %v6788 = vadd.f32 %v6028, %v6494
  %v6789 = vadd.f32 %v6033, %v6499
  %v6790 = vadd.f32 %v6038, %v6504
  %v6791 = vadd.f32 %v6043, %v6509
  %v6792 = vadd.f32 %v6048, %v6514
  %v6793 = vadd.f32 %v6053, %v6519
  %v6794 = vadd.f32 %v6058, %v6524
  %v6795 = vadd.f32 %v6063, %v6529
  %v6796 = vadd.f32 %v6068, %v6534
  %v6797 = vadd.f32 %v6073, %v6539
  %v6798 = vadd.f32 %v6078, %v6544
  %v6799 = vadd.f32 %v6083, %v6549
  %v6800 = vadd.f32 %v6088, %v6554
  %v6801 = vadd.f32 %v6093, %v6559
  %v6802 = vadd.f32 %v6098, %v6564
  %v6803 = vadd.f32 %v6103, %v6569
  %v6804 = vadd.f32 %v6108, %v6574
  %v6805 = vadd.f32 %v6113, %v6579
  %v6806 = vadd.f32 %v6118, %v6584
  %v6807 = vadd.f32 %v6123, %v6589
  %v6808 = vadd.f32 %v6128, %v6594
  %v6809 = vadd.f32 %v6133, %v6599
  %v6810 = vadd.f32 %v6138, %v6604
  %v6811 = vadd.f32 %v6143, %v6609
  %v6812 = vadd.f32 %v6148, %v6614
  %v6813 = vadd.f32 %v6153, %v6619
  %v6814 = vadd.f32 %v6158, %v6624
  %v6815 = vadd.f32 %v6163, %v6629
  %v6816 = vadd.f32 %v6168, %v6634
  %v6817 = vadd.f32 %v6173, %v6639
  %v6818 = vadd.f32 %v6178, %v6644
  %v6819 = vadd.f32 %v6183, %v6649
  %v6820 = vadd.f32 %v6188, %v6654
  %v6821 = vadd.f32 %v6193, %v6659
  %v6822 = vadd.f32 %v6198, %v6664
  %v6823 = vadd.f32 %v6203, %v6669
  %v6824 = vadd.f32 %v6208, %v6674
  %v6825 = vadd.f32 %v6213, %v6679
  %v6826 = vadd.f32 %v6218, %v6684
  %v6827 = vadd.f32 %v6223, %v6689
  %v6828 = vadd.f32 %v6228, %v6694
  %v6829 = vadd.f32 %v6233, %v6699
  %v6830 = vadd.f32 %v6238, %v6704
  %v6831 = vadd.f32 %v6243, %v6709
  %v6832 = vadd.f32 %v6248, %v6714
  %v6833 = vadd.f32 %v6253, %v6719
  %v6834 = vadd.f32 %v6258, %v6724
  %v6835 = vadd.f32 %v6263, %v6729
  %v6836 = vadd.f32 %v6268, %v6734
  %v6837 = vadd.f32 %v6273, %v6739
  %v6838 = vadd.f32 %v6278, %v6744
  %v6839 = vadd.f32 %v6283, %v6749
  %v6840 = vadd.f32 %v6288, %v6754
  %v6841 = vadd.f32 %v6293, %v6759
  %v6842 = vadd.f32 %v6298, %v6764
  %v6843 = vadd.f32 %v6303, %v6769
  %v6844 = vadd.f32 %v6308, %v6774
  %v6845 = vadd.f32 %v6313, %v6779
  %v6846 = vld [vmem:[%s5320] sm:$0xff]
  %v6847 = vld [vmem:[%s5320 + $0x8] sm:$0xff]
  %v6848 = vld [vmem:[%s5320 + $0x18] sm:$0xff]
  %v6849 = vld [vmem:[%s5320 + $0x20] sm:$0xff]
  %v6850 = vld [vmem:[%s5320 + $0x30] sm:$0xff]
  %v6851 = vld [vmem:[%s5320 + $0x38] sm:$0xff]
  %v6852 = vld [vmem:[%s5320 + $0x48] sm:$0xff]
  %v6853 = vld [vmem:[%s5320 + $0x50] sm:$0xff]
  %v6854 = vld [vmem:[%s5320 + $0x60] sm:$0xff]
  %v6855 = vld [vmem:[%s5320 + $0x68] sm:$0xff]
  %v6856 = vld [vmem:[%s5320 + $0x78] sm:$0xff]
  %v6857 = vld [vmem:[%s5320 + $0x80] sm:$0xff]
  %v6858 = vld [vmem:[%s5320 + $0x90] sm:$0xff]
  %v6859 = vld [vmem:[%s5320 + $0x98] sm:$0xff]
  %v6860 = vld [vmem:[%s5320 + $0xa8] sm:$0xff]
  %v6861 = vld [vmem:[%s5320 + $0xb0] sm:$0xff]
  %v6862 = vld [vmem:[%s5320 + $0xc0] sm:$0xff]
  %v6863 = vld [vmem:[%s5320 + $0xc8] sm:$0xff]
  %v6864 = vld [vmem:[%s5320 + $0xd8] sm:$0xff]
  %v6865 = vld [vmem:[%s5320 + $0xe0] sm:$0xff]
  %v6866 = vld [vmem:[%s5320 + $0xf0] sm:$0xff]
  %v6867 = vld [vmem:[%s5320 + $0xf8] sm:$0xff]
  %v6868 = vld [vmem:[%s5320 + $0x108] sm:$0xff]
  %v6869 = vld [vmem:[%s5320 + $0x110] sm:$0xff]
  %v6870 = vld [vmem:[%s5320 + $0x120] sm:$0xff]
  %v6871 = vld [vmem:[%s5320 + $0x128] sm:$0xff]
  %v6872 = vld [vmem:[%s5320 + $0x138] sm:$0xff]
  %v6873 = vld [vmem:[%s5320 + $0x140] sm:$0xff]
  %v6874 = vld [vmem:[%s5320 + $0x150] sm:$0xff]
  %v6875 = vld [vmem:[%s5320 + $0x158] sm:$0xff]
  %v6876 = vld [vmem:[%s5320 + $0x168] sm:$0xff]
  %v6877 = vld [vmem:[%s5320 + $0x170] sm:$0xff]
  %v6878 = vld [vmem:[%s5320 + $0x1b0] sm:$0xff]
  %v6879 = vld [vmem:[%s5320 + $0x1b8] sm:$0xff]
  %v6880 = vld [vmem:[%s5320 + $0x1c8] sm:$0xff]
  %v6881 = vld [vmem:[%s5320 + $0x1d0] sm:$0xff]
  %v6882 = vld [vmem:[%s5320 + $0x1e0] sm:$0xff]
  %v6883 = vld [vmem:[%s5320 + $0x1e8] sm:$0xff]
  %v6884 = vld [vmem:[%s5320 + $0x1f8] sm:$0xff]
  %v6885 = vld [vmem:[%s5320 + $0x200] sm:$0xff]
  %v6886 = vld [vmem:[%s5320 + $0x210] sm:$0xff]
  %v6887 = vld [vmem:[%s5320 + $0x218] sm:$0xff]
  %v6888 = vld [vmem:[%s5320 + $0x228] sm:$0xff]
  %v6889 = vld [vmem:[%s5320 + $0x230] sm:$0xff]
  %v6890 = vld [vmem:[%s5320 + $0x240] sm:$0xff]
  %v6891 = vld [vmem:[%s5320 + $0x248] sm:$0xff]
  %v6892 = vld [vmem:[%s5320 + $0x258] sm:$0xff]
  %v6893 = vld [vmem:[%s5320 + $0x260] sm:$0xff]
  %v6894 = vld [vmem:[%s5320 + $0x270] sm:$0xff]
  %v6895 = vld [vmem:[%s5320 + $0x278] sm:$0xff]
  %v6896 = vld [vmem:[%s5320 + $0x288] sm:$0xff]
  %v6897 = vld [vmem:[%s5320 + $0x290] sm:$0xff]
  %v6898 = vld [vmem:[%s5320 + $0x2a0] sm:$0xff]
  %v6899 = vld [vmem:[%s5320 + $0x2a8] sm:$0xff]
  %v6900 = vld [vmem:[%s5320 + $0x2b8] sm:$0xff]
  %v6901 = vld [vmem:[%s5320 + $0x2c0] sm:$0xff]
  %v6902 = vld [vmem:[%s5320 + $0x2d0] sm:$0xff]
  %v6903 = vld [vmem:[%s5320 + $0x2d8] sm:$0xff]
  %v6904 = vld [vmem:[%s5320 + $0x2e8] sm:$0xff]
  %v6905 = vld [vmem:[%s5320 + $0x2f0] sm:$0xff]
  %v6906 = vld [vmem:[%s5320 + $0x300] sm:$0xff]
  %v6907 = vld [vmem:[%s5320 + $0x308] sm:$0xff]
  %v6908 = vld [vmem:[%s5320 + $0x318] sm:$0xff]
  %v6909 = vld [vmem:[%s5320 + $0x320] sm:$0xff]
  %s6910 = scalar_lea.vmem %s2, 384
  %v6911 = vld [vmem:[%s6910] sm:$0xff]
  %v6912 = vld [vmem:[%s6910 + $0x8] sm:$0xff]
  %v6913 = vld [vmem:[%s6910 + $0x10] sm:$0xff]
  %v6914 = vld [vmem:[%s6910 + $0x18] sm:$0xff]
  %v6915 = vld [vmem:[%s6910 + $0x20] sm:$0xff]
  %v6916 = vld [vmem:[%s6910 + $0x28] sm:$0xff]
  %v6917 = vld [vmem:[%s6910 + $0x30] sm:$0xff]
  %v6918 = vld [vmem:[%s6910 + $0x38] sm:$0xff]
  %v6919 = vld [vmem:[%s6910 + $0x40] sm:$0xff]
  %v6920 = vld [vmem:[%s6910 + $0x48] sm:$0xff]
  %v6921 = vld [vmem:[%s6910 + $0x50] sm:$0xff]
  %v6922 = vld [vmem:[%s6910 + $0x58] sm:$0xff]
  %v6923 = vld [vmem:[%s6910 + $0x60] sm:$0xff]
  %v6924 = vld [vmem:[%s6910 + $0x68] sm:$0xff]
  %v6925 = vld [vmem:[%s6910 + $0x70] sm:$0xff]
  %v6926 = vld [vmem:[%s6910 + $0x78] sm:$0xff]
  %6927 = vmatprep.subr.mxu0 0.0
  %6928 = vmatpush1.msra.mxu0 %v6926
  %6929 = vmatprep.subr.mxu0 0.0
  %6930 = vmatpush1.msra.mxu0 %v6925
  %6931 = vmatprep.subr.mxu0 0.0
  %6932 = vmatpush1.msra.mxu0 %v6924
  %6933 = vmatprep.subr.mxu0 0.0
  %6934 = vmatpush1.msra.mxu0 %v6923
  %6935 = vmatprep.subr.mxu0 0.0
  %6936 = vmatpush1.msra.mxu0 %v6922
  %6937 = vmatprep.subr.mxu0 0.0
  %6938 = vmatpush1.msra.mxu0 %v6921
  %6939 = vmatprep.subr.mxu0 0.0
  %6940 = vmatpush1.msra.mxu0 %v6920
  %6941 = vmatprep.subr.mxu0 0.0
  %6942 = vmatpush1.msra.mxu0 %v6919
  %6943 = vmatprep.subr.mxu0 0.0
  %6944 = vmatpush1.msra.mxu0 %v6918
  %6945 = vmatprep.subr.mxu0 0.0
  %6946 = vmatpush1.msra.mxu0 %v6917
  %6947 = vmatprep.subr.mxu0 0.0
  %6948 = vmatpush1.msra.mxu0 %v6916
  %6949 = vmatprep.subr.mxu0 0.0
  %6950 = vmatpush1.msra.mxu0 %v6915
  %6951 = vmatprep.subr.mxu0 0.0
  %6952 = vmatpush1.msra.mxu0 %v6914
  %6953 = vmatprep.subr.mxu0 0.0
  %6954 = vmatpush1.msra.mxu0 %v6913
  %6955 = vmatprep.subr.mxu0 0.0
  %6956 = vmatpush1.msra.mxu0 %v6912
  %6957 = vmatprep.subr.mxu0 0.0
  %6958 = vmatpush1.msra.mxu0 %v6911
  %6959 = vmatprep.subr.mxu0 0.0
  %6960 = vmatpush2.msra.mxu0 0.0
  %6961 = vmatprep.subr.mxu0 0.0
  %6962 = vmatpush2.msra.mxu0 0.0
  %6963 = vmatprep.subr.mxu0 0.0
  %6964 = vmatpush2.msra.mxu0 0.0
  %6965 = vmatprep.subr.mxu0 0.0
  %6966 = vmatpush2.msra.mxu0 0.0
  %6967 = vmatprep.subr.mxu0 0.0
  %6968 = vmatpush2.msra.mxu0 0.0
  %6969 = vmatprep.subr.mxu0 0.0
  %6970 = vmatpush2.msra.mxu0 0.0
  %6971 = vmatprep.subr.mxu0 0.0
  %6972 = vmatpush2.msra.mxu0 0.0
  %6973 = vmatprep.subr.mxu0 0.0
  %6974 = vmatpush2.msra.mxu0 0.0
  %6975 = vmatprep.subr.mxu0 0.0
  %6976 = vmatpush2.msra.mxu0 0.0
  %6977 = vmatprep.subr.mxu0 0.0
  %6978 = vmatpush2.msra.mxu0 0.0
  %6979 = vmatprep.subr.mxu0 0.0
  %6980 = vmatpush2.msra.mxu0 0.0
  %6981 = vmatprep.subr.mxu0 0.0
  %6982 = vmatpush2.msra.mxu0 0.0
  %6983 = vmatprep.subr.mxu0 0.0
  %6984 = vmatpush2.msra.mxu0 0.0
  %6985 = vmatprep.subr.mxu0 0.0
  %6986 = vmatpush2.msra.mxu0 0.0
  %6987 = vmatprep.subr.mxu0 0.0
  %6988 = vmatpush2.msra.mxu0 0.0
  %6989 = vmatprep.subr.mxu0 0.0
  %6990 = vmatpush2.msra.mxu0 0.0
  %6991 = vmatprep.mubr.f32.mxu0 0.0
  %6992 = vmatmul.mubr.f32.gmra.mxu0 %v6846
  %v6993 = vpop.f32.mrf.mxu0
  %v6994 = vadd.f32 0.0, %v6993
  %v6995 = vpop.f32.mrf.mxu0
  %6996 = vmatprep.mubr.f32.mxu0 0.0
  %6997 = vmatmul.mubr.f32.gmra.mxu0 %v6847
  %v6998 = vpop.f32.mrf.mxu0
  %v6999 = vadd.f32 0.0, %v6998
  %v7000 = vpop.f32.mrf.mxu0
  %7001 = vmatprep.mubr.f32.mxu0 0.0
  %7002 = vmatmul.mubr.f32.gmra.mxu0 %v6848
  %v7003 = vpop.f32.mrf.mxu0
  %v7004 = vadd.f32 0.0, %v7003
  %v7005 = vpop.f32.mrf.mxu0
  %7006 = vmatprep.mubr.f32.mxu0 0.0
  %7007 = vmatmul.mubr.f32.gmra.mxu0 %v6849
  %v7008 = vpop.f32.mrf.mxu0
  %v7009 = vadd.f32 0.0, %v7008
  %v7010 = vpop.f32.mrf.mxu0
  %7011 = vmatprep.mubr.f32.mxu0 0.0
  %7012 = vmatmul.mubr.f32.gmra.mxu0 %v6850
  %v7013 = vpop.f32.mrf.mxu0
  %v7014 = vadd.f32 0.0, %v7013
  %v7015 = vpop.f32.mrf.mxu0
  %7016 = vmatprep.mubr.f32.mxu0 0.0
  %7017 = vmatmul.mubr.f32.gmra.mxu0 %v6851
  %v7018 = vpop.f32.mrf.mxu0
  %v7019 = vadd.f32 0.0, %v7018
  %v7020 = vpop.f32.mrf.mxu0
  %7021 = vmatprep.mubr.f32.mxu0 0.0
  %7022 = vmatmul.mubr.f32.gmra.mxu0 %v6852
  %v7023 = vpop.f32.mrf.mxu0
  %v7024 = vadd.f32 0.0, %v7023
  %v7025 = vpop.f32.mrf.mxu0
  %7026 = vmatprep.mubr.f32.mxu0 0.0
  %7027 = vmatmul.mubr.f32.gmra.mxu0 %v6853
  %v7028 = vpop.f32.mrf.mxu0
  %v7029 = vadd.f32 0.0, %v7028
  %v7030 = vpop.f32.mrf.mxu0
  %7031 = vmatprep.mubr.f32.mxu0 0.0
  %7032 = vmatmul.mubr.f32.gmra.mxu0 %v6854
  %v7033 = vpop.f32.mrf.mxu0
  %v7034 = vadd.f32 0.0, %v7033
  %v7035 = vpop.f32.mrf.mxu0
  %7036 = vmatprep.mubr.f32.mxu0 0.0
  %7037 = vmatmul.mubr.f32.gmra.mxu0 %v6855
  %v7038 = vpop.f32.mrf.mxu0
  %v7039 = vadd.f32 0.0, %v7038
  %v7040 = vpop.f32.mrf.mxu0
  %7041 = vmatprep.mubr.f32.mxu0 0.0
  %7042 = vmatmul.mubr.f32.gmra.mxu0 %v6856
  %v7043 = vpop.f32.mrf.mxu0
  %v7044 = vadd.f32 0.0, %v7043
  %v7045 = vpop.f32.mrf.mxu0
  %7046 = vmatprep.mubr.f32.mxu0 0.0
  %7047 = vmatmul.mubr.f32.gmra.mxu0 %v6857
  %v7048 = vpop.f32.mrf.mxu0
  %v7049 = vadd.f32 0.0, %v7048
  %v7050 = vpop.f32.mrf.mxu0
  %7051 = vmatprep.mubr.f32.mxu0 0.0
  %7052 = vmatmul.mubr.f32.gmra.mxu0 %v6858
  %v7053 = vpop.f32.mrf.mxu0
  %v7054 = vadd.f32 0.0, %v7053
  %v7055 = vpop.f32.mrf.mxu0
  %7056 = vmatprep.mubr.f32.mxu0 0.0
  %7057 = vmatmul.mubr.f32.gmra.mxu0 %v6859
  %v7058 = vpop.f32.mrf.mxu0
  %v7059 = vadd.f32 0.0, %v7058
  %v7060 = vpop.f32.mrf.mxu0
  %7061 = vmatprep.mubr.f32.mxu0 0.0
  %7062 = vmatmul.mubr.f32.gmra.mxu0 %v6860
  %v7063 = vpop.f32.mrf.mxu0
  %v7064 = vadd.f32 0.0, %v7063
  %v7065 = vpop.f32.mrf.mxu0
  %7066 = vmatprep.mubr.f32.mxu0 0.0
  %7067 = vmatmul.mubr.f32.gmra.mxu0 %v6861
  %v7068 = vpop.f32.mrf.mxu0
  %v7069 = vadd.f32 0.0, %v7068
  %v7070 = vpop.f32.mrf.mxu0
  %7071 = vmatprep.mubr.f32.mxu0 0.0
  %7072 = vmatmul.mubr.f32.gmra.mxu0 %v6862
  %v7073 = vpop.f32.mrf.mxu0
  %v7074 = vadd.f32 0.0, %v7073
  %v7075 = vpop.f32.mrf.mxu0
  %7076 = vmatprep.mubr.f32.mxu0 0.0
  %7077 = vmatmul.mubr.f32.gmra.mxu0 %v6863
  %v7078 = vpop.f32.mrf.mxu0
  %v7079 = vadd.f32 0.0, %v7078
  %v7080 = vpop.f32.mrf.mxu0
  %7081 = vmatprep.mubr.f32.mxu0 0.0
  %7082 = vmatmul.mubr.f32.gmra.mxu0 %v6864
  %v7083 = vpop.f32.mrf.mxu0
  %v7084 = vadd.f32 0.0, %v7083
  %v7085 = vpop.f32.mrf.mxu0
  %7086 = vmatprep.mubr.f32.mxu0 0.0
  %7087 = vmatmul.mubr.f32.gmra.mxu0 %v6865
  %v7088 = vpop.f32.mrf.mxu0
  %v7089 = vadd.f32 0.0, %v7088
  %v7090 = vpop.f32.mrf.mxu0
  %7091 = vmatprep.mubr.f32.mxu0 0.0
  %7092 = vmatmul.mubr.f32.gmra.mxu0 %v6866
  %v7093 = vpop.f32.mrf.mxu0
  %v7094 = vadd.f32 0.0, %v7093
  %v7095 = vpop.f32.mrf.mxu0
  %7096 = vmatprep.mubr.f32.mxu0 0.0
  %7097 = vmatmul.mubr.f32.gmra.mxu0 %v6867
  %v7098 = vpop.f32.mrf.mxu0
  %v7099 = vadd.f32 0.0, %v7098
  %v7100 = vpop.f32.mrf.mxu0
  %7101 = vmatprep.mubr.f32.mxu0 0.0
  %7102 = vmatmul.mubr.f32.gmra.mxu0 %v6868
  %v7103 = vpop.f32.mrf.mxu0
  %v7104 = vadd.f32 0.0, %v7103
  %v7105 = vpop.f32.mrf.mxu0
  %7106 = vmatprep.mubr.f32.mxu0 0.0
  %7107 = vmatmul.mubr.f32.gmra.mxu0 %v6869
  %v7108 = vpop.f32.mrf.mxu0
  %v7109 = vadd.f32 0.0, %v7108
  %v7110 = vpop.f32.mrf.mxu0
  %7111 = vmatprep.mubr.f32.mxu0 0.0
  %7112 = vmatmul.mubr.f32.gmra.mxu0 %v6870
  %v7113 = vpop.f32.mrf.mxu0
  %v7114 = vadd.f32 0.0, %v7113
  %v7115 = vpop.f32.mrf.mxu0
  %7116 = vmatprep.mubr.f32.mxu0 0.0
  %7117 = vmatmul.mubr.f32.gmra.mxu0 %v6871
  %v7118 = vpop.f32.mrf.mxu0
  %v7119 = vadd.f32 0.0, %v7118
  %v7120 = vpop.f32.mrf.mxu0
  %7121 = vmatprep.mubr.f32.mxu0 0.0
  %7122 = vmatmul.mubr.f32.gmra.mxu0 %v6872
  %v7123 = vpop.f32.mrf.mxu0
  %v7124 = vadd.f32 0.0, %v7123
  %v7125 = vpop.f32.mrf.mxu0
  %7126 = vmatprep.mubr.f32.mxu0 0.0
  %7127 = vmatmul.mubr.f32.gmra.mxu0 %v6873
  %v7128 = vpop.f32.mrf.mxu0
  %v7129 = vadd.f32 0.0, %v7128
  %v7130 = vpop.f32.mrf.mxu0
  %7131 = vmatprep.mubr.f32.mxu0 0.0
  %7132 = vmatmul.mubr.f32.gmra.mxu0 %v6874
  %v7133 = vpop.f32.mrf.mxu0
  %v7134 = vadd.f32 0.0, %v7133
  %v7135 = vpop.f32.mrf.mxu0
  %7136 = vmatprep.mubr.f32.mxu0 0.0
  %7137 = vmatmul.mubr.f32.gmra.mxu0 %v6875
  %v7138 = vpop.f32.mrf.mxu0
  %v7139 = vadd.f32 0.0, %v7138
  %v7140 = vpop.f32.mrf.mxu0
  %7141 = vmatprep.mubr.f32.mxu0 0.0
  %7142 = vmatmul.mubr.f32.gmra.mxu0 %v6876
  %v7143 = vpop.f32.mrf.mxu0
  %v7144 = vadd.f32 0.0, %v7143
  %v7145 = vpop.f32.mrf.mxu0
  %7146 = vmatprep.mubr.f32.mxu0 0.0
  %7147 = vmatmul.mubr.f32.gmra.mxu0 %v6877
  %v7148 = vpop.f32.mrf.mxu0
  %v7149 = vadd.f32 0.0, %v7148
  %v7150 = vpop.f32.mrf.mxu0
  %7151 = vmatprep.mubr.f32.mxu0 0.0
  %7152 = vmatmul.mubr.f32.gmra.mxu0 %v6878
  %v7153 = vpop.f32.mrf.mxu0
  %v7154 = vadd.f32 0.0, %v7153
  %v7155 = vpop.f32.mrf.mxu0
  %7156 = vmatprep.mubr.f32.mxu0 0.0
  %7157 = vmatmul.mubr.f32.gmra.mxu0 %v6879
  %v7158 = vpop.f32.mrf.mxu0
  %v7159 = vadd.f32 0.0, %v7158
  %v7160 = vpop.f32.mrf.mxu0
  %7161 = vmatprep.mubr.f32.mxu0 0.0
  %7162 = vmatmul.mubr.f32.gmra.mxu0 %v6880
  %v7163 = vpop.f32.mrf.mxu0
  %v7164 = vadd.f32 0.0, %v7163
  %v7165 = vpop.f32.mrf.mxu0
  %7166 = vmatprep.mubr.f32.mxu0 0.0
  %7167 = vmatmul.mubr.f32.gmra.mxu0 %v6881
  %v7168 = vpop.f32.mrf.mxu0
  %v7169 = vadd.f32 0.0, %v7168
  %v7170 = vpop.f32.mrf.mxu0
  %7171 = vmatprep.mubr.f32.mxu0 0.0
  %7172 = vmatmul.mubr.f32.gmra.mxu0 %v6882
  %v7173 = vpop.f32.mrf.mxu0
  %v7174 = vadd.f32 0.0, %v7173
  %v7175 = vpop.f32.mrf.mxu0
  %7176 = vmatprep.mubr.f32.mxu0 0.0
  %7177 = vmatmul.mubr.f32.gmra.mxu0 %v6883
  %v7178 = vpop.f32.mrf.mxu0
  %v7179 = vadd.f32 0.0, %v7178
  %v7180 = vpop.f32.mrf.mxu0
  %7181 = vmatprep.mubr.f32.mxu0 0.0
  %7182 = vmatmul.mubr.f32.gmra.mxu0 %v6884
  %v7183 = vpop.f32.mrf.mxu0
  %v7184 = vadd.f32 0.0, %v7183
  %v7185 = vpop.f32.mrf.mxu0
  %7186 = vmatprep.mubr.f32.mxu0 0.0
  %7187 = vmatmul.mubr.f32.gmra.mxu0 %v6885
  %v7188 = vpop.f32.mrf.mxu0
  %v7189 = vadd.f32 0.0, %v7188
  %v7190 = vpop.f32.mrf.mxu0
  %7191 = vmatprep.mubr.f32.mxu0 0.0
  %7192 = vmatmul.mubr.f32.gmra.mxu0 %v6886
  %v7193 = vpop.f32.mrf.mxu0
  %v7194 = vadd.f32 0.0, %v7193
  %v7195 = vpop.f32.mrf.mxu0
  %7196 = vmatprep.mubr.f32.mxu0 0.0
  %7197 = vmatmul.mubr.f32.gmra.mxu0 %v6887
  %v7198 = vpop.f32.mrf.mxu0
  %v7199 = vadd.f32 0.0, %v7198
  %v7200 = vpop.f32.mrf.mxu0
  %7201 = vmatprep.mubr.f32.mxu0 0.0
  %7202 = vmatmul.mubr.f32.gmra.mxu0 %v6888
  %v7203 = vpop.f32.mrf.mxu0
  %v7204 = vadd.f32 0.0, %v7203
  %v7205 = vpop.f32.mrf.mxu0
  %7206 = vmatprep.mubr.f32.mxu0 0.0
  %7207 = vmatmul.mubr.f32.gmra.mxu0 %v6889
  %v7208 = vpop.f32.mrf.mxu0
  %v7209 = vadd.f32 0.0, %v7208
  %v7210 = vpop.f32.mrf.mxu0
  %7211 = vmatprep.mubr.f32.mxu0 0.0
  %7212 = vmatmul.mubr.f32.gmra.mxu0 %v6890
  %v7213 = vpop.f32.mrf.mxu0
  %v7214 = vadd.f32 0.0, %v7213
  %v7215 = vpop.f32.mrf.mxu0
  %7216 = vmatprep.mubr.f32.mxu0 0.0
  %7217 = vmatmul.mubr.f32.gmra.mxu0 %v6891
  %v7218 = vpop.f32.mrf.mxu0
  %v7219 = vadd.f32 0.0, %v7218
  %v7220 = vpop.f32.mrf.mxu0
  %7221 = vmatprep.mubr.f32.mxu0 0.0
  %7222 = vmatmul.mubr.f32.gmra.mxu0 %v6892
  %v7223 = vpop.f32.mrf.mxu0
  %v7224 = vadd.f32 0.0, %v7223
  %v7225 = vpop.f32.mrf.mxu0
  %7226 = vmatprep.mubr.f32.mxu0 0.0
  %7227 = vmatmul.mubr.f32.gmra.mxu0 %v6893
  %v7228 = vpop.f32.mrf.mxu0
  %v7229 = vadd.f32 0.0, %v7228
  %v7230 = vpop.f32.mrf.mxu0
  %7231 = vmatprep.mubr.f32.mxu0 0.0
  %7232 = vmatmul.mubr.f32.gmra.mxu0 %v6894
  %v7233 = vpop.f32.mrf.mxu0
  %v7234 = vadd.f32 0.0, %v7233
  %v7235 = vpop.f32.mrf.mxu0
  %7236 = vmatprep.mubr.f32.mxu0 0.0
  %7237 = vmatmul.mubr.f32.gmra.mxu0 %v6895
  %v7238 = vpop.f32.mrf.mxu0
  %v7239 = vadd.f32 0.0, %v7238
  %v7240 = vpop.f32.mrf.mxu0
  %7241 = vmatprep.mubr.f32.mxu0 0.0
  %7242 = vmatmul.mubr.f32.gmra.mxu0 %v6896
  %v7243 = vpop.f32.mrf.mxu0
  %v7244 = vadd.f32 0.0, %v7243
  %v7245 = vpop.f32.mrf.mxu0
  %7246 = vmatprep.mubr.f32.mxu0 0.0
  %7247 = vmatmul.mubr.f32.gmra.mxu0 %v6897
  %v7248 = vpop.f32.mrf.mxu0
  %v7249 = vadd.f32 0.0, %v7248
  %v7250 = vpop.f32.mrf.mxu0
  %7251 = vmatprep.mubr.f32.mxu0 0.0
  %7252 = vmatmul.mubr.f32.gmra.mxu0 %v6898
  %v7253 = vpop.f32.mrf.mxu0
  %v7254 = vadd.f32 0.0, %v7253
  %v7255 = vpop.f32.mrf.mxu0
  %7256 = vmatprep.mubr.f32.mxu0 0.0
  %7257 = vmatmul.mubr.f32.gmra.mxu0 %v6899
  %v7258 = vpop.f32.mrf.mxu0
  %v7259 = vadd.f32 0.0, %v7258
  %v7260 = vpop.f32.mrf.mxu0
  %7261 = vmatprep.mubr.f32.mxu0 0.0
  %7262 = vmatmul.mubr.f32.gmra.mxu0 %v6900
  %v7263 = vpop.f32.mrf.mxu0
  %v7264 = vadd.f32 0.0, %v7263
  %v7265 = vpop.f32.mrf.mxu0
  %7266 = vmatprep.mubr.f32.mxu0 0.0
  %7267 = vmatmul.mubr.f32.gmra.mxu0 %v6901
  %v7268 = vpop.f32.mrf.mxu0
  %v7269 = vadd.f32 0.0, %v7268
  %v7270 = vpop.f32.mrf.mxu0
  %7271 = vmatprep.mubr.f32.mxu0 0.0
  %7272 = vmatmul.mubr.f32.gmra.mxu0 %v6902
  %v7273 = vpop.f32.mrf.mxu0
  %v7274 = vadd.f32 0.0, %v7273
  %v7275 = vpop.f32.mrf.mxu0
  %7276 = vmatprep.mubr.f32.mxu0 0.0
  %7277 = vmatmul.mubr.f32.gmra.mxu0 %v6903
  %v7278 = vpop.f32.mrf.mxu0
  %v7279 = vadd.f32 0.0, %v7278
  %v7280 = vpop.f32.mrf.mxu0
  %7281 = vmatprep.mubr.f32.mxu0 0.0
  %7282 = vmatmul.mubr.f32.gmra.mxu0 %v6904
  %v7283 = vpop.f32.mrf.mxu0
  %v7284 = vadd.f32 0.0, %v7283
  %v7285 = vpop.f32.mrf.mxu0
  %7286 = vmatprep.mubr.f32.mxu0 0.0
  %7287 = vmatmul.mubr.f32.gmra.mxu0 %v6905
  %v7288 = vpop.f32.mrf.mxu0
  %v7289 = vadd.f32 0.0, %v7288
  %v7290 = vpop.f32.mrf.mxu0
  %7291 = vmatprep.mubr.f32.mxu0 0.0
  %7292 = vmatmul.mubr.f32.gmra.mxu0 %v6906
  %v7293 = vpop.f32.mrf.mxu0
  %v7294 = vadd.f32 0.0, %v7293
  %v7295 = vpop.f32.mrf.mxu0
  %7296 = vmatprep.mubr.f32.mxu0 0.0
  %7297 = vmatmul.mubr.f32.gmra.mxu0 %v6907
  %v7298 = vpop.f32.mrf.mxu0
  %v7299 = vadd.f32 0.0, %v7298
  %v7300 = vpop.f32.mrf.mxu0
  %7301 = vmatprep.mubr.f32.mxu0 0.0
  %7302 = vmatmul.mubr.f32.gmra.mxu0 %v6908
  %v7303 = vpop.f32.mrf.mxu0
  %v7304 = vadd.f32 0.0, %v7303
  %v7305 = vpop.f32.mrf.mxu0
  %7306 = vmatprep.mubr.f32.mxu0 0.0
  %7307 = vmatmul.mubr.f32.gmra.mxu0 %v6909
  %v7308 = vpop.f32.mrf.mxu0
  %v7309 = vadd.f32 0.0, %v7308
  %v7310 = vpop.f32.mrf.mxu0
  %7311 = vdwg.mxu0
  %v7312 = vadd.f32 %v6782, %v6994
  %v7313 = vadd.f32 %v6783, %v6999
  %v7314 = vadd.f32 %v6784, %v7004
  %v7315 = vadd.f32 %v6785, %v7009
  %v7316 = vadd.f32 %v6786, %v7014
  %v7317 = vadd.f32 %v6787, %v7019
  %v7318 = vadd.f32 %v6788, %v7024
  %v7319 = vadd.f32 %v6789, %v7029
  %v7320 = vadd.f32 %v6790, %v7034
  %v7321 = vadd.f32 %v6791, %v7039
  %v7322 = vadd.f32 %v6792, %v7044
  %v7323 = vadd.f32 %v6793, %v7049
  %v7324 = vadd.f32 %v6794, %v7054
  %v7325 = vadd.f32 %v6795, %v7059
  %v7326 = vadd.f32 %v6796, %v7064
  %v7327 = vadd.f32 %v6797, %v7069
  %v7328 = vadd.f32 %v6798, %v7074
  %v7329 = vadd.f32 %v6799, %v7079
  %v7330 = vadd.f32 %v6800, %v7084
  %v7331 = vadd.f32 %v6801, %v7089
  %v7332 = vadd.f32 %v6802, %v7094
  %v7333 = vadd.f32 %v6803, %v7099
  %v7334 = vadd.f32 %v6804, %v7104
  %v7335 = vadd.f32 %v6805, %v7109
  %v7336 = vadd.f32 %v6806, %v7114
  %v7337 = vadd.f32 %v6807, %v7119
  %v7338 = vadd.f32 %v6808, %v7124
  %v7339 = vadd.f32 %v6809, %v7129
  %v7340 = vadd.f32 %v6810, %v7134
  %v7341 = vadd.f32 %v6811, %v7139
  %v7342 = vadd.f32 %v6812, %v7144
  %v7343 = vadd.f32 %v6813, %v7149
  %v7344 = vadd.f32 %v6814, %v7154
  %v7345 = vadd.f32 %v6815, %v7159
  %v7346 = vadd.f32 %v6816, %v7164
  %v7347 = vadd.f32 %v6817, %v7169
  %v7348 = vadd.f32 %v6818, %v7174
  %v7349 = vadd.f32 %v6819, %v7179
  %v7350 = vadd.f32 %v6820, %v7184
  %v7351 = vadd.f32 %v6821, %v7189
  %v7352 = vadd.f32 %v6822, %v7194
  %v7353 = vadd.f32 %v6823, %v7199
  %v7354 = vadd.f32 %v6824, %v7204
  %v7355 = vadd.f32 %v6825, %v7209
  %v7356 = vadd.f32 %v6826, %v7214
  %v7357 = vadd.f32 %v6827, %v7219
  %v7358 = vadd.f32 %v6828, %v7224
  %v7359 = vadd.f32 %v6829, %v7229
  %v7360 = vadd.f32 %v6830, %v7234
  %v7361 = vadd.f32 %v6831, %v7239
  %v7362 = vadd.f32 %v6832, %v7244
  %v7363 = vadd.f32 %v6833, %v7249
  %v7364 = vadd.f32 %v6834, %v7254
  %v7365 = vadd.f32 %v6835, %v7259
  %v7366 = vadd.f32 %v6836, %v7264
  %v7367 = vadd.f32 %v6837, %v7269
  %v7368 = vadd.f32 %v6838, %v7274
  %v7369 = vadd.f32 %v6839, %v7279
  %v7370 = vadd.f32 %v6840, %v7284
  %v7371 = vadd.f32 %v6841, %v7289
  %v7372 = vadd.f32 %v6842, %v7294
  %v7373 = vadd.f32 %v6843, %v7299
  %v7374 = vadd.f32 %v6844, %v7304
  %v7375 = vadd.f32 %v6845, %v7309
  %v7376 = vld [vmem:[%s5320 + $0x1] sm:$0xff]
  %v7377 = vld [vmem:[%s5320 + $0x9] sm:$0xff]
  %v7378 = vld [vmem:[%s5320 + $0x19] sm:$0xff]
  %v7379 = vld [vmem:[%s5320 + $0x21] sm:$0xff]
  %v7380 = vld [vmem:[%s5320 + $0x31] sm:$0xff]
  %v7381 = vld [vmem:[%s5320 + $0x39] sm:$0xff]
  %v7382 = vld [vmem:[%s5320 + $0x49] sm:$0xff]
  %v7383 = vld [vmem:[%s5320 + $0x51] sm:$0xff]
  %v7384 = vld [vmem:[%s5320 + $0x61] sm:$0xff]
  %v7385 = vld [vmem:[%s5320 + $0x69] sm:$0xff]
  %v7386 = vld [vmem:[%s5320 + $0x79] sm:$0xff]
  %v7387 = vld [vmem:[%s5320 + $0x81] sm:$0xff]
  %v7388 = vld [vmem:[%s5320 + $0x91] sm:$0xff]
  %v7389 = vld [vmem:[%s5320 + $0x99] sm:$0xff]
  %v7390 = vld [vmem:[%s5320 + $0xa9] sm:$0xff]
  %v7391 = vld [vmem:[%s5320 + $0xb1] sm:$0xff]
  %v7392 = vld [vmem:[%s5320 + $0xc1] sm:$0xff]
  %v7393 = vld [vmem:[%s5320 + $0xc9] sm:$0xff]
  %v7394 = vld [vmem:[%s5320 + $0xd9] sm:$0xff]
  %v7395 = vld [vmem:[%s5320 + $0xe1] sm:$0xff]
  %v7396 = vld [vmem:[%s5320 + $0xf1] sm:$0xff]
  %v7397 = vld [vmem:[%s5320 + $0xf9] sm:$0xff]
  %v7398 = vld [vmem:[%s5320 + $0x109] sm:$0xff]
  %v7399 = vld [vmem:[%s5320 + $0x111] sm:$0xff]
  %v7400 = vld [vmem:[%s5320 + $0x121] sm:$0xff]
  %v7401 = vld [vmem:[%s5320 + $0x129] sm:$0xff]
  %v7402 = vld [vmem:[%s5320 + $0x139] sm:$0xff]
  %v7403 = vld [vmem:[%s5320 + $0x141] sm:$0xff]
  %v7404 = vld [vmem:[%s5320 + $0x151] sm:$0xff]
  %v7405 = vld [vmem:[%s5320 + $0x159] sm:$0xff]
  %v7406 = vld [vmem:[%s5320 + $0x169] sm:$0xff]
  %v7407 = vld [vmem:[%s5320 + $0x171] sm:$0xff]
  %v7408 = vld [vmem:[%s5320 + $0x1b1] sm:$0xff]
  %v7409 = vld [vmem:[%s5320 + $0x1b9] sm:$0xff]
  %v7410 = vld [vmem:[%s5320 + $0x1c9] sm:$0xff]
  %v7411 = vld [vmem:[%s5320 + $0x1d1] sm:$0xff]
  %v7412 = vld [vmem:[%s5320 + $0x1e1] sm:$0xff]
  %v7413 = vld [vmem:[%s5320 + $0x1e9] sm:$0xff]
  %v7414 = vld [vmem:[%s5320 + $0x1f9] sm:$0xff]
  %v7415 = vld [vmem:[%s5320 + $0x201] sm:$0xff]
  %v7416 = vld [vmem:[%s5320 + $0x211] sm:$0xff]
  %v7417 = vld [vmem:[%s5320 + $0x219] sm:$0xff]
  %v7418 = vld [vmem:[%s5320 + $0x229] sm:$0xff]
  %v7419 = vld [vmem:[%s5320 + $0x231] sm:$0xff]
  %v7420 = vld [vmem:[%s5320 + $0x241] sm:$0xff]
  %v7421 = vld [vmem:[%s5320 + $0x249] sm:$0xff]
  %v7422 = vld [vmem:[%s5320 + $0x259] sm:$0xff]
  %v7423 = vld [vmem:[%s5320 + $0x261] sm:$0xff]
  %v7424 = vld [vmem:[%s5320 + $0x271] sm:$0xff]
  %v7425 = vld [vmem:[%s5320 + $0x279] sm:$0xff]
  %v7426 = vld [vmem:[%s5320 + $0x289] sm:$0xff]
  %v7427 = vld [vmem:[%s5320 + $0x291] sm:$0xff]
  %v7428 = vld [vmem:[%s5320 + $0x2a1] sm:$0xff]
  %v7429 = vld [vmem:[%s5320 + $0x2a9] sm:$0xff]
  %v7430 = vld [vmem:[%s5320 + $0x2b9] sm:$0xff]
  %v7431 = vld [vmem:[%s5320 + $0x2c1] sm:$0xff]
  %v7432 = vld [vmem:[%s5320 + $0x2d1] sm:$0xff]
  %v7433 = vld [vmem:[%s5320 + $0x2d9] sm:$0xff]
  %v7434 = vld [vmem:[%s5320 + $0x2e9] sm:$0xff]
  %v7435 = vld [vmem:[%s5320 + $0x2f1] sm:$0xff]
  %v7436 = vld [vmem:[%s5320 + $0x301] sm:$0xff]
  %v7437 = vld [vmem:[%s5320 + $0x309] sm:$0xff]
  %v7438 = vld [vmem:[%s5320 + $0x319] sm:$0xff]
  %v7439 = vld [vmem:[%s5320 + $0x321] sm:$0xff]
  %s7440 = scalar_lea.vmem %s2, 512
  %v7441 = vld [vmem:[%s7440] sm:$0xff]
  %v7442 = vld [vmem:[%s7440 + $0x8] sm:$0xff]
  %v7443 = vld [vmem:[%s7440 + $0x10] sm:$0xff]
  %v7444 = vld [vmem:[%s7440 + $0x18] sm:$0xff]
  %v7445 = vld [vmem:[%s7440 + $0x20] sm:$0xff]
  %v7446 = vld [vmem:[%s7440 + $0x28] sm:$0xff]
  %v7447 = vld [vmem:[%s7440 + $0x30] sm:$0xff]
  %v7448 = vld [vmem:[%s7440 + $0x38] sm:$0xff]
  %v7449 = vld [vmem:[%s7440 + $0x40] sm:$0xff]
  %v7450 = vld [vmem:[%s7440 + $0x48] sm:$0xff]
  %v7451 = vld [vmem:[%s7440 + $0x50] sm:$0xff]
  %v7452 = vld [vmem:[%s7440 + $0x58] sm:$0xff]
  %v7453 = vld [vmem:[%s7440 + $0x60] sm:$0xff]
  %v7454 = vld [vmem:[%s7440 + $0x68] sm:$0xff]
  %v7455 = vld [vmem:[%s7440 + $0x70] sm:$0xff]
  %v7456 = vld [vmem:[%s7440 + $0x78] sm:$0xff]
  %7457 = vmatprep.subr.mxu0 0.0
  %7458 = vmatpush1.msra.mxu0 %v7456
  %7459 = vmatprep.subr.mxu0 0.0
  %7460 = vmatpush1.msra.mxu0 %v7455
  %7461 = vmatprep.subr.mxu0 0.0
  %7462 = vmatpush1.msra.mxu0 %v7454
  %7463 = vmatprep.subr.mxu0 0.0
  %7464 = vmatpush1.msra.mxu0 %v7453
  %7465 = vmatprep.subr.mxu0 0.0
  %7466 = vmatpush1.msra.mxu0 %v7452
  %7467 = vmatprep.subr.mxu0 0.0
  %7468 = vmatpush1.msra.mxu0 %v7451
  %7469 = vmatprep.subr.mxu0 0.0
  %7470 = vmatpush1.msra.mxu0 %v7450
  %7471 = vmatprep.subr.mxu0 0.0
  %7472 = vmatpush1.msra.mxu0 %v7449
  %7473 = vmatprep.subr.mxu0 0.0
  %7474 = vmatpush1.msra.mxu0 %v7448
  %7475 = vmatprep.subr.mxu0 0.0
  %7476 = vmatpush1.msra.mxu0 %v7447
  %7477 = vmatprep.subr.mxu0 0.0
  %7478 = vmatpush1.msra.mxu0 %v7446
  %7479 = vmatprep.subr.mxu0 0.0
  %7480 = vmatpush1.msra.mxu0 %v7445
  %7481 = vmatprep.subr.mxu0 0.0
  %7482 = vmatpush1.msra.mxu0 %v7444
  %7483 = vmatprep.subr.mxu0 0.0
  %7484 = vmatpush1.msra.mxu0 %v7443
  %7485 = vmatprep.subr.mxu0 0.0
  %7486 = vmatpush1.msra.mxu0 %v7442
  %7487 = vmatprep.subr.mxu0 0.0
  %7488 = vmatpush1.msra.mxu0 %v7441
  %7489 = vmatprep.subr.mxu0 0.0
  %7490 = vmatpush2.msra.mxu0 0.0
  %7491 = vmatprep.subr.mxu0 0.0
  %7492 = vmatpush2.msra.mxu0 0.0
  %7493 = vmatprep.subr.mxu0 0.0
  %7494 = vmatpush2.msra.mxu0 0.0
  %7495 = vmatprep.subr.mxu0 0.0
  %7496 = vmatpush2.msra.mxu0 0.0
  %7497 = vmatprep.subr.mxu0 0.0
  %7498 = vmatpush2.msra.mxu0 0.0
  %7499 = vmatprep.subr.mxu0 0.0
  %7500 = vmatpush2.msra.mxu0 0.0
  %7501 = vmatprep.subr.mxu0 0.0
  %7502 = vmatpush2.msra.mxu0 0.0
  %7503 = vmatprep.subr.mxu0 0.0
  %7504 = vmatpush2.msra.mxu0 0.0
  %7505 = vmatprep.subr.mxu0 0.0
  %7506 = vmatpush2.msra.mxu0 0.0
  %7507 = vmatprep.subr.mxu0 0.0
  %7508 = vmatpush2.msra.mxu0 0.0
  %7509 = vmatprep.subr.mxu0 0.0
  %7510 = vmatpush2.msra.mxu0 0.0
  %7511 = vmatprep.subr.mxu0 0.0
  %7512 = vmatpush2.msra.mxu0 0.0
  %7513 = vmatprep.subr.mxu0 0.0
  %7514 = vmatpush2.msra.mxu0 0.0
  %7515 = vmatprep.subr.mxu0 0.0
  %7516 = vmatpush2.msra.mxu0 0.0
  %7517 = vmatprep.subr.mxu0 0.0
  %7518 = vmatpush2.msra.mxu0 0.0
  %7519 = vmatprep.subr.mxu0 0.0
  %7520 = vmatpush2.msra.mxu0 0.0
  %7521 = vmatprep.mubr.f32.mxu0 0.0
  %7522 = vmatmul.mubr.f32.gmra.mxu0 %v7376
  %v7523 = vpop.f32.mrf.mxu0
  %v7524 = vadd.f32 0.0, %v7523
  %v7525 = vpop.f32.mrf.mxu0
  %7526 = vmatprep.mubr.f32.mxu0 0.0
  %7527 = vmatmul.mubr.f32.gmra.mxu0 %v7377
  %v7528 = vpop.f32.mrf.mxu0
  %v7529 = vadd.f32 0.0, %v7528
  %v7530 = vpop.f32.mrf.mxu0
  %7531 = vmatprep.mubr.f32.mxu0 0.0
  %7532 = vmatmul.mubr.f32.gmra.mxu0 %v7378
  %v7533 = vpop.f32.mrf.mxu0
  %v7534 = vadd.f32 0.0, %v7533
  %v7535 = vpop.f32.mrf.mxu0
  %7536 = vmatprep.mubr.f32.mxu0 0.0
  %7537 = vmatmul.mubr.f32.gmra.mxu0 %v7379
  %v7538 = vpop.f32.mrf.mxu0
  %v7539 = vadd.f32 0.0, %v7538
  %v7540 = vpop.f32.mrf.mxu0
  %7541 = vmatprep.mubr.f32.mxu0 0.0
  %7542 = vmatmul.mubr.f32.gmra.mxu0 %v7380
  %v7543 = vpop.f32.mrf.mxu0
  %v7544 = vadd.f32 0.0, %v7543
  %v7545 = vpop.f32.mrf.mxu0
  %7546 = vmatprep.mubr.f32.mxu0 0.0
  %7547 = vmatmul.mubr.f32.gmra.mxu0 %v7381
  %v7548 = vpop.f32.mrf.mxu0
  %v7549 = vadd.f32 0.0, %v7548
  %v7550 = vpop.f32.mrf.mxu0
  %7551 = vmatprep.mubr.f32.mxu0 0.0
  %7552 = vmatmul.mubr.f32.gmra.mxu0 %v7382
  %v7553 = vpop.f32.mrf.mxu0
  %v7554 = vadd.f32 0.0, %v7553
  %v7555 = vpop.f32.mrf.mxu0
  %7556 = vmatprep.mubr.f32.mxu0 0.0
  %7557 = vmatmul.mubr.f32.gmra.mxu0 %v7383
  %v7558 = vpop.f32.mrf.mxu0
  %v7559 = vadd.f32 0.0, %v7558
  %v7560 = vpop.f32.mrf.mxu0
  %7561 = vmatprep.mubr.f32.mxu0 0.0
  %7562 = vmatmul.mubr.f32.gmra.mxu0 %v7384
  %v7563 = vpop.f32.mrf.mxu0
  %v7564 = vadd.f32 0.0, %v7563
  %v7565 = vpop.f32.mrf.mxu0
  %7566 = vmatprep.mubr.f32.mxu0 0.0
  %7567 = vmatmul.mubr.f32.gmra.mxu0 %v7385
  %v7568 = vpop.f32.mrf.mxu0
  %v7569 = vadd.f32 0.0, %v7568
  %v7570 = vpop.f32.mrf.mxu0
  %7571 = vmatprep.mubr.f32.mxu0 0.0
  %7572 = vmatmul.mubr.f32.gmra.mxu0 %v7386
  %v7573 = vpop.f32.mrf.mxu0
  %v7574 = vadd.f32 0.0, %v7573
  %v7575 = vpop.f32.mrf.mxu0
  %7576 = vmatprep.mubr.f32.mxu0 0.0
  %7577 = vmatmul.mubr.f32.gmra.mxu0 %v7387
  %v7578 = vpop.f32.mrf.mxu0
  %v7579 = vadd.f32 0.0, %v7578
  %v7580 = vpop.f32.mrf.mxu0
  %7581 = vmatprep.mubr.f32.mxu0 0.0
  %7582 = vmatmul.mubr.f32.gmra.mxu0 %v7388
  %v7583 = vpop.f32.mrf.mxu0
  %v7584 = vadd.f32 0.0, %v7583
  %v7585 = vpop.f32.mrf.mxu0
  %7586 = vmatprep.mubr.f32.mxu0 0.0
  %7587 = vmatmul.mubr.f32.gmra.mxu0 %v7389
  %v7588 = vpop.f32.mrf.mxu0
  %v7589 = vadd.f32 0.0, %v7588
  %v7590 = vpop.f32.mrf.mxu0
  %7591 = vmatprep.mubr.f32.mxu0 0.0
  %7592 = vmatmul.mubr.f32.gmra.mxu0 %v7390
  %v7593 = vpop.f32.mrf.mxu0
  %v7594 = vadd.f32 0.0, %v7593
  %v7595 = vpop.f32.mrf.mxu0
  %7596 = vmatprep.mubr.f32.mxu0 0.0
  %7597 = vmatmul.mubr.f32.gmra.mxu0 %v7391
  %v7598 = vpop.f32.mrf.mxu0
  %v7599 = vadd.f32 0.0, %v7598
  %v7600 = vpop.f32.mrf.mxu0
  %7601 = vmatprep.mubr.f32.mxu0 0.0
  %7602 = vmatmul.mubr.f32.gmra.mxu0 %v7392
  %v7603 = vpop.f32.mrf.mxu0
  %v7604 = vadd.f32 0.0, %v7603
  %v7605 = vpop.f32.mrf.mxu0
  %7606 = vmatprep.mubr.f32.mxu0 0.0
  %7607 = vmatmul.mubr.f32.gmra.mxu0 %v7393
  %v7608 = vpop.f32.mrf.mxu0
  %v7609 = vadd.f32 0.0, %v7608
  %v7610 = vpop.f32.mrf.mxu0
  %7611 = vmatprep.mubr.f32.mxu0 0.0
  %7612 = vmatmul.mubr.f32.gmra.mxu0 %v7394
  %v7613 = vpop.f32.mrf.mxu0
  %v7614 = vadd.f32 0.0, %v7613
  %v7615 = vpop.f32.mrf.mxu0
  %7616 = vmatprep.mubr.f32.mxu0 0.0
  %7617 = vmatmul.mubr.f32.gmra.mxu0 %v7395
  %v7618 = vpop.f32.mrf.mxu0
  %v7619 = vadd.f32 0.0, %v7618
  %v7620 = vpop.f32.mrf.mxu0
  %7621 = vmatprep.mubr.f32.mxu0 0.0
  %7622 = vmatmul.mubr.f32.gmra.mxu0 %v7396
  %v7623 = vpop.f32.mrf.mxu0
  %v7624 = vadd.f32 0.0, %v7623
  %v7625 = vpop.f32.mrf.mxu0
  %7626 = vmatprep.mubr.f32.mxu0 0.0
  %7627 = vmatmul.mubr.f32.gmra.mxu0 %v7397
  %v7628 = vpop.f32.mrf.mxu0
  %v7629 = vadd.f32 0.0, %v7628
  %v7630 = vpop.f32.mrf.mxu0
  %7631 = vmatprep.mubr.f32.mxu0 0.0
  %7632 = vmatmul.mubr.f32.gmra.mxu0 %v7398
  %v7633 = vpop.f32.mrf.mxu0
  %v7634 = vadd.f32 0.0, %v7633
  %v7635 = vpop.f32.mrf.mxu0
  %7636 = vmatprep.mubr.f32.mxu0 0.0
  %7637 = vmatmul.mubr.f32.gmra.mxu0 %v7399
  %v7638 = vpop.f32.mrf.mxu0
  %v7639 = vadd.f32 0.0, %v7638
  %v7640 = vpop.f32.mrf.mxu0
  %7641 = vmatprep.mubr.f32.mxu0 0.0
  %7642 = vmatmul.mubr.f32.gmra.mxu0 %v7400
  %v7643 = vpop.f32.mrf.mxu0
  %v7644 = vadd.f32 0.0, %v7643
  %v7645 = vpop.f32.mrf.mxu0
  %7646 = vmatprep.mubr.f32.mxu0 0.0
  %7647 = vmatmul.mubr.f32.gmra.mxu0 %v7401
  %v7648 = vpop.f32.mrf.mxu0
  %v7649 = vadd.f32 0.0, %v7648
  %v7650 = vpop.f32.mrf.mxu0
  %7651 = vmatprep.mubr.f32.mxu0 0.0
  %7652 = vmatmul.mubr.f32.gmra.mxu0 %v7402
  %v7653 = vpop.f32.mrf.mxu0
  %v7654 = vadd.f32 0.0, %v7653
  %v7655 = vpop.f32.mrf.mxu0
  %7656 = vmatprep.mubr.f32.mxu0 0.0
  %7657 = vmatmul.mubr.f32.gmra.mxu0 %v7403
  %v7658 = vpop.f32.mrf.mxu0
  %v7659 = vadd.f32 0.0, %v7658
  %v7660 = vpop.f32.mrf.mxu0
  %7661 = vmatprep.mubr.f32.mxu0 0.0
  %7662 = vmatmul.mubr.f32.gmra.mxu0 %v7404
  %v7663 = vpop.f32.mrf.mxu0
  %v7664 = vadd.f32 0.0, %v7663
  %v7665 = vpop.f32.mrf.mxu0
  %7666 = vmatprep.mubr.f32.mxu0 0.0
  %7667 = vmatmul.mubr.f32.gmra.mxu0 %v7405
  %v7668 = vpop.f32.mrf.mxu0
  %v7669 = vadd.f32 0.0, %v7668
  %v7670 = vpop.f32.mrf.mxu0
  %7671 = vmatprep.mubr.f32.mxu0 0.0
  %7672 = vmatmul.mubr.f32.gmra.mxu0 %v7406
  %v7673 = vpop.f32.mrf.mxu0
  %v7674 = vadd.f32 0.0, %v7673
  %v7675 = vpop.f32.mrf.mxu0
  %7676 = vmatprep.mubr.f32.mxu0 0.0
  %7677 = vmatmul.mubr.f32.gmra.mxu0 %v7407
  %v7678 = vpop.f32.mrf.mxu0
  %v7679 = vadd.f32 0.0, %v7678
  %v7680 = vpop.f32.mrf.mxu0
  %7681 = vmatprep.mubr.f32.mxu0 0.0
  %7682 = vmatmul.mubr.f32.gmra.mxu0 %v7408
  %v7683 = vpop.f32.mrf.mxu0
  %v7684 = vadd.f32 0.0, %v7683
  %v7685 = vpop.f32.mrf.mxu0
  %7686 = vmatprep.mubr.f32.mxu0 0.0
  %7687 = vmatmul.mubr.f32.gmra.mxu0 %v7409
  %v7688 = vpop.f32.mrf.mxu0
  %v7689 = vadd.f32 0.0, %v7688
  %v7690 = vpop.f32.mrf.mxu0
  %7691 = vmatprep.mubr.f32.mxu0 0.0
  %7692 = vmatmul.mubr.f32.gmra.mxu0 %v7410
  %v7693 = vpop.f32.mrf.mxu0
  %v7694 = vadd.f32 0.0, %v7693
  %v7695 = vpop.f32.mrf.mxu0
  %7696 = vmatprep.mubr.f32.mxu0 0.0
  %7697 = vmatmul.mubr.f32.gmra.mxu0 %v7411
  %v7698 = vpop.f32.mrf.mxu0
  %v7699 = vadd.f32 0.0, %v7698
  %v7700 = vpop.f32.mrf.mxu0
  %7701 = vmatprep.mubr.f32.mxu0 0.0
  %7702 = vmatmul.mubr.f32.gmra.mxu0 %v7412
  %v7703 = vpop.f32.mrf.mxu0
  %v7704 = vadd.f32 0.0, %v7703
  %v7705 = vpop.f32.mrf.mxu0
  %7706 = vmatprep.mubr.f32.mxu0 0.0
  %7707 = vmatmul.mubr.f32.gmra.mxu0 %v7413
  %v7708 = vpop.f32.mrf.mxu0
  %v7709 = vadd.f32 0.0, %v7708
  %v7710 = vpop.f32.mrf.mxu0
  %7711 = vmatprep.mubr.f32.mxu0 0.0
  %7712 = vmatmul.mubr.f32.gmra.mxu0 %v7414
  %v7713 = vpop.f32.mrf.mxu0
  %v7714 = vadd.f32 0.0, %v7713
  %v7715 = vpop.f32.mrf.mxu0
  %7716 = vmatprep.mubr.f32.mxu0 0.0
  %7717 = vmatmul.mubr.f32.gmra.mxu0 %v7415
  %v7718 = vpop.f32.mrf.mxu0
  %v7719 = vadd.f32 0.0, %v7718
  %v7720 = vpop.f32.mrf.mxu0
  %7721 = vmatprep.mubr.f32.mxu0 0.0
  %7722 = vmatmul.mubr.f32.gmra.mxu0 %v7416
  %v7723 = vpop.f32.mrf.mxu0
  %v7724 = vadd.f32 0.0, %v7723
  %v7725 = vpop.f32.mrf.mxu0
  %7726 = vmatprep.mubr.f32.mxu0 0.0
  %7727 = vmatmul.mubr.f32.gmra.mxu0 %v7417
  %v7728 = vpop.f32.mrf.mxu0
  %v7729 = vadd.f32 0.0, %v7728
  %v7730 = vpop.f32.mrf.mxu0
  %7731 = vmatprep.mubr.f32.mxu0 0.0
  %7732 = vmatmul.mubr.f32.gmra.mxu0 %v7418
  %v7733 = vpop.f32.mrf.mxu0
  %v7734 = vadd.f32 0.0, %v7733
  %v7735 = vpop.f32.mrf.mxu0
  %7736 = vmatprep.mubr.f32.mxu0 0.0
  %7737 = vmatmul.mubr.f32.gmra.mxu0 %v7419
  %v7738 = vpop.f32.mrf.mxu0
  %v7739 = vadd.f32 0.0, %v7738
  %v7740 = vpop.f32.mrf.mxu0
  %7741 = vmatprep.mubr.f32.mxu0 0.0
  %7742 = vmatmul.mubr.f32.gmra.mxu0 %v7420
  %v7743 = vpop.f32.mrf.mxu0
  %v7744 = vadd.f32 0.0, %v7743
  %v7745 = vpop.f32.mrf.mxu0
  %7746 = vmatprep.mubr.f32.mxu0 0.0
  %7747 = vmatmul.mubr.f32.gmra.mxu0 %v7421
  %v7748 = vpop.f32.mrf.mxu0
  %v7749 = vadd.f32 0.0, %v7748
  %v7750 = vpop.f32.mrf.mxu0
  %7751 = vmatprep.mubr.f32.mxu0 0.0
  %7752 = vmatmul.mubr.f32.gmra.mxu0 %v7422
  %v7753 = vpop.f32.mrf.mxu0
  %v7754 = vadd.f32 0.0, %v7753
  %v7755 = vpop.f32.mrf.mxu0
  %7756 = vmatprep.mubr.f32.mxu0 0.0
  %7757 = vmatmul.mubr.f32.gmra.mxu0 %v7423
  %v7758 = vpop.f32.mrf.mxu0
  %v7759 = vadd.f32 0.0, %v7758
  %v7760 = vpop.f32.mrf.mxu0
  %7761 = vmatprep.mubr.f32.mxu0 0.0
  %7762 = vmatmul.mubr.f32.gmra.mxu0 %v7424
  %v7763 = vpop.f32.mrf.mxu0
  %v7764 = vadd.f32 0.0, %v7763
  %v7765 = vpop.f32.mrf.mxu0
  %7766 = vmatprep.mubr.f32.mxu0 0.0
  %7767 = vmatmul.mubr.f32.gmra.mxu0 %v7425
  %v7768 = vpop.f32.mrf.mxu0
  %v7769 = vadd.f32 0.0, %v7768
  %v7770 = vpop.f32.mrf.mxu0
  %7771 = vmatprep.mubr.f32.mxu0 0.0
  %7772 = vmatmul.mubr.f32.gmra.mxu0 %v7426
  %v7773 = vpop.f32.mrf.mxu0
  %v7774 = vadd.f32 0.0, %v7773
  %v7775 = vpop.f32.mrf.mxu0
  %7776 = vmatprep.mubr.f32.mxu0 0.0
  %7777 = vmatmul.mubr.f32.gmra.mxu0 %v7427
  %v7778 = vpop.f32.mrf.mxu0
  %v7779 = vadd.f32 0.0, %v7778
  %v7780 = vpop.f32.mrf.mxu0
  %7781 = vmatprep.mubr.f32.mxu0 0.0
  %7782 = vmatmul.mubr.f32.gmra.mxu0 %v7428
  %v7783 = vpop.f32.mrf.mxu0
  %v7784 = vadd.f32 0.0, %v7783
  %v7785 = vpop.f32.mrf.mxu0
  %7786 = vmatprep.mubr.f32.mxu0 0.0
  %7787 = vmatmul.mubr.f32.gmra.mxu0 %v7429
  %v7788 = vpop.f32.mrf.mxu0
  %v7789 = vadd.f32 0.0, %v7788
  %v7790 = vpop.f32.mrf.mxu0
  %7791 = vmatprep.mubr.f32.mxu0 0.0
  %7792 = vmatmul.mubr.f32.gmra.mxu0 %v7430
  %v7793 = vpop.f32.mrf.mxu0
  %v7794 = vadd.f32 0.0, %v7793
  %v7795 = vpop.f32.mrf.mxu0
  %7796 = vmatprep.mubr.f32.mxu0 0.0
  %7797 = vmatmul.mubr.f32.gmra.mxu0 %v7431
  %v7798 = vpop.f32.mrf.mxu0
  %v7799 = vadd.f32 0.0, %v7798
  %v7800 = vpop.f32.mrf.mxu0
  %7801 = vmatprep.mubr.f32.mxu0 0.0
  %7802 = vmatmul.mubr.f32.gmra.mxu0 %v7432
  %v7803 = vpop.f32.mrf.mxu0
  %v7804 = vadd.f32 0.0, %v7803
  %v7805 = vpop.f32.mrf.mxu0
  %7806 = vmatprep.mubr.f32.mxu0 0.0
  %7807 = vmatmul.mubr.f32.gmra.mxu0 %v7433
  %v7808 = vpop.f32.mrf.mxu0
  %v7809 = vadd.f32 0.0, %v7808
  %v7810 = vpop.f32.mrf.mxu0
  %7811 = vmatprep.mubr.f32.mxu0 0.0
  %7812 = vmatmul.mubr.f32.gmra.mxu0 %v7434
  %v7813 = vpop.f32.mrf.mxu0
  %v7814 = vadd.f32 0.0, %v7813
  %v7815 = vpop.f32.mrf.mxu0
  %7816 = vmatprep.mubr.f32.mxu0 0.0
  %7817 = vmatmul.mubr.f32.gmra.mxu0 %v7435
  %v7818 = vpop.f32.mrf.mxu0
  %v7819 = vadd.f32 0.0, %v7818
  %v7820 = vpop.f32.mrf.mxu0
  %7821 = vmatprep.mubr.f32.mxu0 0.0
  %7822 = vmatmul.mubr.f32.gmra.mxu0 %v7436
  %v7823 = vpop.f32.mrf.mxu0
  %v7824 = vadd.f32 0.0, %v7823
  %v7825 = vpop.f32.mrf.mxu0
  %7826 = vmatprep.mubr.f32.mxu0 0.0
  %7827 = vmatmul.mubr.f32.gmra.mxu0 %v7437
  %v7828 = vpop.f32.mrf.mxu0
  %v7829 = vadd.f32 0.0, %v7828
  %v7830 = vpop.f32.mrf.mxu0
  %7831 = vmatprep.mubr.f32.mxu0 0.0
  %7832 = vmatmul.mubr.f32.gmra.mxu0 %v7438
  %v7833 = vpop.f32.mrf.mxu0
  %v7834 = vadd.f32 0.0, %v7833
  %v7835 = vpop.f32.mrf.mxu0
  %7836 = vmatprep.mubr.f32.mxu0 0.0
  %7837 = vmatmul.mubr.f32.gmra.mxu0 %v7439
  %v7838 = vpop.f32.mrf.mxu0
  %v7839 = vadd.f32 0.0, %v7838
  %v7840 = vpop.f32.mrf.mxu0
  %7841 = vdwg.mxu0
  %v7842 = vadd.f32 %v7312, %v7524
  %v7843 = vadd.f32 %v7313, %v7529
  %v7844 = vadd.f32 %v7314, %v7534
  %v7845 = vadd.f32 %v7315, %v7539
  %v7846 = vadd.f32 %v7316, %v7544
  %v7847 = vadd.f32 %v7317, %v7549
  %v7848 = vadd.f32 %v7318, %v7554
  %v7849 = vadd.f32 %v7319, %v7559
  %v7850 = vadd.f32 %v7320, %v7564
  %v7851 = vadd.f32 %v7321, %v7569
  %v7852 = vadd.f32 %v7322, %v7574
  %v7853 = vadd.f32 %v7323, %v7579
  %v7854 = vadd.f32 %v7324, %v7584
  %v7855 = vadd.f32 %v7325, %v7589
  %v7856 = vadd.f32 %v7326, %v7594
  %v7857 = vadd.f32 %v7327, %v7599
  %v7858 = vadd.f32 %v7328, %v7604
  %v7859 = vadd.f32 %v7329, %v7609
  %v7860 = vadd.f32 %v7330, %v7614
  %v7861 = vadd.f32 %v7331, %v7619
  %v7862 = vadd.f32 %v7332, %v7624
  %v7863 = vadd.f32 %v7333, %v7629
  %v7864 = vadd.f32 %v7334, %v7634
  %v7865 = vadd.f32 %v7335, %v7639
  %v7866 = vadd.f32 %v7336, %v7644
  %v7867 = vadd.f32 %v7337, %v7649
  %v7868 = vadd.f32 %v7338, %v7654
  %v7869 = vadd.f32 %v7339, %v7659
  %v7870 = vadd.f32 %v7340, %v7664
  %v7871 = vadd.f32 %v7341, %v7669
  %v7872 = vadd.f32 %v7342, %v7674
  %v7873 = vadd.f32 %v7343, %v7679
  %v7874 = vadd.f32 %v7344, %v7684
  %v7875 = vadd.f32 %v7345, %v7689
  %v7876 = vadd.f32 %v7346, %v7694
  %v7877 = vadd.f32 %v7347, %v7699
  %v7878 = vadd.f32 %v7348, %v7704
  %v7879 = vadd.f32 %v7349, %v7709
  %v7880 = vadd.f32 %v7350, %v7714
  %v7881 = vadd.f32 %v7351, %v7719
  %v7882 = vadd.f32 %v7352, %v7724
  %v7883 = vadd.f32 %v7353, %v7729
  %v7884 = vadd.f32 %v7354, %v7734
  %v7885 = vadd.f32 %v7355, %v7739
  %v7886 = vadd.f32 %v7356, %v7744
  %v7887 = vadd.f32 %v7357, %v7749
  %v7888 = vadd.f32 %v7358, %v7754
  %v7889 = vadd.f32 %v7359, %v7759
  %v7890 = vadd.f32 %v7360, %v7764
  %v7891 = vadd.f32 %v7361, %v7769
  %v7892 = vadd.f32 %v7362, %v7774
  %v7893 = vadd.f32 %v7363, %v7779
  %v7894 = vadd.f32 %v7364, %v7784
  %v7895 = vadd.f32 %v7365, %v7789
  %v7896 = vadd.f32 %v7366, %v7794
  %v7897 = vadd.f32 %v7367, %v7799
  %v7898 = vadd.f32 %v7368, %v7804
  %v7899 = vadd.f32 %v7369, %v7809
  %v7900 = vadd.f32 %v7370, %v7814
  %v7901 = vadd.f32 %v7371, %v7819
  %v7902 = vadd.f32 %v7372, %v7824
  %v7903 = vadd.f32 %v7373, %v7829
  %v7904 = vadd.f32 %v7374, %v7834
  %v7905 = vadd.f32 %v7375, %v7839
  %v7906 = vld [vmem:[%s5320 + $0x2] sm:$0xff]
  %v7907 = vld [vmem:[%s5320 + $0xa] sm:$0xff]
  %v7908 = vld [vmem:[%s5320 + $0x1a] sm:$0xff]
  %v7909 = vld [vmem:[%s5320 + $0x22] sm:$0xff]
  %v7910 = vld [vmem:[%s5320 + $0x32] sm:$0xff]
  %v7911 = vld [vmem:[%s5320 + $0x3a] sm:$0xff]
  %v7912 = vld [vmem:[%s5320 + $0x4a] sm:$0xff]
  %v7913 = vld [vmem:[%s5320 + $0x52] sm:$0xff]
  %v7914 = vld [vmem:[%s5320 + $0x62] sm:$0xff]
  %v7915 = vld [vmem:[%s5320 + $0x6a] sm:$0xff]
  %v7916 = vld [vmem:[%s5320 + $0x7a] sm:$0xff]
  %v7917 = vld [vmem:[%s5320 + $0x82] sm:$0xff]
  %v7918 = vld [vmem:[%s5320 + $0x92] sm:$0xff]
  %v7919 = vld [vmem:[%s5320 + $0x9a] sm:$0xff]
  %v7920 = vld [vmem:[%s5320 + $0xaa] sm:$0xff]
  %v7921 = vld [vmem:[%s5320 + $0xb2] sm:$0xff]
  %v7922 = vld [vmem:[%s5320 + $0xc2] sm:$0xff]
  %v7923 = vld [vmem:[%s5320 + $0xca] sm:$0xff]
  %v7924 = vld [vmem:[%s5320 + $0xda] sm:$0xff]
  %v7925 = vld [vmem:[%s5320 + $0xe2] sm:$0xff]
  %v7926 = vld [vmem:[%s5320 + $0xf2] sm:$0xff]
  %v7927 = vld [vmem:[%s5320 + $0xfa] sm:$0xff]
  %v7928 = vld [vmem:[%s5320 + $0x10a] sm:$0xff]
  %v7929 = vld [vmem:[%s5320 + $0x112] sm:$0xff]
  %v7930 = vld [vmem:[%s5320 + $0x122] sm:$0xff]
  %v7931 = vld [vmem:[%s5320 + $0x12a] sm:$0xff]
  %v7932 = vld [vmem:[%s5320 + $0x13a] sm:$0xff]
  %v7933 = vld [vmem:[%s5320 + $0x142] sm:$0xff]
  %v7934 = vld [vmem:[%s5320 + $0x152] sm:$0xff]
  %v7935 = vld [vmem:[%s5320 + $0x15a] sm:$0xff]
  %v7936 = vld [vmem:[%s5320 + $0x16a] sm:$0xff]
  %v7937 = vld [vmem:[%s5320 + $0x172] sm:$0xff]
  %v7938 = vld [vmem:[%s5320 + $0x1b2] sm:$0xff]
  %v7939 = vld [vmem:[%s5320 + $0x1ba] sm:$0xff]
  %v7940 = vld [vmem:[%s5320 + $0x1ca] sm:$0xff]
  %v7941 = vld [vmem:[%s5320 + $0x1d2] sm:$0xff]
  %v7942 = vld [vmem:[%s5320 + $0x1e2] sm:$0xff]
  %v7943 = vld [vmem:[%s5320 + $0x1ea] sm:$0xff]
  %v7944 = vld [vmem:[%s5320 + $0x1fa] sm:$0xff]
  %v7945 = vld [vmem:[%s5320 + $0x202] sm:$0xff]
  %v7946 = vld [vmem:[%s5320 + $0x212] sm:$0xff]
  %v7947 = vld [vmem:[%s5320 + $0x21a] sm:$0xff]
  %v7948 = vld [vmem:[%s5320 + $0x22a] sm:$0xff]
  %v7949 = vld [vmem:[%s5320 + $0x232] sm:$0xff]
  %v7950 = vld [vmem:[%s5320 + $0x242] sm:$0xff]
  %v7951 = vld [vmem:[%s5320 + $0x24a] sm:$0xff]
  %v7952 = vld [vmem:[%s5320 + $0x25a] sm:$0xff]
  %v7953 = vld [vmem:[%s5320 + $0x262] sm:$0xff]
  %v7954 = vld [vmem:[%s5320 + $0x272] sm:$0xff]
  %v7955 = vld [vmem:[%s5320 + $0x27a] sm:$0xff]
  %v7956 = vld [vmem:[%s5320 + $0x28a] sm:$0xff]
  %v7957 = vld [vmem:[%s5320 + $0x292] sm:$0xff]
  %v7958 = vld [vmem:[%s5320 + $0x2a2] sm:$0xff]
  %v7959 = vld [vmem:[%s5320 + $0x2aa] sm:$0xff]
  %v7960 = vld [vmem:[%s5320 + $0x2ba] sm:$0xff]
  %v7961 = vld [vmem:[%s5320 + $0x2c2] sm:$0xff]
  %v7962 = vld [vmem:[%s5320 + $0x2d2] sm:$0xff]
  %v7963 = vld [vmem:[%s5320 + $0x2da] sm:$0xff]
  %v7964 = vld [vmem:[%s5320 + $0x2ea] sm:$0xff]
  %v7965 = vld [vmem:[%s5320 + $0x2f2] sm:$0xff]
  %v7966 = vld [vmem:[%s5320 + $0x302] sm:$0xff]
  %v7967 = vld [vmem:[%s5320 + $0x30a] sm:$0xff]
  %v7968 = vld [vmem:[%s5320 + $0x31a] sm:$0xff]
  %v7969 = vld [vmem:[%s5320 + $0x322] sm:$0xff]
  %s7970 = scalar_lea.vmem %s2, 640
  %v7971 = vld [vmem:[%s7970] sm:$0xff]
  %v7972 = vld [vmem:[%s7970 + $0x8] sm:$0xff]
  %v7973 = vld [vmem:[%s7970 + $0x10] sm:$0xff]
  %v7974 = vld [vmem:[%s7970 + $0x18] sm:$0xff]
  %v7975 = vld [vmem:[%s7970 + $0x20] sm:$0xff]
  %v7976 = vld [vmem:[%s7970 + $0x28] sm:$0xff]
  %v7977 = vld [vmem:[%s7970 + $0x30] sm:$0xff]
  %v7978 = vld [vmem:[%s7970 + $0x38] sm:$0xff]
  %v7979 = vld [vmem:[%s7970 + $0x40] sm:$0xff]
  %v7980 = vld [vmem:[%s7970 + $0x48] sm:$0xff]
  %v7981 = vld [vmem:[%s7970 + $0x50] sm:$0xff]
  %v7982 = vld [vmem:[%s7970 + $0x58] sm:$0xff]
  %v7983 = vld [vmem:[%s7970 + $0x60] sm:$0xff]
  %v7984 = vld [vmem:[%s7970 + $0x68] sm:$0xff]
  %v7985 = vld [vmem:[%s7970 + $0x70] sm:$0xff]
  %v7986 = vld [vmem:[%s7970 + $0x78] sm:$0xff]
  %7987 = vmatprep.subr.mxu0 0.0
  %7988 = vmatpush1.msra.mxu0 %v7986
  %7989 = vmatprep.subr.mxu0 0.0
  %7990 = vmatpush1.msra.mxu0 %v7985
  %7991 = vmatprep.subr.mxu0 0.0
  %7992 = vmatpush1.msra.mxu0 %v7984
  %7993 = vmatprep.subr.mxu0 0.0
  %7994 = vmatpush1.msra.mxu0 %v7983
  %7995 = vmatprep.subr.mxu0 0.0
  %7996 = vmatpush1.msra.mxu0 %v7982
  %7997 = vmatprep.subr.mxu0 0.0
  %7998 = vmatpush1.msra.mxu0 %v7981
  %7999 = vmatprep.subr.mxu0 0.0
  %8000 = vmatpush1.msra.mxu0 %v7980
  %8001 = vmatprep.subr.mxu0 0.0
  %8002 = vmatpush1.msra.mxu0 %v7979
  %8003 = vmatprep.subr.mxu0 0.0
  %8004 = vmatpush1.msra.mxu0 %v7978
  %8005 = vmatprep.subr.mxu0 0.0
  %8006 = vmatpush1.msra.mxu0 %v7977
  %8007 = vmatprep.subr.mxu0 0.0
  %8008 = vmatpush1.msra.mxu0 %v7976
  %8009 = vmatprep.subr.mxu0 0.0
  %8010 = vmatpush1.msra.mxu0 %v7975
  %8011 = vmatprep.subr.mxu0 0.0
  %8012 = vmatpush1.msra.mxu0 %v7974
  %8013 = vmatprep.subr.mxu0 0.0
  %8014 = vmatpush1.msra.mxu0 %v7973
  %8015 = vmatprep.subr.mxu0 0.0
  %8016 = vmatpush1.msra.mxu0 %v7972
  %8017 = vmatprep.subr.mxu0 0.0
  %8018 = vmatpush1.msra.mxu0 %v7971
  %8019 = vmatprep.subr.mxu0 0.0
  %8020 = vmatpush2.msra.mxu0 0.0
  %8021 = vmatprep.subr.mxu0 0.0
  %8022 = vmatpush2.msra.mxu0 0.0
  %8023 = vmatprep.subr.mxu0 0.0
  %8024 = vmatpush2.msra.mxu0 0.0
  %8025 = vmatprep.subr.mxu0 0.0
  %8026 = vmatpush2.msra.mxu0 0.0
  %8027 = vmatprep.subr.mxu0 0.0
  %8028 = vmatpush2.msra.mxu0 0.0
  %8029 = vmatprep.subr.mxu0 0.0
  %8030 = vmatpush2.msra.mxu0 0.0
  %8031 = vmatprep.subr.mxu0 0.0
  %8032 = vmatpush2.msra.mxu0 0.0
  %8033 = vmatprep.subr.mxu0 0.0
  %8034 = vmatpush2.msra.mxu0 0.0
  %8035 = vmatprep.subr.mxu0 0.0
  %8036 = vmatpush2.msra.mxu0 0.0
  %8037 = vmatprep.subr.mxu0 0.0
  %8038 = vmatpush2.msra.mxu0 0.0
  %8039 = vmatprep.subr.mxu0 0.0
  %8040 = vmatpush2.msra.mxu0 0.0
  %8041 = vmatprep.subr.mxu0 0.0
  %8042 = vmatpush2.msra.mxu0 0.0
  %8043 = vmatprep.subr.mxu0 0.0
  %8044 = vmatpush2.msra.mxu0 0.0
  %8045 = vmatprep.subr.mxu0 0.0
  %8046 = vmatpush2.msra.mxu0 0.0
  %8047 = vmatprep.subr.mxu0 0.0
  %8048 = vmatpush2.msra.mxu0 0.0
  %8049 = vmatprep.subr.mxu0 0.0
  %8050 = vmatpush2.msra.mxu0 0.0
  %8051 = vmatprep.mubr.f32.mxu0 0.0
  %8052 = vmatmul.mubr.f32.gmra.mxu0 %v7906
  %v8053 = vpop.f32.mrf.mxu0
  %v8054 = vadd.f32 0.0, %v8053
  %v8055 = vpop.f32.mrf.mxu0
  %8056 = vmatprep.mubr.f32.mxu0 0.0
  %8057 = vmatmul.mubr.f32.gmra.mxu0 %v7907
  %v8058 = vpop.f32.mrf.mxu0
  %v8059 = vadd.f32 0.0, %v8058
  %v8060 = vpop.f32.mrf.mxu0
  %8061 = vmatprep.mubr.f32.mxu0 0.0
  %8062 = vmatmul.mubr.f32.gmra.mxu0 %v7908
  %v8063 = vpop.f32.mrf.mxu0
  %v8064 = vadd.f32 0.0, %v8063
  %v8065 = vpop.f32.mrf.mxu0
  %8066 = vmatprep.mubr.f32.mxu0 0.0
  %8067 = vmatmul.mubr.f32.gmra.mxu0 %v7909
  %v8068 = vpop.f32.mrf.mxu0
  %v8069 = vadd.f32 0.0, %v8068
  %v8070 = vpop.f32.mrf.mxu0
  %8071 = vmatprep.mubr.f32.mxu0 0.0
  %8072 = vmatmul.mubr.f32.gmra.mxu0 %v7910
  %v8073 = vpop.f32.mrf.mxu0
  %v8074 = vadd.f32 0.0, %v8073
  %v8075 = vpop.f32.mrf.mxu0
  %8076 = vmatprep.mubr.f32.mxu0 0.0
  %8077 = vmatmul.mubr.f32.gmra.mxu0 %v7911
  %v8078 = vpop.f32.mrf.mxu0
  %v8079 = vadd.f32 0.0, %v8078
  %v8080 = vpop.f32.mrf.mxu0
  %8081 = vmatprep.mubr.f32.mxu0 0.0
  %8082 = vmatmul.mubr.f32.gmra.mxu0 %v7912
  %v8083 = vpop.f32.mrf.mxu0
  %v8084 = vadd.f32 0.0, %v8083
  %v8085 = vpop.f32.mrf.mxu0
  %8086 = vmatprep.mubr.f32.mxu0 0.0
  %8087 = vmatmul.mubr.f32.gmra.mxu0 %v7913
  %v8088 = vpop.f32.mrf.mxu0
  %v8089 = vadd.f32 0.0, %v8088
  %v8090 = vpop.f32.mrf.mxu0
  %8091 = vmatprep.mubr.f32.mxu0 0.0
  %8092 = vmatmul.mubr.f32.gmra.mxu0 %v7914
  %v8093 = vpop.f32.mrf.mxu0
  %v8094 = vadd.f32 0.0, %v8093
  %v8095 = vpop.f32.mrf.mxu0
  %8096 = vmatprep.mubr.f32.mxu0 0.0
  %8097 = vmatmul.mubr.f32.gmra.mxu0 %v7915
  %v8098 = vpop.f32.mrf.mxu0
  %v8099 = vadd.f32 0.0, %v8098
  %v8100 = vpop.f32.mrf.mxu0
  %8101 = vmatprep.mubr.f32.mxu0 0.0
  %8102 = vmatmul.mubr.f32.gmra.mxu0 %v7916
  %v8103 = vpop.f32.mrf.mxu0
  %v8104 = vadd.f32 0.0, %v8103
  %v8105 = vpop.f32.mrf.mxu0
  %8106 = vmatprep.mubr.f32.mxu0 0.0
  %8107 = vmatmul.mubr.f32.gmra.mxu0 %v7917
  %v8108 = vpop.f32.mrf.mxu0
  %v8109 = vadd.f32 0.0, %v8108
  %v8110 = vpop.f32.mrf.mxu0
  %8111 = vmatprep.mubr.f32.mxu0 0.0
  %8112 = vmatmul.mubr.f32.gmra.mxu0 %v7918
  %v8113 = vpop.f32.mrf.mxu0
  %v8114 = vadd.f32 0.0, %v8113
  %v8115 = vpop.f32.mrf.mxu0
  %8116 = vmatprep.mubr.f32.mxu0 0.0
  %8117 = vmatmul.mubr.f32.gmra.mxu0 %v7919
  %v8118 = vpop.f32.mrf.mxu0
  %v8119 = vadd.f32 0.0, %v8118
  %v8120 = vpop.f32.mrf.mxu0
  %8121 = vmatprep.mubr.f32.mxu0 0.0
  %8122 = vmatmul.mubr.f32.gmra.mxu0 %v7920
  %v8123 = vpop.f32.mrf.mxu0
  %v8124 = vadd.f32 0.0, %v8123
  %v8125 = vpop.f32.mrf.mxu0
  %8126 = vmatprep.mubr.f32.mxu0 0.0
  %8127 = vmatmul.mubr.f32.gmra.mxu0 %v7921
  %v8128 = vpop.f32.mrf.mxu0
  %v8129 = vadd.f32 0.0, %v8128
  %v8130 = vpop.f32.mrf.mxu0
  %8131 = vmatprep.mubr.f32.mxu0 0.0
  %8132 = vmatmul.mubr.f32.gmra.mxu0 %v7922
  %v8133 = vpop.f32.mrf.mxu0
  %v8134 = vadd.f32 0.0, %v8133
  %v8135 = vpop.f32.mrf.mxu0
  %8136 = vmatprep.mubr.f32.mxu0 0.0
  %8137 = vmatmul.mubr.f32.gmra.mxu0 %v7923
  %v8138 = vpop.f32.mrf.mxu0
  %v8139 = vadd.f32 0.0, %v8138
  %v8140 = vpop.f32.mrf.mxu0
  %8141 = vmatprep.mubr.f32.mxu0 0.0
  %8142 = vmatmul.mubr.f32.gmra.mxu0 %v7924
  %v8143 = vpop.f32.mrf.mxu0
  %v8144 = vadd.f32 0.0, %v8143
  %v8145 = vpop.f32.mrf.mxu0
  %8146 = vmatprep.mubr.f32.mxu0 0.0
  %8147 = vmatmul.mubr.f32.gmra.mxu0 %v7925
  %v8148 = vpop.f32.mrf.mxu0
  %v8149 = vadd.f32 0.0, %v8148
  %v8150 = vpop.f32.mrf.mxu0
  %8151 = vmatprep.mubr.f32.mxu0 0.0
  %8152 = vmatmul.mubr.f32.gmra.mxu0 %v7926
  %v8153 = vpop.f32.mrf.mxu0
  %v8154 = vadd.f32 0.0, %v8153
  %v8155 = vpop.f32.mrf.mxu0
  %8156 = vmatprep.mubr.f32.mxu0 0.0
  %8157 = vmatmul.mubr.f32.gmra.mxu0 %v7927
  %v8158 = vpop.f32.mrf.mxu0
  %v8159 = vadd.f32 0.0, %v8158
  %v8160 = vpop.f32.mrf.mxu0
  %8161 = vmatprep.mubr.f32.mxu0 0.0
  %8162 = vmatmul.mubr.f32.gmra.mxu0 %v7928
  %v8163 = vpop.f32.mrf.mxu0
  %v8164 = vadd.f32 0.0, %v8163
  %v8165 = vpop.f32.mrf.mxu0
  %8166 = vmatprep.mubr.f32.mxu0 0.0
  %8167 = vmatmul.mubr.f32.gmra.mxu0 %v7929
  %v8168 = vpop.f32.mrf.mxu0
  %v8169 = vadd.f32 0.0, %v8168
  %v8170 = vpop.f32.mrf.mxu0
  %8171 = vmatprep.mubr.f32.mxu0 0.0
  %8172 = vmatmul.mubr.f32.gmra.mxu0 %v7930
  %v8173 = vpop.f32.mrf.mxu0
  %v8174 = vadd.f32 0.0, %v8173
  %v8175 = vpop.f32.mrf.mxu0
  %8176 = vmatprep.mubr.f32.mxu0 0.0
  %8177 = vmatmul.mubr.f32.gmra.mxu0 %v7931
  %v8178 = vpop.f32.mrf.mxu0
  %v8179 = vadd.f32 0.0, %v8178
  %v8180 = vpop.f32.mrf.mxu0
  %8181 = vmatprep.mubr.f32.mxu0 0.0
  %8182 = vmatmul.mubr.f32.gmra.mxu0 %v7932
  %v8183 = vpop.f32.mrf.mxu0
  %v8184 = vadd.f32 0.0, %v8183
  %v8185 = vpop.f32.mrf.mxu0
  %8186 = vmatprep.mubr.f32.mxu0 0.0
  %8187 = vmatmul.mubr.f32.gmra.mxu0 %v7933
  %v8188 = vpop.f32.mrf.mxu0
  %v8189 = vadd.f32 0.0, %v8188
  %v8190 = vpop.f32.mrf.mxu0
  %8191 = vmatprep.mubr.f32.mxu0 0.0
  %8192 = vmatmul.mubr.f32.gmra.mxu0 %v7934
  %v8193 = vpop.f32.mrf.mxu0
  %v8194 = vadd.f32 0.0, %v8193
  %v8195 = vpop.f32.mrf.mxu0
  %8196 = vmatprep.mubr.f32.mxu0 0.0
  %8197 = vmatmul.mubr.f32.gmra.mxu0 %v7935
  %v8198 = vpop.f32.mrf.mxu0
  %v8199 = vadd.f32 0.0, %v8198
  %v8200 = vpop.f32.mrf.mxu0
  %8201 = vmatprep.mubr.f32.mxu0 0.0
  %8202 = vmatmul.mubr.f32.gmra.mxu0 %v7936
  %v8203 = vpop.f32.mrf.mxu0
  %v8204 = vadd.f32 0.0, %v8203
  %v8205 = vpop.f32.mrf.mxu0
  %8206 = vmatprep.mubr.f32.mxu0 0.0
  %8207 = vmatmul.mubr.f32.gmra.mxu0 %v7937
  %v8208 = vpop.f32.mrf.mxu0
  %v8209 = vadd.f32 0.0, %v8208
  %v8210 = vpop.f32.mrf.mxu0
  %8211 = vmatprep.mubr.f32.mxu0 0.0
  %8212 = vmatmul.mubr.f32.gmra.mxu0 %v7938
  %v8213 = vpop.f32.mrf.mxu0
  %v8214 = vadd.f32 0.0, %v8213
  %v8215 = vpop.f32.mrf.mxu0
  %8216 = vmatprep.mubr.f32.mxu0 0.0
  %8217 = vmatmul.mubr.f32.gmra.mxu0 %v7939
  %v8218 = vpop.f32.mrf.mxu0
  %v8219 = vadd.f32 0.0, %v8218
  %v8220 = vpop.f32.mrf.mxu0
  %8221 = vmatprep.mubr.f32.mxu0 0.0
  %8222 = vmatmul.mubr.f32.gmra.mxu0 %v7940
  %v8223 = vpop.f32.mrf.mxu0
  %v8224 = vadd.f32 0.0, %v8223
  %v8225 = vpop.f32.mrf.mxu0
  %8226 = vmatprep.mubr.f32.mxu0 0.0
  %8227 = vmatmul.mubr.f32.gmra.mxu0 %v7941
  %v8228 = vpop.f32.mrf.mxu0
  %v8229 = vadd.f32 0.0, %v8228
  %v8230 = vpop.f32.mrf.mxu0
  %8231 = vmatprep.mubr.f32.mxu0 0.0
  %8232 = vmatmul.mubr.f32.gmra.mxu0 %v7942
  %v8233 = vpop.f32.mrf.mxu0
  %v8234 = vadd.f32 0.0, %v8233
  %v8235 = vpop.f32.mrf.mxu0
  %8236 = vmatprep.mubr.f32.mxu0 0.0
  %8237 = vmatmul.mubr.f32.gmra.mxu0 %v7943
  %v8238 = vpop.f32.mrf.mxu0
  %v8239 = vadd.f32 0.0, %v8238
  %v8240 = vpop.f32.mrf.mxu0
  %8241 = vmatprep.mubr.f32.mxu0 0.0
  %8242 = vmatmul.mubr.f32.gmra.mxu0 %v7944
  %v8243 = vpop.f32.mrf.mxu0
  %v8244 = vadd.f32 0.0, %v8243
  %v8245 = vpop.f32.mrf.mxu0
  %8246 = vmatprep.mubr.f32.mxu0 0.0
  %8247 = vmatmul.mubr.f32.gmra.mxu0 %v7945
  %v8248 = vpop.f32.mrf.mxu0
  %v8249 = vadd.f32 0.0, %v8248
  %v8250 = vpop.f32.mrf.mxu0
  %8251 = vmatprep.mubr.f32.mxu0 0.0
  %8252 = vmatmul.mubr.f32.gmra.mxu0 %v7946
  %v8253 = vpop.f32.mrf.mxu0
  %v8254 = vadd.f32 0.0, %v8253
  %v8255 = vpop.f32.mrf.mxu0
  %8256 = vmatprep.mubr.f32.mxu0 0.0
  %8257 = vmatmul.mubr.f32.gmra.mxu0 %v7947
  %v8258 = vpop.f32.mrf.mxu0
  %v8259 = vadd.f32 0.0, %v8258
  %v8260 = vpop.f32.mrf.mxu0
  %8261 = vmatprep.mubr.f32.mxu0 0.0
  %8262 = vmatmul.mubr.f32.gmra.mxu0 %v7948
  %v8263 = vpop.f32.mrf.mxu0
  %v8264 = vadd.f32 0.0, %v8263
  %v8265 = vpop.f32.mrf.mxu0
  %8266 = vmatprep.mubr.f32.mxu0 0.0
  %8267 = vmatmul.mubr.f32.gmra.mxu0 %v7949
  %v8268 = vpop.f32.mrf.mxu0
  %v8269 = vadd.f32 0.0, %v8268
  %v8270 = vpop.f32.mrf.mxu0
  %8271 = vmatprep.mubr.f32.mxu0 0.0
  %8272 = vmatmul.mubr.f32.gmra.mxu0 %v7950
  %v8273 = vpop.f32.mrf.mxu0
  %v8274 = vadd.f32 0.0, %v8273
  %v8275 = vpop.f32.mrf.mxu0
  %8276 = vmatprep.mubr.f32.mxu0 0.0
  %8277 = vmatmul.mubr.f32.gmra.mxu0 %v7951
  %v8278 = vpop.f32.mrf.mxu0
  %v8279 = vadd.f32 0.0, %v8278
  %v8280 = vpop.f32.mrf.mxu0
  %8281 = vmatprep.mubr.f32.mxu0 0.0
  %8282 = vmatmul.mubr.f32.gmra.mxu0 %v7952
  %v8283 = vpop.f32.mrf.mxu0
  %v8284 = vadd.f32 0.0, %v8283
  %v8285 = vpop.f32.mrf.mxu0
  %8286 = vmatprep.mubr.f32.mxu0 0.0
  %8287 = vmatmul.mubr.f32.gmra.mxu0 %v7953
  %v8288 = vpop.f32.mrf.mxu0
  %v8289 = vadd.f32 0.0, %v8288
  %v8290 = vpop.f32.mrf.mxu0
  %8291 = vmatprep.mubr.f32.mxu0 0.0
  %8292 = vmatmul.mubr.f32.gmra.mxu0 %v7954
  %v8293 = vpop.f32.mrf.mxu0
  %v8294 = vadd.f32 0.0, %v8293
  %v8295 = vpop.f32.mrf.mxu0
  %8296 = vmatprep.mubr.f32.mxu0 0.0
  %8297 = vmatmul.mubr.f32.gmra.mxu0 %v7955
  %v8298 = vpop.f32.mrf.mxu0
  %v8299 = vadd.f32 0.0, %v8298
  %v8300 = vpop.f32.mrf.mxu0
  %8301 = vmatprep.mubr.f32.mxu0 0.0
  %8302 = vmatmul.mubr.f32.gmra.mxu0 %v7956
  %v8303 = vpop.f32.mrf.mxu0
  %v8304 = vadd.f32 0.0, %v8303
  %v8305 = vpop.f32.mrf.mxu0
  %8306 = vmatprep.mubr.f32.mxu0 0.0
  %8307 = vmatmul.mubr.f32.gmra.mxu0 %v7957
  %v8308 = vpop.f32.mrf.mxu0
  %v8309 = vadd.f32 0.0, %v8308
  %v8310 = vpop.f32.mrf.mxu0
  %8311 = vmatprep.mubr.f32.mxu0 0.0
  %8312 = vmatmul.mubr.f32.gmra.mxu0 %v7958
  %v8313 = vpop.f32.mrf.mxu0
  %v8314 = vadd.f32 0.0, %v8313
  %v8315 = vpop.f32.mrf.mxu0
  %8316 = vmatprep.mubr.f32.mxu0 0.0
  %8317 = vmatmul.mubr.f32.gmra.mxu0 %v7959
  %v8318 = vpop.f32.mrf.mxu0
  %v8319 = vadd.f32 0.0, %v8318
  %v8320 = vpop.f32.mrf.mxu0
  %8321 = vmatprep.mubr.f32.mxu0 0.0
  %8322 = vmatmul.mubr.f32.gmra.mxu0 %v7960
  %v8323 = vpop.f32.mrf.mxu0
  %v8324 = vadd.f32 0.0, %v8323
  %v8325 = vpop.f32.mrf.mxu0
  %8326 = vmatprep.mubr.f32.mxu0 0.0
  %8327 = vmatmul.mubr.f32.gmra.mxu0 %v7961
  %v8328 = vpop.f32.mrf.mxu0
  %v8329 = vadd.f32 0.0, %v8328
  %v8330 = vpop.f32.mrf.mxu0
  %8331 = vmatprep.mubr.f32.mxu0 0.0
  %8332 = vmatmul.mubr.f32.gmra.mxu0 %v7962
  %v8333 = vpop.f32.mrf.mxu0
  %v8334 = vadd.f32 0.0, %v8333
  %v8335 = vpop.f32.mrf.mxu0
  %8336 = vmatprep.mubr.f32.mxu0 0.0
  %8337 = vmatmul.mubr.f32.gmra.mxu0 %v7963
  %v8338 = vpop.f32.mrf.mxu0
  %v8339 = vadd.f32 0.0, %v8338
  %v8340 = vpop.f32.mrf.mxu0
  %8341 = vmatprep.mubr.f32.mxu0 0.0
  %8342 = vmatmul.mubr.f32.gmra.mxu0 %v7964
  %v8343 = vpop.f32.mrf.mxu0
  %v8344 = vadd.f32 0.0, %v8343
  %v8345 = vpop.f32.mrf.mxu0
  %8346 = vmatprep.mubr.f32.mxu0 0.0
  %8347 = vmatmul.mubr.f32.gmra.mxu0 %v7965
  %v8348 = vpop.f32.mrf.mxu0
  %v8349 = vadd.f32 0.0, %v8348
  %v8350 = vpop.f32.mrf.mxu0
  %8351 = vmatprep.mubr.f32.mxu0 0.0
  %8352 = vmatmul.mubr.f32.gmra.mxu0 %v7966
  %v8353 = vpop.f32.mrf.mxu0
  %v8354 = vadd.f32 0.0, %v8353
  %v8355 = vpop.f32.mrf.mxu0
  %8356 = vmatprep.mubr.f32.mxu0 0.0
  %8357 = vmatmul.mubr.f32.gmra.mxu0 %v7967
  %v8358 = vpop.f32.mrf.mxu0
  %v8359 = vadd.f32 0.0, %v8358
  %v8360 = vpop.f32.mrf.mxu0
  %8361 = vmatprep.mubr.f32.mxu0 0.0
  %8362 = vmatmul.mubr.f32.gmra.mxu0 %v7968
  %v8363 = vpop.f32.mrf.mxu0
  %v8364 = vadd.f32 0.0, %v8363
  %v8365 = vpop.f32.mrf.mxu0
  %8366 = vmatprep.mubr.f32.mxu0 0.0
  %8367 = vmatmul.mubr.f32.gmra.mxu0 %v7969
  %v8368 = vpop.f32.mrf.mxu0
  %v8369 = vadd.f32 0.0, %v8368
  %v8370 = vpop.f32.mrf.mxu0
  %8371 = vdwg.mxu0
  %v8372 = vadd.f32 %v7842, %v8054
  %v8373 = vadd.f32 %v7843, %v8059
  %v8374 = vadd.f32 %v7844, %v8064
  %v8375 = vadd.f32 %v7845, %v8069
  %v8376 = vadd.f32 %v7846, %v8074
  %v8377 = vadd.f32 %v7847, %v8079
  %v8378 = vadd.f32 %v7848, %v8084
  %v8379 = vadd.f32 %v7849, %v8089
  %v8380 = vadd.f32 %v7850, %v8094
  %v8381 = vadd.f32 %v7851, %v8099
  %v8382 = vadd.f32 %v7852, %v8104
  %v8383 = vadd.f32 %v7853, %v8109
  %v8384 = vadd.f32 %v7854, %v8114
  %v8385 = vadd.f32 %v7855, %v8119
  %v8386 = vadd.f32 %v7856, %v8124
  %v8387 = vadd.f32 %v7857, %v8129
  %v8388 = vadd.f32 %v7858, %v8134
  %v8389 = vadd.f32 %v7859, %v8139
  %v8390 = vadd.f32 %v7860, %v8144
  %v8391 = vadd.f32 %v7861, %v8149
  %v8392 = vadd.f32 %v7862, %v8154
  %v8393 = vadd.f32 %v7863, %v8159
  %v8394 = vadd.f32 %v7864, %v8164
  %v8395 = vadd.f32 %v7865, %v8169
  %v8396 = vadd.f32 %v7866, %v8174
  %v8397 = vadd.f32 %v7867, %v8179
  %v8398 = vadd.f32 %v7868, %v8184
  %v8399 = vadd.f32 %v7869, %v8189
  %v8400 = vadd.f32 %v7870, %v8194
  %v8401 = vadd.f32 %v7871, %v8199
  %v8402 = vadd.f32 %v7872, %v8204
  %v8403 = vadd.f32 %v7873, %v8209
  %v8404 = vadd.f32 %v7874, %v8214
  %v8405 = vadd.f32 %v7875, %v8219
  %v8406 = vadd.f32 %v7876, %v8224
  %v8407 = vadd.f32 %v7877, %v8229
  %v8408 = vadd.f32 %v7878, %v8234
  %v8409 = vadd.f32 %v7879, %v8239
  %v8410 = vadd.f32 %v7880, %v8244
  %v8411 = vadd.f32 %v7881, %v8249
  %v8412 = vadd.f32 %v7882, %v8254
  %v8413 = vadd.f32 %v7883, %v8259
  %v8414 = vadd.f32 %v7884, %v8264
  %v8415 = vadd.f32 %v7885, %v8269
  %v8416 = vadd.f32 %v7886, %v8274
  %v8417 = vadd.f32 %v7887, %v8279
  %v8418 = vadd.f32 %v7888, %v8284
  %v8419 = vadd.f32 %v7889, %v8289
  %v8420 = vadd.f32 %v7890, %v8294
  %v8421 = vadd.f32 %v7891, %v8299
  %v8422 = vadd.f32 %v7892, %v8304
  %v8423 = vadd.f32 %v7893, %v8309
  %v8424 = vadd.f32 %v7894, %v8314
  %v8425 = vadd.f32 %v7895, %v8319
  %v8426 = vadd.f32 %v7896, %v8324
  %v8427 = vadd.f32 %v7897, %v8329
  %v8428 = vadd.f32 %v7898, %v8334
  %v8429 = vadd.f32 %v7899, %v8339
  %v8430 = vadd.f32 %v7900, %v8344
  %v8431 = vadd.f32 %v7901, %v8349
  %v8432 = vadd.f32 %v7902, %v8354
  %v8433 = vadd.f32 %v7903, %v8359
  %v8434 = vadd.f32 %v7904, %v8364
  %v8435 = vadd.f32 %v7905, %v8369
  %s8436 = scalar_lea.vmem [#allocation2], 48
  %v8437 = vld [vmem:[%s8436] sm:$0xff]
  %v8438 = vld [vmem:[%s8436 + $0x8] sm:$0xff]
  %v8439 = vld [vmem:[%s8436 + $0x18] sm:$0xff]
  %v8440 = vld [vmem:[%s8436 + $0x20] sm:$0xff]
  %v8441 = vld [vmem:[%s8436 + $0x30] sm:$0xff]
  %v8442 = vld [vmem:[%s8436 + $0x38] sm:$0xff]
  %v8443 = vld [vmem:[%s8436 + $0x48] sm:$0xff]
  %v8444 = vld [vmem:[%s8436 + $0x50] sm:$0xff]
  %v8445 = vld [vmem:[%s8436 + $0x60] sm:$0xff]
  %v8446 = vld [vmem:[%s8436 + $0x68] sm:$0xff]
  %v8447 = vld [vmem:[%s8436 + $0x78] sm:$0xff]
  %v8448 = vld [vmem:[%s8436 + $0x80] sm:$0xff]
  %v8449 = vld [vmem:[%s8436 + $0x90] sm:$0xff]
  %v8450 = vld [vmem:[%s8436 + $0x98] sm:$0xff]
  %v8451 = vld [vmem:[%s8436 + $0xa8] sm:$0xff]
  %v8452 = vld [vmem:[%s8436 + $0xb0] sm:$0xff]
  %v8453 = vld [vmem:[%s8436 + $0xc0] sm:$0xff]
  %v8454 = vld [vmem:[%s8436 + $0xc8] sm:$0xff]
  %v8455 = vld [vmem:[%s8436 + $0xd8] sm:$0xff]
  %v8456 = vld [vmem:[%s8436 + $0xe0] sm:$0xff]
  %v8457 = vld [vmem:[%s8436 + $0xf0] sm:$0xff]
  %v8458 = vld [vmem:[%s8436 + $0xf8] sm:$0xff]
  %v8459 = vld [vmem:[%s8436 + $0x108] sm:$0xff]
  %v8460 = vld [vmem:[%s8436 + $0x110] sm:$0xff]
  %v8461 = vld [vmem:[%s8436 + $0x120] sm:$0xff]
  %v8462 = vld [vmem:[%s8436 + $0x128] sm:$0xff]
  %v8463 = vld [vmem:[%s8436 + $0x138] sm:$0xff]
  %v8464 = vld [vmem:[%s8436 + $0x140] sm:$0xff]
  %v8465 = vld [vmem:[%s8436 + $0x150] sm:$0xff]
  %v8466 = vld [vmem:[%s8436 + $0x158] sm:$0xff]
  %v8467 = vld [vmem:[%s8436 + $0x168] sm:$0xff]
  %v8468 = vld [vmem:[%s8436 + $0x170] sm:$0xff]
  %v8469 = vld [vmem:[%s8436 + $0x1b0] sm:$0xff]
  %v8470 = vld [vmem:[%s8436 + $0x1b8] sm:$0xff]
  %v8471 = vld [vmem:[%s8436 + $0x1c8] sm:$0xff]
  %v8472 = vld [vmem:[%s8436 + $0x1d0] sm:$0xff]
  %v8473 = vld [vmem:[%s8436 + $0x1e0] sm:$0xff]
  %v8474 = vld [vmem:[%s8436 + $0x1e8] sm:$0xff]
  %v8475 = vld [vmem:[%s8436 + $0x1f8] sm:$0xff]
  %v8476 = vld [vmem:[%s8436 + $0x200] sm:$0xff]
  %v8477 = vld [vmem:[%s8436 + $0x210] sm:$0xff]
  %v8478 = vld [vmem:[%s8436 + $0x218] sm:$0xff]
  %v8479 = vld [vmem:[%s8436 + $0x228] sm:$0xff]
  %v8480 = vld [vmem:[%s8436 + $0x230] sm:$0xff]
  %v8481 = vld [vmem:[%s8436 + $0x240] sm:$0xff]
  %v8482 = vld [vmem:[%s8436 + $0x248] sm:$0xff]
  %v8483 = vld [vmem:[%s8436 + $0x258] sm:$0xff]
  %v8484 = vld [vmem:[%s8436 + $0x260] sm:$0xff]
  %v8485 = vld [vmem:[%s8436 + $0x270] sm:$0xff]
  %v8486 = vld [vmem:[%s8436 + $0x278] sm:$0xff]
  %v8487 = vld [vmem:[%s8436 + $0x288] sm:$0xff]
  %v8488 = vld [vmem:[%s8436 + $0x290] sm:$0xff]
  %v8489 = vld [vmem:[%s8436 + $0x2a0] sm:$0xff]
  %v8490 = vld [vmem:[%s8436 + $0x2a8] sm:$0xff]
  %v8491 = vld [vmem:[%s8436 + $0x2b8] sm:$0xff]
  %v8492 = vld [vmem:[%s8436 + $0x2c0] sm:$0xff]
  %v8493 = vld [vmem:[%s8436 + $0x2d0] sm:$0xff]
  %v8494 = vld [vmem:[%s8436 + $0x2d8] sm:$0xff]
  %v8495 = vld [vmem:[%s8436 + $0x2e8] sm:$0xff]
  %v8496 = vld [vmem:[%s8436 + $0x2f0] sm:$0xff]
  %v8497 = vld [vmem:[%s8436 + $0x300] sm:$0xff]
  %v8498 = vld [vmem:[%s8436 + $0x308] sm:$0xff]
  %v8499 = vld [vmem:[%s8436 + $0x318] sm:$0xff]
  %v8500 = vld [vmem:[%s8436 + $0x320] sm:$0xff]
  %s8501 = scalar_lea.vmem %s2, 768
  %v8502 = vld [vmem:[%s8501] sm:$0xff]
  %v8503 = vld [vmem:[%s8501 + $0x8] sm:$0xff]
  %v8504 = vld [vmem:[%s8501 + $0x10] sm:$0xff]
  %v8505 = vld [vmem:[%s8501 + $0x18] sm:$0xff]
  %v8506 = vld [vmem:[%s8501 + $0x20] sm:$0xff]
  %v8507 = vld [vmem:[%s8501 + $0x28] sm:$0xff]
  %v8508 = vld [vmem:[%s8501 + $0x30] sm:$0xff]
  %v8509 = vld [vmem:[%s8501 + $0x38] sm:$0xff]
  %v8510 = vld [vmem:[%s8501 + $0x40] sm:$0xff]
  %v8511 = vld [vmem:[%s8501 + $0x48] sm:$0xff]
  %v8512 = vld [vmem:[%s8501 + $0x50] sm:$0xff]
  %v8513 = vld [vmem:[%s8501 + $0x58] sm:$0xff]
  %v8514 = vld [vmem:[%s8501 + $0x60] sm:$0xff]
  %v8515 = vld [vmem:[%s8501 + $0x68] sm:$0xff]
  %v8516 = vld [vmem:[%s8501 + $0x70] sm:$0xff]
  %v8517 = vld [vmem:[%s8501 + $0x78] sm:$0xff]
  %8518 = vmatprep.subr.mxu0 0.0
  %8519 = vmatpush1.msra.mxu0 %v8517
  %8520 = vmatprep.subr.mxu0 0.0
  %8521 = vmatpush1.msra.mxu0 %v8516
  %8522 = vmatprep.subr.mxu0 0.0
  %8523 = vmatpush1.msra.mxu0 %v8515
  %8524 = vmatprep.subr.mxu0 0.0
  %8525 = vmatpush1.msra.mxu0 %v8514
  %8526 = vmatprep.subr.mxu0 0.0
  %8527 = vmatpush1.msra.mxu0 %v8513
  %8528 = vmatprep.subr.mxu0 0.0
  %8529 = vmatpush1.msra.mxu0 %v8512
  %8530 = vmatprep.subr.mxu0 0.0
  %8531 = vmatpush1.msra.mxu0 %v8511
  %8532 = vmatprep.subr.mxu0 0.0
  %8533 = vmatpush1.msra.mxu0 %v8510
  %8534 = vmatprep.subr.mxu0 0.0
  %8535 = vmatpush1.msra.mxu0 %v8509
  %8536 = vmatprep.subr.mxu0 0.0
  %8537 = vmatpush1.msra.mxu0 %v8508
  %8538 = vmatprep.subr.mxu0 0.0
  %8539 = vmatpush1.msra.mxu0 %v8507
  %8540 = vmatprep.subr.mxu0 0.0
  %8541 = vmatpush1.msra.mxu0 %v8506
  %8542 = vmatprep.subr.mxu0 0.0
  %8543 = vmatpush1.msra.mxu0 %v8505
  %8544 = vmatprep.subr.mxu0 0.0
  %8545 = vmatpush1.msra.mxu0 %v8504
  %8546 = vmatprep.subr.mxu0 0.0
  %8547 = vmatpush1.msra.mxu0 %v8503
  %8548 = vmatprep.subr.mxu0 0.0
  %8549 = vmatpush1.msra.mxu0 %v8502
  %8550 = vmatprep.subr.mxu0 0.0
  %8551 = vmatpush2.msra.mxu0 0.0
  %8552 = vmatprep.subr.mxu0 0.0
  %8553 = vmatpush2.msra.mxu0 0.0
  %8554 = vmatprep.subr.mxu0 0.0
  %8555 = vmatpush2.msra.mxu0 0.0
  %8556 = vmatprep.subr.mxu0 0.0
  %8557 = vmatpush2.msra.mxu0 0.0
  %8558 = vmatprep.subr.mxu0 0.0
  %8559 = vmatpush2.msra.mxu0 0.0
  %8560 = vmatprep.subr.mxu0 0.0
  %8561 = vmatpush2.msra.mxu0 0.0
  %8562 = vmatprep.subr.mxu0 0.0
  %8563 = vmatpush2.msra.mxu0 0.0
  %8564 = vmatprep.subr.mxu0 0.0
  %8565 = vmatpush2.msra.mxu0 0.0
  %8566 = vmatprep.subr.mxu0 0.0
  %8567 = vmatpush2.msra.mxu0 0.0
  %8568 = vmatprep.subr.mxu0 0.0
  %8569 = vmatpush2.msra.mxu0 0.0
  %8570 = vmatprep.subr.mxu0 0.0
  %8571 = vmatpush2.msra.mxu0 0.0
  %8572 = vmatprep.subr.mxu0 0.0
  %8573 = vmatpush2.msra.mxu0 0.0
  %8574 = vmatprep.subr.mxu0 0.0
  %8575 = vmatpush2.msra.mxu0 0.0
  %8576 = vmatprep.subr.mxu0 0.0
  %8577 = vmatpush2.msra.mxu0 0.0
  %8578 = vmatprep.subr.mxu0 0.0
  %8579 = vmatpush2.msra.mxu0 0.0
  %8580 = vmatprep.subr.mxu0 0.0
  %8581 = vmatpush2.msra.mxu0 0.0
  %8582 = vmatprep.mubr.f32.mxu0 0.0
  %8583 = vmatmul.mubr.f32.gmra.mxu0 %v8437
  %v8584 = vpop.f32.mrf.mxu0
  %v8585 = vadd.f32 0.0, %v8584
  %v8586 = vpop.f32.mrf.mxu0
  %8587 = vmatprep.mubr.f32.mxu0 0.0
  %8588 = vmatmul.mubr.f32.gmra.mxu0 %v8438
  %v8589 = vpop.f32.mrf.mxu0
  %v8590 = vadd.f32 0.0, %v8589
  %v8591 = vpop.f32.mrf.mxu0
  %8592 = vmatprep.mubr.f32.mxu0 0.0
  %8593 = vmatmul.mubr.f32.gmra.mxu0 %v8439
  %v8594 = vpop.f32.mrf.mxu0
  %v8595 = vadd.f32 0.0, %v8594
  %v8596 = vpop.f32.mrf.mxu0
  %8597 = vmatprep.mubr.f32.mxu0 0.0
  %8598 = vmatmul.mubr.f32.gmra.mxu0 %v8440
  %v8599 = vpop.f32.mrf.mxu0
  %v8600 = vadd.f32 0.0, %v8599
  %v8601 = vpop.f32.mrf.mxu0
  %8602 = vmatprep.mubr.f32.mxu0 0.0
  %8603 = vmatmul.mubr.f32.gmra.mxu0 %v8441
  %v8604 = vpop.f32.mrf.mxu0
  %v8605 = vadd.f32 0.0, %v8604
  %v8606 = vpop.f32.mrf.mxu0
  %8607 = vmatprep.mubr.f32.mxu0 0.0
  %8608 = vmatmul.mubr.f32.gmra.mxu0 %v8442
  %v8609 = vpop.f32.mrf.mxu0
  %v8610 = vadd.f32 0.0, %v8609
  %v8611 = vpop.f32.mrf.mxu0
  %8612 = vmatprep.mubr.f32.mxu0 0.0
  %8613 = vmatmul.mubr.f32.gmra.mxu0 %v8443
  %v8614 = vpop.f32.mrf.mxu0
  %v8615 = vadd.f32 0.0, %v8614
  %v8616 = vpop.f32.mrf.mxu0
  %8617 = vmatprep.mubr.f32.mxu0 0.0
  %8618 = vmatmul.mubr.f32.gmra.mxu0 %v8444
  %v8619 = vpop.f32.mrf.mxu0
  %v8620 = vadd.f32 0.0, %v8619
  %v8621 = vpop.f32.mrf.mxu0
  %8622 = vmatprep.mubr.f32.mxu0 0.0
  %8623 = vmatmul.mubr.f32.gmra.mxu0 %v8445
  %v8624 = vpop.f32.mrf.mxu0
  %v8625 = vadd.f32 0.0, %v8624
  %v8626 = vpop.f32.mrf.mxu0
  %8627 = vmatprep.mubr.f32.mxu0 0.0
  %8628 = vmatmul.mubr.f32.gmra.mxu0 %v8446
  %v8629 = vpop.f32.mrf.mxu0
  %v8630 = vadd.f32 0.0, %v8629
  %v8631 = vpop.f32.mrf.mxu0
  %8632 = vmatprep.mubr.f32.mxu0 0.0
  %8633 = vmatmul.mubr.f32.gmra.mxu0 %v8447
  %v8634 = vpop.f32.mrf.mxu0
  %v8635 = vadd.f32 0.0, %v8634
  %v8636 = vpop.f32.mrf.mxu0
  %8637 = vmatprep.mubr.f32.mxu0 0.0
  %8638 = vmatmul.mubr.f32.gmra.mxu0 %v8448
  %v8639 = vpop.f32.mrf.mxu0
  %v8640 = vadd.f32 0.0, %v8639
  %v8641 = vpop.f32.mrf.mxu0
  %8642 = vmatprep.mubr.f32.mxu0 0.0
  %8643 = vmatmul.mubr.f32.gmra.mxu0 %v8449
  %v8644 = vpop.f32.mrf.mxu0
  %v8645 = vadd.f32 0.0, %v8644
  %v8646 = vpop.f32.mrf.mxu0
  %8647 = vmatprep.mubr.f32.mxu0 0.0
  %8648 = vmatmul.mubr.f32.gmra.mxu0 %v8450
  %v8649 = vpop.f32.mrf.mxu0
  %v8650 = vadd.f32 0.0, %v8649
  %v8651 = vpop.f32.mrf.mxu0
  %8652 = vmatprep.mubr.f32.mxu0 0.0
  %8653 = vmatmul.mubr.f32.gmra.mxu0 %v8451
  %v8654 = vpop.f32.mrf.mxu0
  %v8655 = vadd.f32 0.0, %v8654
  %v8656 = vpop.f32.mrf.mxu0
  %8657 = vmatprep.mubr.f32.mxu0 0.0
  %8658 = vmatmul.mubr.f32.gmra.mxu0 %v8452
  %v8659 = vpop.f32.mrf.mxu0
  %v8660 = vadd.f32 0.0, %v8659
  %v8661 = vpop.f32.mrf.mxu0
  %8662 = vmatprep.mubr.f32.mxu0 0.0
  %8663 = vmatmul.mubr.f32.gmra.mxu0 %v8453
  %v8664 = vpop.f32.mrf.mxu0
  %v8665 = vadd.f32 0.0, %v8664
  %v8666 = vpop.f32.mrf.mxu0
  %8667 = vmatprep.mubr.f32.mxu0 0.0
  %8668 = vmatmul.mubr.f32.gmra.mxu0 %v8454
  %v8669 = vpop.f32.mrf.mxu0
  %v8670 = vadd.f32 0.0, %v8669
  %v8671 = vpop.f32.mrf.mxu0
  %8672 = vmatprep.mubr.f32.mxu0 0.0
  %8673 = vmatmul.mubr.f32.gmra.mxu0 %v8455
  %v8674 = vpop.f32.mrf.mxu0
  %v8675 = vadd.f32 0.0, %v8674
  %v8676 = vpop.f32.mrf.mxu0
  %8677 = vmatprep.mubr.f32.mxu0 0.0
  %8678 = vmatmul.mubr.f32.gmra.mxu0 %v8456
  %v8679 = vpop.f32.mrf.mxu0
  %v8680 = vadd.f32 0.0, %v8679
  %v8681 = vpop.f32.mrf.mxu0
  %8682 = vmatprep.mubr.f32.mxu0 0.0
  %8683 = vmatmul.mubr.f32.gmra.mxu0 %v8457
  %v8684 = vpop.f32.mrf.mxu0
  %v8685 = vadd.f32 0.0, %v8684
  %v8686 = vpop.f32.mrf.mxu0
  %8687 = vmatprep.mubr.f32.mxu0 0.0
  %8688 = vmatmul.mubr.f32.gmra.mxu0 %v8458
  %v8689 = vpop.f32.mrf.mxu0
  %v8690 = vadd.f32 0.0, %v8689
  %v8691 = vpop.f32.mrf.mxu0
  %8692 = vmatprep.mubr.f32.mxu0 0.0
  %8693 = vmatmul.mubr.f32.gmra.mxu0 %v8459
  %v8694 = vpop.f32.mrf.mxu0
  %v8695 = vadd.f32 0.0, %v8694
  %v8696 = vpop.f32.mrf.mxu0
  %8697 = vmatprep.mubr.f32.mxu0 0.0
  %8698 = vmatmul.mubr.f32.gmra.mxu0 %v8460
  %v8699 = vpop.f32.mrf.mxu0
  %v8700 = vadd.f32 0.0, %v8699
  %v8701 = vpop.f32.mrf.mxu0
  %8702 = vmatprep.mubr.f32.mxu0 0.0
  %8703 = vmatmul.mubr.f32.gmra.mxu0 %v8461
  %v8704 = vpop.f32.mrf.mxu0
  %v8705 = vadd.f32 0.0, %v8704
  %v8706 = vpop.f32.mrf.mxu0
  %8707 = vmatprep.mubr.f32.mxu0 0.0
  %8708 = vmatmul.mubr.f32.gmra.mxu0 %v8462
  %v8709 = vpop.f32.mrf.mxu0
  %v8710 = vadd.f32 0.0, %v8709
  %v8711 = vpop.f32.mrf.mxu0
  %8712 = vmatprep.mubr.f32.mxu0 0.0
  %8713 = vmatmul.mubr.f32.gmra.mxu0 %v8463
  %v8714 = vpop.f32.mrf.mxu0
  %v8715 = vadd.f32 0.0, %v8714
  %v8716 = vpop.f32.mrf.mxu0
  %8717 = vmatprep.mubr.f32.mxu0 0.0
  %8718 = vmatmul.mubr.f32.gmra.mxu0 %v8464
  %v8719 = vpop.f32.mrf.mxu0
  %v8720 = vadd.f32 0.0, %v8719
  %v8721 = vpop.f32.mrf.mxu0
  %8722 = vmatprep.mubr.f32.mxu0 0.0
  %8723 = vmatmul.mubr.f32.gmra.mxu0 %v8465
  %v8724 = vpop.f32.mrf.mxu0
  %v8725 = vadd.f32 0.0, %v8724
  %v8726 = vpop.f32.mrf.mxu0
  %8727 = vmatprep.mubr.f32.mxu0 0.0
  %8728 = vmatmul.mubr.f32.gmra.mxu0 %v8466
  %v8729 = vpop.f32.mrf.mxu0
  %v8730 = vadd.f32 0.0, %v8729
  %v8731 = vpop.f32.mrf.mxu0
  %8732 = vmatprep.mubr.f32.mxu0 0.0
  %8733 = vmatmul.mubr.f32.gmra.mxu0 %v8467
  %v8734 = vpop.f32.mrf.mxu0
  %v8735 = vadd.f32 0.0, %v8734
  %v8736 = vpop.f32.mrf.mxu0
  %8737 = vmatprep.mubr.f32.mxu0 0.0
  %8738 = vmatmul.mubr.f32.gmra.mxu0 %v8468
  %v8739 = vpop.f32.mrf.mxu0
  %v8740 = vadd.f32 0.0, %v8739
  %v8741 = vpop.f32.mrf.mxu0
  %8742 = vmatprep.mubr.f32.mxu0 0.0
  %8743 = vmatmul.mubr.f32.gmra.mxu0 %v8469
  %v8744 = vpop.f32.mrf.mxu0
  %v8745 = vadd.f32 0.0, %v8744
  %v8746 = vpop.f32.mrf.mxu0
  %8747 = vmatprep.mubr.f32.mxu0 0.0
  %8748 = vmatmul.mubr.f32.gmra.mxu0 %v8470
  %v8749 = vpop.f32.mrf.mxu0
  %v8750 = vadd.f32 0.0, %v8749
  %v8751 = vpop.f32.mrf.mxu0
  %8752 = vmatprep.mubr.f32.mxu0 0.0
  %8753 = vmatmul.mubr.f32.gmra.mxu0 %v8471
  %v8754 = vpop.f32.mrf.mxu0
  %v8755 = vadd.f32 0.0, %v8754
  %v8756 = vpop.f32.mrf.mxu0
  %8757 = vmatprep.mubr.f32.mxu0 0.0
  %8758 = vmatmul.mubr.f32.gmra.mxu0 %v8472
  %v8759 = vpop.f32.mrf.mxu0
  %v8760 = vadd.f32 0.0, %v8759
  %v8761 = vpop.f32.mrf.mxu0
  %8762 = vmatprep.mubr.f32.mxu0 0.0
  %8763 = vmatmul.mubr.f32.gmra.mxu0 %v8473
  %v8764 = vpop.f32.mrf.mxu0
  %v8765 = vadd.f32 0.0, %v8764
  %v8766 = vpop.f32.mrf.mxu0
  %8767 = vmatprep.mubr.f32.mxu0 0.0
  %8768 = vmatmul.mubr.f32.gmra.mxu0 %v8474
  %v8769 = vpop.f32.mrf.mxu0
  %v8770 = vadd.f32 0.0, %v8769
  %v8771 = vpop.f32.mrf.mxu0
  %8772 = vmatprep.mubr.f32.mxu0 0.0
  %8773 = vmatmul.mubr.f32.gmra.mxu0 %v8475
  %v8774 = vpop.f32.mrf.mxu0
  %v8775 = vadd.f32 0.0, %v8774
  %v8776 = vpop.f32.mrf.mxu0
  %8777 = vmatprep.mubr.f32.mxu0 0.0
  %8778 = vmatmul.mubr.f32.gmra.mxu0 %v8476
  %v8779 = vpop.f32.mrf.mxu0
  %v8780 = vadd.f32 0.0, %v8779
  %v8781 = vpop.f32.mrf.mxu0
  %8782 = vmatprep.mubr.f32.mxu0 0.0
  %8783 = vmatmul.mubr.f32.gmra.mxu0 %v8477
  %v8784 = vpop.f32.mrf.mxu0
  %v8785 = vadd.f32 0.0, %v8784
  %v8786 = vpop.f32.mrf.mxu0
  %8787 = vmatprep.mubr.f32.mxu0 0.0
  %8788 = vmatmul.mubr.f32.gmra.mxu0 %v8478
  %v8789 = vpop.f32.mrf.mxu0
  %v8790 = vadd.f32 0.0, %v8789
  %v8791 = vpop.f32.mrf.mxu0
  %8792 = vmatprep.mubr.f32.mxu0 0.0
  %8793 = vmatmul.mubr.f32.gmra.mxu0 %v8479
  %v8794 = vpop.f32.mrf.mxu0
  %v8795 = vadd.f32 0.0, %v8794
  %v8796 = vpop.f32.mrf.mxu0
  %8797 = vmatprep.mubr.f32.mxu0 0.0
  %8798 = vmatmul.mubr.f32.gmra.mxu0 %v8480
  %v8799 = vpop.f32.mrf.mxu0
  %v8800 = vadd.f32 0.0, %v8799
  %v8801 = vpop.f32.mrf.mxu0
  %8802 = vmatprep.mubr.f32.mxu0 0.0
  %8803 = vmatmul.mubr.f32.gmra.mxu0 %v8481
  %v8804 = vpop.f32.mrf.mxu0
  %v8805 = vadd.f32 0.0, %v8804
  %v8806 = vpop.f32.mrf.mxu0
  %8807 = vmatprep.mubr.f32.mxu0 0.0
  %8808 = vmatmul.mubr.f32.gmra.mxu0 %v8482
  %v8809 = vpop.f32.mrf.mxu0
  %v8810 = vadd.f32 0.0, %v8809
  %v8811 = vpop.f32.mrf.mxu0
  %8812 = vmatprep.mubr.f32.mxu0 0.0
  %8813 = vmatmul.mubr.f32.gmra.mxu0 %v8483
  %v8814 = vpop.f32.mrf.mxu0
  %v8815 = vadd.f32 0.0, %v8814
  %v8816 = vpop.f32.mrf.mxu0
  %8817 = vmatprep.mubr.f32.mxu0 0.0
  %8818 = vmatmul.mubr.f32.gmra.mxu0 %v8484
  %v8819 = vpop.f32.mrf.mxu0
  %v8820 = vadd.f32 0.0, %v8819
  %v8821 = vpop.f32.mrf.mxu0
  %8822 = vmatprep.mubr.f32.mxu0 0.0
  %8823 = vmatmul.mubr.f32.gmra.mxu0 %v8485
  %v8824 = vpop.f32.mrf.mxu0
  %v8825 = vadd.f32 0.0, %v8824
  %v8826 = vpop.f32.mrf.mxu0
  %8827 = vmatprep.mubr.f32.mxu0 0.0
  %8828 = vmatmul.mubr.f32.gmra.mxu0 %v8486
  %v8829 = vpop.f32.mrf.mxu0
  %v8830 = vadd.f32 0.0, %v8829
  %v8831 = vpop.f32.mrf.mxu0
  %8832 = vmatprep.mubr.f32.mxu0 0.0
  %8833 = vmatmul.mubr.f32.gmra.mxu0 %v8487
  %v8834 = vpop.f32.mrf.mxu0
  %v8835 = vadd.f32 0.0, %v8834
  %v8836 = vpop.f32.mrf.mxu0
  %8837 = vmatprep.mubr.f32.mxu0 0.0
  %8838 = vmatmul.mubr.f32.gmra.mxu0 %v8488
  %v8839 = vpop.f32.mrf.mxu0
  %v8840 = vadd.f32 0.0, %v8839
  %v8841 = vpop.f32.mrf.mxu0
  %8842 = vmatprep.mubr.f32.mxu0 0.0
  %8843 = vmatmul.mubr.f32.gmra.mxu0 %v8489
  %v8844 = vpop.f32.mrf.mxu0
  %v8845 = vadd.f32 0.0, %v8844
  %v8846 = vpop.f32.mrf.mxu0
  %8847 = vmatprep.mubr.f32.mxu0 0.0
  %8848 = vmatmul.mubr.f32.gmra.mxu0 %v8490
  %v8849 = vpop.f32.mrf.mxu0
  %v8850 = vadd.f32 0.0, %v8849
  %v8851 = vpop.f32.mrf.mxu0
  %8852 = vmatprep.mubr.f32.mxu0 0.0
  %8853 = vmatmul.mubr.f32.gmra.mxu0 %v8491
  %v8854 = vpop.f32.mrf.mxu0
  %v8855 = vadd.f32 0.0, %v8854
  %v8856 = vpop.f32.mrf.mxu0
  %8857 = vmatprep.mubr.f32.mxu0 0.0
  %8858 = vmatmul.mubr.f32.gmra.mxu0 %v8492
  %v8859 = vpop.f32.mrf.mxu0
  %v8860 = vadd.f32 0.0, %v8859
  %v8861 = vpop.f32.mrf.mxu0
  %8862 = vmatprep.mubr.f32.mxu0 0.0
  %8863 = vmatmul.mubr.f32.gmra.mxu0 %v8493
  %v8864 = vpop.f32.mrf.mxu0
  %v8865 = vadd.f32 0.0, %v8864
  %v8866 = vpop.f32.mrf.mxu0
  %8867 = vmatprep.mubr.f32.mxu0 0.0
  %8868 = vmatmul.mubr.f32.gmra.mxu0 %v8494
  %v8869 = vpop.f32.mrf.mxu0
  %v8870 = vadd.f32 0.0, %v8869
  %v8871 = vpop.f32.mrf.mxu0
  %8872 = vmatprep.mubr.f32.mxu0 0.0
  %8873 = vmatmul.mubr.f32.gmra.mxu0 %v8495
  %v8874 = vpop.f32.mrf.mxu0
  %v8875 = vadd.f32 0.0, %v8874
  %v8876 = vpop.f32.mrf.mxu0
  %8877 = vmatprep.mubr.f32.mxu0 0.0
  %8878 = vmatmul.mubr.f32.gmra.mxu0 %v8496
  %v8879 = vpop.f32.mrf.mxu0
  %v8880 = vadd.f32 0.0, %v8879
  %v8881 = vpop.f32.mrf.mxu0
  %8882 = vmatprep.mubr.f32.mxu0 0.0
  %8883 = vmatmul.mubr.f32.gmra.mxu0 %v8497
  %v8884 = vpop.f32.mrf.mxu0
  %v8885 = vadd.f32 0.0, %v8884
  %v8886 = vpop.f32.mrf.mxu0
  %8887 = vmatprep.mubr.f32.mxu0 0.0
  %8888 = vmatmul.mubr.f32.gmra.mxu0 %v8498
  %v8889 = vpop.f32.mrf.mxu0
  %v8890 = vadd.f32 0.0, %v8889
  %v8891 = vpop.f32.mrf.mxu0
  %8892 = vmatprep.mubr.f32.mxu0 0.0
  %8893 = vmatmul.mubr.f32.gmra.mxu0 %v8499
  %v8894 = vpop.f32.mrf.mxu0
  %v8895 = vadd.f32 0.0, %v8894
  %v8896 = vpop.f32.mrf.mxu0
  %8897 = vmatprep.mubr.f32.mxu0 0.0
  %8898 = vmatmul.mubr.f32.gmra.mxu0 %v8500
  %v8899 = vpop.f32.mrf.mxu0
  %v8900 = vadd.f32 0.0, %v8899
  %v8901 = vpop.f32.mrf.mxu0
  %8902 = vdwg.mxu0
  %v8903 = vadd.f32 %v8372, %v8585
  %v8904 = vadd.f32 %v8373, %v8590
  %v8905 = vadd.f32 %v8374, %v8595
  %v8906 = vadd.f32 %v8375, %v8600
  %v8907 = vadd.f32 %v8376, %v8605
  %v8908 = vadd.f32 %v8377, %v8610
  %v8909 = vadd.f32 %v8378, %v8615
  %v8910 = vadd.f32 %v8379, %v8620
  %v8911 = vadd.f32 %v8380, %v8625
  %v8912 = vadd.f32 %v8381, %v8630
  %v8913 = vadd.f32 %v8382, %v8635
  %v8914 = vadd.f32 %v8383, %v8640
  %v8915 = vadd.f32 %v8384, %v8645
  %v8916 = vadd.f32 %v8385, %v8650
  %v8917 = vadd.f32 %v8386, %v8655
  %v8918 = vadd.f32 %v8387, %v8660
  %v8919 = vadd.f32 %v8388, %v8665
  %v8920 = vadd.f32 %v8389, %v8670
  %v8921 = vadd.f32 %v8390, %v8675
  %v8922 = vadd.f32 %v8391, %v8680
  %v8923 = vadd.f32 %v8392, %v8685
  %v8924 = vadd.f32 %v8393, %v8690
  %v8925 = vadd.f32 %v8394, %v8695
  %v8926 = vadd.f32 %v8395, %v8700
  %v8927 = vadd.f32 %v8396, %v8705
  %v8928 = vadd.f32 %v8397, %v8710
  %v8929 = vadd.f32 %v8398, %v8715
  %v8930 = vadd.f32 %v8399, %v8720
  %v8931 = vadd.f32 %v8400, %v8725
  %v8932 = vadd.f32 %v8401, %v8730
  %v8933 = vadd.f32 %v8402, %v8735
  %v8934 = vadd.f32 %v8403, %v8740
  %v8935 = vadd.f32 %v8404, %v8745
  %v8936 = vadd.f32 %v8405, %v8750
  %v8937 = vadd.f32 %v8406, %v8755
  %v8938 = vadd.f32 %v8407, %v8760
  %v8939 = vadd.f32 %v8408, %v8765
  %v8940 = vadd.f32 %v8409, %v8770
  %v8941 = vadd.f32 %v8410, %v8775
  %v8942 = vadd.f32 %v8411, %v8780
  %v8943 = vadd.f32 %v8412, %v8785
  %v8944 = vadd.f32 %v8413, %v8790
  %v8945 = vadd.f32 %v8414, %v8795
  %v8946 = vadd.f32 %v8415, %v8800
  %v8947 = vadd.f32 %v8416, %v8805
  %v8948 = vadd.f32 %v8417, %v8810
  %v8949 = vadd.f32 %v8418, %v8815
  %v8950 = vadd.f32 %v8419, %v8820
  %v8951 = vadd.f32 %v8420, %v8825
  %v8952 = vadd.f32 %v8421, %v8830
  %v8953 = vadd.f32 %v8422, %v8835
  %v8954 = vadd.f32 %v8423, %v8840
  %v8955 = vadd.f32 %v8424, %v8845
  %v8956 = vadd.f32 %v8425, %v8850
  %v8957 = vadd.f32 %v8426, %v8855
  %v8958 = vadd.f32 %v8427, %v8860
  %v8959 = vadd.f32 %v8428, %v8865
  %v8960 = vadd.f32 %v8429, %v8870
  %v8961 = vadd.f32 %v8430, %v8875
  %v8962 = vadd.f32 %v8431, %v8880
  %v8963 = vadd.f32 %v8432, %v8885
  %v8964 = vadd.f32 %v8433, %v8890
  %v8965 = vadd.f32 %v8434, %v8895
  %v8966 = vadd.f32 %v8435, %v8900
  %v8967 = vld [vmem:[%s8436 + $0x1] sm:$0xff]
  %v8968 = vld [vmem:[%s8436 + $0x9] sm:$0xff]
  %v8969 = vld [vmem:[%s8436 + $0x19] sm:$0xff]
  %v8970 = vld [vmem:[%s8436 + $0x21] sm:$0xff]
  %v8971 = vld [vmem:[%s8436 + $0x31] sm:$0xff]
  %v8972 = vld [vmem:[%s8436 + $0x39] sm:$0xff]
  %v8973 = vld [vmem:[%s8436 + $0x49] sm:$0xff]
  %v8974 = vld [vmem:[%s8436 + $0x51] sm:$0xff]
  %v8975 = vld [vmem:[%s8436 + $0x61] sm:$0xff]
  %v8976 = vld [vmem:[%s8436 + $0x69] sm:$0xff]
  %v8977 = vld [vmem:[%s8436 + $0x79] sm:$0xff]
  %v8978 = vld [vmem:[%s8436 + $0x81] sm:$0xff]
  %v8979 = vld [vmem:[%s8436 + $0x91] sm:$0xff]
  %v8980 = vld [vmem:[%s8436 + $0x99] sm:$0xff]
  %v8981 = vld [vmem:[%s8436 + $0xa9] sm:$0xff]
  %v8982 = vld [vmem:[%s8436 + $0xb1] sm:$0xff]
  %v8983 = vld [vmem:[%s8436 + $0xc1] sm:$0xff]
  %v8984 = vld [vmem:[%s8436 + $0xc9] sm:$0xff]
  %v8985 = vld [vmem:[%s8436 + $0xd9] sm:$0xff]
  %v8986 = vld [vmem:[%s8436 + $0xe1] sm:$0xff]
  %v8987 = vld [vmem:[%s8436 + $0xf1] sm:$0xff]
  %v8988 = vld [vmem:[%s8436 + $0xf9] sm:$0xff]
  %v8989 = vld [vmem:[%s8436 + $0x109] sm:$0xff]
  %v8990 = vld [vmem:[%s8436 + $0x111] sm:$0xff]
  %v8991 = vld [vmem:[%s8436 + $0x121] sm:$0xff]
  %v8992 = vld [vmem:[%s8436 + $0x129] sm:$0xff]
  %v8993 = vld [vmem:[%s8436 + $0x139] sm:$0xff]
  %v8994 = vld [vmem:[%s8436 + $0x141] sm:$0xff]
  %v8995 = vld [vmem:[%s8436 + $0x151] sm:$0xff]
  %v8996 = vld [vmem:[%s8436 + $0x159] sm:$0xff]
  %v8997 = vld [vmem:[%s8436 + $0x169] sm:$0xff]
  %v8998 = vld [vmem:[%s8436 + $0x171] sm:$0xff]
  %v8999 = vld [vmem:[%s8436 + $0x1b1] sm:$0xff]
  %v9000 = vld [vmem:[%s8436 + $0x1b9] sm:$0xff]
  %v9001 = vld [vmem:[%s8436 + $0x1c9] sm:$0xff]
  %v9002 = vld [vmem:[%s8436 + $0x1d1] sm:$0xff]
  %v9003 = vld [vmem:[%s8436 + $0x1e1] sm:$0xff]
  %v9004 = vld [vmem:[%s8436 + $0x1e9] sm:$0xff]
  %v9005 = vld [vmem:[%s8436 + $0x1f9] sm:$0xff]
  %v9006 = vld [vmem:[%s8436 + $0x201] sm:$0xff]
  %v9007 = vld [vmem:[%s8436 + $0x211] sm:$0xff]
  %v9008 = vld [vmem:[%s8436 + $0x219] sm:$0xff]
  %v9009 = vld [vmem:[%s8436 + $0x229] sm:$0xff]
  %v9010 = vld [vmem:[%s8436 + $0x231] sm:$0xff]
  %v9011 = vld [vmem:[%s8436 + $0x241] sm:$0xff]
  %v9012 = vld [vmem:[%s8436 + $0x249] sm:$0xff]
  %v9013 = vld [vmem:[%s8436 + $0x259] sm:$0xff]
  %v9014 = vld [vmem:[%s8436 + $0x261] sm:$0xff]
  %v9015 = vld [vmem:[%s8436 + $0x271] sm:$0xff]
  %v9016 = vld [vmem:[%s8436 + $0x279] sm:$0xff]
  %v9017 = vld [vmem:[%s8436 + $0x289] sm:$0xff]
  %v9018 = vld [vmem:[%s8436 + $0x291] sm:$0xff]
  %v9019 = vld [vmem:[%s8436 + $0x2a1] sm:$0xff]
  %v9020 = vld [vmem:[%s8436 + $0x2a9] sm:$0xff]
  %v9021 = vld [vmem:[%s8436 + $0x2b9] sm:$0xff]
  %v9022 = vld [vmem:[%s8436 + $0x2c1] sm:$0xff]
  %v9023 = vld [vmem:[%s8436 + $0x2d1] sm:$0xff]
  %v9024 = vld [vmem:[%s8436 + $0x2d9] sm:$0xff]
  %v9025 = vld [vmem:[%s8436 + $0x2e9] sm:$0xff]
  %v9026 = vld [vmem:[%s8436 + $0x2f1] sm:$0xff]
  %v9027 = vld [vmem:[%s8436 + $0x301] sm:$0xff]
  %v9028 = vld [vmem:[%s8436 + $0x309] sm:$0xff]
  %v9029 = vld [vmem:[%s8436 + $0x319] sm:$0xff]
  %v9030 = vld [vmem:[%s8436 + $0x321] sm:$0xff]
  %s9031 = scalar_lea.vmem %s2, 896
  %v9032 = vld [vmem:[%s9031] sm:$0xff]
  %v9033 = vld [vmem:[%s9031 + $0x8] sm:$0xff]
  %v9034 = vld [vmem:[%s9031 + $0x10] sm:$0xff]
  %v9035 = vld [vmem:[%s9031 + $0x18] sm:$0xff]
  %v9036 = vld [vmem:[%s9031 + $0x20] sm:$0xff]
  %v9037 = vld [vmem:[%s9031 + $0x28] sm:$0xff]
  %v9038 = vld [vmem:[%s9031 + $0x30] sm:$0xff]
  %v9039 = vld [vmem:[%s9031 + $0x38] sm:$0xff]
  %v9040 = vld [vmem:[%s9031 + $0x40] sm:$0xff]
  %v9041 = vld [vmem:[%s9031 + $0x48] sm:$0xff]
  %v9042 = vld [vmem:[%s9031 + $0x50] sm:$0xff]
  %v9043 = vld [vmem:[%s9031 + $0x58] sm:$0xff]
  %v9044 = vld [vmem:[%s9031 + $0x60] sm:$0xff]
  %v9045 = vld [vmem:[%s9031 + $0x68] sm:$0xff]
  %v9046 = vld [vmem:[%s9031 + $0x70] sm:$0xff]
  %v9047 = vld [vmem:[%s9031 + $0x78] sm:$0xff]
  %9048 = vmatprep.subr.mxu0 0.0
  %9049 = vmatpush1.msra.mxu0 %v9047
  %9050 = vmatprep.subr.mxu0 0.0
  %9051 = vmatpush1.msra.mxu0 %v9046
  %9052 = vmatprep.subr.mxu0 0.0
  %9053 = vmatpush1.msra.mxu0 %v9045
  %9054 = vmatprep.subr.mxu0 0.0
  %9055 = vmatpush1.msra.mxu0 %v9044
  %9056 = vmatprep.subr.mxu0 0.0
  %9057 = vmatpush1.msra.mxu0 %v9043
  %9058 = vmatprep.subr.mxu0 0.0
  %9059 = vmatpush1.msra.mxu0 %v9042
  %9060 = vmatprep.subr.mxu0 0.0
  %9061 = vmatpush1.msra.mxu0 %v9041
  %9062 = vmatprep.subr.mxu0 0.0
  %9063 = vmatpush1.msra.mxu0 %v9040
  %9064 = vmatprep.subr.mxu0 0.0
  %9065 = vmatpush1.msra.mxu0 %v9039
  %9066 = vmatprep.subr.mxu0 0.0
  %9067 = vmatpush1.msra.mxu0 %v9038
  %9068 = vmatprep.subr.mxu0 0.0
  %9069 = vmatpush1.msra.mxu0 %v9037
  %9070 = vmatprep.subr.mxu0 0.0
  %9071 = vmatpush1.msra.mxu0 %v9036
  %9072 = vmatprep.subr.mxu0 0.0
  %9073 = vmatpush1.msra.mxu0 %v9035
  %9074 = vmatprep.subr.mxu0 0.0
  %9075 = vmatpush1.msra.mxu0 %v9034
  %9076 = vmatprep.subr.mxu0 0.0
  %9077 = vmatpush1.msra.mxu0 %v9033
  %9078 = vmatprep.subr.mxu0 0.0
  %9079 = vmatpush1.msra.mxu0 %v9032
  %9080 = vmatprep.subr.mxu0 0.0
  %9081 = vmatpush2.msra.mxu0 0.0
  %9082 = vmatprep.subr.mxu0 0.0
  %9083 = vmatpush2.msra.mxu0 0.0
  %9084 = vmatprep.subr.mxu0 0.0
  %9085 = vmatpush2.msra.mxu0 0.0
  %9086 = vmatprep.subr.mxu0 0.0
  %9087 = vmatpush2.msra.mxu0 0.0
  %9088 = vmatprep.subr.mxu0 0.0
  %9089 = vmatpush2.msra.mxu0 0.0
  %9090 = vmatprep.subr.mxu0 0.0
  %9091 = vmatpush2.msra.mxu0 0.0
  %9092 = vmatprep.subr.mxu0 0.0
  %9093 = vmatpush2.msra.mxu0 0.0
  %9094 = vmatprep.subr.mxu0 0.0
  %9095 = vmatpush2.msra.mxu0 0.0
  %9096 = vmatprep.subr.mxu0 0.0
  %9097 = vmatpush2.msra.mxu0 0.0
  %9098 = vmatprep.subr.mxu0 0.0
  %9099 = vmatpush2.msra.mxu0 0.0
  %9100 = vmatprep.subr.mxu0 0.0
  %9101 = vmatpush2.msra.mxu0 0.0
  %9102 = vmatprep.subr.mxu0 0.0
  %9103 = vmatpush2.msra.mxu0 0.0
  %9104 = vmatprep.subr.mxu0 0.0
  %9105 = vmatpush2.msra.mxu0 0.0
  %9106 = vmatprep.subr.mxu0 0.0
  %9107 = vmatpush2.msra.mxu0 0.0
  %9108 = vmatprep.subr.mxu0 0.0
  %9109 = vmatpush2.msra.mxu0 0.0
  %9110 = vmatprep.subr.mxu0 0.0
  %9111 = vmatpush2.msra.mxu0 0.0
  %9112 = vmatprep.mubr.f32.mxu0 0.0
  %9113 = vmatmul.mubr.f32.gmra.mxu0 %v8967
  %v9114 = vpop.f32.mrf.mxu0
  %v9115 = vadd.f32 0.0, %v9114
  %v9116 = vpop.f32.mrf.mxu0
  %9117 = vmatprep.mubr.f32.mxu0 0.0
  %9118 = vmatmul.mubr.f32.gmra.mxu0 %v8968
  %v9119 = vpop.f32.mrf.mxu0
  %v9120 = vadd.f32 0.0, %v9119
  %v9121 = vpop.f32.mrf.mxu0
  %9122 = vmatprep.mubr.f32.mxu0 0.0
  %9123 = vmatmul.mubr.f32.gmra.mxu0 %v8969
  %v9124 = vpop.f32.mrf.mxu0
  %v9125 = vadd.f32 0.0, %v9124
  %v9126 = vpop.f32.mrf.mxu0
  %9127 = vmatprep.mubr.f32.mxu0 0.0
  %9128 = vmatmul.mubr.f32.gmra.mxu0 %v8970
  %v9129 = vpop.f32.mrf.mxu0
  %v9130 = vadd.f32 0.0, %v9129
  %v9131 = vpop.f32.mrf.mxu0
  %9132 = vmatprep.mubr.f32.mxu0 0.0
  %9133 = vmatmul.mubr.f32.gmra.mxu0 %v8971
  %v9134 = vpop.f32.mrf.mxu0
  %v9135 = vadd.f32 0.0, %v9134
  %v9136 = vpop.f32.mrf.mxu0
  %9137 = vmatprep.mubr.f32.mxu0 0.0
  %9138 = vmatmul.mubr.f32.gmra.mxu0 %v8972
  %v9139 = vpop.f32.mrf.mxu0
  %v9140 = vadd.f32 0.0, %v9139
  %v9141 = vpop.f32.mrf.mxu0
  %9142 = vmatprep.mubr.f32.mxu0 0.0
  %9143 = vmatmul.mubr.f32.gmra.mxu0 %v8973
  %v9144 = vpop.f32.mrf.mxu0
  %v9145 = vadd.f32 0.0, %v9144
  %v9146 = vpop.f32.mrf.mxu0
  %9147 = vmatprep.mubr.f32.mxu0 0.0
  %9148 = vmatmul.mubr.f32.gmra.mxu0 %v8974
  %v9149 = vpop.f32.mrf.mxu0
  %v9150 = vadd.f32 0.0, %v9149
  %v9151 = vpop.f32.mrf.mxu0
  %9152 = vmatprep.mubr.f32.mxu0 0.0
  %9153 = vmatmul.mubr.f32.gmra.mxu0 %v8975
  %v9154 = vpop.f32.mrf.mxu0
  %v9155 = vadd.f32 0.0, %v9154
  %v9156 = vpop.f32.mrf.mxu0
  %9157 = vmatprep.mubr.f32.mxu0 0.0
  %9158 = vmatmul.mubr.f32.gmra.mxu0 %v8976
  %v9159 = vpop.f32.mrf.mxu0
  %v9160 = vadd.f32 0.0, %v9159
  %v9161 = vpop.f32.mrf.mxu0
  %9162 = vmatprep.mubr.f32.mxu0 0.0
  %9163 = vmatmul.mubr.f32.gmra.mxu0 %v8977
  %v9164 = vpop.f32.mrf.mxu0
  %v9165 = vadd.f32 0.0, %v9164
  %v9166 = vpop.f32.mrf.mxu0
  %9167 = vmatprep.mubr.f32.mxu0 0.0
  %9168 = vmatmul.mubr.f32.gmra.mxu0 %v8978
  %v9169 = vpop.f32.mrf.mxu0
  %v9170 = vadd.f32 0.0, %v9169
  %v9171 = vpop.f32.mrf.mxu0
  %9172 = vmatprep.mubr.f32.mxu0 0.0
  %9173 = vmatmul.mubr.f32.gmra.mxu0 %v8979
  %v9174 = vpop.f32.mrf.mxu0
  %v9175 = vadd.f32 0.0, %v9174
  %v9176 = vpop.f32.mrf.mxu0
  %9177 = vmatprep.mubr.f32.mxu0 0.0
  %9178 = vmatmul.mubr.f32.gmra.mxu0 %v8980
  %v9179 = vpop.f32.mrf.mxu0
  %v9180 = vadd.f32 0.0, %v9179
  %v9181 = vpop.f32.mrf.mxu0
  %9182 = vmatprep.mubr.f32.mxu0 0.0
  %9183 = vmatmul.mubr.f32.gmra.mxu0 %v8981
  %v9184 = vpop.f32.mrf.mxu0
  %v9185 = vadd.f32 0.0, %v9184
  %v9186 = vpop.f32.mrf.mxu0
  %9187 = vmatprep.mubr.f32.mxu0 0.0
  %9188 = vmatmul.mubr.f32.gmra.mxu0 %v8982
  %v9189 = vpop.f32.mrf.mxu0
  %v9190 = vadd.f32 0.0, %v9189
  %v9191 = vpop.f32.mrf.mxu0
  %9192 = vmatprep.mubr.f32.mxu0 0.0
  %9193 = vmatmul.mubr.f32.gmra.mxu0 %v8983
  %v9194 = vpop.f32.mrf.mxu0
  %v9195 = vadd.f32 0.0, %v9194
  %v9196 = vpop.f32.mrf.mxu0
  %9197 = vmatprep.mubr.f32.mxu0 0.0
  %9198 = vmatmul.mubr.f32.gmra.mxu0 %v8984
  %v9199 = vpop.f32.mrf.mxu0
  %v9200 = vadd.f32 0.0, %v9199
  %v9201 = vpop.f32.mrf.mxu0
  %9202 = vmatprep.mubr.f32.mxu0 0.0
  %9203 = vmatmul.mubr.f32.gmra.mxu0 %v8985
  %v9204 = vpop.f32.mrf.mxu0
  %v9205 = vadd.f32 0.0, %v9204
  %v9206 = vpop.f32.mrf.mxu0
  %9207 = vmatprep.mubr.f32.mxu0 0.0
  %9208 = vmatmul.mubr.f32.gmra.mxu0 %v8986
  %v9209 = vpop.f32.mrf.mxu0
  %v9210 = vadd.f32 0.0, %v9209
  %v9211 = vpop.f32.mrf.mxu0
  %9212 = vmatprep.mubr.f32.mxu0 0.0
  %9213 = vmatmul.mubr.f32.gmra.mxu0 %v8987
  %v9214 = vpop.f32.mrf.mxu0
  %v9215 = vadd.f32 0.0, %v9214
  %v9216 = vpop.f32.mrf.mxu0
  %9217 = vmatprep.mubr.f32.mxu0 0.0
  %9218 = vmatmul.mubr.f32.gmra.mxu0 %v8988
  %v9219 = vpop.f32.mrf.mxu0
  %v9220 = vadd.f32 0.0, %v9219
  %v9221 = vpop.f32.mrf.mxu0
  %9222 = vmatprep.mubr.f32.mxu0 0.0
  %9223 = vmatmul.mubr.f32.gmra.mxu0 %v8989
  %v9224 = vpop.f32.mrf.mxu0
  %v9225 = vadd.f32 0.0, %v9224
  %v9226 = vpop.f32.mrf.mxu0
  %9227 = vmatprep.mubr.f32.mxu0 0.0
  %9228 = vmatmul.mubr.f32.gmra.mxu0 %v8990
  %v9229 = vpop.f32.mrf.mxu0
  %v9230 = vadd.f32 0.0, %v9229
  %v9231 = vpop.f32.mrf.mxu0
  %9232 = vmatprep.mubr.f32.mxu0 0.0
  %9233 = vmatmul.mubr.f32.gmra.mxu0 %v8991
  %v9234 = vpop.f32.mrf.mxu0
  %v9235 = vadd.f32 0.0, %v9234
  %v9236 = vpop.f32.mrf.mxu0
  %9237 = vmatprep.mubr.f32.mxu0 0.0
  %9238 = vmatmul.mubr.f32.gmra.mxu0 %v8992
  %v9239 = vpop.f32.mrf.mxu0
  %v9240 = vadd.f32 0.0, %v9239
  %v9241 = vpop.f32.mrf.mxu0
  %9242 = vmatprep.mubr.f32.mxu0 0.0
  %9243 = vmatmul.mubr.f32.gmra.mxu0 %v8993
  %v9244 = vpop.f32.mrf.mxu0
  %v9245 = vadd.f32 0.0, %v9244
  %v9246 = vpop.f32.mrf.mxu0
  %9247 = vmatprep.mubr.f32.mxu0 0.0
  %9248 = vmatmul.mubr.f32.gmra.mxu0 %v8994
  %v9249 = vpop.f32.mrf.mxu0
  %v9250 = vadd.f32 0.0, %v9249
  %v9251 = vpop.f32.mrf.mxu0
  %9252 = vmatprep.mubr.f32.mxu0 0.0
  %9253 = vmatmul.mubr.f32.gmra.mxu0 %v8995
  %v9254 = vpop.f32.mrf.mxu0
  %v9255 = vadd.f32 0.0, %v9254
  %v9256 = vpop.f32.mrf.mxu0
  %9257 = vmatprep.mubr.f32.mxu0 0.0
  %9258 = vmatmul.mubr.f32.gmra.mxu0 %v8996
  %v9259 = vpop.f32.mrf.mxu0
  %v9260 = vadd.f32 0.0, %v9259
  %v9261 = vpop.f32.mrf.mxu0
  %9262 = vmatprep.mubr.f32.mxu0 0.0
  %9263 = vmatmul.mubr.f32.gmra.mxu0 %v8997
  %v9264 = vpop.f32.mrf.mxu0
  %v9265 = vadd.f32 0.0, %v9264
  %v9266 = vpop.f32.mrf.mxu0
  %9267 = vmatprep.mubr.f32.mxu0 0.0
  %9268 = vmatmul.mubr.f32.gmra.mxu0 %v8998
  %v9269 = vpop.f32.mrf.mxu0
  %v9270 = vadd.f32 0.0, %v9269
  %v9271 = vpop.f32.mrf.mxu0
  %9272 = vmatprep.mubr.f32.mxu0 0.0
  %9273 = vmatmul.mubr.f32.gmra.mxu0 %v8999
  %v9274 = vpop.f32.mrf.mxu0
  %v9275 = vadd.f32 0.0, %v9274
  %v9276 = vpop.f32.mrf.mxu0
  %9277 = vmatprep.mubr.f32.mxu0 0.0
  %9278 = vmatmul.mubr.f32.gmra.mxu0 %v9000
  %v9279 = vpop.f32.mrf.mxu0
  %v9280 = vadd.f32 0.0, %v9279
  %v9281 = vpop.f32.mrf.mxu0
  %9282 = vmatprep.mubr.f32.mxu0 0.0
  %9283 = vmatmul.mubr.f32.gmra.mxu0 %v9001
  %v9284 = vpop.f32.mrf.mxu0
  %v9285 = vadd.f32 0.0, %v9284
  %v9286 = vpop.f32.mrf.mxu0
  %9287 = vmatprep.mubr.f32.mxu0 0.0
  %9288 = vmatmul.mubr.f32.gmra.mxu0 %v9002
  %v9289 = vpop.f32.mrf.mxu0
  %v9290 = vadd.f32 0.0, %v9289
  %v9291 = vpop.f32.mrf.mxu0
  %9292 = vmatprep.mubr.f32.mxu0 0.0
  %9293 = vmatmul.mubr.f32.gmra.mxu0 %v9003
  %v9294 = vpop.f32.mrf.mxu0
  %v9295 = vadd.f32 0.0, %v9294
  %v9296 = vpop.f32.mrf.mxu0
  %9297 = vmatprep.mubr.f32.mxu0 0.0
  %9298 = vmatmul.mubr.f32.gmra.mxu0 %v9004
  %v9299 = vpop.f32.mrf.mxu0
  %v9300 = vadd.f32 0.0, %v9299
  %v9301 = vpop.f32.mrf.mxu0
  %9302 = vmatprep.mubr.f32.mxu0 0.0
  %9303 = vmatmul.mubr.f32.gmra.mxu0 %v9005
  %v9304 = vpop.f32.mrf.mxu0
  %v9305 = vadd.f32 0.0, %v9304
  %v9306 = vpop.f32.mrf.mxu0
  %9307 = vmatprep.mubr.f32.mxu0 0.0
  %9308 = vmatmul.mubr.f32.gmra.mxu0 %v9006
  %v9309 = vpop.f32.mrf.mxu0
  %v9310 = vadd.f32 0.0, %v9309
  %v9311 = vpop.f32.mrf.mxu0
  %9312 = vmatprep.mubr.f32.mxu0 0.0
  %9313 = vmatmul.mubr.f32.gmra.mxu0 %v9007
  %v9314 = vpop.f32.mrf.mxu0
  %v9315 = vadd.f32 0.0, %v9314
  %v9316 = vpop.f32.mrf.mxu0
  %9317 = vmatprep.mubr.f32.mxu0 0.0
  %9318 = vmatmul.mubr.f32.gmra.mxu0 %v9008
  %v9319 = vpop.f32.mrf.mxu0
  %v9320 = vadd.f32 0.0, %v9319
  %v9321 = vpop.f32.mrf.mxu0
  %9322 = vmatprep.mubr.f32.mxu0 0.0
  %9323 = vmatmul.mubr.f32.gmra.mxu0 %v9009
  %v9324 = vpop.f32.mrf.mxu0
  %v9325 = vadd.f32 0.0, %v9324
  %v9326 = vpop.f32.mrf.mxu0
  %9327 = vmatprep.mubr.f32.mxu0 0.0
  %9328 = vmatmul.mubr.f32.gmra.mxu0 %v9010
  %v9329 = vpop.f32.mrf.mxu0
  %v9330 = vadd.f32 0.0, %v9329
  %v9331 = vpop.f32.mrf.mxu0
  %9332 = vmatprep.mubr.f32.mxu0 0.0
  %9333 = vmatmul.mubr.f32.gmra.mxu0 %v9011
  %v9334 = vpop.f32.mrf.mxu0
  %v9335 = vadd.f32 0.0, %v9334
  %v9336 = vpop.f32.mrf.mxu0
  %9337 = vmatprep.mubr.f32.mxu0 0.0
  %9338 = vmatmul.mubr.f32.gmra.mxu0 %v9012
  %v9339 = vpop.f32.mrf.mxu0
  %v9340 = vadd.f32 0.0, %v9339
  %v9341 = vpop.f32.mrf.mxu0
  %9342 = vmatprep.mubr.f32.mxu0 0.0
  %9343 = vmatmul.mubr.f32.gmra.mxu0 %v9013
  %v9344 = vpop.f32.mrf.mxu0
  %v9345 = vadd.f32 0.0, %v9344
  %v9346 = vpop.f32.mrf.mxu0
  %9347 = vmatprep.mubr.f32.mxu0 0.0
  %9348 = vmatmul.mubr.f32.gmra.mxu0 %v9014
  %v9349 = vpop.f32.mrf.mxu0
  %v9350 = vadd.f32 0.0, %v9349
  %v9351 = vpop.f32.mrf.mxu0
  %9352 = vmatprep.mubr.f32.mxu0 0.0
  %9353 = vmatmul.mubr.f32.gmra.mxu0 %v9015
  %v9354 = vpop.f32.mrf.mxu0
  %v9355 = vadd.f32 0.0, %v9354
  %v9356 = vpop.f32.mrf.mxu0
  %9357 = vmatprep.mubr.f32.mxu0 0.0
  %9358 = vmatmul.mubr.f32.gmra.mxu0 %v9016
  %v9359 = vpop.f32.mrf.mxu0
  %v9360 = vadd.f32 0.0, %v9359
  %v9361 = vpop.f32.mrf.mxu0
  %9362 = vmatprep.mubr.f32.mxu0 0.0
  %9363 = vmatmul.mubr.f32.gmra.mxu0 %v9017
  %v9364 = vpop.f32.mrf.mxu0
  %v9365 = vadd.f32 0.0, %v9364
  %v9366 = vpop.f32.mrf.mxu0
  %9367 = vmatprep.mubr.f32.mxu0 0.0
  %9368 = vmatmul.mubr.f32.gmra.mxu0 %v9018
  %v9369 = vpop.f32.mrf.mxu0
  %v9370 = vadd.f32 0.0, %v9369
  %v9371 = vpop.f32.mrf.mxu0
  %9372 = vmatprep.mubr.f32.mxu0 0.0
  %9373 = vmatmul.mubr.f32.gmra.mxu0 %v9019
  %v9374 = vpop.f32.mrf.mxu0
  %v9375 = vadd.f32 0.0, %v9374
  %v9376 = vpop.f32.mrf.mxu0
  %9377 = vmatprep.mubr.f32.mxu0 0.0
  %9378 = vmatmul.mubr.f32.gmra.mxu0 %v9020
  %v9379 = vpop.f32.mrf.mxu0
  %v9380 = vadd.f32 0.0, %v9379
  %v9381 = vpop.f32.mrf.mxu0
  %9382 = vmatprep.mubr.f32.mxu0 0.0
  %9383 = vmatmul.mubr.f32.gmra.mxu0 %v9021
  %v9384 = vpop.f32.mrf.mxu0
  %v9385 = vadd.f32 0.0, %v9384
  %v9386 = vpop.f32.mrf.mxu0
  %9387 = vmatprep.mubr.f32.mxu0 0.0
  %9388 = vmatmul.mubr.f32.gmra.mxu0 %v9022
  %v9389 = vpop.f32.mrf.mxu0
  %v9390 = vadd.f32 0.0, %v9389
  %v9391 = vpop.f32.mrf.mxu0
  %9392 = vmatprep.mubr.f32.mxu0 0.0
  %9393 = vmatmul.mubr.f32.gmra.mxu0 %v9023
  %v9394 = vpop.f32.mrf.mxu0
  %v9395 = vadd.f32 0.0, %v9394
  %v9396 = vpop.f32.mrf.mxu0
  %9397 = vmatprep.mubr.f32.mxu0 0.0
  %9398 = vmatmul.mubr.f32.gmra.mxu0 %v9024
  %v9399 = vpop.f32.mrf.mxu0
  %v9400 = vadd.f32 0.0, %v9399
  %v9401 = vpop.f32.mrf.mxu0
  %9402 = vmatprep.mubr.f32.mxu0 0.0
  %9403 = vmatmul.mubr.f32.gmra.mxu0 %v9025
  %v9404 = vpop.f32.mrf.mxu0
  %v9405 = vadd.f32 0.0, %v9404
  %v9406 = vpop.f32.mrf.mxu0
  %9407 = vmatprep.mubr.f32.mxu0 0.0
  %9408 = vmatmul.mubr.f32.gmra.mxu0 %v9026
  %v9409 = vpop.f32.mrf.mxu0
  %v9410 = vadd.f32 0.0, %v9409
  %v9411 = vpop.f32.mrf.mxu0
  %9412 = vmatprep.mubr.f32.mxu0 0.0
  %9413 = vmatmul.mubr.f32.gmra.mxu0 %v9027
  %v9414 = vpop.f32.mrf.mxu0
  %v9415 = vadd.f32 0.0, %v9414
  %v9416 = vpop.f32.mrf.mxu0
  %9417 = vmatprep.mubr.f32.mxu0 0.0
  %9418 = vmatmul.mubr.f32.gmra.mxu0 %v9028
  %v9419 = vpop.f32.mrf.mxu0
  %v9420 = vadd.f32 0.0, %v9419
  %v9421 = vpop.f32.mrf.mxu0
  %9422 = vmatprep.mubr.f32.mxu0 0.0
  %9423 = vmatmul.mubr.f32.gmra.mxu0 %v9029
  %v9424 = vpop.f32.mrf.mxu0
  %v9425 = vadd.f32 0.0, %v9424
  %v9426 = vpop.f32.mrf.mxu0
  %9427 = vmatprep.mubr.f32.mxu0 0.0
  %9428 = vmatmul.mubr.f32.gmra.mxu0 %v9030
  %v9429 = vpop.f32.mrf.mxu0
  %v9430 = vadd.f32 0.0, %v9429
  %v9431 = vpop.f32.mrf.mxu0
  %9432 = vdwg.mxu0
  %v9433 = vadd.f32 %v8903, %v9115
  %v9434 = vadd.f32 %v8904, %v9120
  %v9435 = vadd.f32 %v8905, %v9125
  %v9436 = vadd.f32 %v8906, %v9130
  %v9437 = vadd.f32 %v8907, %v9135
  %v9438 = vadd.f32 %v8908, %v9140
  %v9439 = vadd.f32 %v8909, %v9145
  %v9440 = vadd.f32 %v8910, %v9150
  %v9441 = vadd.f32 %v8911, %v9155
  %v9442 = vadd.f32 %v8912, %v9160
  %v9443 = vadd.f32 %v8913, %v9165
  %v9444 = vadd.f32 %v8914, %v9170
  %v9445 = vadd.f32 %v8915, %v9175
  %v9446 = vadd.f32 %v8916, %v9180
  %v9447 = vadd.f32 %v8917, %v9185
  %v9448 = vadd.f32 %v8918, %v9190
  %v9449 = vadd.f32 %v8919, %v9195
  %v9450 = vadd.f32 %v8920, %v9200
  %v9451 = vadd.f32 %v8921, %v9205
  %v9452 = vadd.f32 %v8922, %v9210
  %v9453 = vadd.f32 %v8923, %v9215
  %v9454 = vadd.f32 %v8924, %v9220
  %v9455 = vadd.f32 %v8925, %v9225
  %v9456 = vadd.f32 %v8926, %v9230
  %v9457 = vadd.f32 %v8927, %v9235
  %v9458 = vadd.f32 %v8928, %v9240
  %v9459 = vadd.f32 %v8929, %v9245
  %v9460 = vadd.f32 %v8930, %v9250
  %v9461 = vadd.f32 %v8931, %v9255
  %v9462 = vadd.f32 %v8932, %v9260
  %v9463 = vadd.f32 %v8933, %v9265
  %v9464 = vadd.f32 %v8934, %v9270
  %v9465 = vadd.f32 %v8935, %v9275
  %v9466 = vadd.f32 %v8936, %v9280
  %v9467 = vadd.f32 %v8937, %v9285
  %v9468 = vadd.f32 %v8938, %v9290
  %v9469 = vadd.f32 %v8939, %v9295
  %v9470 = vadd.f32 %v8940, %v9300
  %v9471 = vadd.f32 %v8941, %v9305
  %v9472 = vadd.f32 %v8942, %v9310
  %v9473 = vadd.f32 %v8943, %v9315
  %v9474 = vadd.f32 %v8944, %v9320
  %v9475 = vadd.f32 %v8945, %v9325
  %v9476 = vadd.f32 %v8946, %v9330
  %v9477 = vadd.f32 %v8947, %v9335
  %v9478 = vadd.f32 %v8948, %v9340
  %v9479 = vadd.f32 %v8949, %v9345
  %v9480 = vadd.f32 %v8950, %v9350
  %v9481 = vadd.f32 %v8951, %v9355
  %v9482 = vadd.f32 %v8952, %v9360
  %v9483 = vadd.f32 %v8953, %v9365
  %v9484 = vadd.f32 %v8954, %v9370
  %v9485 = vadd.f32 %v8955, %v9375
  %v9486 = vadd.f32 %v8956, %v9380
  %v9487 = vadd.f32 %v8957, %v9385
  %v9488 = vadd.f32 %v8958, %v9390
  %v9489 = vadd.f32 %v8959, %v9395
  %v9490 = vadd.f32 %v8960, %v9400
  %v9491 = vadd.f32 %v8961, %v9405
  %v9492 = vadd.f32 %v8962, %v9410
  %v9493 = vadd.f32 %v8963, %v9415
  %v9494 = vadd.f32 %v8964, %v9420
  %v9495 = vadd.f32 %v8965, %v9425
  %v9496 = vadd.f32 %v8966, %v9430
  %v9497 = vld [vmem:[%s8436 + $0x2] sm:$0xff]
  %v9498 = vld [vmem:[%s8436 + $0xa] sm:$0xff]
  %v9499 = vld [vmem:[%s8436 + $0x1a] sm:$0xff]
  %v9500 = vld [vmem:[%s8436 + $0x22] sm:$0xff]
  %v9501 = vld [vmem:[%s8436 + $0x32] sm:$0xff]
  %v9502 = vld [vmem:[%s8436 + $0x3a] sm:$0xff]
  %v9503 = vld [vmem:[%s8436 + $0x4a] sm:$0xff]
  %v9504 = vld [vmem:[%s8436 + $0x52] sm:$0xff]
  %v9505 = vld [vmem:[%s8436 + $0x62] sm:$0xff]
  %v9506 = vld [vmem:[%s8436 + $0x6a] sm:$0xff]
  %v9507 = vld [vmem:[%s8436 + $0x7a] sm:$0xff]
  %v9508 = vld [vmem:[%s8436 + $0x82] sm:$0xff]
  %v9509 = vld [vmem:[%s8436 + $0x92] sm:$0xff]
  %v9510 = vld [vmem:[%s8436 + $0x9a] sm:$0xff]
  %v9511 = vld [vmem:[%s8436 + $0xaa] sm:$0xff]
  %v9512 = vld [vmem:[%s8436 + $0xb2] sm:$0xff]
  %v9513 = vld [vmem:[%s8436 + $0xc2] sm:$0xff]
  %v9514 = vld [vmem:[%s8436 + $0xca] sm:$0xff]
  %v9515 = vld [vmem:[%s8436 + $0xda] sm:$0xff]
  %v9516 = vld [vmem:[%s8436 + $0xe2] sm:$0xff]
  %v9517 = vld [vmem:[%s8436 + $0xf2] sm:$0xff]
  %v9518 = vld [vmem:[%s8436 + $0xfa] sm:$0xff]
  %v9519 = vld [vmem:[%s8436 + $0x10a] sm:$0xff]
  %v9520 = vld [vmem:[%s8436 + $0x112] sm:$0xff]
  %v9521 = vld [vmem:[%s8436 + $0x122] sm:$0xff]
  %v9522 = vld [vmem:[%s8436 + $0x12a] sm:$0xff]
  %v9523 = vld [vmem:[%s8436 + $0x13a] sm:$0xff]
  %v9524 = vld [vmem:[%s8436 + $0x142] sm:$0xff]
  %v9525 = vld [vmem:[%s8436 + $0x152] sm:$0xff]
  %v9526 = vld [vmem:[%s8436 + $0x15a] sm:$0xff]
  %v9527 = vld [vmem:[%s8436 + $0x16a] sm:$0xff]
  %v9528 = vld [vmem:[%s8436 + $0x172] sm:$0xff]
  %v9529 = vld [vmem:[%s8436 + $0x1b2] sm:$0xff]
  %v9530 = vld [vmem:[%s8436 + $0x1ba] sm:$0xff]
  %v9531 = vld [vmem:[%s8436 + $0x1ca] sm:$0xff]
  %v9532 = vld [vmem:[%s8436 + $0x1d2] sm:$0xff]
  %v9533 = vld [vmem:[%s8436 + $0x1e2] sm:$0xff]
  %v9534 = vld [vmem:[%s8436 + $0x1ea] sm:$0xff]
  %v9535 = vld [vmem:[%s8436 + $0x1fa] sm:$0xff]
  %v9536 = vld [vmem:[%s8436 + $0x202] sm:$0xff]
  %v9537 = vld [vmem:[%s8436 + $0x212] sm:$0xff]
  %v9538 = vld [vmem:[%s8436 + $0x21a] sm:$0xff]
  %v9539 = vld [vmem:[%s8436 + $0x22a] sm:$0xff]
  %v9540 = vld [vmem:[%s8436 + $0x232] sm:$0xff]
  %v9541 = vld [vmem:[%s8436 + $0x242] sm:$0xff]
  %v9542 = vld [vmem:[%s8436 + $0x24a] sm:$0xff]
  %v9543 = vld [vmem:[%s8436 + $0x25a] sm:$0xff]
  %v9544 = vld [vmem:[%s8436 + $0x262] sm:$0xff]
  %v9545 = vld [vmem:[%s8436 + $0x272] sm:$0xff]
  %v9546 = vld [vmem:[%s8436 + $0x27a] sm:$0xff]
  %v9547 = vld [vmem:[%s8436 + $0x28a] sm:$0xff]
  %v9548 = vld [vmem:[%s8436 + $0x292] sm:$0xff]
  %v9549 = vld [vmem:[%s8436 + $0x2a2] sm:$0xff]
  %v9550 = vld [vmem:[%s8436 + $0x2aa] sm:$0xff]
  %v9551 = vld [vmem:[%s8436 + $0x2ba] sm:$0xff]
  %v9552 = vld [vmem:[%s8436 + $0x2c2] sm:$0xff]
  %v9553 = vld [vmem:[%s8436 + $0x2d2] sm:$0xff]
  %v9554 = vld [vmem:[%s8436 + $0x2da] sm:$0xff]
  %v9555 = vld [vmem:[%s8436 + $0x2ea] sm:$0xff]
  %v9556 = vld [vmem:[%s8436 + $0x2f2] sm:$0xff]
  %v9557 = vld [vmem:[%s8436 + $0x302] sm:$0xff]
  %v9558 = vld [vmem:[%s8436 + $0x30a] sm:$0xff]
  %v9559 = vld [vmem:[%s8436 + $0x31a] sm:$0xff]
  %v9560 = vld [vmem:[%s8436 + $0x322] sm:$0xff]
  %s9561 = scalar_lea.vmem %s2, 1024
  %v9562 = vld [vmem:[%s9561] sm:$0xff]
  %v9563 = vld [vmem:[%s9561 + $0x8] sm:$0xff]
  %v9564 = vld [vmem:[%s9561 + $0x10] sm:$0xff]
  %v9565 = vld [vmem:[%s9561 + $0x18] sm:$0xff]
  %v9566 = vld [vmem:[%s9561 + $0x20] sm:$0xff]
  %v9567 = vld [vmem:[%s9561 + $0x28] sm:$0xff]
  %v9568 = vld [vmem:[%s9561 + $0x30] sm:$0xff]
  %v9569 = vld [vmem:[%s9561 + $0x38] sm:$0xff]
  %v9570 = vld [vmem:[%s9561 + $0x40] sm:$0xff]
  %v9571 = vld [vmem:[%s9561 + $0x48] sm:$0xff]
  %v9572 = vld [vmem:[%s9561 + $0x50] sm:$0xff]
  %v9573 = vld [vmem:[%s9561 + $0x58] sm:$0xff]
  %v9574 = vld [vmem:[%s9561 + $0x60] sm:$0xff]
  %v9575 = vld [vmem:[%s9561 + $0x68] sm:$0xff]
  %v9576 = vld [vmem:[%s9561 + $0x70] sm:$0xff]
  %v9577 = vld [vmem:[%s9561 + $0x78] sm:$0xff]
  %9578 = vmatprep.subr.mxu0 0.0
  %9579 = vmatpush1.msra.mxu0 %v9577
  %9580 = vmatprep.subr.mxu0 0.0
  %9581 = vmatpush1.msra.mxu0 %v9576
  %9582 = vmatprep.subr.mxu0 0.0
  %9583 = vmatpush1.msra.mxu0 %v9575
  %9584 = vmatprep.subr.mxu0 0.0
  %9585 = vmatpush1.msra.mxu0 %v9574
  %9586 = vmatprep.subr.mxu0 0.0
  %9587 = vmatpush1.msra.mxu0 %v9573
  %9588 = vmatprep.subr.mxu0 0.0
  %9589 = vmatpush1.msra.mxu0 %v9572
  %9590 = vmatprep.subr.mxu0 0.0
  %9591 = vmatpush1.msra.mxu0 %v9571
  %9592 = vmatprep.subr.mxu0 0.0
  %9593 = vmatpush1.msra.mxu0 %v9570
  %9594 = vmatprep.subr.mxu0 0.0
  %9595 = vmatpush1.msra.mxu0 %v9569
  %9596 = vmatprep.subr.mxu0 0.0
  %9597 = vmatpush1.msra.mxu0 %v9568
  %9598 = vmatprep.subr.mxu0 0.0
  %9599 = vmatpush1.msra.mxu0 %v9567
  %9600 = vmatprep.subr.mxu0 0.0
  %9601 = vmatpush1.msra.mxu0 %v9566
  %9602 = vmatprep.subr.mxu0 0.0
  %9603 = vmatpush1.msra.mxu0 %v9565
  %9604 = vmatprep.subr.mxu0 0.0
  %9605 = vmatpush1.msra.mxu0 %v9564
  %9606 = vmatprep.subr.mxu0 0.0
  %9607 = vmatpush1.msra.mxu0 %v9563
  %9608 = vmatprep.subr.mxu0 0.0
  %9609 = vmatpush1.msra.mxu0 %v9562
  %9610 = vmatprep.subr.mxu0 0.0
  %9611 = vmatpush2.msra.mxu0 0.0
  %9612 = vmatprep.subr.mxu0 0.0
  %9613 = vmatpush2.msra.mxu0 0.0
  %9614 = vmatprep.subr.mxu0 0.0
  %9615 = vmatpush2.msra.mxu0 0.0
  %9616 = vmatprep.subr.mxu0 0.0
  %9617 = vmatpush2.msra.mxu0 0.0
  %9618 = vmatprep.subr.mxu0 0.0
  %9619 = vmatpush2.msra.mxu0 0.0
  %9620 = vmatprep.subr.mxu0 0.0
  %9621 = vmatpush2.msra.mxu0 0.0
  %9622 = vmatprep.subr.mxu0 0.0
  %9623 = vmatpush2.msra.mxu0 0.0
  %9624 = vmatprep.subr.mxu0 0.0
  %9625 = vmatpush2.msra.mxu0 0.0
  %9626 = vmatprep.subr.mxu0 0.0
  %9627 = vmatpush2.msra.mxu0 0.0
  %9628 = vmatprep.subr.mxu0 0.0
  %9629 = vmatpush2.msra.mxu0 0.0
  %9630 = vmatprep.subr.mxu0 0.0
  %9631 = vmatpush2.msra.mxu0 0.0
  %9632 = vmatprep.subr.mxu0 0.0
  %9633 = vmatpush2.msra.mxu0 0.0
  %9634 = vmatprep.subr.mxu0 0.0
  %9635 = vmatpush2.msra.mxu0 0.0
  %9636 = vmatprep.subr.mxu0 0.0
  %9637 = vmatpush2.msra.mxu0 0.0
  %9638 = vmatprep.subr.mxu0 0.0
  %9639 = vmatpush2.msra.mxu0 0.0
  %9640 = vmatprep.subr.mxu0 0.0
  %9641 = vmatpush2.msra.mxu0 0.0
  %9642 = vmatprep.mubr.f32.mxu0 0.0
  %9643 = vmatmul.mubr.f32.gmra.mxu0 %v9497
  %v9644 = vpop.f32.mrf.mxu0
  %v9645 = vadd.f32 0.0, %v9644
  %v9646 = vpop.f32.mrf.mxu0
  %9647 = vmatprep.mubr.f32.mxu0 0.0
  %9648 = vmatmul.mubr.f32.gmra.mxu0 %v9498
  %v9649 = vpop.f32.mrf.mxu0
  %v9650 = vadd.f32 0.0, %v9649
  %v9651 = vpop.f32.mrf.mxu0
  %9652 = vmatprep.mubr.f32.mxu0 0.0
  %9653 = vmatmul.mubr.f32.gmra.mxu0 %v9499
  %v9654 = vpop.f32.mrf.mxu0
  %v9655 = vadd.f32 0.0, %v9654
  %v9656 = vpop.f32.mrf.mxu0
  %9657 = vmatprep.mubr.f32.mxu0 0.0
  %9658 = vmatmul.mubr.f32.gmra.mxu0 %v9500
  %v9659 = vpop.f32.mrf.mxu0
  %v9660 = vadd.f32 0.0, %v9659
  %v9661 = vpop.f32.mrf.mxu0
  %9662 = vmatprep.mubr.f32.mxu0 0.0
  %9663 = vmatmul.mubr.f32.gmra.mxu0 %v9501
  %v9664 = vpop.f32.mrf.mxu0
  %v9665 = vadd.f32 0.0, %v9664
  %v9666 = vpop.f32.mrf.mxu0
  %9667 = vmatprep.mubr.f32.mxu0 0.0
  %9668 = vmatmul.mubr.f32.gmra.mxu0 %v9502
  %v9669 = vpop.f32.mrf.mxu0
  %v9670 = vadd.f32 0.0, %v9669
  %v9671 = vpop.f32.mrf.mxu0
  %9672 = vmatprep.mubr.f32.mxu0 0.0
  %9673 = vmatmul.mubr.f32.gmra.mxu0 %v9503
  %v9674 = vpop.f32.mrf.mxu0
  %v9675 = vadd.f32 0.0, %v9674
  %v9676 = vpop.f32.mrf.mxu0
  %9677 = vmatprep.mubr.f32.mxu0 0.0
  %9678 = vmatmul.mubr.f32.gmra.mxu0 %v9504
  %v9679 = vpop.f32.mrf.mxu0
  %v9680 = vadd.f32 0.0, %v9679
  %v9681 = vpop.f32.mrf.mxu0
  %9682 = vmatprep.mubr.f32.mxu0 0.0
  %9683 = vmatmul.mubr.f32.gmra.mxu0 %v9505
  %v9684 = vpop.f32.mrf.mxu0
  %v9685 = vadd.f32 0.0, %v9684
  %v9686 = vpop.f32.mrf.mxu0
  %9687 = vmatprep.mubr.f32.mxu0 0.0
  %9688 = vmatmul.mubr.f32.gmra.mxu0 %v9506
  %v9689 = vpop.f32.mrf.mxu0
  %v9690 = vadd.f32 0.0, %v9689
  %v9691 = vpop.f32.mrf.mxu0
  %9692 = vmatprep.mubr.f32.mxu0 0.0
  %9693 = vmatmul.mubr.f32.gmra.mxu0 %v9507
  %v9694 = vpop.f32.mrf.mxu0
  %v9695 = vadd.f32 0.0, %v9694
  %v9696 = vpop.f32.mrf.mxu0
  %9697 = vmatprep.mubr.f32.mxu0 0.0
  %9698 = vmatmul.mubr.f32.gmra.mxu0 %v9508
  %v9699 = vpop.f32.mrf.mxu0
  %v9700 = vadd.f32 0.0, %v9699
  %v9701 = vpop.f32.mrf.mxu0
  %9702 = vmatprep.mubr.f32.mxu0 0.0
  %9703 = vmatmul.mubr.f32.gmra.mxu0 %v9509
  %v9704 = vpop.f32.mrf.mxu0
  %v9705 = vadd.f32 0.0, %v9704
  %v9706 = vpop.f32.mrf.mxu0
  %9707 = vmatprep.mubr.f32.mxu0 0.0
  %9708 = vmatmul.mubr.f32.gmra.mxu0 %v9510
  %v9709 = vpop.f32.mrf.mxu0
  %v9710 = vadd.f32 0.0, %v9709
  %v9711 = vpop.f32.mrf.mxu0
  %9712 = vmatprep.mubr.f32.mxu0 0.0
  %9713 = vmatmul.mubr.f32.gmra.mxu0 %v9511
  %v9714 = vpop.f32.mrf.mxu0
  %v9715 = vadd.f32 0.0, %v9714
  %v9716 = vpop.f32.mrf.mxu0
  %9717 = vmatprep.mubr.f32.mxu0 0.0
  %9718 = vmatmul.mubr.f32.gmra.mxu0 %v9512
  %v9719 = vpop.f32.mrf.mxu0
  %v9720 = vadd.f32 0.0, %v9719
  %v9721 = vpop.f32.mrf.mxu0
  %9722 = vmatprep.mubr.f32.mxu0 0.0
  %9723 = vmatmul.mubr.f32.gmra.mxu0 %v9513
  %v9724 = vpop.f32.mrf.mxu0
  %v9725 = vadd.f32 0.0, %v9724
  %v9726 = vpop.f32.mrf.mxu0
  %9727 = vmatprep.mubr.f32.mxu0 0.0
  %9728 = vmatmul.mubr.f32.gmra.mxu0 %v9514
  %v9729 = vpop.f32.mrf.mxu0
  %v9730 = vadd.f32 0.0, %v9729
  %v9731 = vpop.f32.mrf.mxu0
  %9732 = vmatprep.mubr.f32.mxu0 0.0
  %9733 = vmatmul.mubr.f32.gmra.mxu0 %v9515
  %v9734 = vpop.f32.mrf.mxu0
  %v9735 = vadd.f32 0.0, %v9734
  %v9736 = vpop.f32.mrf.mxu0
  %9737 = vmatprep.mubr.f32.mxu0 0.0
  %9738 = vmatmul.mubr.f32.gmra.mxu0 %v9516
  %v9739 = vpop.f32.mrf.mxu0
  %v9740 = vadd.f32 0.0, %v9739
  %v9741 = vpop.f32.mrf.mxu0
  %9742 = vmatprep.mubr.f32.mxu0 0.0
  %9743 = vmatmul.mubr.f32.gmra.mxu0 %v9517
  %v9744 = vpop.f32.mrf.mxu0
  %v9745 = vadd.f32 0.0, %v9744
  %v9746 = vpop.f32.mrf.mxu0
  %9747 = vmatprep.mubr.f32.mxu0 0.0
  %9748 = vmatmul.mubr.f32.gmra.mxu0 %v9518
  %v9749 = vpop.f32.mrf.mxu0
  %v9750 = vadd.f32 0.0, %v9749
  %v9751 = vpop.f32.mrf.mxu0
  %9752 = vmatprep.mubr.f32.mxu0 0.0
  %9753 = vmatmul.mubr.f32.gmra.mxu0 %v9519
  %v9754 = vpop.f32.mrf.mxu0
  %v9755 = vadd.f32 0.0, %v9754
  %v9756 = vpop.f32.mrf.mxu0
  %9757 = vmatprep.mubr.f32.mxu0 0.0
  %9758 = vmatmul.mubr.f32.gmra.mxu0 %v9520
  %v9759 = vpop.f32.mrf.mxu0
  %v9760 = vadd.f32 0.0, %v9759
  %v9761 = vpop.f32.mrf.mxu0
  %9762 = vmatprep.mubr.f32.mxu0 0.0
  %9763 = vmatmul.mubr.f32.gmra.mxu0 %v9521
  %v9764 = vpop.f32.mrf.mxu0
  %v9765 = vadd.f32 0.0, %v9764
  %v9766 = vpop.f32.mrf.mxu0
  %9767 = vmatprep.mubr.f32.mxu0 0.0
  %9768 = vmatmul.mubr.f32.gmra.mxu0 %v9522
  %v9769 = vpop.f32.mrf.mxu0
  %v9770 = vadd.f32 0.0, %v9769
  %v9771 = vpop.f32.mrf.mxu0
  %9772 = vmatprep.mubr.f32.mxu0 0.0
  %9773 = vmatmul.mubr.f32.gmra.mxu0 %v9523
  %v9774 = vpop.f32.mrf.mxu0
  %v9775 = vadd.f32 0.0, %v9774
  %v9776 = vpop.f32.mrf.mxu0
  %9777 = vmatprep.mubr.f32.mxu0 0.0
  %9778 = vmatmul.mubr.f32.gmra.mxu0 %v9524
  %v9779 = vpop.f32.mrf.mxu0
  %v9780 = vadd.f32 0.0, %v9779
  %v9781 = vpop.f32.mrf.mxu0
  %9782 = vmatprep.mubr.f32.mxu0 0.0
  %9783 = vmatmul.mubr.f32.gmra.mxu0 %v9525
  %v9784 = vpop.f32.mrf.mxu0
  %v9785 = vadd.f32 0.0, %v9784
  %v9786 = vpop.f32.mrf.mxu0
  %9787 = vmatprep.mubr.f32.mxu0 0.0
  %9788 = vmatmul.mubr.f32.gmra.mxu0 %v9526
  %v9789 = vpop.f32.mrf.mxu0
  %v9790 = vadd.f32 0.0, %v9789
  %v9791 = vpop.f32.mrf.mxu0
  %9792 = vmatprep.mubr.f32.mxu0 0.0
  %9793 = vmatmul.mubr.f32.gmra.mxu0 %v9527
  %v9794 = vpop.f32.mrf.mxu0
  %v9795 = vadd.f32 0.0, %v9794
  %v9796 = vpop.f32.mrf.mxu0
  %9797 = vmatprep.mubr.f32.mxu0 0.0
  %9798 = vmatmul.mubr.f32.gmra.mxu0 %v9528
  %v9799 = vpop.f32.mrf.mxu0
  %v9800 = vadd.f32 0.0, %v9799
  %v9801 = vpop.f32.mrf.mxu0
  %9802 = vmatprep.mubr.f32.mxu0 0.0
  %9803 = vmatmul.mubr.f32.gmra.mxu0 %v9529
  %v9804 = vpop.f32.mrf.mxu0
  %v9805 = vadd.f32 0.0, %v9804
  %v9806 = vpop.f32.mrf.mxu0
  %9807 = vmatprep.mubr.f32.mxu0 0.0
  %9808 = vmatmul.mubr.f32.gmra.mxu0 %v9530
  %v9809 = vpop.f32.mrf.mxu0
  %v9810 = vadd.f32 0.0, %v9809
  %v9811 = vpop.f32.mrf.mxu0
  %9812 = vmatprep.mubr.f32.mxu0 0.0
  %9813 = vmatmul.mubr.f32.gmra.mxu0 %v9531
  %v9814 = vpop.f32.mrf.mxu0
  %v9815 = vadd.f32 0.0, %v9814
  %v9816 = vpop.f32.mrf.mxu0
  %9817 = vmatprep.mubr.f32.mxu0 0.0
  %9818 = vmatmul.mubr.f32.gmra.mxu0 %v9532
  %v9819 = vpop.f32.mrf.mxu0
  %v9820 = vadd.f32 0.0, %v9819
  %v9821 = vpop.f32.mrf.mxu0
  %9822 = vmatprep.mubr.f32.mxu0 0.0
  %9823 = vmatmul.mubr.f32.gmra.mxu0 %v9533
  %v9824 = vpop.f32.mrf.mxu0
  %v9825 = vadd.f32 0.0, %v9824
  %v9826 = vpop.f32.mrf.mxu0
  %9827 = vmatprep.mubr.f32.mxu0 0.0
  %9828 = vmatmul.mubr.f32.gmra.mxu0 %v9534
  %v9829 = vpop.f32.mrf.mxu0
  %v9830 = vadd.f32 0.0, %v9829
  %v9831 = vpop.f32.mrf.mxu0
  %9832 = vmatprep.mubr.f32.mxu0 0.0
  %9833 = vmatmul.mubr.f32.gmra.mxu0 %v9535
  %v9834 = vpop.f32.mrf.mxu0
  %v9835 = vadd.f32 0.0, %v9834
  %v9836 = vpop.f32.mrf.mxu0
  %9837 = vmatprep.mubr.f32.mxu0 0.0
  %9838 = vmatmul.mubr.f32.gmra.mxu0 %v9536
  %v9839 = vpop.f32.mrf.mxu0
  %v9840 = vadd.f32 0.0, %v9839
  %v9841 = vpop.f32.mrf.mxu0
  %9842 = vmatprep.mubr.f32.mxu0 0.0
  %9843 = vmatmul.mubr.f32.gmra.mxu0 %v9537
  %v9844 = vpop.f32.mrf.mxu0
  %v9845 = vadd.f32 0.0, %v9844
  %v9846 = vpop.f32.mrf.mxu0
  %9847 = vmatprep.mubr.f32.mxu0 0.0
  %9848 = vmatmul.mubr.f32.gmra.mxu0 %v9538
  %v9849 = vpop.f32.mrf.mxu0
  %v9850 = vadd.f32 0.0, %v9849
  %v9851 = vpop.f32.mrf.mxu0
  %9852 = vmatprep.mubr.f32.mxu0 0.0
  %9853 = vmatmul.mubr.f32.gmra.mxu0 %v9539
  %v9854 = vpop.f32.mrf.mxu0
  %v9855 = vadd.f32 0.0, %v9854
  %v9856 = vpop.f32.mrf.mxu0
  %9857 = vmatprep.mubr.f32.mxu0 0.0
  %9858 = vmatmul.mubr.f32.gmra.mxu0 %v9540
  %v9859 = vpop.f32.mrf.mxu0
  %v9860 = vadd.f32 0.0, %v9859
  %v9861 = vpop.f32.mrf.mxu0
  %9862 = vmatprep.mubr.f32.mxu0 0.0
  %9863 = vmatmul.mubr.f32.gmra.mxu0 %v9541
  %v9864 = vpop.f32.mrf.mxu0
  %v9865 = vadd.f32 0.0, %v9864
  %v9866 = vpop.f32.mrf.mxu0
  %9867 = vmatprep.mubr.f32.mxu0 0.0
  %9868 = vmatmul.mubr.f32.gmra.mxu0 %v9542
  %v9869 = vpop.f32.mrf.mxu0
  %v9870 = vadd.f32 0.0, %v9869
  %v9871 = vpop.f32.mrf.mxu0
  %9872 = vmatprep.mubr.f32.mxu0 0.0
  %9873 = vmatmul.mubr.f32.gmra.mxu0 %v9543
  %v9874 = vpop.f32.mrf.mxu0
  %v9875 = vadd.f32 0.0, %v9874
  %v9876 = vpop.f32.mrf.mxu0
  %9877 = vmatprep.mubr.f32.mxu0 0.0
  %9878 = vmatmul.mubr.f32.gmra.mxu0 %v9544
  %v9879 = vpop.f32.mrf.mxu0
  %v9880 = vadd.f32 0.0, %v9879
  %v9881 = vpop.f32.mrf.mxu0
  %9882 = vmatprep.mubr.f32.mxu0 0.0
  %9883 = vmatmul.mubr.f32.gmra.mxu0 %v9545
  %v9884 = vpop.f32.mrf.mxu0
  %v9885 = vadd.f32 0.0, %v9884
  %v9886 = vpop.f32.mrf.mxu0
  %9887 = vmatprep.mubr.f32.mxu0 0.0
  %9888 = vmatmul.mubr.f32.gmra.mxu0 %v9546
  %v9889 = vpop.f32.mrf.mxu0
  %v9890 = vadd.f32 0.0, %v9889
  %v9891 = vpop.f32.mrf.mxu0
  %9892 = vmatprep.mubr.f32.mxu0 0.0
  %9893 = vmatmul.mubr.f32.gmra.mxu0 %v9547
  %v9894 = vpop.f32.mrf.mxu0
  %v9895 = vadd.f32 0.0, %v9894
  %v9896 = vpop.f32.mrf.mxu0
  %9897 = vmatprep.mubr.f32.mxu0 0.0
  %9898 = vmatmul.mubr.f32.gmra.mxu0 %v9548
  %v9899 = vpop.f32.mrf.mxu0
  %v9900 = vadd.f32 0.0, %v9899
  %v9901 = vpop.f32.mrf.mxu0
  %9902 = vmatprep.mubr.f32.mxu0 0.0
  %9903 = vmatmul.mubr.f32.gmra.mxu0 %v9549
  %v9904 = vpop.f32.mrf.mxu0
  %v9905 = vadd.f32 0.0, %v9904
  %v9906 = vpop.f32.mrf.mxu0
  %9907 = vmatprep.mubr.f32.mxu0 0.0
  %9908 = vmatmul.mubr.f32.gmra.mxu0 %v9550
  %v9909 = vpop.f32.mrf.mxu0
  %v9910 = vadd.f32 0.0, %v9909
  %v9911 = vpop.f32.mrf.mxu0
  %9912 = vmatprep.mubr.f32.mxu0 0.0
  %9913 = vmatmul.mubr.f32.gmra.mxu0 %v9551
  %v9914 = vpop.f32.mrf.mxu0
  %v9915 = vadd.f32 0.0, %v9914
  %v9916 = vpop.f32.mrf.mxu0
  %9917 = vmatprep.mubr.f32.mxu0 0.0
  %9918 = vmatmul.mubr.f32.gmra.mxu0 %v9552
  %v9919 = vpop.f32.mrf.mxu0
  %v9920 = vadd.f32 0.0, %v9919
  %v9921 = vpop.f32.mrf.mxu0
  %9922 = vmatprep.mubr.f32.mxu0 0.0
  %9923 = vmatmul.mubr.f32.gmra.mxu0 %v9553
  %v9924 = vpop.f32.mrf.mxu0
  %v9925 = vadd.f32 0.0, %v9924
  %v9926 = vpop.f32.mrf.mxu0
  %9927 = vmatprep.mubr.f32.mxu0 0.0
  %9928 = vmatmul.mubr.f32.gmra.mxu0 %v9554
  %v9929 = vpop.f32.mrf.mxu0
  %v9930 = vadd.f32 0.0, %v9929
  %v9931 = vpop.f32.mrf.mxu0
  %9932 = vmatprep.mubr.f32.mxu0 0.0
  %9933 = vmatmul.mubr.f32.gmra.mxu0 %v9555
  %v9934 = vpop.f32.mrf.mxu0
  %v9935 = vadd.f32 0.0, %v9934
  %v9936 = vpop.f32.mrf.mxu0
  %9937 = vmatprep.mubr.f32.mxu0 0.0
  %9938 = vmatmul.mubr.f32.gmra.mxu0 %v9556
  %v9939 = vpop.f32.mrf.mxu0
  %v9940 = vadd.f32 0.0, %v9939
  %v9941 = vpop.f32.mrf.mxu0
  %9942 = vmatprep.mubr.f32.mxu0 0.0
  %9943 = vmatmul.mubr.f32.gmra.mxu0 %v9557
  %v9944 = vpop.f32.mrf.mxu0
  %v9945 = vadd.f32 0.0, %v9944
  %v9946 = vpop.f32.mrf.mxu0
  %9947 = vmatprep.mubr.f32.mxu0 0.0
  %9948 = vmatmul.mubr.f32.gmra.mxu0 %v9558
  %v9949 = vpop.f32.mrf.mxu0
  %v9950 = vadd.f32 0.0, %v9949
  %v9951 = vpop.f32.mrf.mxu0
  %9952 = vmatprep.mubr.f32.mxu0 0.0
  %9953 = vmatmul.mubr.f32.gmra.mxu0 %v9559
  %v9954 = vpop.f32.mrf.mxu0
  %v9955 = vadd.f32 0.0, %v9954
  %v9956 = vpop.f32.mrf.mxu0
  %9957 = vmatprep.mubr.f32.mxu0 0.0
  %9958 = vmatmul.mubr.f32.gmra.mxu0 %v9560
  %v9959 = vpop.f32.mrf.mxu0
  %v9960 = vadd.f32 0.0, %v9959
  %v9961 = vpop.f32.mrf.mxu0
  %9962 = vdwg.mxu0
  %v9963 = vadd.f32 %v9433, %v9645
  %v9964 = vadd.f32 %v9434, %v9650
  %v9965 = vadd.f32 %v9435, %v9655
  %v9966 = vadd.f32 %v9436, %v9660
  %v9967 = vadd.f32 %v9437, %v9665
  %v9968 = vadd.f32 %v9438, %v9670
  %v9969 = vadd.f32 %v9439, %v9675
  %v9970 = vadd.f32 %v9440, %v9680
  %v9971 = vadd.f32 %v9441, %v9685
  %v9972 = vadd.f32 %v9442, %v9690
  %v9973 = vadd.f32 %v9443, %v9695
  %v9974 = vadd.f32 %v9444, %v9700
  %v9975 = vadd.f32 %v9445, %v9705
  %v9976 = vadd.f32 %v9446, %v9710
  %v9977 = vadd.f32 %v9447, %v9715
  %v9978 = vadd.f32 %v9448, %v9720
  %v9979 = vadd.f32 %v9449, %v9725
  %v9980 = vadd.f32 %v9450, %v9730
  %v9981 = vadd.f32 %v9451, %v9735
  %v9982 = vadd.f32 %v9452, %v9740
  %v9983 = vadd.f32 %v9453, %v9745
  %v9984 = vadd.f32 %v9454, %v9750
  %v9985 = vadd.f32 %v9455, %v9755
  %v9986 = vadd.f32 %v9456, %v9760
  %v9987 = vadd.f32 %v9457, %v9765
  %v9988 = vadd.f32 %v9458, %v9770
  %v9989 = vadd.f32 %v9459, %v9775
  %v9990 = vadd.f32 %v9460, %v9780
  %v9991 = vadd.f32 %v9461, %v9785
  %v9992 = vadd.f32 %v9462, %v9790
  %v9993 = vadd.f32 %v9463, %v9795
  %v9994 = vadd.f32 %v9464, %v9800
  %v9995 = vadd.f32 %v9465, %v9805
  %v9996 = vadd.f32 %v9466, %v9810
  %v9997 = vadd.f32 %v9467, %v9815
  %v9998 = vadd.f32 %v9468, %v9820
  %v9999 = vadd.f32 %v9469, %v9825
  %v10000 = vadd.f32 %v9470, %v9830
  %v10001 = vadd.f32 %v9471, %v9835
  %v10002 = vadd.f32 %v9472, %v9840
  %v10003 = vadd.f32 %v9473, %v9845
  %v10004 = vadd.f32 %v9474, %v9850
  %v10005 = vadd.f32 %v9475, %v9855
  %v10006 = vadd.f32 %v9476, %v9860
  %v10007 = vadd.f32 %v9477, %v9865
  %v10008 = vadd.f32 %v9478, %v9870
  %v10009 = vadd.f32 %v9479, %v9875
  %v10010 = vadd.f32 %v9480, %v9880
  %v10011 = vadd.f32 %v9481, %v9885
  %v10012 = vadd.f32 %v9482, %v9890
  %v10013 = vadd.f32 %v9483, %v9895
  %v10014 = vadd.f32 %v9484, %v9900
  %v10015 = vadd.f32 %v9485, %v9905
  %v10016 = vadd.f32 %v9486, %v9910
  %v10017 = vadd.f32 %v9487, %v9915
  %v10018 = vadd.f32 %v9488, %v9920
  %v10019 = vadd.f32 %v9489, %v9925
  %v10020 = vadd.f32 %v9490, %v9930
  %v10021 = vadd.f32 %v9491, %v9935
  %v10022 = vadd.f32 %v9492, %v9940
  %v10023 = vadd.f32 %v9493, %v9945
  %v10024 = vadd.f32 %v9494, %v9950
  %v10025 = vadd.f32 %v9495, %v9955
  %v10026 = vadd.f32 %v9496, %v9960
  %v10027 = vld [vmem:[%s5] sm:$0x1]
  %v10028 = vld [vmem:[%s6] sm:$0x1]
  %v10029 = vadd.f32 %v9963, %v9964
  %v10030 = vadd.f32 %v10029, %v9965
  %v10031 = vadd.f32 %v10030, %v9966
  %v10032 = vadd.f32 %v10031, %v9967
  %v10033 = vadd.f32 %v10032, %v9968
  %v10034 = vadd.f32 %v10033, %v9969
  %v10035 = vadd.f32 %v10034, %v9970
  %v10036 = vadd.f32 %v10035, %v9971
  %v10037 = vadd.f32 %v10036, %v9972
  %v10038 = vadd.f32 %v10037, %v9973
  %v10039 = vadd.f32 %v10038, %v9974
  %v10040 = vadd.f32 %v10039, %v9975
  %v10041 = vadd.f32 %v10040, %v9976
  %v10042 = vadd.f32 %v10041, %v9977
  %v10043 = vadd.f32 %v10042, %v9978
  %v10044 = vadd.f32 %v10043, %v9979
  %v10045 = vadd.f32 %v10044, %v9980
  %v10046 = vadd.f32 %v10045, %v9981
  %v10047 = vadd.f32 %v10046, %v9982
  %v10048 = vadd.f32 %v10047, %v9983
  %v10049 = vadd.f32 %v10048, %v9984
  %v10050 = vadd.f32 %v10049, %v9985
  %v10051 = vadd.f32 %v10050, %v9986
  %v10052 = vadd.f32 %v10051, %v9987
  %v10053 = vadd.f32 %v10052, %v9988
  %v10054 = vadd.f32 %v10053, %v9989
  %v10055 = vadd.f32 %v10054, %v9990
  %v10056 = vadd.f32 %v10055, %v9991
  %v10057 = vadd.f32 %v10056, %v9992
  %v10058 = vadd.f32 %v10057, %v9993
  %v10059 = vadd.f32 %v10058, %v9994
  %v10060 = vadd.f32 %v10059, %v9995
  %v10061 = vadd.f32 %v10060, %v9996
  %v10062 = vadd.f32 %v10061, %v9997
  %v10063 = vadd.f32 %v10062, %v9998
  %v10064 = vadd.f32 %v10063, %v9999
  %v10065 = vadd.f32 %v10064, %v10000
  %v10066 = vadd.f32 %v10065, %v10001
  %v10067 = vadd.f32 %v10066, %v10002
  %v10068 = vadd.f32 %v10067, %v10003
  %v10069 = vadd.f32 %v10068, %v10004
  %v10070 = vadd.f32 %v10069, %v10005
  %v10071 = vadd.f32 %v10070, %v10006
  %v10072 = vadd.f32 %v10071, %v10007
  %v10073 = vadd.f32 %v10072, %v10008
  %v10074 = vadd.f32 %v10073, %v10009
  %v10075 = vadd.f32 %v10074, %v10010
  %v10076 = vadd.f32 %v10075, %v10011
  %v10077 = vadd.f32 %v10076, %v10012
  %v10078 = vadd.f32 %v10077, %v10013
  %v10079 = vadd.f32 %v10078, %v10014
  %v10080 = vadd.f32 %v10079, %v10015
  %v10081 = vadd.f32 %v10080, %v10016
  %v10082 = vadd.f32 %v10081, %v10017
  %v10083 = vadd.f32 %v10082, %v10018
  %v10084 = vadd.f32 %v10083, %v10019
  %v10085 = vadd.f32 %v10084, %v10020
  %v10086 = vadd.f32 %v10085, %v10021
  %v10087 = vadd.f32 %v10086, %v10022
  %v10088 = vadd.f32 %v10087, %v10023
  %v10089 = vadd.f32 %v10088, %v10024
  %v10090 = vadd.f32 %v10089, %v10025
  %v10091 = vadd.f32 %v10090, %v10026
  %v10092 = vrot.slane %v10091, 4
  %v10093 = vadd.f32 %v10091, %v10092
  %v10094 = vrot.slane %v10093, 2
  %v10095 = vadd.f32 %v10093, %v10094
  %v10096 = vrot.slane %v10095, 1
  %v10097 = vadd.f32 %v10095, %v10096
  %v10098 = vmul.f32 %v10097, 0.001953125
  %v10099 = vmul.f32 %v9963, %v9963
  %v10100 = vmul.f32 %v9964, %v9964
  %v10101 = vmul.f32 %v9965, %v9965
  %v10102 = vmul.f32 %v9966, %v9966
  %v10103 = vmul.f32 %v9967, %v9967
  %v10104 = vmul.f32 %v9968, %v9968
  %v10105 = vmul.f32 %v9969, %v9969
  %v10106 = vmul.f32 %v9970, %v9970
  %v10107 = vmul.f32 %v9971, %v9971
  %v10108 = vmul.f32 %v9972, %v9972
  %v10109 = vmul.f32 %v9973, %v9973
  %v10110 = vmul.f32 %v9974, %v9974
  %v10111 = vmul.f32 %v9975, %v9975
  %v10112 = vmul.f32 %v9976, %v9976
  %v10113 = vmul.f32 %v9977, %v9977
  %v10114 = vmul.f32 %v9978, %v9978
  %v10115 = vmul.f32 %v9979, %v9979
  %v10116 = vmul.f32 %v9980, %v9980
  %v10117 = vmul.f32 %v9981, %v9981
  %v10118 = vmul.f32 %v9982, %v9982
  %v10119 = vmul.f32 %v9983, %v9983
  %v10120 = vmul.f32 %v9984, %v9984
  %v10121 = vmul.f32 %v9985, %v9985
  %v10122 = vmul.f32 %v9986, %v9986
  %v10123 = vmul.f32 %v9987, %v9987
  %v10124 = vmul.f32 %v9988, %v9988
  %v10125 = vmul.f32 %v9989, %v9989
  %v10126 = vmul.f32 %v9990, %v9990
  %v10127 = vmul.f32 %v9991, %v9991
  %v10128 = vmul.f32 %v9992, %v9992
  %v10129 = vmul.f32 %v9993, %v9993
  %v10130 = vmul.f32 %v9994, %v9994
  %v10131 = vmul.f32 %v9995, %v9995
  %v10132 = vmul.f32 %v9996, %v9996
  %v10133 = vmul.f32 %v9997, %v9997
  %v10134 = vmul.f32 %v9998, %v9998
  %v10135 = vmul.f32 %v9999, %v9999
  %v10136 = vmul.f32 %v10000, %v10000
  %v10137 = vmul.f32 %v10001, %v10001
  %v10138 = vmul.f32 %v10002, %v10002
  %v10139 = vmul.f32 %v10003, %v10003
  %v10140 = vmul.f32 %v10004, %v10004
  %v10141 = vmul.f32 %v10005, %v10005
  %v10142 = vmul.f32 %v10006, %v10006
  %v10143 = vmul.f32 %v10007, %v10007
  %v10144 = vmul.f32 %v10008, %v10008
  %v10145 = vmul.f32 %v10009, %v10009
  %v10146 = vmul.f32 %v10010, %v10010
  %v10147 = vmul.f32 %v10011, %v10011
  %v10148 = vmul.f32 %v10012, %v10012
  %v10149 = vmul.f32 %v10013, %v10013
  %v10150 = vmul.f32 %v10014, %v10014
  %v10151 = vmul.f32 %v10015, %v10015
  %v10152 = vmul.f32 %v10016, %v10016
  %v10153 = vmul.f32 %v10017, %v10017
  %v10154 = vmul.f32 %v10018, %v10018
  %v10155 = vmul.f32 %v10019, %v10019
  %v10156 = vmul.f32 %v10020, %v10020
  %v10157 = vmul.f32 %v10021, %v10021
  %v10158 = vmul.f32 %v10022, %v10022
  %v10159 = vmul.f32 %v10023, %v10023
  %v10160 = vmul.f32 %v10024, %v10024
  %v10161 = vmul.f32 %v10025, %v10025
  %v10162 = vmul.f32 %v10026, %v10026
  %v10163 = vadd.f32 %v10099, %v10100
  %v10164 = vadd.f32 %v10163, %v10101
  %v10165 = vadd.f32 %v10164, %v10102
  %v10166 = vadd.f32 %v10165, %v10103
  %v10167 = vadd.f32 %v10166, %v10104
  %v10168 = vadd.f32 %v10167, %v10105
  %v10169 = vadd.f32 %v10168, %v10106
  %v10170 = vadd.f32 %v10169, %v10107
  %v10171 = vadd.f32 %v10170, %v10108
  %v10172 = vadd.f32 %v10171, %v10109
  %v10173 = vadd.f32 %v10172, %v10110
  %v10174 = vadd.f32 %v10173, %v10111
  %v10175 = vadd.f32 %v10174, %v10112
  %v10176 = vadd.f32 %v10175, %v10113
  %v10177 = vadd.f32 %v10176, %v10114
  %v10178 = vadd.f32 %v10177, %v10115
  %v10179 = vadd.f32 %v10178, %v10116
  %v10180 = vadd.f32 %v10179, %v10117
  %v10181 = vadd.f32 %v10180, %v10118
  %v10182 = vadd.f32 %v10181, %v10119
  %v10183 = vadd.f32 %v10182, %v10120
  %v10184 = vadd.f32 %v10183, %v10121
  %v10185 = vadd.f32 %v10184, %v10122
  %v10186 = vadd.f32 %v10185, %v10123
  %v10187 = vadd.f32 %v10186, %v10124
  %v10188 = vadd.f32 %v10187, %v10125
  %v10189 = vadd.f32 %v10188, %v10126
  %v10190 = vadd.f32 %v10189, %v10127
  %v10191 = vadd.f32 %v10190, %v10128
  %v10192 = vadd.f32 %v10191, %v10129
  %v10193 = vadd.f32 %v10192, %v10130
  %v10194 = vadd.f32 %v10193, %v10131
  %v10195 = vadd.f32 %v10194, %v10132
  %v10196 = vadd.f32 %v10195, %v10133
  %v10197 = vadd.f32 %v10196, %v10134
  %v10198 = vadd.f32 %v10197, %v10135
  %v10199 = vadd.f32 %v10198, %v10136
  %v10200 = vadd.f32 %v10199, %v10137
  %v10201 = vadd.f32 %v10200, %v10138
  %v10202 = vadd.f32 %v10201, %v10139
  %v10203 = vadd.f32 %v10202, %v10140
  %v10204 = vadd.f32 %v10203, %v10141
  %v10205 = vadd.f32 %v10204, %v10142
  %v10206 = vadd.f32 %v10205, %v10143
  %v10207 = vadd.f32 %v10206, %v10144
  %v10208 = vadd.f32 %v10207, %v10145
  %v10209 = vadd.f32 %v10208, %v10146
  %v10210 = vadd.f32 %v10209, %v10147
  %v10211 = vadd.f32 %v10210, %v10148
  %v10212 = vadd.f32 %v10211, %v10149
  %v10213 = vadd.f32 %v10212, %v10150
  %v10214 = vadd.f32 %v10213, %v10151
  %v10215 = vadd.f32 %v10214, %v10152
  %v10216 = vadd.f32 %v10215, %v10153
  %v10217 = vadd.f32 %v10216, %v10154
  %v10218 = vadd.f32 %v10217, %v10155
  %v10219 = vadd.f32 %v10218, %v10156
  %v10220 = vadd.f32 %v10219, %v10157
  %v10221 = vadd.f32 %v10220, %v10158
  %v10222 = vadd.f32 %v10221, %v10159
  %v10223 = vadd.f32 %v10222, %v10160
  %v10224 = vadd.f32 %v10223, %v10161
  %v10225 = vadd.f32 %v10224, %v10162
  %v10226 = vrot.slane %v10225, 4
  %v10227 = vadd.f32 %v10225, %v10226
  %v10228 = vrot.slane %v10227, 2
  %v10229 = vadd.f32 %v10227, %v10228
  %v10230 = vrot.slane %v10229, 1
  %v10231 = vadd.f32 %v10229, %v10230
  %v10232 = vmul.f32 %v10231, 0.001953125
  %v10233 = vmul.f32 %v10098, %v10098
  %v10234 = vsub.f32 %v10232, %v10233
  %v10235 = vmax.f32 %v10234, 0.0
  %v10236 = vsub.f32 %v9963, %v10098
  %v10237 = vsub.f32 %v9964, %v10098
  %v10238 = vsub.f32 %v9965, %v10098
  %v10239 = vsub.f32 %v9966, %v10098
  %v10240 = vsub.f32 %v9967, %v10098
  %v10241 = vsub.f32 %v9968, %v10098
  %v10242 = vsub.f32 %v9969, %v10098
  %v10243 = vsub.f32 %v9970, %v10098
  %v10244 = vsub.f32 %v9971, %v10098
  %v10245 = vsub.f32 %v9972, %v10098
  %v10246 = vsub.f32 %v9973, %v10098
  %v10247 = vsub.f32 %v9974, %v10098
  %v10248 = vsub.f32 %v9975, %v10098
  %v10249 = vsub.f32 %v9976, %v10098
  %v10250 = vsub.f32 %v9977, %v10098
  %v10251 = vsub.f32 %v9978, %v10098
  %v10252 = vsub.f32 %v9979, %v10098
  %v10253 = vsub.f32 %v9980, %v10098
  %v10254 = vsub.f32 %v9981, %v10098
  %v10255 = vsub.f32 %v9982, %v10098
  %v10256 = vsub.f32 %v9983, %v10098
  %v10257 = vsub.f32 %v9984, %v10098
  %v10258 = vsub.f32 %v9985, %v10098
  %v10259 = vsub.f32 %v9986, %v10098
  %v10260 = vsub.f32 %v9987, %v10098
  %v10261 = vsub.f32 %v9988, %v10098
  %v10262 = vsub.f32 %v9989, %v10098
  %v10263 = vsub.f32 %v9990, %v10098
  %v10264 = vsub.f32 %v9991, %v10098
  %v10265 = vsub.f32 %v9992, %v10098
  %v10266 = vsub.f32 %v9993, %v10098
  %v10267 = vsub.f32 %v9994, %v10098
  %v10268 = vsub.f32 %v9995, %v10098
  %v10269 = vsub.f32 %v9996, %v10098
  %v10270 = vsub.f32 %v9997, %v10098
  %v10271 = vsub.f32 %v9998, %v10098
  %v10272 = vsub.f32 %v9999, %v10098
  %v10273 = vsub.f32 %v10000, %v10098
  %v10274 = vsub.f32 %v10001, %v10098
  %v10275 = vsub.f32 %v10002, %v10098
  %v10276 = vsub.f32 %v10003, %v10098
  %v10277 = vsub.f32 %v10004, %v10098
  %v10278 = vsub.f32 %v10005, %v10098
  %v10279 = vsub.f32 %v10006, %v10098
  %v10280 = vsub.f32 %v10007, %v10098
  %v10281 = vsub.f32 %v10008, %v10098
  %v10282 = vsub.f32 %v10009, %v10098
  %v10283 = vsub.f32 %v10010, %v10098
  %v10284 = vsub.f32 %v10011, %v10098
  %v10285 = vsub.f32 %v10012, %v10098
  %v10286 = vsub.f32 %v10013, %v10098
  %v10287 = vsub.f32 %v10014, %v10098
  %v10288 = vsub.f32 %v10015, %v10098
  %v10289 = vsub.f32 %v10016, %v10098
  %v10290 = vsub.f32 %v10017, %v10098
  %v10291 = vsub.f32 %v10018, %v10098
  %v10292 = vsub.f32 %v10019, %v10098
  %v10293 = vsub.f32 %v10020, %v10098
  %v10294 = vsub.f32 %v10021, %v10098
  %v10295 = vsub.f32 %v10022, %v10098
  %v10296 = vsub.f32 %v10023, %v10098
  %v10297 = vsub.f32 %v10024, %v10098
  %v10298 = vsub.f32 %v10025, %v10098
  %v10299 = vsub.f32 %v10026, %v10098
  %v10300 = vadd.f32 %v10235, 1e-05
  %v10301 = vrsqrt.pop %v10300
  %v10302 = vmul.f32 %v10236, %v10301
  %v10303 = vmul.f32 %v10237, %v10301
  %v10304 = vmul.f32 %v10238, %v10301
  %v10305 = vmul.f32 %v10239, %v10301
  %v10306 = vmul.f32 %v10240, %v10301
  %v10307 = vmul.f32 %v10241, %v10301
  %v10308 = vmul.f32 %v10242, %v10301
  %v10309 = vmul.f32 %v10243, %v10301
  %v10310 = vmul.f32 %v10244, %v10301
  %v10311 = vmul.f32 %v10245, %v10301
  %v10312 = vmul.f32 %v10246, %v10301
  %v10313 = vmul.f32 %v10247, %v10301
  %v10314 = vmul.f32 %v10248, %v10301
  %v10315 = vmul.f32 %v10249, %v10301
  %v10316 = vmul.f32 %v10250, %v10301
  %v10317 = vmul.f32 %v10251, %v10301
  %v10318 = vmul.f32 %v10252, %v10301
  %v10319 = vmul.f32 %v10253, %v10301
  %v10320 = vmul.f32 %v10254, %v10301
  %v10321 = vmul.f32 %v10255, %v10301
  %v10322 = vmul.f32 %v10256, %v10301
  %v10323 = vmul.f32 %v10257, %v10301
  %v10324 = vmul.f32 %v10258, %v10301
  %v10325 = vmul.f32 %v10259, %v10301
  %v10326 = vmul.f32 %v10260, %v10301
  %v10327 = vmul.f32 %v10261, %v10301
  %v10328 = vmul.f32 %v10262, %v10301
  %v10329 = vmul.f32 %v10263, %v10301
  %v10330 = vmul.f32 %v10264, %v10301
  %v10331 = vmul.f32 %v10265, %v10301
  %v10332 = vmul.f32 %v10266, %v10301
  %v10333 = vmul.f32 %v10267, %v10301
  %v10334 = vmul.f32 %v10268, %v10301
  %v10335 = vmul.f32 %v10269, %v10301
  %v10336 = vmul.f32 %v10270, %v10301
  %v10337 = vmul.f32 %v10271, %v10301
  %v10338 = vmul.f32 %v10272, %v10301
  %v10339 = vmul.f32 %v10273, %v10301
  %v10340 = vmul.f32 %v10274, %v10301
  %v10341 = vmul.f32 %v10275, %v10301
  %v10342 = vmul.f32 %v10276, %v10301
  %v10343 = vmul.f32 %v10277, %v10301
  %v10344 = vmul.f32 %v10278, %v10301
  %v10345 = vmul.f32 %v10279, %v10301
  %v10346 = vmul.f32 %v10280, %v10301
  %v10347 = vmul.f32 %v10281, %v10301
  %v10348 = vmul.f32 %v10282, %v10301
  %v10349 = vmul.f32 %v10283, %v10301
  %v10350 = vmul.f32 %v10284, %v10301
  %v10351 = vmul.f32 %v10285, %v10301
  %v10352 = vmul.f32 %v10286, %v10301
  %v10353 = vmul.f32 %v10287, %v10301
  %v10354 = vmul.f32 %v10288, %v10301
  %v10355 = vmul.f32 %v10289, %v10301
  %v10356 = vmul.f32 %v10290, %v10301
  %v10357 = vmul.f32 %v10291, %v10301
  %v10358 = vmul.f32 %v10292, %v10301
  %v10359 = vmul.f32 %v10293, %v10301
  %v10360 = vmul.f32 %v10294, %v10301
  %v10361 = vmul.f32 %v10295, %v10301
  %v10362 = vmul.f32 %v10296, %v10301
  %v10363 = vmul.f32 %v10297, %v10301
  %v10364 = vmul.f32 %v10298, %v10301
  %v10365 = vmul.f32 %v10299, %v10301
  %v10367 = vlaneseq
  %v10368 = vshrl.u32 %v10367, 7
  %v10369 = vsub.s32 0, %v10368
  %v10370 = vrot.slane %v10027, %v10369
  %v10372 = vmul.f32 %v10302, %v10370
  %v10373 = vmul.f32 %v10303, %v10370
  %v10374 = vmul.f32 %v10304, %v10370
  %v10375 = vmul.f32 %v10305, %v10370
  %v10376 = vmul.f32 %v10306, %v10370
  %v10377 = vmul.f32 %v10307, %v10370
  %v10378 = vmul.f32 %v10308, %v10370
  %v10379 = vmul.f32 %v10309, %v10370
  %v10380 = vmul.f32 %v10310, %v10370
  %v10381 = vmul.f32 %v10311, %v10370
  %v10382 = vmul.f32 %v10312, %v10370
  %v10383 = vmul.f32 %v10313, %v10370
  %v10384 = vmul.f32 %v10314, %v10370
  %v10385 = vmul.f32 %v10315, %v10370
  %v10386 = vmul.f32 %v10316, %v10370
  %v10387 = vmul.f32 %v10317, %v10370
  %v10388 = vmul.f32 %v10318, %v10370
  %v10389 = vmul.f32 %v10319, %v10370
  %v10390 = vmul.f32 %v10320, %v10370
  %v10391 = vmul.f32 %v10321, %v10370
  %v10392 = vmul.f32 %v10322, %v10370
  %v10393 = vmul.f32 %v10323, %v10370
  %v10394 = vmul.f32 %v10324, %v10370
  %v10395 = vmul.f32 %v10325, %v10370
  %v10396 = vmul.f32 %v10326, %v10370
  %v10397 = vmul.f32 %v10327, %v10370
  %v10398 = vmul.f32 %v10328, %v10370
  %v10399 = vmul.f32 %v10329, %v10370
  %v10400 = vmul.f32 %v10330, %v10370
  %v10401 = vmul.f32 %v10331, %v10370
  %v10402 = vmul.f32 %v10332, %v10370
  %v10403 = vmul.f32 %v10333, %v10370
  %v10404 = vmul.f32 %v10334, %v10370
  %v10405 = vmul.f32 %v10335, %v10370
  %v10406 = vmul.f32 %v10336, %v10370
  %v10407 = vmul.f32 %v10337, %v10370
  %v10408 = vmul.f32 %v10338, %v10370
  %v10409 = vmul.f32 %v10339, %v10370
  %v10410 = vmul.f32 %v10340, %v10370
  %v10411 = vmul.f32 %v10341, %v10370
  %v10412 = vmul.f32 %v10342, %v10370
  %v10413 = vmul.f32 %v10343, %v10370
  %v10414 = vmul.f32 %v10344, %v10370
  %v10415 = vmul.f32 %v10345, %v10370
  %v10416 = vmul.f32 %v10346, %v10370
  %v10417 = vmul.f32 %v10347, %v10370
  %v10418 = vmul.f32 %v10348, %v10370
  %v10419 = vmul.f32 %v10349, %v10370
  %v10420 = vmul.f32 %v10350, %v10370
  %v10421 = vmul.f32 %v10351, %v10370
  %v10422 = vmul.f32 %v10352, %v10370
  %v10423 = vmul.f32 %v10353, %v10370
  %v10424 = vmul.f32 %v10354, %v10370
  %v10425 = vmul.f32 %v10355, %v10370
  %v10426 = vmul.f32 %v10356, %v10370
  %v10427 = vmul.f32 %v10357, %v10370
  %v10428 = vmul.f32 %v10358, %v10370
  %v10429 = vmul.f32 %v10359, %v10370
  %v10430 = vmul.f32 %v10360, %v10370
  %v10431 = vmul.f32 %v10361, %v10370
  %v10432 = vmul.f32 %v10362, %v10370
  %v10433 = vmul.f32 %v10363, %v10370
  %v10434 = vmul.f32 %v10364, %v10370
  %v10435 = vmul.f32 %v10365, %v10370
  %v10437 = vlaneseq
  %v10438 = vshrl.u32 %v10437, 7
  %v10439 = vsub.s32 0, %v10438
  %v10440 = vrot.slane %v10028, %v10439
  %v10442 = vadd.f32 %v10372, %v10440
  %v10443 = vadd.f32 %v10373, %v10440
  %v10444 = vadd.f32 %v10374, %v10440
  %v10445 = vadd.f32 %v10375, %v10440
  %v10446 = vadd.f32 %v10376, %v10440
  %v10447 = vadd.f32 %v10377, %v10440
  %v10448 = vadd.f32 %v10378, %v10440
  %v10449 = vadd.f32 %v10379, %v10440
  %v10450 = vadd.f32 %v10380, %v10440
  %v10451 = vadd.f32 %v10381, %v10440
  %v10452 = vadd.f32 %v10382, %v10440
  %v10453 = vadd.f32 %v10383, %v10440
  %v10454 = vadd.f32 %v10384, %v10440
  %v10455 = vadd.f32 %v10385, %v10440
  %v10456 = vadd.f32 %v10386, %v10440
  %v10457 = vadd.f32 %v10387, %v10440
  %v10458 = vadd.f32 %v10388, %v10440
  %v10459 = vadd.f32 %v10389, %v10440
  %v10460 = vadd.f32 %v10390, %v10440
  %v10461 = vadd.f32 %v10391, %v10440
  %v10462 = vadd.f32 %v10392, %v10440
  %v10463 = vadd.f32 %v10393, %v10440
  %v10464 = vadd.f32 %v10394, %v10440
  %v10465 = vadd.f32 %v10395, %v10440
  %v10466 = vadd.f32 %v10396, %v10440
  %v10467 = vadd.f32 %v10397, %v10440
  %v10468 = vadd.f32 %v10398, %v10440
  %v10469 = vadd.f32 %v10399, %v10440
  %v10470 = vadd.f32 %v10400, %v10440
  %v10471 = vadd.f32 %v10401, %v10440
  %v10472 = vadd.f32 %v10402, %v10440
  %v10473 = vadd.f32 %v10403, %v10440
  %v10474 = vadd.f32 %v10404, %v10440
  %v10475 = vadd.f32 %v10405, %v10440
  %v10476 = vadd.f32 %v10406, %v10440
  %v10477 = vadd.f32 %v10407, %v10440
  %v10478 = vadd.f32 %v10408, %v10440
  %v10479 = vadd.f32 %v10409, %v10440
  %v10480 = vadd.f32 %v10410, %v10440
  %v10481 = vadd.f32 %v10411, %v10440
  %v10482 = vadd.f32 %v10412, %v10440
  %v10483 = vadd.f32 %v10413, %v10440
  %v10484 = vadd.f32 %v10414, %v10440
  %v10485 = vadd.f32 %v10415, %v10440
  %v10486 = vadd.f32 %v10416, %v10440
  %v10487 = vadd.f32 %v10417, %v10440
  %v10488 = vadd.f32 %v10418, %v10440
  %v10489 = vadd.f32 %v10419, %v10440
  %v10490 = vadd.f32 %v10420, %v10440
  %v10491 = vadd.f32 %v10421, %v10440
  %v10492 = vadd.f32 %v10422, %v10440
  %v10493 = vadd.f32 %v10423, %v10440
  %v10494 = vadd.f32 %v10424, %v10440
  %v10495 = vadd.f32 %v10425, %v10440
  %v10496 = vadd.f32 %v10426, %v10440
  %v10497 = vadd.f32 %v10427, %v10440
  %v10498 = vadd.f32 %v10428, %v10440
  %v10499 = vadd.f32 %v10429, %v10440
  %v10500 = vadd.f32 %v10430, %v10440
  %v10501 = vadd.f32 %v10431, %v10440
  %v10502 = vadd.f32 %v10432, %v10440
  %v10503 = vadd.f32 %v10433, %v10440
  %v10504 = vadd.f32 %v10434, %v10440
  %v10505 = vadd.f32 %v10435, %v10440
  %v10506 = vld [vmem:[%s1487 + $0x1] sm:$0xff]
  %v10507 = vld [vmem:[%s1487 + $0x9] sm:$0xff]
  %v10508 = vld [vmem:[%s1487 + $0x19] sm:$0xff]
  %v10509 = vld [vmem:[%s1487 + $0x21] sm:$0xff]
  %v10510 = vld [vmem:[%s1487 + $0x31] sm:$0xff]
  %v10511 = vld [vmem:[%s1487 + $0x39] sm:$0xff]
  %v10512 = vld [vmem:[%s1487 + $0x49] sm:$0xff]
  %v10513 = vld [vmem:[%s1487 + $0x51] sm:$0xff]
  %v10514 = vld [vmem:[%s1487 + $0x61] sm:$0xff]
  %v10515 = vld [vmem:[%s1487 + $0x69] sm:$0xff]
  %v10516 = vld [vmem:[%s1487 + $0x79] sm:$0xff]
  %v10517 = vld [vmem:[%s1487 + $0x81] sm:$0xff]
  %v10518 = vld [vmem:[%s1487 + $0x91] sm:$0xff]
  %v10519 = vld [vmem:[%s1487 + $0x99] sm:$0xff]
  %v10520 = vld [vmem:[%s1487 + $0xa9] sm:$0xff]
  %v10521 = vld [vmem:[%s1487 + $0xb1] sm:$0xff]
  %v10522 = vld [vmem:[%s1487 + $0xc1] sm:$0xff]
  %v10523 = vld [vmem:[%s1487 + $0xc9] sm:$0xff]
  %v10524 = vld [vmem:[%s1487 + $0xd9] sm:$0xff]
  %v10525 = vld [vmem:[%s1487 + $0xe1] sm:$0xff]
  %v10526 = vld [vmem:[%s1487 + $0xf1] sm:$0xff]
  %v10527 = vld [vmem:[%s1487 + $0xf9] sm:$0xff]
  %v10528 = vld [vmem:[%s1487 + $0x109] sm:$0xff]
  %v10529 = vld [vmem:[%s1487 + $0x111] sm:$0xff]
  %v10530 = vld [vmem:[%s1487 + $0x121] sm:$0xff]
  %v10531 = vld [vmem:[%s1487 + $0x129] sm:$0xff]
  %v10532 = vld [vmem:[%s1487 + $0x139] sm:$0xff]
  %v10533 = vld [vmem:[%s1487 + $0x141] sm:$0xff]
  %v10534 = vld [vmem:[%s1487 + $0x151] sm:$0xff]
  %v10535 = vld [vmem:[%s1487 + $0x159] sm:$0xff]
  %v10536 = vld [vmem:[%s1487 + $0x169] sm:$0xff]
  %v10537 = vld [vmem:[%s1487 + $0x171] sm:$0xff]
  %v10538 = vld [vmem:[%s1487 + $0x1b1] sm:$0xff]
  %v10539 = vld [vmem:[%s1487 + $0x1b9] sm:$0xff]
  %v10540 = vld [vmem:[%s1487 + $0x1c9] sm:$0xff]
  %v10541 = vld [vmem:[%s1487 + $0x1d1] sm:$0xff]
  %v10542 = vld [vmem:[%s1487 + $0x1e1] sm:$0xff]
  %v10543 = vld [vmem:[%s1487 + $0x1e9] sm:$0xff]
  %v10544 = vld [vmem:[%s1487 + $0x1f9] sm:$0xff]
  %v10545 = vld [vmem:[%s1487 + $0x201] sm:$0xff]
  %v10546 = vld [vmem:[%s1487 + $0x211] sm:$0xff]
  %v10547 = vld [vmem:[%s1487 + $0x219] sm:$0xff]
  %v10548 = vld [vmem:[%s1487 + $0x229] sm:$0xff]
  %v10549 = vld [vmem:[%s1487 + $0x231] sm:$0xff]
  %v10550 = vld [vmem:[%s1487 + $0x241] sm:$0xff]
  %v10551 = vld [vmem:[%s1487 + $0x249] sm:$0xff]
  %v10552 = vld [vmem:[%s1487 + $0x259] sm:$0xff]
  %v10553 = vld [vmem:[%s1487 + $0x261] sm:$0xff]
  %v10554 = vld [vmem:[%s1487 + $0x271] sm:$0xff]
  %v10555 = vld [vmem:[%s1487 + $0x279] sm:$0xff]
  %v10556 = vld [vmem:[%s1487 + $0x289] sm:$0xff]
  %v10557 = vld [vmem:[%s1487 + $0x291] sm:$0xff]
  %v10558 = vld [vmem:[%s1487 + $0x2a1] sm:$0xff]
  %v10559 = vld [vmem:[%s1487 + $0x2a9] sm:$0xff]
  %v10560 = vld [vmem:[%s1487 + $0x2b9] sm:$0xff]
  %v10561 = vld [vmem:[%s1487 + $0x2c1] sm:$0xff]
  %v10562 = vld [vmem:[%s1487 + $0x2d1] sm:$0xff]
  %v10563 = vld [vmem:[%s1487 + $0x2d9] sm:$0xff]
  %v10564 = vld [vmem:[%s1487 + $0x2e9] sm:$0xff]
  %v10565 = vld [vmem:[%s1487 + $0x2f1] sm:$0xff]
  %v10566 = vld [vmem:[%s1487 + $0x301] sm:$0xff]
  %v10567 = vld [vmem:[%s1487 + $0x309] sm:$0xff]
  %v10568 = vld [vmem:[%s1487 + $0x319] sm:$0xff]
  %v10569 = vld [vmem:[%s1487 + $0x321] sm:$0xff]
  %v10570 = vadd.f32 %v10442, %v10506
  %v10571 = vadd.f32 %v10443, %v10507
  %v10572 = vadd.f32 %v10444, %v10508
  %v10573 = vadd.f32 %v10445, %v10509
  %v10574 = vadd.f32 %v10446, %v10510
  %v10575 = vadd.f32 %v10447, %v10511
  %v10576 = vadd.f32 %v10448, %v10512
  %v10577 = vadd.f32 %v10449, %v10513
  %v10578 = vadd.f32 %v10450, %v10514
  %v10579 = vadd.f32 %v10451, %v10515
  %v10580 = vadd.f32 %v10452, %v10516
  %v10581 = vadd.f32 %v10453, %v10517
  %v10582 = vadd.f32 %v10454, %v10518
  %v10583 = vadd.f32 %v10455, %v10519
  %v10584 = vadd.f32 %v10456, %v10520
  %v10585 = vadd.f32 %v10457, %v10521
  %v10586 = vadd.f32 %v10458, %v10522
  %v10587 = vadd.f32 %v10459, %v10523
  %v10588 = vadd.f32 %v10460, %v10524
  %v10589 = vadd.f32 %v10461, %v10525
  %v10590 = vadd.f32 %v10462, %v10526
  %v10591 = vadd.f32 %v10463, %v10527
  %v10592 = vadd.f32 %v10464, %v10528
  %v10593 = vadd.f32 %v10465, %v10529
  %v10594 = vadd.f32 %v10466, %v10530
  %v10595 = vadd.f32 %v10467, %v10531
  %v10596 = vadd.f32 %v10468, %v10532
  %v10597 = vadd.f32 %v10469, %v10533
  %v10598 = vadd.f32 %v10470, %v10534
  %v10599 = vadd.f32 %v10471, %v10535
  %v10600 = vadd.f32 %v10472, %v10536
  %v10601 = vadd.f32 %v10473, %v10537
  %v10602 = vadd.f32 %v10474, %v10538
  %v10603 = vadd.f32 %v10475, %v10539
  %v10604 = vadd.f32 %v10476, %v10540
  %v10605 = vadd.f32 %v10477, %v10541
  %v10606 = vadd.f32 %v10478, %v10542
  %v10607 = vadd.f32 %v10479, %v10543
  %v10608 = vadd.f32 %v10480, %v10544
  %v10609 = vadd.f32 %v10481, %v10545
  %v10610 = vadd.f32 %v10482, %v10546
  %v10611 = vadd.f32 %v10483, %v10547
  %v10612 = vadd.f32 %v10484, %v10548
  %v10613 = vadd.f32 %v10485, %v10549
  %v10614 = vadd.f32 %v10486, %v10550
  %v10615 = vadd.f32 %v10487, %v10551
  %v10616 = vadd.f32 %v10488, %v10552
  %v10617 = vadd.f32 %v10489, %v10553
  %v10618 = vadd.f32 %v10490, %v10554
  %v10619 = vadd.f32 %v10491, %v10555
  %v10620 = vadd.f32 %v10492, %v10556
  %v10621 = vadd.f32 %v10493, %v10557
  %v10622 = vadd.f32 %v10494, %v10558
  %v10623 = vadd.f32 %v10495, %v10559
  %v10624 = vadd.f32 %v10496, %v10560
  %v10625 = vadd.f32 %v10497, %v10561
  %v10626 = vadd.f32 %v10498, %v10562
  %v10627 = vadd.f32 %v10499, %v10563
  %v10628 = vadd.f32 %v10500, %v10564
  %v10629 = vadd.f32 %v10501, %v10565
  %v10630 = vadd.f32 %v10502, %v10566
  %v10631 = vadd.f32 %v10503, %v10567
  %v10632 = vadd.f32 %v10504, %v10568
  %v10633 = vadd.f32 %v10505, %v10569
  %v10634 = vmax.f32 %v10570, 0.0
  %v10635 = vmax.f32 %v10571, 0.0
  %v10636 = vmax.f32 %v10572, 0.0
  %v10637 = vmax.f32 %v10573, 0.0
  %v10638 = vmax.f32 %v10574, 0.0
  %v10639 = vmax.f32 %v10575, 0.0
  %v10640 = vmax.f32 %v10576, 0.0
  %v10641 = vmax.f32 %v10577, 0.0
  %v10642 = vmax.f32 %v10578, 0.0
  %v10643 = vmax.f32 %v10579, 0.0
  %v10644 = vmax.f32 %v10580, 0.0
  %v10645 = vmax.f32 %v10581, 0.0
  %v10646 = vmax.f32 %v10582, 0.0
  %v10647 = vmax.f32 %v10583, 0.0
  %v10648 = vmax.f32 %v10584, 0.0
  %v10649 = vmax.f32 %v10585, 0.0
  %v10650 = vmax.f32 %v10586, 0.0
  %v10651 = vmax.f32 %v10587, 0.0
  %v10652 = vmax.f32 %v10588, 0.0
  %v10653 = vmax.f32 %v10589, 0.0
  %v10654 = vmax.f32 %v10590, 0.0
  %v10655 = vmax.f32 %v10591, 0.0
  %v10656 = vmax.f32 %v10592, 0.0
  %v10657 = vmax.f32 %v10593, 0.0
  %v10658 = vmax.f32 %v10594, 0.0
  %v10659 = vmax.f32 %v10595, 0.0
  %v10660 = vmax.f32 %v10596, 0.0
  %v10661 = vmax.f32 %v10597, 0.0
  %v10662 = vmax.f32 %v10598, 0.0
  %v10663 = vmax.f32 %v10599, 0.0
  %v10664 = vmax.f32 %v10600, 0.0
  %v10665 = vmax.f32 %v10601, 0.0
  %v10666 = vmax.f32 %v10602, 0.0
  %v10667 = vmax.f32 %v10603, 0.0
  %v10668 = vmax.f32 %v10604, 0.0
  %v10669 = vmax.f32 %v10605, 0.0
  %v10670 = vmax.f32 %v10606, 0.0
  %v10671 = vmax.f32 %v10607, 0.0
  %v10672 = vmax.f32 %v10608, 0.0
  %v10673 = vmax.f32 %v10609, 0.0
  %v10674 = vmax.f32 %v10610, 0.0
  %v10675 = vmax.f32 %v10611, 0.0
  %v10676 = vmax.f32 %v10612, 0.0
  %v10677 = vmax.f32 %v10613, 0.0
  %v10678 = vmax.f32 %v10614, 0.0
  %v10679 = vmax.f32 %v10615, 0.0
  %v10680 = vmax.f32 %v10616, 0.0
  %v10681 = vmax.f32 %v10617, 0.0
  %v10682 = vmax.f32 %v10618, 0.0
  %v10683 = vmax.f32 %v10619, 0.0
  %v10684 = vmax.f32 %v10620, 0.0
  %v10685 = vmax.f32 %v10621, 0.0
  %v10686 = vmax.f32 %v10622, 0.0
  %v10687 = vmax.f32 %v10623, 0.0
  %v10688 = vmax.f32 %v10624, 0.0
  %v10689 = vmax.f32 %v10625, 0.0
  %v10690 = vmax.f32 %v10626, 0.0
  %v10691 = vmax.f32 %v10627, 0.0
  %v10692 = vmax.f32 %v10628, 0.0
  %v10693 = vmax.f32 %v10629, 0.0
  %v10694 = vmax.f32 %v10630, 0.0
  %v10695 = vmax.f32 %v10631, 0.0
  %v10696 = vmax.f32 %v10632, 0.0
  %v10697 = vmax.f32 %v10633, 0.0
  %10698 = vst [vmem:[%s7] sm:$0xff] %v10634
  %10699 = vst [vmem:[%s7 + $0x8] sm:$0xff] %v10635
  %10700 = vst [vmem:[%s7 + $0x10] sm:$0xff] %v10636
  %10701 = vst [vmem:[%s7 + $0x18] sm:$0xff] %v10637
  %10702 = vst [vmem:[%s7 + $0x20] sm:$0xff] %v10638
  %10703 = vst [vmem:[%s7 + $0x28] sm:$0xff] %v10639
  %10704 = vst [vmem:[%s7 + $0x30] sm:$0xff] %v10640
  %10705 = vst [vmem:[%s7 + $0x38] sm:$0xff] %v10641
  %10706 = vst [vmem:[%s7 + $0x40] sm:$0xff] %v10642
  %10707 = vst [vmem:[%s7 + $0x48] sm:$0xff] %v10643
  %10708 = vst [vmem:[%s7 + $0x50] sm:$0xff] %v10644
  %10709 = vst [vmem:[%s7 + $0x58] sm:$0xff] %v10645
  %10710 = vst [vmem:[%s7 + $0x60] sm:$0xff] %v10646
  %10711 = vst [vmem:[%s7 + $0x68] sm:$0xff] %v10647
  %10712 = vst [vmem:[%s7 + $0x70] sm:$0xff] %v10648
  %10713 = vst [vmem:[%s7 + $0x78] sm:$0xff] %v10649
  %10714 = vst [vmem:[%s7 + $0x80] sm:$0xff] %v10650
  %10715 = vst [vmem:[%s7 + $0x88] sm:$0xff] %v10651
  %10716 = vst [vmem:[%s7 + $0x90] sm:$0xff] %v10652
  %10717 = vst [vmem:[%s7 + $0x98] sm:$0xff] %v10653
  %10718 = vst [vmem:[%s7 + $0xa0] sm:$0xff] %v10654
  %10719 = vst [vmem:[%s7 + $0xa8] sm:$0xff] %v10655
  %10720 = vst [vmem:[%s7 + $0xb0] sm:$0xff] %v10656
  %10721 = vst [vmem:[%s7 + $0xb8] sm:$0xff] %v10657
  %10722 = vst [vmem:[%s7 + $0xc0] sm:$0xff] %v10658
  %10723 = vst [vmem:[%s7 + $0xc8] sm:$0xff] %v10659
  %10724 = vst [vmem:[%s7 + $0xd0] sm:$0xff] %v10660
  %10725 = vst [vmem:[%s7 + $0xd8] sm:$0xff] %v10661
  %10726 = vst [vmem:[%s7 + $0xe0] sm:$0xff] %v10662
  %10727 = vst [vmem:[%s7 + $0xe8] sm:$0xff] %v10663
  %10728 = vst [vmem:[%s7 + $0xf0] sm:$0xff] %v10664
  %10729 = vst [vmem:[%s7 + $0xf8] sm:$0xff] %v10665
  %10730 = vst [vmem:[%s7 + $0x100] sm:$0xff] %v10666
  %10731 = vst [vmem:[%s7 + $0x108] sm:$0xff] %v10667
  %10732 = vst [vmem:[%s7 + $0x110] sm:$0xff] %v10668
  %10733 = vst [vmem:[%s7 + $0x118] sm:$0xff] %v10669
  %10734 = vst [vmem:[%s7 + $0x120] sm:$0xff] %v10670
  %10735 = vst [vmem:[%s7 + $0x128] sm:$0xff] %v10671
  %10736 = vst [vmem:[%s7 + $0x130] sm:$0xff] %v10672
  %10737 = vst [vmem:[%s7 + $0x138] sm:$0xff] %v10673
  %10738 = vst [vmem:[%s7 + $0x140] sm:$0xff] %v10674
  %10739 = vst [vmem:[%s7 + $0x148] sm:$0xff] %v10675
  %10740 = vst [vmem:[%s7 + $0x150] sm:$0xff] %v10676
  %10741 = vst [vmem:[%s7 + $0x158] sm:$0xff] %v10677
  %10742 = vst [vmem:[%s7 + $0x160] sm:$0xff] %v10678
  %10743 = vst [vmem:[%s7 + $0x168] sm:$0xff] %v10679
  %10744 = vst [vmem:[%s7 + $0x170] sm:$0xff] %v10680
  %10745 = vst [vmem:[%s7 + $0x178] sm:$0xff] %v10681
  %10746 = vst [vmem:[%s7 + $0x180] sm:$0xff] %v10682
  %10747 = vst [vmem:[%s7 + $0x188] sm:$0xff] %v10683
  %10748 = vst [vmem:[%s7 + $0x190] sm:$0xff] %v10684
  %10749 = vst [vmem:[%s7 + $0x198] sm:$0xff] %v10685
  %10750 = vst [vmem:[%s7 + $0x1a0] sm:$0xff] %v10686
  %10751 = vst [vmem:[%s7 + $0x1a8] sm:$0xff] %v10687
  %10752 = vst [vmem:[%s7 + $0x1b0] sm:$0xff] %v10688
  %10753 = vst [vmem:[%s7 + $0x1b8] sm:$0xff] %v10689
  %10754 = vst [vmem:[%s7 + $0x1c0] sm:$0xff] %v10690
  %10755 = vst [vmem:[%s7 + $0x1c8] sm:$0xff] %v10691
  %10756 = vst [vmem:[%s7 + $0x1d0] sm:$0xff] %v10692
  %10757 = vst [vmem:[%s7 + $0x1d8] sm:$0xff] %v10693
  %10758 = vst [vmem:[%s7 + $0x1e0] sm:$0xff] %v10694
  %10759 = vst [vmem:[%s7 + $0x1e8] sm:$0xff] %v10695
  %10760 = vst [vmem:[%s7 + $0x1f0] sm:$0xff] %v10696
  %10761 = vst [vmem:[%s7 + $0x1f8] sm:$0xff] %v10697
  // Predicated region
  $region30: #{basic_block.1} parent=0 // pred_check
    _
  $region31: #{basic_block.1} parent=0 // pred_check_branch
    %10763 = sbr.rel (0) target = $region33
  $region32: #{basic_block.1} parent=0 // pred_region
    _
  $region33: #{basic_block.1} parent=0 // pred_fallthru
    _
  // Predicated region
  $region34: #{basic_block.1} parent=0 // pred_check
    _
  $region35: #{basic_block.1} parent=0 // pred_check_branch
    %10765 = sbr.rel (0) target = $region37
  $region36: #{basic_block.1} parent=0 // pred_region
    _
  $region37: #{basic_block.1} parent=0 // pred_fallthru
    _

</llo_original>
